<compile_context>
chip_gen: v5e
topology: v5e:2x2
jax: 0.10.0
libtpu: 0.0.40
codegen_flags: <defaults>
</compile_context>

<pallas_src>
import jax
import jax.numpy as jnp
from jax import lax
from jax.experimental import pallas as pl
from jax.experimental.pallas import tpu as pltpu


# --------------------------- in-kernel helpers -------------------------------

def _shift_rows(x, dh, fill):
    """y[h] = x[h+dh] if 0 <= h+dh < H else fill.  H is the untiled major dim,
    so the slice + concat are layout-cheap."""
    if dh == 0:
        return x
    H = x.shape[0]
    pad = jnp.full((abs(dh),) + x.shape[1:], fill, x.dtype)
    if dh > 0:
        return jnp.concatenate([x[dh:], pad], axis=0)
    return jnp.concatenate([pad, x[:H + dh]], axis=0)


def _shift_cols(x, dw, w_idx, fill):
    """y[:, w] = x[:, w+dw] if 0 <= w+dw < W else fill.
    Uses an XLU sublane rotation (pltpu.roll) plus a static iota mask instead
    of a sublane-unaligned slice of a padded buffer."""
    if dw == 0:
        return x
    W = x.shape[1]
    rolled = pltpu.roll(x, shift=(-dw) % W, axis=1)
    valid = jnp.logical_and(w_idx >= -dw, w_idx < W - dw)
    return jnp.where(valid, rolled, fill)


def _conv_relu_im2col(x, w_flat, bias, K):
    """KxK stride-1 SAME conv + bias + ReLU as ONE im2col MXU matmul.
    x: (H, W, C) f32; w_flat: (K*K*C, Cout), tap-major (kh, kw, cin); bias (1, Cout)."""
    H, W, C = x.shape
    p = (K - 1) // 2
    w_idx = lax.broadcasted_iota(jnp.int32, (H, W, C), 1)
    taps = []
    for kh in range(K):
        x_h = _shift_rows(x, kh - p, 0.0)
        for kw in range(K):
            taps.append(_shift_cols(x_h, kw - p, w_idx, 0.0))
    cols = jnp.concatenate(taps, axis=-1)                    # (H, W, K*K*C)
    acc = lax.dot_general(cols, w_flat,
                          dimension_numbers=(((2,), (0,)), ((), ())),
                          preferred_element_type=jnp.float32)
    return jnp.maximum(acc + bias, 0.0)


def _maxpool3x3(x):
    """3x3 / stride 1 / pad 1 max pool (pad value -inf, like PyTorch)."""
    H, W, C = x.shape
    w_idx = lax.broadcasted_iota(jnp.int32, (H, W, C), 1)
    res = x                                                  # center tap
    for kh in range(3):
        x_h = _shift_rows(x, kh - 1, -jnp.inf)
        for kw in range(3):
            if kh == 1 and kw == 1:
                continue
            res = jnp.maximum(res, _shift_cols(x_h, kw - 1, w_idx, -jnp.inf))
    return res


# ------------------------------ fused kernel ---------------------------------

def _make_inception_kernel(p1, p2, p4):
    s1, s2, s3 = p1, p1 + p2, p1 + p2 + p4

    def kernel(x_ref, wf_ref, bf_ref, w3_ref, b3_ref, w5_ref, b5_ref,
               w4_ref, b4_ref, o_ref):
        x = x_ref[0]                                         # (H, W, Cin)

        # Branch 1 + the two reduce 1x1s: one fused GEMM over the shared input.
        y = lax.dot_general(x, wf_ref[...],
                            dimension_numbers=(((2,), (0,)), ((), ())),
                            preferred_element_type=jnp.float32)
        y = jnp.maximum(y + bf_ref[...], 0.0)                # (H, W, p1+p2+p4)
        branch1 = y[:, :, :s1]
        t2 = y[:, :, s1:s2]
        t3 = y[:, :, s2:s3]

        # Branch 2: 3x3 conv + ReLU (SAME padding folded in-kernel).
        branch2 = _conv_relu_im2col(t2, w3_ref[...], b3_ref[...], 3)
        # Branch 3: 5x5 conv + ReLU.
        branch3 = _conv_relu_im2col(t3, w5_ref[...], b5_ref[...], 5)
        # Branch 4: 3x3 max pool then 1x1 conv + ReLU (all in VMEM).
        pooled = _maxpool3x3(x)
        b4 = lax.dot_general(pooled, w4_ref[...],
                             dimension_numbers=(((2,), (0,)), ((), ())),
                             preferred_element_type=jnp.float32)
        branch4 = jnp.maximum(b4 + b4_ref[...], 0.0)

        # Channel concat in VMEM; single store of the full output tile.
        o_ref[0] = jnp.concatenate([branch1, branch2, branch3, branch4], axis=-1)

    return kernel


# --------------------------- parameters & forward ----------------------------

def init_inception_params(key, in_channels, p1, p2, p3, p4, p5, p6):
    def conv_init(k, kh, kw, cin, cout):
        kw_key, kb_key = jax.random.split(k)
        w = jax.random.normal(kw_key, (kh, kw, cin, cout), jnp.float32) * 0.1
        b = jax.random.normal(kb_key, (cout,), jnp.float32) * 0.1
        return w, b

    keys = jax.random.split(key, 6)
    return {
        "b1_1x1": conv_init(keys[0], 1, 1, in_channels, p1),
        "b2_1x1": conv_init(keys[1], 1, 1, in_channels, p2),
        "b2_3x3": conv_init(keys[2], 3, 3, p2, p3),
        "b3_1x1": conv_init(keys[3], 1, 1, in_channels, p4),
        "b3_5x5": conv_init(keys[4], 5, 5, p4, p5),
        "b4_1x1": conv_init(keys[5], 1, 1, in_channels, p6),
    }


def inception_forward(params, x_nchw):
    """Matches InceptionModule.forward; input/output are NCHW like PyTorch."""
    x = jnp.transpose(x_nchw, (0, 2, 3, 1))                  # NCHW -> NHWC
    N, H, W, Cin = x.shape

    w_b1, bias_b1 = params["b1_1x1"]
    w_b2r, bias_b2r = params["b2_1x1"]
    w_b2, bias_b2 = params["b2_3x3"]
    w_b3r, bias_b3r = params["b3_1x1"]
    w_b3, bias_b3 = params["b3_5x5"]
    w_b4, bias_b4 = params["b4_1x1"]

    p1, p2, p3 = w_b1.shape[-1], w_b2r.shape[-1], w_b2.shape[-1]
    p4, p5, p6 = w_b3r.shape[-1], w_b3.shape[-1], w_b4.shape[-1]
    Ctot = p1 + p3 + p5 + p6

    # Fuse the three 1x1 convs that share input x into one (Cin, p1+p2+p4) GEMM.
    w_fused = jnp.concatenate(
        [w_b1.reshape(Cin, p1), w_b2r.reshape(Cin, p2), w_b3r.reshape(Cin, p4)],
        axis=-1)
    b_fused = jnp.concatenate([bias_b1, bias_b2r, bias_b3r]).reshape(1, p1 + p2 + p4)

    # im2col-flattened KxK weights, tap-major (kh, kw, cin) to match the kernel.
    w3_flat = w_b2.reshape(3 * 3 * p2, p3)
    w5_flat = w_b3.reshape(5 * 5 * p4, p5)
    w4_2d = w_b4.reshape(Cin, p6)
    b3_2d = bias_b2.reshape(1, p3)
    b5_2d = bias_b3.reshape(1, p5)
    b4_2d = bias_b4.reshape(1, p6)

    out_nhwc = pl.pallas_call(
        _make_inception_kernel(p1, p2, p4),
        out_shape=jax.ShapeDtypeStruct((N, H, W, Ctot), jnp.float32),
        grid=(N,),
        in_specs=[
            pl.BlockSpec((1, H, W, Cin), lambda n: (n, 0, 0, 0)),
            pl.BlockSpec(w_fused.shape, lambda n: (0, 0)),
            pl.BlockSpec(b_fused.shape, lambda n: (0, 0)),
            pl.BlockSpec(w3_flat.shape, lambda n: (0, 0)),
            pl.BlockSpec(b3_2d.shape, lambda n: (0, 0)),
            pl.BlockSpec(w5_flat.shape, lambda n: (0, 0)),
            pl.BlockSpec(b5_2d.shape, lambda n: (0, 0)),
            pl.BlockSpec(w4_2d.shape, lambda n: (0, 0)),
            pl.BlockSpec(b4_2d.shape, lambda n: (0, 0)),
        ],
        out_specs=pl.BlockSpec((1, H, W, Ctot), lambda n: (n, 0, 0, 0)),
        compiler_params=pltpu.CompilerParams(dimension_semantics=("parallel",)),
    )(x, w_fused, b_fused, w3_flat, b3_2d, w5_flat, b5_2d, w4_2d, b4_2d)

    return jnp.transpose(out_nhwc, (0, 3, 1, 2))             # NHWC -> NCHW


# -------------------------------- reference ----------------------------------

def _ref_conv_relu(x_nhwc, w, b, padding):
    y = lax.conv_general_dilated(
        x_nhwc, w, window_strides=(1, 1),
        padding=[(padding, padding), (padding, padding)],
        dimension_numbers=("NHWC", "HWIO", "NHWC"))
    return jnp.maximum(y + b, 0.0)


def _ref_forward(params, x_nchw):
    x = jnp.transpose(x_nchw, (0, 2, 3, 1))
    b1 = _ref_conv_relu(x, *params["b1_1x1"], 0)
    b2 = _ref_conv_relu(_ref_conv_relu(x, *params["b2_1x1"], 0),
                        *params["b2_3x3"], 1)
    b3 = _ref_conv_relu(_ref_conv_relu(x, *params["b3_1x1"], 0),
                        *params["b3_5x5"], 2)
    pooled = lax.reduce_window(x, -jnp.inf, lax.max, (1, 3, 3, 1),
                               (1, 1, 1, 1),
                               [(0, 0), (1, 1), (1, 1), (0, 0)])
    b4 = _ref_conv_relu(pooled, *params["b4_1x1"], 0)
    out = jnp.concatenate([b1, b2, b3, b4], axis=-1)
    return jnp.transpose(out, (0, 3, 1, 2))


# ---------------------------------- main --------------------------------------

if __name__ == "__main__":
    key = jax.random.PRNGKey(0)
    k_x, k_p = jax.random.split(key)

    # Small shapes: batch=2, in_channels=4, spatial=16x16.
    N, C, H, W = 2, 4, 16, 16
    p1, p2, p3, p4, p5, p6 = 8, 4, 8, 4, 8, 8

    x = jax.random.normal(k_x, (N, C, H, W), jnp.float32)
    params = init_inception_params(k_p, C, p1, p2, p3, p4, p5, p6)

    fwd = jax.jit(inception_forward)
    out = jax.block_until_ready(fwd(params, x))
    assert out.shape == (N, p1 + p3 + p5 + p6, H, W), out.shape

    ref = jax.block_until_ready(_ref_forward(params, x))
    max_err = float(jnp.max(jnp.abs(out - ref)))
    assert jnp.allclose(out, ref, atol=2e-4, rtol=2e-4), f"mismatch, max|err|={max_err}"

    print("KERNEL_OK")
</pallas_src>

<mosaic_0001>
module attributes {stable_mosaic.version = 11 : i64} {
  func.func @kernel(%arg0: i32, %arg1: memref<1x16x16x4xf32, #tpu.memory_space<vmem>>, %arg2: memref<4x16xf32, #tpu.memory_space<vmem>>, %arg3: memref<1x16xf32, #tpu.memory_space<vmem>>, %arg4: memref<36x8xf32, #tpu.memory_space<vmem>>, %arg5: memref<1x8xf32, #tpu.memory_space<vmem>>, %arg6: memref<100x8xf32, #tpu.memory_space<vmem>>, %arg7: memref<1x8xf32, #tpu.memory_space<vmem>>, %arg8: memref<4x8xf32, #tpu.memory_space<vmem>>, %arg9: memref<1x8xf32, #tpu.memory_space<vmem>>, %arg10: memref<1x16x16x32xf32, #tpu.memory_space<vmem>>) attributes {dimension_semantics = [#tpu.dimension_semantics<parallel>], iteration_bounds = array<i64: 2>, scalar_prefetch = 0 : i64, scratch_operands = 0 : i64, tpu.core_type = #tpu.core_type<tc>, window_params = [{transform_indices = @transform_0, window_bounds = array<i64: 1, 16, 16, 4>}, {pipeline_mode = #tpu.pipeline_mode<synchronous>, transform_indices = @transform_1, window_bounds = array<i64: 4, 16>}, {pipeline_mode = #tpu.pipeline_mode<synchronous>, transform_indices = @transform_2, window_bounds = array<i64: 1, 16>}, {pipeline_mode = #tpu.pipeline_mode<synchronous>, transform_indices = @transform_3, window_bounds = array<i64: 36, 8>}, {pipeline_mode = #tpu.pipeline_mode<synchronous>, transform_indices = @transform_4, window_bounds = array<i64: 1, 8>}, {pipeline_mode = #tpu.pipeline_mode<synchronous>, transform_indices = @transform_5, window_bounds = array<i64: 100, 8>}, {pipeline_mode = #tpu.pipeline_mode<synchronous>, transform_indices = @transform_6, window_bounds = array<i64: 1, 8>}, {pipeline_mode = #tpu.pipeline_mode<synchronous>, transform_indices = @transform_7, window_bounds = array<i64: 4, 8>}, {pipeline_mode = #tpu.pipeline_mode<synchronous>, transform_indices = @transform_8, window_bounds = array<i64: 1, 8>}, {transform_indices = @transform_9, window_bounds = array<i64: 1, 16, 16, 32>}]} {
    %c0 = arith.constant 0 : index
    %c0_0 = arith.constant 0 : index
    %c0_1 = arith.constant 0 : index
    %c0_2 = arith.constant 0 : index
    %0 = vector.load %arg1[%c0, %c0_0, %c0_1, %c0_2] : memref<1x16x16x4xf32, #tpu.memory_space<vmem>>, vector<1x16x16x4xf32>
    %1 = vector.shape_cast %0 : vector<1x16x16x4xf32> to vector<16x16x4xf32>
    %c0_3 = arith.constant 0 : index
    %c0_4 = arith.constant 0 : index
    %2 = vector.load %arg2[%c0_3, %c0_4] : memref<4x16xf32, #tpu.memory_space<vmem>>, vector<4x16xf32>
    %cst = arith.constant dense<0.000000e+00> : vector<16x16x16xf32>
    %3 = tpu.matmul %1, %2, %cst {dimension_numbers = #tpu.dot_dimension_numbers<[2], [0], [0, 1], [1], [0, 0, 0, 1, 1, 1], [], []>} : vector<16x16x4xf32>, vector<4x16xf32>, vector<16x16x16xf32> -> vector<16x16x16xf32>
    %c0_5 = arith.constant 0 : index
    %c0_6 = arith.constant 0 : index
    %4 = vector.load %arg3[%c0_5, %c0_6] : memref<1x16xf32, #tpu.memory_space<vmem>>, vector<1x16xf32>
    %5 = vector.shape_cast %4 : vector<1x16xf32> to vector<1x1x16xf32>
    %6 = vector.broadcast %5 : vector<1x1x16xf32> to vector<16x16x16xf32>
    %7 = arith.addf %3, %6 : vector<16x16x16xf32>
    %cst_7 = arith.constant 0.000000e+00 : f32
    %8 = vector.broadcast %cst_7 : f32 to vector<16x16x16xf32>
    %9 = arith.maximumf %7, %8 : vector<16x16x16xf32>
    %10 = vector.extract_strided_slice %9 {offsets = [0, 0, 0], sizes = [16, 16, 8], strides = [1, 1, 1]} : vector<16x16x16xf32> to vector<16x16x8xf32>
    %11 = vector.extract_strided_slice %9 {offsets = [0, 0, 8], sizes = [16, 16, 4], strides = [1, 1, 1]} : vector<16x16x16xf32> to vector<16x16x4xf32>
    %12 = vector.extract_strided_slice %9 {offsets = [0, 0, 12], sizes = [16, 16, 4], strides = [1, 1, 1]} : vector<16x16x16xf32> to vector<16x16x4xf32>
    %c0_8 = arith.constant 0 : index
    %c0_9 = arith.constant 0 : index
    %13 = vector.load %arg4[%c0_8, %c0_9] : memref<36x8xf32, #tpu.memory_space<vmem>>, vector<36x8xf32>
    %c0_10 = arith.constant 0 : index
    %c0_11 = arith.constant 0 : index
    %14 = vector.load %arg5[%c0_10, %c0_11] : memref<1x8xf32, #tpu.memory_space<vmem>>, vector<1x8xf32>
    %15 = tpu.iota {dimensions = array<i32: 1>} : vector<16x16x4xi32>
    %cst_12 = arith.constant 0.000000e+00 : f32
    %16 = vector.broadcast %cst_12 : f32 to vector<1x16x4xf32>
    %17 = vector.extract_strided_slice %11 {offsets = [0, 0, 0], sizes = [15, 16, 4], strides = [1, 1, 1]} : vector<16x16x4xf32> to vector<15x16x4xf32>
    %18 = tpu.concatenate %16, %17 in 0 : vector<1x16x4xf32>, vector<15x16x4xf32> -> vector<16x16x4xf32>
    %c1_i32 = arith.constant 1 : i32
    %19 = tpu.dynamic_rotate %18 by %c1_i32 dim 1 : vector<16x16x4xf32>, i32 -> vector<16x16x4xf32>
    %c1_i32_13 = arith.constant 1 : i32
    %20 = vector.broadcast %c1_i32_13 : i32 to vector<16x16x4xi32>
    %21 = arith.cmpi sge, %15, %20 : vector<16x16x4xi32>
    %c17_i32 = arith.constant 17 : i32
    %22 = vector.broadcast %c17_i32 : i32 to vector<16x16x4xi32>
    %23 = arith.cmpi slt, %15, %22 : vector<16x16x4xi32>
    %24 = arith.andi %21, %23 : vector<16x16x4xi1>
    %cst_14 = arith.constant 0.000000e+00 : f32
    %25 = vector.broadcast %cst_14 : f32 to vector<16x16x4xf32>
    %26 = arith.select %24, %19, %25 : vector<16x16x4xi1>, vector<16x16x4xf32>
    %c15_i32 = arith.constant 15 : i32
    %27 = tpu.dynamic_rotate %18 by %c15_i32 dim 1 : vector<16x16x4xf32>, i32 -> vector<16x16x4xf32>
    %c-1_i32 = arith.constant -1 : i32
    %28 = vector.broadcast %c-1_i32 : i32 to vector<16x16x4xi32>
    %29 = arith.cmpi sge, %15, %28 : vector<16x16x4xi32>
    %c15_i32_15 = arith.constant 15 : i32
    %30 = vector.broadcast %c15_i32_15 : i32 to vector<16x16x4xi32>
    %31 = arith.cmpi slt, %15, %30 : vector<16x16x4xi32>
    %32 = arith.andi %29, %31 : vector<16x16x4xi1>
    %cst_16 = arith.constant 0.000000e+00 : f32
    %33 = vector.broadcast %cst_16 : f32 to vector<16x16x4xf32>
    %34 = arith.select %32, %27, %33 : vector<16x16x4xi1>, vector<16x16x4xf32>
    %c1_i32_17 = arith.constant 1 : i32
    %35 = tpu.dynamic_rotate %11 by %c1_i32_17 dim 1 : vector<16x16x4xf32>, i32 -> vector<16x16x4xf32>
    %c1_i32_18 = arith.constant 1 : i32
    %36 = vector.broadcast %c1_i32_18 : i32 to vector<16x16x4xi32>
    %37 = arith.cmpi sge, %15, %36 : vector<16x16x4xi32>
    %c17_i32_19 = arith.constant 17 : i32
    %38 = vector.broadcast %c17_i32_19 : i32 to vector<16x16x4xi32>
    %39 = arith.cmpi slt, %15, %38 : vector<16x16x4xi32>
    %40 = arith.andi %37, %39 : vector<16x16x4xi1>
    %cst_20 = arith.constant 0.000000e+00 : f32
    %41 = vector.broadcast %cst_20 : f32 to vector<16x16x4xf32>
    %42 = arith.select %40, %35, %41 : vector<16x16x4xi1>, vector<16x16x4xf32>
    %c15_i32_21 = arith.constant 15 : i32
    %43 = tpu.dynamic_rotate %11 by %c15_i32_21 dim 1 : vector<16x16x4xf32>, i32 -> vector<16x16x4xf32>
    %c-1_i32_22 = arith.constant -1 : i32
    %44 = vector.broadcast %c-1_i32_22 : i32 to vector<16x16x4xi32>
    %45 = arith.cmpi sge, %15, %44 : vector<16x16x4xi32>
    %c15_i32_23 = arith.constant 15 : i32
    %46 = vector.broadcast %c15_i32_23 : i32 to vector<16x16x4xi32>
    %47 = arith.cmpi slt, %15, %46 : vector<16x16x4xi32>
    %48 = arith.andi %45, %47 : vector<16x16x4xi1>
    %cst_24 = arith.constant 0.000000e+00 : f32
    %49 = vector.broadcast %cst_24 : f32 to vector<16x16x4xf32>
    %50 = arith.select %48, %43, %49 : vector<16x16x4xi1>, vector<16x16x4xf32>
    %cst_25 = arith.constant 0.000000e+00 : f32
    %51 = vector.broadcast %cst_25 : f32 to vector<1x16x4xf32>
    %52 = vector.extract_strided_slice %11 {offsets = [1, 0, 0], sizes = [15, 16, 4], strides = [1, 1, 1]} : vector<16x16x4xf32> to vector<15x16x4xf32>
    %53 = tpu.concatenate %52, %51 in 0 : vector<15x16x4xf32>, vector<1x16x4xf32> -> vector<16x16x4xf32>
    %c1_i32_26 = arith.constant 1 : i32
    %54 = tpu.dynamic_rotate %53 by %c1_i32_26 dim 1 : vector<16x16x4xf32>, i32 -> vector<16x16x4xf32>
    %c1_i32_27 = arith.constant 1 : i32
    %55 = vector.broadcast %c1_i32_27 : i32 to vector<16x16x4xi32>
    %56 = arith.cmpi sge, %15, %55 : vector<16x16x4xi32>
    %c17_i32_28 = arith.constant 17 : i32
    %57 = vector.broadcast %c17_i32_28 : i32 to vector<16x16x4xi32>
    %58 = arith.cmpi slt, %15, %57 : vector<16x16x4xi32>
    %59 = arith.andi %56, %58 : vector<16x16x4xi1>
    %cst_29 = arith.constant 0.000000e+00 : f32
    %60 = vector.broadcast %cst_29 : f32 to vector<16x16x4xf32>
    %61 = arith.select %59, %54, %60 : vector<16x16x4xi1>, vector<16x16x4xf32>
    %c15_i32_30 = arith.constant 15 : i32
    %62 = tpu.dynamic_rotate %53 by %c15_i32_30 dim 1 : vector<16x16x4xf32>, i32 -> vector<16x16x4xf32>
    %c-1_i32_31 = arith.constant -1 : i32
    %63 = vector.broadcast %c-1_i32_31 : i32 to vector<16x16x4xi32>
    %64 = arith.cmpi sge, %15, %63 : vector<16x16x4xi32>
    %c15_i32_32 = arith.constant 15 : i32
    %65 = vector.broadcast %c15_i32_32 : i32 to vector<16x16x4xi32>
    %66 = arith.cmpi slt, %15, %65 : vector<16x16x4xi32>
    %67 = arith.andi %64, %66 : vector<16x16x4xi1>
    %cst_33 = arith.constant 0.000000e+00 : f32
    %68 = vector.broadcast %cst_33 : f32 to vector<16x16x4xf32>
    %69 = arith.select %67, %62, %68 : vector<16x16x4xi1>, vector<16x16x4xf32>
    %70 = tpu.concatenate %26, %18, %34, %42, %11, %50, %61, %53, %69 in 2 : vector<16x16x4xf32>, vector<16x16x4xf32>, vector<16x16x4xf32>, vector<16x16x4xf32>, vector<16x16x4xf32>, vector<16x16x4xf32>, vector<16x16x4xf32>, vector<16x16x4xf32>, vector<16x16x4xf32> -> vector<16x16x36xf32>
    %cst_34 = arith.constant dense<0.000000e+00> : vector<16x16x8xf32>
    %71 = tpu.matmul %70, %13, %cst_34 {dimension_numbers = #tpu.dot_dimension_numbers<[2], [0], [0, 1], [1], [0, 0, 0, 1, 1, 1], [], []>} : vector<16x16x36xf32>, vector<36x8xf32>, vector<16x16x8xf32> -> vector<16x16x8xf32>
    %72 = vector.shape_cast %14 : vector<1x8xf32> to vector<1x1x8xf32>
    %73 = vector.broadcast %72 : vector<1x1x8xf32> to vector<16x16x8xf32>
    %74 = arith.addf %71, %73 : vector<16x16x8xf32>
    %cst_35 = arith.constant 0.000000e+00 : f32
    %75 = vector.broadcast %cst_35 : f32 to vector<16x16x8xf32>
    %76 = arith.maximumf %74, %75 : vector<16x16x8xf32>
    %c0_36 = arith.constant 0 : index
    %c0_37 = arith.constant 0 : index
    %77 = vector.load %arg6[%c0_36, %c0_37] : memref<100x8xf32, #tpu.memory_space<vmem>>, vector<100x8xf32>
    %c0_38 = arith.constant 0 : index
    %c0_39 = arith.constant 0 : index
    %78 = vector.load %arg7[%c0_38, %c0_39] : memref<1x8xf32, #tpu.memory_space<vmem>>, vector<1x8xf32>
    %79 = tpu.iota {dimensions = array<i32: 1>} : vector<16x16x4xi32>
    %cst_40 = arith.constant 0.000000e+00 : f32
    %80 = vector.broadcast %cst_40 : f32 to vector<2x16x4xf32>
    %81 = vector.extract_strided_slice %12 {offsets = [0, 0, 0], sizes = [14, 16, 4], strides = [1, 1, 1]} : vector<16x16x4xf32> to vector<14x16x4xf32>
    %82 = tpu.concatenate %80, %81 in 0 : vector<2x16x4xf32>, vector<14x16x4xf32> -> vector<16x16x4xf32>
    %c2_i32 = arith.constant 2 : i32
    %83 = tpu.dynamic_rotate %82 by %c2_i32 dim 1 : vector<16x16x4xf32>, i32 -> vector<16x16x4xf32>
    %c2_i32_41 = arith.constant 2 : i32
    %84 = vector.broadcast %c2_i32_41 : i32 to vector<16x16x4xi32>
    %85 = arith.cmpi sge, %79, %84 : vector<16x16x4xi32>
    %c18_i32 = arith.constant 18 : i32
    %86 = vector.broadcast %c18_i32 : i32 to vector<16x16x4xi32>
    %87 = arith.cmpi slt, %79, %86 : vector<16x16x4xi32>
    %88 = arith.andi %85, %87 : vector<16x16x4xi1>
    %cst_42 = arith.constant 0.000000e+00 : f32
    %89 = vector.broadcast %cst_42 : f32 to vector<16x16x4xf32>
    %90 = arith.select %88, %83, %89 : vector<16x16x4xi1>, vector<16x16x4xf32>
    %c1_i32_43 = arith.constant 1 : i32
    %91 = tpu.dynamic_rotate %82 by %c1_i32_43 dim 1 : vector<16x16x4xf32>, i32 -> vector<16x16x4xf32>
    %c1_i32_44 = arith.constant 1 : i32
    %92 = vector.broadcast %c1_i32_44 : i32 to vector<16x16x4xi32>
    %93 = arith.cmpi sge, %79, %92 : vector<16x16x4xi32>
    %c17_i32_45 = arith.constant 17 : i32
    %94 = vector.broadcast %c17_i32_45 : i32 to vector<16x16x4xi32>
    %95 = arith.cmpi slt, %79, %94 : vector<16x16x4xi32>
    %96 = arith.andi %93, %95 : vector<16x16x4xi1>
    %cst_46 = arith.constant 0.000000e+00 : f32
    %97 = vector.broadcast %cst_46 : f32 to vector<16x16x4xf32>
    %98 = arith.select %96, %91, %97 : vector<16x16x4xi1>, vector<16x16x4xf32>
    %c15_i32_47 = arith.constant 15 : i32
    %99 = tpu.dynamic_rotate %82 by %c15_i32_47 dim 1 : vector<16x16x4xf32>, i32 -> vector<16x16x4xf32>
    %c-1_i32_48 = arith.constant -1 : i32
    %100 = vector.broadcast %c-1_i32_48 : i32 to vector<16x16x4xi32>
    %101 = arith.cmpi sge, %79, %100 : vector<16x16x4xi32>
    %c15_i32_49 = arith.constant 15 : i32
    %102 = vector.broadcast %c15_i32_49 : i32 to vector<16x16x4xi32>
    %103 = arith.cmpi slt, %79, %102 : vector<16x16x4xi32>
    %104 = arith.andi %101, %103 : vector<16x16x4xi1>
    %cst_50 = arith.constant 0.000000e+00 : f32
    %105 = vector.broadcast %cst_50 : f32 to vector<16x16x4xf32>
    %106 = arith.select %104, %99, %105 : vector<16x16x4xi1>, vector<16x16x4xf32>
    %c14_i32 = arith.constant 14 : i32
    %107 = tpu.dynamic_rotate %82 by %c14_i32 dim 1 : vector<16x16x4xf32>, i32 -> vector<16x16x4xf32>
    %c-2_i32 = arith.constant -2 : i32
    %108 = vector.broadcast %c-2_i32 : i32 to vector<16x16x4xi32>
    %109 = arith.cmpi sge, %79, %108 : vector<16x16x4xi32>
    %c14_i32_51 = arith.constant 14 : i32
    %110 = vector.broadcast %c14_i32_51 : i32 to vector<16x16x4xi32>
    %111 = arith.cmpi slt, %79, %110 : vector<16x16x4xi32>
    %112 = arith.andi %109, %111 : vector<16x16x4xi1>
    %cst_52 = arith.constant 0.000000e+00 : f32
    %113 = vector.broadcast %cst_52 : f32 to vector<16x16x4xf32>
    %114 = arith.select %112, %107, %113 : vector<16x16x4xi1>, vector<16x16x4xf32>
    %cst_53 = arith.constant 0.000000e+00 : f32
    %115 = vector.broadcast %cst_53 : f32 to vector<1x16x4xf32>
    %116 = vector.extract_strided_slice %12 {offsets = [0, 0, 0], sizes = [15, 16, 4], strides = [1, 1, 1]} : vector<16x16x4xf32> to vector<15x16x4xf32>
    %117 = tpu.concatenate %115, %116 in 0 : vector<1x16x4xf32>, vector<15x16x4xf32> -> vector<16x16x4xf32>
    %c2_i32_54 = arith.constant 2 : i32
    %118 = tpu.dynamic_rotate %117 by %c2_i32_54 dim 1 : vector<16x16x4xf32>, i32 -> vector<16x16x4xf32>
    %c2_i32_55 = arith.constant 2 : i32
    %119 = vector.broadcast %c2_i32_55 : i32 to vector<16x16x4xi32>
    %120 = arith.cmpi sge, %79, %119 : vector<16x16x4xi32>
    %c18_i32_56 = arith.constant 18 : i32
    %121 = vector.broadcast %c18_i32_56 : i32 to vector<16x16x4xi32>
    %122 = arith.cmpi slt, %79, %121 : vector<16x16x4xi32>
    %123 = arith.andi %120, %122 : vector<16x16x4xi1>
    %cst_57 = arith.constant 0.000000e+00 : f32
    %124 = vector.broadcast %cst_57 : f32 to vector<16x16x4xf32>
    %125 = arith.select %123, %118, %124 : vector<16x16x4xi1>, vector<16x16x4xf32>
    %c1_i32_58 = arith.constant 1 : i32
    %126 = tpu.dynamic_rotate %117 by %c1_i32_58 dim 1 : vector<16x16x4xf32>, i32 -> vector<16x16x4xf32>
    %c1_i32_59 = arith.constant 1 : i32
    %127 = vector.broadcast %c1_i32_59 : i32 to vector<16x16x4xi32>
    %128 = arith.cmpi sge, %79, %127 : vector<16x16x4xi32>
    %c17_i32_60 = arith.constant 17 : i32
    %129 = vector.broadcast %c17_i32_60 : i32 to vector<16x16x4xi32>
    %130 = arith.cmpi slt, %79, %129 : vector<16x16x4xi32>
    %131 = arith.andi %128, %130 : vector<16x16x4xi1>
    %cst_61 = arith.constant 0.000000e+00 : f32
    %132 = vector.broadcast %cst_61 : f32 to vector<16x16x4xf32>
    %133 = arith.select %131, %126, %132 : vector<16x16x4xi1>, vector<16x16x4xf32>
    %c15_i32_62 = arith.constant 15 : i32
    %134 = tpu.dynamic_rotate %117 by %c15_i32_62 dim 1 : vector<16x16x4xf32>, i32 -> vector<16x16x4xf32>
    %c-1_i32_63 = arith.constant -1 : i32
    %135 = vector.broadcast %c-1_i32_63 : i32 to vector<16x16x4xi32>
    %136 = arith.cmpi sge, %79, %135 : vector<16x16x4xi32>
    %c15_i32_64 = arith.constant 15 : i32
    %137 = vector.broadcast %c15_i32_64 : i32 to vector<16x16x4xi32>
    %138 = arith.cmpi slt, %79, %137 : vector<16x16x4xi32>
    %139 = arith.andi %136, %138 : vector<16x16x4xi1>
    %cst_65 = arith.constant 0.000000e+00 : f32
    %140 = vector.broadcast %cst_65 : f32 to vector<16x16x4xf32>
    %141 = arith.select %139, %134, %140 : vector<16x16x4xi1>, vector<16x16x4xf32>
    %c14_i32_66 = arith.constant 14 : i32
    %142 = tpu.dynamic_rotate %117 by %c14_i32_66 dim 1 : vector<16x16x4xf32>, i32 -> vector<16x16x4xf32>
    %c-2_i32_67 = arith.constant -2 : i32
    %143 = vector.broadcast %c-2_i32_67 : i32 to vector<16x16x4xi32>
    %144 = arith.cmpi sge, %79, %143 : vector<16x16x4xi32>
    %c14_i32_68 = arith.constant 14 : i32
    %145 = vector.broadcast %c14_i32_68 : i32 to vector<16x16x4xi32>
    %146 = arith.cmpi slt, %79, %145 : vector<16x16x4xi32>
    %147 = arith.andi %144, %146 : vector<16x16x4xi1>
    %cst_69 = arith.constant 0.000000e+00 : f32
    %148 = vector.broadcast %cst_69 : f32 to vector<16x16x4xf32>
    %149 = arith.select %147, %142, %148 : vector<16x16x4xi1>, vector<16x16x4xf32>
    %c2_i32_70 = arith.constant 2 : i32
    %150 = tpu.dynamic_rotate %12 by %c2_i32_70 dim 1 : vector<16x16x4xf32>, i32 -> vector<16x16x4xf32>
    %c2_i32_71 = arith.constant 2 : i32
    %151 = vector.broadcast %c2_i32_71 : i32 to vector<16x16x4xi32>
    %152 = arith.cmpi sge, %79, %151 : vector<16x16x4xi32>
    %c18_i32_72 = arith.constant 18 : i32
    %153 = vector.broadcast %c18_i32_72 : i32 to vector<16x16x4xi32>
    %154 = arith.cmpi slt, %79, %153 : vector<16x16x4xi32>
    %155 = arith.andi %152, %154 : vector<16x16x4xi1>
    %cst_73 = arith.constant 0.000000e+00 : f32
    %156 = vector.broadcast %cst_73 : f32 to vector<16x16x4xf32>
    %157 = arith.select %155, %150, %156 : vector<16x16x4xi1>, vector<16x16x4xf32>
    %c1_i32_74 = arith.constant 1 : i32
    %158 = tpu.dynamic_rotate %12 by %c1_i32_74 dim 1 : vector<16x16x4xf32>, i32 -> vector<16x16x4xf32>
    %c1_i32_75 = arith.constant 1 : i32
    %159 = vector.broadcast %c1_i32_75 : i32 to vector<16x16x4xi32>
    %160 = arith.cmpi sge, %79, %159 : vector<16x16x4xi32>
    %c17_i32_76 = arith.constant 17 : i32
    %161 = vector.broadcast %c17_i32_76 : i32 to vector<16x16x4xi32>
    %162 = arith.cmpi slt, %79, %161 : vector<16x16x4xi32>
    %163 = arith.andi %160, %162 : vector<16x16x4xi1>
    %cst_77 = arith.constant 0.000000e+00 : f32
    %164 = vector.broadcast %cst_77 : f32 to vector<16x16x4xf32>
    %165 = arith.select %163, %158, %164 : vector<16x16x4xi1>, vector<16x16x4xf32>
    %c15_i32_78 = arith.constant 15 : i32
    %166 = tpu.dynamic_rotate %12 by %c15_i32_78 dim 1 : vector<16x16x4xf32>, i32 -> vector<16x16x4xf32>
    %c-1_i32_79 = arith.constant -1 : i32
    %167 = vector.broadcast %c-1_i32_79 : i32 to vector<16x16x4xi32>
    %168 = arith.cmpi sge, %79, %167 : vector<16x16x4xi32>
    %c15_i32_80 = arith.constant 15 : i32
    %169 = vector.broadcast %c15_i32_80 : i32 to vector<16x16x4xi32>
    %170 = arith.cmpi slt, %79, %169 : vector<16x16x4xi32>
    %171 = arith.andi %168, %170 : vector<16x16x4xi1>
    %cst_81 = arith.constant 0.000000e+00 : f32
    %172 = vector.broadcast %cst_81 : f32 to vector<16x16x4xf32>
    %173 = arith.select %171, %166, %172 : vector<16x16x4xi1>, vector<16x16x4xf32>
    %c14_i32_82 = arith.constant 14 : i32
    %174 = tpu.dynamic_rotate %12 by %c14_i32_82 dim 1 : vector<16x16x4xf32>, i32 -> vector<16x16x4xf32>
    %c-2_i32_83 = arith.constant -2 : i32
    %175 = vector.broadcast %c-2_i32_83 : i32 to vector<16x16x4xi32>
    %176 = arith.cmpi sge, %79, %175 : vector<16x16x4xi32>
    %c14_i32_84 = arith.constant 14 : i32
    %177 = vector.broadcast %c14_i32_84 : i32 to vector<16x16x4xi32>
    %178 = arith.cmpi slt, %79, %177 : vector<16x16x4xi32>
    %179 = arith.andi %176, %178 : vector<16x16x4xi1>
    %cst_85 = arith.constant 0.000000e+00 : f32
    %180 = vector.broadcast %cst_85 : f32 to vector<16x16x4xf32>
    %181 = arith.select %179, %174, %180 : vector<16x16x4xi1>, vector<16x16x4xf32>
    %cst_86 = arith.constant 0.000000e+00 : f32
    %182 = vector.broadcast %cst_86 : f32 to vector<1x16x4xf32>
    %183 = vector.extract_strided_slice %12 {offsets = [1, 0, 0], sizes = [15, 16, 4], strides = [1, 1, 1]} : vector<16x16x4xf32> to vector<15x16x4xf32>
    %184 = tpu.concatenate %183, %182 in 0 : vector<15x16x4xf32>, vector<1x16x4xf32> -> vector<16x16x4xf32>
    %c2_i32_87 = arith.constant 2 : i32
    %185 = tpu.dynamic_rotate %184 by %c2_i32_87 dim 1 : vector<16x16x4xf32>, i32 -> vector<16x16x4xf32>
    %c2_i32_88 = arith.constant 2 : i32
    %186 = vector.broadcast %c2_i32_88 : i32 to vector<16x16x4xi32>
    %187 = arith.cmpi sge, %79, %186 : vector<16x16x4xi32>
    %c18_i32_89 = arith.constant 18 : i32
    %188 = vector.broadcast %c18_i32_89 : i32 to vector<16x16x4xi32>
    %189 = arith.cmpi slt, %79, %188 : vector<16x16x4xi32>
    %190 = arith.andi %187, %189 : vector<16x16x4xi1>
    %cst_90 = arith.constant 0.000000e+00 : f32
    %191 = vector.broadcast %cst_90 : f32 to vector<16x16x4xf32>
    %192 = arith.select %190, %185, %191 : vector<16x16x4xi1>, vector<16x16x4xf32>
    %c1_i32_91 = arith.constant 1 : i32
    %193 = tpu.dynamic_rotate %184 by %c1_i32_91 dim 1 : vector<16x16x4xf32>, i32 -> vector<16x16x4xf32>
    %c1_i32_92 = arith.constant 1 : i32
    %194 = vector.broadcast %c1_i32_92 : i32 to vector<16x16x4xi32>
    %195 = arith.cmpi sge, %79, %194 : vector<16x16x4xi32>
    %c17_i32_93 = arith.constant 17 : i32
    %196 = vector.broadcast %c17_i32_93 : i32 to vector<16x16x4xi32>
    %197 = arith.cmpi slt, %79, %196 : vector<16x16x4xi32>
    %198 = arith.andi %195, %197 : vector<16x16x4xi1>
    %cst_94 = arith.constant 0.000000e+00 : f32
    %199 = vector.broadcast %cst_94 : f32 to vector<16x16x4xf32>
    %200 = arith.select %198, %193, %199 : vector<16x16x4xi1>, vector<16x16x4xf32>
    %c15_i32_95 = arith.constant 15 : i32
    %201 = tpu.dynamic_rotate %184 by %c15_i32_95 dim 1 : vector<16x16x4xf32>, i32 -> vector<16x16x4xf32>
    %c-1_i32_96 = arith.constant -1 : i32
    %202 = vector.broadcast %c-1_i32_96 : i32 to vector<16x16x4xi32>
    %203 = arith.cmpi sge, %79, %202 : vector<16x16x4xi32>
    %c15_i32_97 = arith.constant 15 : i32
    %204 = vector.broadcast %c15_i32_97 : i32 to vector<16x16x4xi32>
    %205 = arith.cmpi slt, %79, %204 : vector<16x16x4xi32>
    %206 = arith.andi %203, %205 : vector<16x16x4xi1>
    %cst_98 = arith.constant 0.000000e+00 : f32
    %207 = vector.broadcast %cst_98 : f32 to vector<16x16x4xf32>
    %208 = arith.select %206, %201, %207 : vector<16x16x4xi1>, vector<16x16x4xf32>
    %c14_i32_99 = arith.constant 14 : i32
    %209 = tpu.dynamic_rotate %184 by %c14_i32_99 dim 1 : vector<16x16x4xf32>, i32 -> vector<16x16x4xf32>
    %c-2_i32_100 = arith.constant -2 : i32
    %210 = vector.broadcast %c-2_i32_100 : i32 to vector<16x16x4xi32>
    %211 = arith.cmpi sge, %79, %210 : vector<16x16x4xi32>
    %c14_i32_101 = arith.constant 14 : i32
    %212 = vector.broadcast %c14_i32_101 : i32 to vector<16x16x4xi32>
    %213 = arith.cmpi slt, %79, %212 : vector<16x16x4xi32>
    %214 = arith.andi %211, %213 : vector<16x16x4xi1>
    %cst_102 = arith.constant 0.000000e+00 : f32
    %215 = vector.broadcast %cst_102 : f32 to vector<16x16x4xf32>
    %216 = arith.select %214, %209, %215 : vector<16x16x4xi1>, vector<16x16x4xf32>
    %cst_103 = arith.constant 0.000000e+00 : f32
    %217 = vector.broadcast %cst_103 : f32 to vector<2x16x4xf32>
    %218 = vector.extract_strided_slice %12 {offsets = [2, 0, 0], sizes = [14, 16, 4], strides = [1, 1, 1]} : vector<16x16x4xf32> to vector<14x16x4xf32>
    %219 = tpu.concatenate %218, %217 in 0 : vector<14x16x4xf32>, vector<2x16x4xf32> -> vector<16x16x4xf32>
    %c2_i32_104 = arith.constant 2 : i32
    %220 = tpu.dynamic_rotate %219 by %c2_i32_104 dim 1 : vector<16x16x4xf32>, i32 -> vector<16x16x4xf32>
    %c2_i32_105 = arith.constant 2 : i32
    %221 = vector.broadcast %c2_i32_105 : i32 to vector<16x16x4xi32>
    %222 = arith.cmpi sge, %79, %221 : vector<16x16x4xi32>
    %c18_i32_106 = arith.constant 18 : i32
    %223 = vector.broadcast %c18_i32_106 : i32 to vector<16x16x4xi32>
    %224 = arith.cmpi slt, %79, %223 : vector<16x16x4xi32>
    %225 = arith.andi %222, %224 : vector<16x16x4xi1>
    %cst_107 = arith.constant 0.000000e+00 : f32
    %226 = vector.broadcast %cst_107 : f32 to vector<16x16x4xf32>
    %227 = arith.select %225, %220, %226 : vector<16x16x4xi1>, vector<16x16x4xf32>
    %c1_i32_108 = arith.constant 1 : i32
    %228 = tpu.dynamic_rotate %219 by %c1_i32_108 dim 1 : vector<16x16x4xf32>, i32 -> vector<16x16x4xf32>
    %c1_i32_109 = arith.constant 1 : i32
    %229 = vector.broadcast %c1_i32_109 : i32 to vector<16x16x4xi32>
    %230 = arith.cmpi sge, %79, %229 : vector<16x16x4xi32>
    %c17_i32_110 = arith.constant 17 : i32
    %231 = vector.broadcast %c17_i32_110 : i32 to vector<16x16x4xi32>
    %232 = arith.cmpi slt, %79, %231 : vector<16x16x4xi32>
    %233 = arith.andi %230, %232 : vector<16x16x4xi1>
    %cst_111 = arith.constant 0.000000e+00 : f32
    %234 = vector.broadcast %cst_111 : f32 to vector<16x16x4xf32>
    %235 = arith.select %233, %228, %234 : vector<16x16x4xi1>, vector<16x16x4xf32>
    %c15_i32_112 = arith.constant 15 : i32
    %236 = tpu.dynamic_rotate %219 by %c15_i32_112 dim 1 : vector<16x16x4xf32>, i32 -> vector<16x16x4xf32>
    %c-1_i32_113 = arith.constant -1 : i32
    %237 = vector.broadcast %c-1_i32_113 : i32 to vector<16x16x4xi32>
    %238 = arith.cmpi sge, %79, %237 : vector<16x16x4xi32>
    %c15_i32_114 = arith.constant 15 : i32
    %239 = vector.broadcast %c15_i32_114 : i32 to vector<16x16x4xi32>
    %240 = arith.cmpi slt, %79, %239 : vector<16x16x4xi32>
    %241 = arith.andi %238, %240 : vector<16x16x4xi1>
    %cst_115 = arith.constant 0.000000e+00 : f32
    %242 = vector.broadcast %cst_115 : f32 to vector<16x16x4xf32>
    %243 = arith.select %241, %236, %242 : vector<16x16x4xi1>, vector<16x16x4xf32>
    %c14_i32_116 = arith.constant 14 : i32
    %244 = tpu.dynamic_rotate %219 by %c14_i32_116 dim 1 : vector<16x16x4xf32>, i32 -> vector<16x16x4xf32>
    %c-2_i32_117 = arith.constant -2 : i32
    %245 = vector.broadcast %c-2_i32_117 : i32 to vector<16x16x4xi32>
    %246 = arith.cmpi sge, %79, %245 : vector<16x16x4xi32>
    %c14_i32_118 = arith.constant 14 : i32
    %247 = vector.broadcast %c14_i32_118 : i32 to vector<16x16x4xi32>
    %248 = arith.cmpi slt, %79, %247 : vector<16x16x4xi32>
    %249 = arith.andi %246, %248 : vector<16x16x4xi1>
    %cst_119 = arith.constant 0.000000e+00 : f32
    %250 = vector.broadcast %cst_119 : f32 to vector<16x16x4xf32>
    %251 = arith.select %249, %244, %250 : vector<16x16x4xi1>, vector<16x16x4xf32>
    %252 = tpu.concatenate %90, %98, %82, %106, %114, %125, %133, %117, %141, %149, %157, %165, %12, %173, %181, %192 in 2 : vector<16x16x4xf32>, vector<16x16x4xf32>, vector<16x16x4xf32>, vector<16x16x4xf32>, vector<16x16x4xf32>, vector<16x16x4xf32>, vector<16x16x4xf32>, vector<16x16x4xf32>, vector<16x16x4xf32>, vector<16x16x4xf32>, vector<16x16x4xf32>, vector<16x16x4xf32>, vector<16x16x4xf32>, vector<16x16x4xf32>, vector<16x16x4xf32>, vector<16x16x4xf32> -> vector<16x16x64xf32>
    %253 = tpu.concatenate %200, %184, %208, %216, %227, %235, %219, %243, %251 in 2 : vector<16x16x4xf32>, vector<16x16x4xf32>, vector<16x16x4xf32>, vector<16x16x4xf32>, vector<16x16x4xf32>, vector<16x16x4xf32>, vector<16x16x4xf32>, vector<16x16x4xf32>, vector<16x16x4xf32> -> vector<16x16x36xf32>
    %254 = tpu.concatenate %252, %253 in 2 : vector<16x16x64xf32>, vector<16x16x36xf32> -> vector<16x16x100xf32>
    %cst_120 = arith.constant dense<0.000000e+00> : vector<16x16x8xf32>
    %255 = tpu.matmul %254, %77, %cst_120 {dimension_numbers = #tpu.dot_dimension_numbers<[2], [0], [0, 1], [1], [0, 0, 0, 1, 1, 1], [], []>} : vector<16x16x100xf32>, vector<100x8xf32>, vector<16x16x8xf32> -> vector<16x16x8xf32>
    %256 = vector.shape_cast %78 : vector<1x8xf32> to vector<1x1x8xf32>
    %257 = vector.broadcast %256 : vector<1x1x8xf32> to vector<16x16x8xf32>
    %258 = arith.addf %255, %257 : vector<16x16x8xf32>
    %cst_121 = arith.constant 0.000000e+00 : f32
    %259 = vector.broadcast %cst_121 : f32 to vector<16x16x8xf32>
    %260 = arith.maximumf %258, %259 : vector<16x16x8xf32>
    %261 = tpu.iota {dimensions = array<i32: 1>} : vector<16x16x4xi32>
    %cst_122 = arith.constant 0xFF800000 : f32
    %262 = vector.broadcast %cst_122 : f32 to vector<1x16x4xf32>
    %263 = vector.extract_strided_slice %1 {offsets = [0, 0, 0], sizes = [15, 16, 4], strides = [1, 1, 1]} : vector<16x16x4xf32> to vector<15x16x4xf32>
    %264 = tpu.concatenate %262, %263 in 0 : vector<1x16x4xf32>, vector<15x16x4xf32> -> vector<16x16x4xf32>
    %c1_i32_123 = arith.constant 1 : i32
    %265 = tpu.dynamic_rotate %264 by %c1_i32_123 dim 1 : vector<16x16x4xf32>, i32 -> vector<16x16x4xf32>
    %c1_i32_124 = arith.constant 1 : i32
    %266 = vector.broadcast %c1_i32_124 : i32 to vector<16x16x4xi32>
    %267 = arith.cmpi sge, %261, %266 : vector<16x16x4xi32>
    %c17_i32_125 = arith.constant 17 : i32
    %268 = vector.broadcast %c17_i32_125 : i32 to vector<16x16x4xi32>
    %269 = arith.cmpi slt, %261, %268 : vector<16x16x4xi32>
    %270 = arith.andi %267, %269 : vector<16x16x4xi1>
    %cst_126 = arith.constant 0xFF800000 : f32
    %271 = vector.broadcast %cst_126 : f32 to vector<16x16x4xf32>
    %272 = arith.select %270, %265, %271 : vector<16x16x4xi1>, vector<16x16x4xf32>
    %273 = arith.maximumf %1, %272 : vector<16x16x4xf32>
    %274 = arith.maximumf %273, %264 : vector<16x16x4xf32>
    %c15_i32_127 = arith.constant 15 : i32
    %275 = tpu.dynamic_rotate %264 by %c15_i32_127 dim 1 : vector<16x16x4xf32>, i32 -> vector<16x16x4xf32>
    %c-1_i32_128 = arith.constant -1 : i32
    %276 = vector.broadcast %c-1_i32_128 : i32 to vector<16x16x4xi32>
    %277 = arith.cmpi sge, %261, %276 : vector<16x16x4xi32>
    %c15_i32_129 = arith.constant 15 : i32
    %278 = vector.broadcast %c15_i32_129 : i32 to vector<16x16x4xi32>
    %279 = arith.cmpi slt, %261, %278 : vector<16x16x4xi32>
    %280 = arith.andi %277, %279 : vector<16x16x4xi1>
    %cst_130 = arith.constant 0xFF800000 : f32
    %281 = vector.broadcast %cst_130 : f32 to vector<16x16x4xf32>
    %282 = arith.select %280, %275, %281 : vector<16x16x4xi1>, vector<16x16x4xf32>
    %283 = arith.maximumf %274, %282 : vector<16x16x4xf32>
    %c1_i32_131 = arith.constant 1 : i32
    %284 = tpu.dynamic_rotate %1 by %c1_i32_131 dim 1 : vector<16x16x4xf32>, i32 -> vector<16x16x4xf32>
    %c1_i32_132 = arith.constant 1 : i32
    %285 = vector.broadcast %c1_i32_132 : i32 to vector<16x16x4xi32>
    %286 = arith.cmpi sge, %261, %285 : vector<16x16x4xi32>
    %c17_i32_133 = arith.constant 17 : i32
    %287 = vector.broadcast %c17_i32_133 : i32 to vector<16x16x4xi32>
    %288 = arith.cmpi slt, %261, %287 : vector<16x16x4xi32>
    %289 = arith.andi %286, %288 : vector<16x16x4xi1>
    %cst_134 = arith.constant 0xFF800000 : f32
    %290 = vector.broadcast %cst_134 : f32 to vector<16x16x4xf32>
    %291 = arith.select %289, %284, %290 : vector<16x16x4xi1>, vector<16x16x4xf32>
    %292 = arith.maximumf %283, %291 : vector<16x16x4xf32>
    %c15_i32_135 = arith.constant 15 : i32
    %293 = tpu.dynamic_rotate %1 by %c15_i32_135 dim 1 : vector<16x16x4xf32>, i32 -> vector<16x16x4xf32>
    %c-1_i32_136 = arith.constant -1 : i32
    %294 = vector.broadcast %c-1_i32_136 : i32 to vector<16x16x4xi32>
    %295 = arith.cmpi sge, %261, %294 : vector<16x16x4xi32>
    %c15_i32_137 = arith.constant 15 : i32
    %296 = vector.broadcast %c15_i32_137 : i32 to vector<16x16x4xi32>
    %297 = arith.cmpi slt, %261, %296 : vector<16x16x4xi32>
    %298 = arith.andi %295, %297 : vector<16x16x4xi1>
    %cst_138 = arith.constant 0xFF800000 : f32
    %299 = vector.broadcast %cst_138 : f32 to vector<16x16x4xf32>
    %300 = arith.select %298, %293, %299 : vector<16x16x4xi1>, vector<16x16x4xf32>
    %301 = arith.maximumf %292, %300 : vector<16x16x4xf32>
    %cst_139 = arith.constant 0xFF800000 : f32
    %302 = vector.broadcast %cst_139 : f32 to vector<1x16x4xf32>
    %303 = vector.extract_strided_slice %1 {offsets = [1, 0, 0], sizes = [15, 16, 4], strides = [1, 1, 1]} : vector<16x16x4xf32> to vector<15x16x4xf32>
    %304 = tpu.concatenate %303, %302 in 0 : vector<15x16x4xf32>, vector<1x16x4xf32> -> vector<16x16x4xf32>
    %c1_i32_140 = arith.constant 1 : i32
    %305 = tpu.dynamic_rotate %304 by %c1_i32_140 dim 1 : vector<16x16x4xf32>, i32 -> vector<16x16x4xf32>
    %c1_i32_141 = arith.constant 1 : i32
    %306 = vector.broadcast %c1_i32_141 : i32 to vector<16x16x4xi32>
    %307 = arith.cmpi sge, %261, %306 : vector<16x16x4xi32>
    %c17_i32_142 = arith.constant 17 : i32
    %308 = vector.broadcast %c17_i32_142 : i32 to vector<16x16x4xi32>
    %309 = arith.cmpi slt, %261, %308 : vector<16x16x4xi32>
    %310 = arith.andi %307, %309 : vector<16x16x4xi1>
    %cst_143 = arith.constant 0xFF800000 : f32
    %311 = vector.broadcast %cst_143 : f32 to vector<16x16x4xf32>
    %312 = arith.select %310, %305, %311 : vector<16x16x4xi1>, vector<16x16x4xf32>
    %313 = arith.maximumf %301, %312 : vector<16x16x4xf32>
    %314 = arith.maximumf %313, %304 : vector<16x16x4xf32>
    %c15_i32_144 = arith.constant 15 : i32
    %315 = tpu.dynamic_rotate %304 by %c15_i32_144 dim 1 : vector<16x16x4xf32>, i32 -> vector<16x16x4xf32>
    %c-1_i32_145 = arith.constant -1 : i32
    %316 = vector.broadcast %c-1_i32_145 : i32 to vector<16x16x4xi32>
    %317 = arith.cmpi sge, %261, %316 : vector<16x16x4xi32>
    %c15_i32_146 = arith.constant 15 : i32
    %318 = vector.broadcast %c15_i32_146 : i32 to vector<16x16x4xi32>
    %319 = arith.cmpi slt, %261, %318 : vector<16x16x4xi32>
    %320 = arith.andi %317, %319 : vector<16x16x4xi1>
    %cst_147 = arith.constant 0xFF800000 : f32
    %321 = vector.broadcast %cst_147 : f32 to vector<16x16x4xf32>
    %322 = arith.select %320, %315, %321 : vector<16x16x4xi1>, vector<16x16x4xf32>
    %323 = arith.maximumf %314, %322 : vector<16x16x4xf32>
    %c0_148 = arith.constant 0 : index
    %c0_149 = arith.constant 0 : index
    %324 = vector.load %arg8[%c0_148, %c0_149] : memref<4x8xf32, #tpu.memory_space<vmem>>, vector<4x8xf32>
    %cst_150 = arith.constant dense<0.000000e+00> : vector<16x16x8xf32>
    %325 = tpu.matmul %323, %324, %cst_150 {dimension_numbers = #tpu.dot_dimension_numbers<[2], [0], [0, 1], [1], [0, 0, 0, 1, 1, 1], [], []>} : vector<16x16x4xf32>, vector<4x8xf32>, vector<16x16x8xf32> -> vector<16x16x8xf32>
    %c0_151 = arith.constant 0 : index
    %c0_152 = arith.constant 0 : index
    %326 = vector.load %arg9[%c0_151, %c0_152] : memref<1x8xf32, #tpu.memory_space<vmem>>, vector<1x8xf32>
    %327 = vector.shape_cast %326 : vector<1x8xf32> to vector<1x1x8xf32>
    %328 = vector.broadcast %327 : vector<1x1x8xf32> to vector<16x16x8xf32>
    %329 = arith.addf %325, %328 : vector<16x16x8xf32>
    %cst_153 = arith.constant 0.000000e+00 : f32
    %330 = vector.broadcast %cst_153 : f32 to vector<16x16x8xf32>
    %331 = arith.maximumf %329, %330 : vector<16x16x8xf32>
    %332 = tpu.concatenate %10, %76, %260, %331 in 2 : vector<16x16x8xf32>, vector<16x16x8xf32>, vector<16x16x8xf32>, vector<16x16x8xf32> -> vector<16x16x32xf32>
    %c0_154 = arith.constant 0 : index
    %c0_155 = arith.constant 0 : index
    %c0_156 = arith.constant 0 : index
    %c0_157 = arith.constant 0 : index
    %333 = vector.load %arg10[%c0_154, %c0_155, %c0_156, %c0_157] : memref<1x16x16x32xf32, #tpu.memory_space<vmem>>, vector<1x16x16x32xf32>
    %334 = vector.shape_cast %333 : vector<1x16x16x32xf32> to vector<16x16x32xf32>
    %335 = vector.shape_cast %332 : vector<16x16x32xf32> to vector<1x16x16x32xf32>
    tpu.vector_store %arg10[%c0_154, %c0_155, %c0_156, %c0_157], %335 {strides = array<i32>} : memref<1x16x16x32xf32, #tpu.memory_space<vmem>>, vector<1x16x16x32xf32>,
    return
  }
  func.func @transform_0(%arg0: i32) -> (i32, i32, i32, i32) {
    %c0_i32 = arith.constant 0 : i32
    %c0_i32_0 = arith.constant 0 : i32
    %c0_i32_1 = arith.constant 0 : i32
    %c0_i32_2 = arith.constant 0 : i32
    return %arg0, %c0_i32, %c0_i32_0, %c0_i32_1 : i32, i32, i32, i32
  }
  func.func @transform_1(%arg0: i32) -> (i32, i32) {
    %c0_i32 = arith.constant 0 : i32
    %c0_i32_0 = arith.constant 0 : i32
    %c0_i32_1 = arith.constant 0 : i32
    return %c0_i32, %c0_i32_0 : i32, i32
  }
  func.func @transform_2(%arg0: i32) -> (i32, i32) {
    %c0_i32 = arith.constant 0 : i32
    %c0_i32_0 = arith.constant 0 : i32
    %c0_i32_1 = arith.constant 0 : i32
    return %c0_i32, %c0_i32_0 : i32, i32
  }
  func.func @transform_3(%arg0: i32) -> (i32, i32) {
    %c0_i32 = arith.constant 0 : i32
    %c0_i32_0 = arith.constant 0 : i32
    %c0_i32_1 = arith.constant 0 : i32
    return %c0_i32, %c0_i32_0 : i32, i32
  }
  func.func @transform_4(%arg0: i32) -> (i32, i32) {
    %c0_i32 = arith.constant 0 : i32
    %c0_i32_0 = arith.constant 0 : i32
    %c0_i32_1 = arith.constant 0 : i32
    return %c0_i32, %c0_i32_0 : i32, i32
  }
  func.func @transform_5(%arg0: i32) -> (i32, i32) {
    %c0_i32 = arith.constant 0 : i32
    %c0_i32_0 = arith.constant 0 : i32
    %c0_i32_1 = arith.constant 0 : i32
    return %c0_i32, %c0_i32_0 : i32, i32
  }
  func.func @transform_6(%arg0: i32) -> (i32, i32) {
    %c0_i32 = arith.constant 0 : i32
    %c0_i32_0 = arith.constant 0 : i32
    %c0_i32_1 = arith.constant 0 : i32
    return %c0_i32, %c0_i32_0 : i32, i32
  }
  func.func @transform_7(%arg0: i32) -> (i32, i32) {
    %c0_i32 = arith.constant 0 : i32
    %c0_i32_0 = arith.constant 0 : i32
    %c0_i32_1 = arith.constant 0 : i32
    return %c0_i32, %c0_i32_0 : i32, i32
  }
  func.func @transform_8(%arg0: i32) -> (i32, i32) {
    %c0_i32 = arith.constant 0 : i32
    %c0_i32_0 = arith.constant 0 : i32
    %c0_i32_1 = arith.constant 0 : i32
    return %c0_i32, %c0_i32_0 : i32, i32
  }
  func.func @transform_9(%arg0: i32) -> (i32, i32, i32, i32) {
    %c0_i32 = arith.constant 0 : i32
    %c0_i32_0 = arith.constant 0 : i32
    %c0_i32_1 = arith.constant 0 : i32
    %c0_i32_2 = arith.constant 0 : i32
    return %arg0, %c0_i32, %c0_i32_0, %c0_i32_1 : i32, i32, i32, i32
  }
}

</mosaic_0001>

<llo_original>
// kernel: inception_forward.1
$region0: #{inception_forward.1}
  #allocation0 [shape = 'u32[]', space=smem, size = 0x4, offset = 0x4, fixed_abs, tag = 'smem constant byte address 0x4 - core index']
  #allocation1 [shape = 'u32[72,128]{1,0:T(1,128)}', space=vmem, size = 0x9000, scoped, tag = 'internal scratch']
  %s0 = inlined_call_operand.vmem [shape: f32[2,16,16,4], index: 0, kind: input, shape index: {}]
  %s1 = inlined_call_operand.vmem [shape: f32[4,16], index: 1, kind: input, shape index: {}]
  %s2 = inlined_call_operand.vmem [shape: f32[1,16], index: 2, kind: input, shape index: {}]
  %s3 = inlined_call_operand.vmem [shape: f32[36,8], index: 3, kind: input, shape index: {}]
  %s4 = inlined_call_operand.vmem [shape: f32[1,8], index: 4, kind: input, shape index: {}]
  %s5 = inlined_call_operand.vmem [shape: f32[100,8], index: 5, kind: input, shape index: {}]
  %s6 = inlined_call_operand.vmem [shape: f32[1,8], index: 6, kind: input, shape index: {}]
  %s7 = inlined_call_operand.vmem [shape: f32[4,8], index: 7, kind: input, shape index: {}]
  %s8 = inlined_call_operand.vmem [shape: f32[1,8], index: 8, kind: input, shape index: {}]
  %s9 = inlined_call_operand.hbm [shape: f32[2,16,16,32], index: 9, kind: output, shape index: {}]
  %s10 = sld [smem:[#allocation0]]
  $region69: #{inception_forward.1} parent=0
    _
  %s12 = ssub.s32 1, %s10
  %s13 = scalar_select 0, %s12, %s10
  $region1: #{inception_forward.1} parent=0
    #allocation2 [shape = 'u8[262144]{0}', space=vmem, size = 0x40000, scoped, tag = 'output window, operand 0']
    #allocation3 [shape = 's32[2]{0}', space=sflag, size = 0x8, scoped, tag = 'scoped memory for inception_forward.1']
    %14 = vsyncpa [#allocation3], 0
    %s15 = scalar_lea.sflag [#allocation3], 1
    %16 = vsyncpa %s15, 0
    loop: start=0, step=1, limit=4
    $region2: #{inception_forward.1} parent=1 // loop_pre_header
      _
    $region3: #{inception_forward.1} parent=1 // loop_header
      %s18 = sphi 0, %s22
      %p19 = scmp.ge.s32.totalorder %s18, 4
      %s28 = sphi 0, %s30
      %s31 = sphi 0, %s28
      %s32 = sphi 0, %s31
      %s48 = sphi 0, %s32
      %s52 = sphi 0, %s52
      %s54 = sphi 0, %s52
      %s55 = sphi 0, %s54
      %s69 = sphi 0, %s55
      %s73 = sphi 0, %s73
      %s75 = sphi 0, %s73
      %s76 = sphi 0, %s75
      %s90 = sphi 0, %s76
      %s94 = sphi 0, %s94
      %s96 = sphi 0, %s94
      %s97 = sphi 0, %s96
      %s111 = sphi 0, %s97
      %s115 = sphi 0, %s115
      %s117 = sphi 0, %s115
      %s118 = sphi 0, %s117
      %s132 = sphi 0, %s118
      %s136 = sphi 0, %s136
      %s138 = sphi 0, %s136
      %s139 = sphi 0, %s138
      %s153 = sphi 0, %s139
      %s157 = sphi 0, %s157
      %s159 = sphi 0, %s157
      %s160 = sphi 0, %s159
      %s174 = sphi 0, %s160
      %s178 = sphi 0, %s178
      %s180 = sphi 0, %s178
      %s181 = sphi 0, %s180
      %s195 = sphi 0, %s181
      %s199 = sphi 0, %s199
      %s201 = sphi 0, %s199
      %s202 = sphi 0, %s201
      %s216 = sphi 0, %s202
      %s222 = sphi 0, %s224
      %s225 = sphi 0, %s222
      %s226 = sphi 0, %s225
      %s242 = sphi 0, %s226
    $region4: #{inception_forward.1} parent=1 // loop_header_branch
      %21 = sbr.rel (%p19) target = $region8
    $region5: #{inception_forward.1} parent=1 // loop_body
      %s23 = ssub.s32 %s18, 1
      %s24 = ssub.s32 %s18, 2
      %s25 = sadd.s32 %s18, 1
      %s26 = ssub.s32 %s18, %s25
      %p27 = scmp.eq.s32.totalorder %s26, 0
      %s29 = sadd.s32 %s28, 1
      %s30 = scalar_select %p27, %s28, %s29
      %p33 = pneg %p27
      %p34 = scmp.eq.s32.totalorder %s18, 1
      %p35 = por %p33, %p34
      %p36 = scmp.ne.s32.totalorder %s28, %s31
      %p37 = scmp.eq.s32.totalorder %s18, 0
      %p38 = por %p36, %p37
      %p39 = scmp.ne.s32.totalorder %s28, %s31
      %p40 = scmp.eq.s32.totalorder %s23, 1
      %p41 = por %p39, %p40
      %p42 = scmp.ne.s32.totalorder %s31, %s32
      %p43 = scmp.eq.s32.totalorder %s23, 0
      %p44 = por %p42, %p43
      %p45 = scmp.ne.s32.totalorder %s31, %s32
      %p46 = scmp.eq.s32.totalorder %s24, 1
      %p47 = por %p45, %p46
      %p49 = scmp.ne.s32.totalorder %s32, %s48
      %p50 = scmp.eq.s32.totalorder %s24, 0
      %p51 = por %p49, %p50
      %s53 = sadd.s32 %s52, 1
      %p56 = scmp.eq.s32.totalorder %s18, 1
      %p57 = scmp.ne.s32.totalorder %s52, %s54
      %p58 = scmp.eq.s32.totalorder %s18, 0
      %p59 = por %p57, %p58
      %p60 = scmp.ne.s32.totalorder %s52, %s54
      %p61 = scmp.eq.s32.totalorder %s23, 1
      %p62 = por %p60, %p61
      %p63 = scmp.ne.s32.totalorder %s54, %s55
      %p64 = scmp.eq.s32.totalorder %s23, 0
      %p65 = por %p63, %p64
      %p66 = scmp.ne.s32.totalorder %s54, %s55
      %p67 = scmp.eq.s32.totalorder %s24, 1
      %p68 = por %p66, %p67
      %p70 = scmp.ne.s32.totalorder %s55, %s69
      %p71 = scmp.eq.s32.totalorder %s24, 0
      %p72 = por %p70, %p71
      %s74 = sadd.s32 %s73, 1
      %p77 = scmp.eq.s32.totalorder %s18, 1
      %p78 = scmp.ne.s32.totalorder %s73, %s75
      %p79 = scmp.eq.s32.totalorder %s18, 0
      %p80 = por %p78, %p79
      %p81 = scmp.ne.s32.totalorder %s73, %s75
      %p82 = scmp.eq.s32.totalorder %s23, 1
      %p83 = por %p81, %p82
      %p84 = scmp.ne.s32.totalorder %s75, %s76
      %p85 = scmp.eq.s32.totalorder %s23, 0
      %p86 = por %p84, %p85
      %p87 = scmp.ne.s32.totalorder %s75, %s76
      %p88 = scmp.eq.s32.totalorder %s24, 1
      %p89 = por %p87, %p88
      %p91 = scmp.ne.s32.totalorder %s76, %s90
      %p92 = scmp.eq.s32.totalorder %s24, 0
      %p93 = por %p91, %p92
      %s95 = sadd.s32 %s94, 1
      %p98 = scmp.eq.s32.totalorder %s18, 1
      %p99 = scmp.ne.s32.totalorder %s94, %s96
      %p100 = scmp.eq.s32.totalorder %s18, 0
      %p101 = por %p99, %p100
      %p102 = scmp.ne.s32.totalorder %s94, %s96
      %p103 = scmp.eq.s32.totalorder %s23, 1
      %p104 = por %p102, %p103
      %p105 = scmp.ne.s32.totalorder %s96, %s97
      %p106 = scmp.eq.s32.totalorder %s23, 0
      %p107 = por %p105, %p106
      %p108 = scmp.ne.s32.totalorder %s96, %s97
      %p109 = scmp.eq.s32.totalorder %s24, 1
      %p110 = por %p108, %p109
      %p112 = scmp.ne.s32.totalorder %s97, %s111
      %p113 = scmp.eq.s32.totalorder %s24, 0
      %p114 = por %p112, %p113
      %s116 = sadd.s32 %s115, 1
      %p119 = scmp.eq.s32.totalorder %s18, 1
      %p120 = scmp.ne.s32.totalorder %s115, %s117
      %p121 = scmp.eq.s32.totalorder %s18, 0
      %p122 = por %p120, %p121
      %p123 = scmp.ne.s32.totalorder %s115, %s117
      %p124 = scmp.eq.s32.totalorder %s23, 1
      %p125 = por %p123, %p124
      %p126 = scmp.ne.s32.totalorder %s117, %s118
      %p127 = scmp.eq.s32.totalorder %s23, 0
      %p128 = por %p126, %p127
      %p129 = scmp.ne.s32.totalorder %s117, %s118
      %p130 = scmp.eq.s32.totalorder %s24, 1
      %p131 = por %p129, %p130
      %p133 = scmp.ne.s32.totalorder %s118, %s132
      %p134 = scmp.eq.s32.totalorder %s24, 0
      %p135 = por %p133, %p134
      %s137 = sadd.s32 %s136, 1
      %p140 = scmp.eq.s32.totalorder %s18, 1
      %p141 = scmp.ne.s32.totalorder %s136, %s138
      %p142 = scmp.eq.s32.totalorder %s18, 0
      %p143 = por %p141, %p142
      %p144 = scmp.ne.s32.totalorder %s136, %s138
      %p145 = scmp.eq.s32.totalorder %s23, 1
      %p146 = por %p144, %p145
      %p147 = scmp.ne.s32.totalorder %s138, %s139
      %p148 = scmp.eq.s32.totalorder %s23, 0
      %p149 = por %p147, %p148
      %p150 = scmp.ne.s32.totalorder %s138, %s139
      %p151 = scmp.eq.s32.totalorder %s24, 1
      %p152 = por %p150, %p151
      %p154 = scmp.ne.s32.totalorder %s139, %s153
      %p155 = scmp.eq.s32.totalorder %s24, 0
      %p156 = por %p154, %p155
      %s158 = sadd.s32 %s157, 1
      %p161 = scmp.eq.s32.totalorder %s18, 1
      %p162 = scmp.ne.s32.totalorder %s157, %s159
      %p163 = scmp.eq.s32.totalorder %s18, 0
      %p164 = por %p162, %p163
      %p165 = scmp.ne.s32.totalorder %s157, %s159
      %p166 = scmp.eq.s32.totalorder %s23, 1
      %p167 = por %p165, %p166
      %p168 = scmp.ne.s32.totalorder %s159, %s160
      %p169 = scmp.eq.s32.totalorder %s23, 0
      %p170 = por %p168, %p169
      %p171 = scmp.ne.s32.totalorder %s159, %s160
      %p172 = scmp.eq.s32.totalorder %s24, 1
      %p173 = por %p171, %p172
      %p175 = scmp.ne.s32.totalorder %s160, %s174
      %p176 = scmp.eq.s32.totalorder %s24, 0
      %p177 = por %p175, %p176
      %s179 = sadd.s32 %s178, 1
      %p182 = scmp.eq.s32.totalorder %s18, 1
      %p183 = scmp.ne.s32.totalorder %s178, %s180
      %p184 = scmp.eq.s32.totalorder %s18, 0
      %p185 = por %p183, %p184
      %p186 = scmp.ne.s32.totalorder %s178, %s180
      %p187 = scmp.eq.s32.totalorder %s23, 1
      %p188 = por %p186, %p187
      %p189 = scmp.ne.s32.totalorder %s180, %s181
      %p190 = scmp.eq.s32.totalorder %s23, 0
      %p191 = por %p189, %p190
      %p192 = scmp.ne.s32.totalorder %s180, %s181
      %p193 = scmp.eq.s32.totalorder %s24, 1
      %p194 = por %p192, %p193
      %p196 = scmp.ne.s32.totalorder %s181, %s195
      %p197 = scmp.eq.s32.totalorder %s24, 0
      %p198 = por %p196, %p197
      %s200 = sadd.s32 %s199, 1
      %p203 = scmp.eq.s32.totalorder %s18, 1
      %p204 = scmp.ne.s32.totalorder %s199, %s201
      %p205 = scmp.eq.s32.totalorder %s18, 0
      %p206 = por %p204, %p205
      %p207 = scmp.ne.s32.totalorder %s199, %s201
      %p208 = scmp.eq.s32.totalorder %s23, 1
      %p209 = por %p207, %p208
      %p210 = scmp.ne.s32.totalorder %s201, %s202
      %p211 = scmp.eq.s32.totalorder %s23, 0
      %p212 = por %p210, %p211
      %p213 = scmp.ne.s32.totalorder %s201, %s202
      %p214 = scmp.eq.s32.totalorder %s24, 1
      %p215 = por %p213, %p214
      %p217 = scmp.ne.s32.totalorder %s202, %s216
      %p218 = scmp.eq.s32.totalorder %s24, 0
      %p219 = por %p217, %p218
      %s220 = ssub.s32 %s18, %s25
      %p221 = scmp.eq.s32.totalorder %s220, 0
      %s223 = sadd.s32 %s222, 1
      %s224 = scalar_select %p221, %s222, %s223
      %p227 = pneg %p221
      %p228 = scmp.eq.s32.totalorder %s18, 1
      %p229 = por %p227, %p228
      %p230 = scmp.ne.s32.totalorder %s222, %s225
      %p231 = scmp.eq.s32.totalorder %s18, 0
      %p232 = por %p230, %p231
      %p233 = scmp.ne.s32.totalorder %s222, %s225
      %p234 = scmp.eq.s32.totalorder %s23, 1
      %p235 = por %p233, %p234
      %p236 = scmp.ne.s32.totalorder %s225, %s226
      %p237 = scmp.eq.s32.totalorder %s23, 0
      %p238 = por %p236, %p237
      %p239 = scmp.ne.s32.totalorder %s225, %s226
      %p240 = scmp.eq.s32.totalorder %s24, 1
      %p241 = por %p239, %p240
      %p243 = scmp.ne.s32.totalorder %s226, %s242
      %p244 = scmp.eq.s32.totalorder %s24, 0
      %p245 = por %p243, %p244
      %p246 = scmp.le.s32.totalorder 1, %s18
      %p247 = scmp.lt.s32.totalorder %s18, 3
      %p248 = pnand %p246, %p247
      %p249 = pneg %p248
      // Predicated region
      $region9: #{inception_forward.1} parent=5 // pred_check
        _
      $region10: #{inception_forward.1} parent=5 // pred_check_branch
        %251 = sbr.rel (%p248) target = $region12
      $region11: #{inception_forward.1} parent=5 // pred_region
        %s252 = ssub.s32 %s18, 1
        // Predicated region
        $region13: #{inception_forward.1} parent=11 // pred_check
          %p253 = pneg %p65
        $region14: #{inception_forward.1} parent=11 // pred_check_branch
          %255 = sbr.rel (%p253) target = $region16
        $region15: #{inception_forward.1} parent=11 // pred_region
          _
        $region16: #{inception_forward.1} parent=11 // pred_fallthru
          _
        // Predicated region
        $region17: #{inception_forward.1} parent=11 // pred_check
          %p256 = pneg %p86
        $region18: #{inception_forward.1} parent=11 // pred_check_branch
          %258 = sbr.rel (%p256) target = $region20
        $region19: #{inception_forward.1} parent=11 // pred_region
          _
        $region20: #{inception_forward.1} parent=11 // pred_fallthru
          _
        // Predicated region
        $region21: #{inception_forward.1} parent=11 // pred_check
          %p259 = pneg %p107
        $region22: #{inception_forward.1} parent=11 // pred_check_branch
          %261 = sbr.rel (%p259) target = $region24
        $region23: #{inception_forward.1} parent=11 // pred_region
          _
        $region24: #{inception_forward.1} parent=11 // pred_fallthru
          _
        // Predicated region
        $region25: #{inception_forward.1} parent=11 // pred_check
          %p262 = pneg %p128
        $region26: #{inception_forward.1} parent=11 // pred_check_branch
          %264 = sbr.rel (%p262) target = $region28
        $region27: #{inception_forward.1} parent=11 // pred_region
          _
        $region28: #{inception_forward.1} parent=11 // pred_fallthru
          _
        // Predicated region
        $region29: #{inception_forward.1} parent=11 // pred_check
          %p265 = pneg %p149
        $region30: #{inception_forward.1} parent=11 // pred_check_branch
          %267 = sbr.rel (%p265) target = $region32
        $region31: #{inception_forward.1} parent=11 // pred_region
          _
        $region32: #{inception_forward.1} parent=11 // pred_fallthru
          _
        // Predicated region
        $region33: #{inception_forward.1} parent=11 // pred_check
          %p268 = pneg %p170
        $region34: #{inception_forward.1} parent=11 // pred_check_branch
          %270 = sbr.rel (%p268) target = $region36
        $region35: #{inception_forward.1} parent=11 // pred_region
          _
        $region36: #{inception_forward.1} parent=11 // pred_fallthru
          _
        // Predicated region
        $region37: #{inception_forward.1} parent=11 // pred_check
          %p271 = pneg %p191
        $region38: #{inception_forward.1} parent=11 // pred_check_branch
          %273 = sbr.rel (%p271) target = $region40
        $region39: #{inception_forward.1} parent=11 // pred_region
          _
        $region40: #{inception_forward.1} parent=11 // pred_fallthru
          _
        // Predicated region
        $region41: #{inception_forward.1} parent=11 // pred_check
          %p274 = pneg %p212
        $region42: #{inception_forward.1} parent=11 // pred_check_branch
          %276 = sbr.rel (%p274) target = $region44
        $region43: #{inception_forward.1} parent=11 // pred_region
          _
        $region44: #{inception_forward.1} parent=11 // pred_fallthru
          _
      $region12: #{inception_forward.1} parent=5 // pred_fallthru
        _
      %p277 = scmp.lt.s32.totalorder %s18, 2
      // Predicated region
      $region45: #{inception_forward.1} parent=5 // pred_check
        %p278 = pneg %p277
      $region46: #{inception_forward.1} parent=5 // pred_check_branch
        %280 = sbr.rel (%p278) target = $region48
      $region47: #{inception_forward.1} parent=5 // pred_region
        // Predicated region
        $region49: #{inception_forward.1} parent=47 // pred_check
          %p281 = pneg %p38
        $region50: #{inception_forward.1} parent=47 // pred_check_branch
          %283 = sbr.rel (%p281) target = $region52
        $region51: #{inception_forward.1} parent=47 // pred_region
          %p284 = scmp.lt.s32.totalorder %s18, 1
          %s285 = scalar_select %p284, %s18, 1
          %s286 = smul.addr %s285, 32
          %s287 = smul.addr %s286, 8
          %s288 = scalar_lea.vmem %s0, %s287
        $region52: #{inception_forward.1} parent=47 // pred_fallthru
          _
      $region48: #{inception_forward.1} parent=5 // pred_fallthru
        _
      %p289 = scmp.le.s32.totalorder 1, %s18
      %p290 = scmp.lt.s32.totalorder %s18, 3
      %p291 = pnand %p289, %p290
      %p292 = pneg %p291
      // Predicated region
      $region53: #{inception_forward.1} parent=5 // pred_check
        _
      $region54: #{inception_forward.1} parent=5 // pred_check_branch
        %294 = sbr.rel (%p291) target = $region56
      $region55: #{inception_forward.1} parent=5 // pred_region
        %s295 = ssub.s32 %s18, 1
        %p296 = scmp.lt.s32.totalorder %s23, 1
        %s297 = scalar_select %p296, %s23, 1
        %s298 = smul.addr %s297, 32
        %s299 = smul.addr %s298, 8
        %s300 = scalar_lea.vmem %s0, %s299
        %p301 = pneg %p44
        %p302 = pneg %p41
        %p303 = pneg %p65
        %p304 = pneg %p62
        %p305 = pneg %p86
        %p306 = pneg %p83
        %p307 = pneg %p107
        %p308 = pneg %p104
        %p309 = pneg %p128
        %p310 = pneg %p125
        %p311 = pneg %p149
        %p312 = pneg %p146
        %p313 = pneg %p170
        %p314 = pneg %p167
        %p315 = pneg %p191
        %p316 = pneg %p188
        %p317 = pneg %p212
        %p318 = pneg %p209
        %p319 = pneg %p238
        %p320 = pneg %p235
        %s321 = sand.u32 %s225, 1
        %s322 = scalar_lea.sflag [#allocation3], %s321
        %s323 = sand.u32 %s225, 1
        %s324 = smul.addr %s323, 256
        %s325 = scalar_lea.vmem [#allocation2], %s324
        %p326 = scmp.lt.s32.totalorder %s23, 1
        %s327 = scalar_select %p326, %s23, 1
        %s328 = smul.addr %s327, 32
        %s329 = smul.addr %s328, 8
        %s330 = scalar_lea.vmem %s0, %s329
        %v331 = vld [vmem:[%s330] sm:$0xff]
        %v332 = vld [vmem:[%s330 + $0x8] sm:$0xff]
        %v333 = vld [vmem:[%s330 + $0x10] sm:$0xff]
        %v334 = vld [vmem:[%s330 + $0x18] sm:$0xff]
        %v335 = vld [vmem:[%s330 + $0x20] sm:$0xff]
        %v336 = vld [vmem:[%s330 + $0x28] sm:$0xff]
        %v337 = vld [vmem:[%s330 + $0x30] sm:$0xff]
        %v338 = vld [vmem:[%s330 + $0x38] sm:$0xff]
        %v339 = vld [vmem:[%s330 + $0x40] sm:$0xff]
        %v340 = vld [vmem:[%s330 + $0x48] sm:$0xff]
        %v341 = vld [vmem:[%s330 + $0x50] sm:$0xff]
        %v342 = vld [vmem:[%s330 + $0x58] sm:$0xff]
        %v343 = vld [vmem:[%s330 + $0x60] sm:$0xff]
        %v344 = vld [vmem:[%s330 + $0x68] sm:$0xff]
        %v345 = vld [vmem:[%s330 + $0x70] sm:$0xff]
        %v346 = vld [vmem:[%s330 + $0x78] sm:$0xff]
        %v347 = vld [vmem:[%s330 + $0x80] sm:$0xff]
        %v348 = vld [vmem:[%s330 + $0x88] sm:$0xff]
        %v349 = vld [vmem:[%s330 + $0x90] sm:$0xff]
        %v350 = vld [vmem:[%s330 + $0x98] sm:$0xff]
        %v351 = vld [vmem:[%s330 + $0xa0] sm:$0xff]
        %v352 = vld [vmem:[%s330 + $0xa8] sm:$0xff]
        %v353 = vld [vmem:[%s330 + $0xb0] sm:$0xff]
        %v354 = vld [vmem:[%s330 + $0xb8] sm:$0xff]
        %v355 = vld [vmem:[%s330 + $0xc0] sm:$0xff]
        %v356 = vld [vmem:[%s330 + $0xc8] sm:$0xff]
        %v357 = vld [vmem:[%s330 + $0xd0] sm:$0xff]
        %v358 = vld [vmem:[%s330 + $0xd8] sm:$0xff]
        %v359 = vld [vmem:[%s330 + $0xe0] sm:$0xff]
        %v360 = vld [vmem:[%s330 + $0xe8] sm:$0xff]
        %v361 = vld [vmem:[%s330 + $0xf0] sm:$0xff]
        %v362 = vld [vmem:[%s330 + $0xf8] sm:$0xff]
        %v363 = vld [vmem:[%s1] sm:$0xf]
        %v364 = vld [vmem:[%s2] sm:$0x1]
        %v366 = vperm.slane %v364, 0
        %vm368 = vcmask 31744
        %v370 = vsel %vm368, %v331, 0
        %v373 = vsel %vm368, %v332, 0
        %v376 = vsel %vm368, %v333, 0
        %v379 = vsel %vm368, %v334, 0
        %v382 = vsel %vm368, %v335, 0
        %v385 = vsel %vm368, %v336, 0
        %v388 = vsel %vm368, %v337, 0
        %v391 = vsel %vm368, %v338, 0
        %v394 = vsel %vm368, %v339, 0
        %v397 = vsel %vm368, %v340, 0
        %v400 = vsel %vm368, %v341, 0
        %v403 = vsel %vm368, %v342, 0
        %v406 = vsel %vm368, %v343, 0
        %v409 = vsel %vm368, %v344, 0
        %v412 = vsel %vm368, %v345, 0
        %v415 = vsel %vm368, %v346, 0
        %v418 = vsel %vm368, %v347, 0
        %v421 = vsel %vm368, %v348, 0
        %v424 = vsel %vm368, %v349, 0
        %v427 = vsel %vm368, %v350, 0
        %v430 = vsel %vm368, %v351, 0
        %v433 = vsel %vm368, %v352, 0
        %v436 = vsel %vm368, %v353, 0
        %v439 = vsel %vm368, %v354, 0
        %v442 = vsel %vm368, %v355, 0
        %v445 = vsel %vm368, %v356, 0
        %v448 = vsel %vm368, %v357, 0
        %v451 = vsel %vm368, %v358, 0
        %v454 = vsel %vm368, %v359, 0
        %v457 = vsel %vm368, %v360, 0
        %v460 = vsel %vm368, %v361, 0
        %v463 = vsel %vm368, %v362, 0
        %vm465 = vcmask 1043456
        %v467 = vsel %vm465, %v363, 0
        %469 = vmatpush.msra.mxu0 0.0
        %470 = vmatpush.msra.mxu0 0.0
        %471 = vmatpush.msra.mxu0 0.0
        %472 = vmatpush.msra.mxu0 0.0
        %473 = vmatpush.msra.mxu0 0.0
        %474 = vmatpush.msra.mxu0 0.0
        %475 = vmatpush.msra.mxu0 0.0
        %476 = vmatpush.msra.mxu0 0.0
        %477 = vmatpush.msra.mxu0 0.0
        %478 = vmatpush.msra.mxu0 0.0
        %479 = vmatpush.msra.mxu0 0.0
        %480 = vmatpush.msra.mxu0 0.0
        %481 = vmatpush.msra.mxu0 0.0
        %482 = vmatpush.msra.mxu0 0.0
        %483 = vmatpush.msra.mxu0 0.0
        %484 = vmatpush.msra.mxu0 %v467
        %485 = vmatmul.f32.gmra.mxu0 %v370
        %v486 = vpop.f32.mrf.mxu0
        %v487 = vadd.f32 %v366, %v486
        %488 = vmatmul.f32.gmra.mxu0 %v373
        %v489 = vpop.f32.mrf.mxu0
        %v490 = vadd.f32 %v366, %v489
        %491 = vmatmul.f32.gmra.mxu0 %v376
        %v492 = vpop.f32.mrf.mxu0
        %v493 = vadd.f32 %v366, %v492
        %494 = vmatmul.f32.gmra.mxu0 %v379
        %v495 = vpop.f32.mrf.mxu0
        %v496 = vadd.f32 %v366, %v495
        %497 = vmatmul.f32.gmra.mxu0 %v382
        %v498 = vpop.f32.mrf.mxu0
        %v499 = vadd.f32 %v366, %v498
        %500 = vmatmul.f32.gmra.mxu0 %v385
        %v501 = vpop.f32.mrf.mxu0
        %v502 = vadd.f32 %v366, %v501
        %503 = vmatmul.f32.gmra.mxu0 %v388
        %v504 = vpop.f32.mrf.mxu0
        %v505 = vadd.f32 %v366, %v504
        %506 = vmatmul.f32.gmra.mxu0 %v391
        %v507 = vpop.f32.mrf.mxu0
        %v508 = vadd.f32 %v366, %v507
        %509 = vmatmul.f32.gmra.mxu0 %v394
        %v510 = vpop.f32.mrf.mxu0
        %v511 = vadd.f32 %v366, %v510
        %512 = vmatmul.f32.gmra.mxu0 %v397
        %v513 = vpop.f32.mrf.mxu0
        %v514 = vadd.f32 %v366, %v513
        %515 = vmatmul.f32.gmra.mxu0 %v400
        %v516 = vpop.f32.mrf.mxu0
        %v517 = vadd.f32 %v366, %v516
        %518 = vmatmul.f32.gmra.mxu0 %v403
        %v519 = vpop.f32.mrf.mxu0
        %v520 = vadd.f32 %v366, %v519
        %521 = vmatmul.f32.gmra.mxu0 %v406
        %v522 = vpop.f32.mrf.mxu0
        %v523 = vadd.f32 %v366, %v522
        %524 = vmatmul.f32.gmra.mxu0 %v409
        %v525 = vpop.f32.mrf.mxu0
        %v526 = vadd.f32 %v366, %v525
        %527 = vmatmul.f32.gmra.mxu0 %v412
        %v528 = vpop.f32.mrf.mxu0
        %v529 = vadd.f32 %v366, %v528
        %530 = vmatmul.f32.gmra.mxu0 %v415
        %v531 = vpop.f32.mrf.mxu0
        %v532 = vadd.f32 %v366, %v531
        %533 = vmatmul.f32.gmra.mxu0 %v418
        %v534 = vpop.f32.mrf.mxu0
        %v535 = vadd.f32 %v366, %v534
        %536 = vmatmul.f32.gmra.mxu0 %v421
        %v537 = vpop.f32.mrf.mxu0
        %v538 = vadd.f32 %v366, %v537
        %539 = vmatmul.f32.gmra.mxu0 %v424
        %v540 = vpop.f32.mrf.mxu0
        %v541 = vadd.f32 %v366, %v540
        %542 = vmatmul.f32.gmra.mxu0 %v427
        %v543 = vpop.f32.mrf.mxu0
        %v544 = vadd.f32 %v366, %v543
        %545 = vmatmul.f32.gmra.mxu0 %v430
        %v546 = vpop.f32.mrf.mxu0
        %v547 = vadd.f32 %v366, %v546
        %548 = vmatmul.f32.gmra.mxu0 %v433
        %v549 = vpop.f32.mrf.mxu0
        %v550 = vadd.f32 %v366, %v549
        %551 = vmatmul.f32.gmra.mxu0 %v436
        %v552 = vpop.f32.mrf.mxu0
        %v553 = vadd.f32 %v366, %v552
        %554 = vmatmul.f32.gmra.mxu0 %v439
        %v555 = vpop.f32.mrf.mxu0
        %v556 = vadd.f32 %v366, %v555
        %557 = vmatmul.f32.gmra.mxu0 %v442
        %v558 = vpop.f32.mrf.mxu0
        %v559 = vadd.f32 %v366, %v558
        %560 = vmatmul.f32.gmra.mxu0 %v445
        %v561 = vpop.f32.mrf.mxu0
        %v562 = vadd.f32 %v366, %v561
        %563 = vmatmul.f32.gmra.mxu0 %v448
        %v564 = vpop.f32.mrf.mxu0
        %v565 = vadd.f32 %v366, %v564
        %566 = vmatmul.f32.gmra.mxu0 %v451
        %v567 = vpop.f32.mrf.mxu0
        %v568 = vadd.f32 %v366, %v567
        %569 = vmatmul.f32.gmra.mxu0 %v454
        %v570 = vpop.f32.mrf.mxu0
        %v571 = vadd.f32 %v366, %v570
        %572 = vmatmul.f32.gmra.mxu0 %v457
        %v573 = vpop.f32.mrf.mxu0
        %v574 = vadd.f32 %v366, %v573
        %575 = vmatmul.f32.gmra.mxu0 %v460
        %v576 = vpop.f32.mrf.mxu0
        %v577 = vadd.f32 %v366, %v576
        %578 = vmatmul.f32.gmra.mxu0 %v463
        %v579 = vpop.f32.mrf.mxu0
        %v580 = vadd.f32 %v366, %v579
        %581 = vdwg.mxu0
        %v582 = vmax.f32 %v487, 0.0
        %v583 = vmax.f32 %v490, 0.0
        %v584 = vmax.f32 %v493, 0.0
        %v585 = vmax.f32 %v496, 0.0
        %v586 = vmax.f32 %v499, 0.0
        %v587 = vmax.f32 %v502, 0.0
        %v588 = vmax.f32 %v505, 0.0
        %v589 = vmax.f32 %v508, 0.0
        %v590 = vmax.f32 %v511, 0.0
        %v591 = vmax.f32 %v514, 0.0
        %v592 = vmax.f32 %v517, 0.0
        %v593 = vmax.f32 %v520, 0.0
        %v594 = vmax.f32 %v523, 0.0
        %v595 = vmax.f32 %v526, 0.0
        %v596 = vmax.f32 %v529, 0.0
        %v597 = vmax.f32 %v532, 0.0
        %v598 = vmax.f32 %v535, 0.0
        %v599 = vmax.f32 %v538, 0.0
        %v600 = vmax.f32 %v541, 0.0
        %v601 = vmax.f32 %v544, 0.0
        %v602 = vmax.f32 %v547, 0.0
        %v603 = vmax.f32 %v550, 0.0
        %v604 = vmax.f32 %v553, 0.0
        %v605 = vmax.f32 %v556, 0.0
        %v606 = vmax.f32 %v559, 0.0
        %v607 = vmax.f32 %v562, 0.0
        %v608 = vmax.f32 %v565, 0.0
        %v609 = vmax.f32 %v568, 0.0
        %v610 = vmax.f32 %v571, 0.0
        %v611 = vmax.f32 %v574, 0.0
        %v612 = vmax.f32 %v577, 0.0
        %v613 = vmax.f32 %v580, 0.0
        %v614 = vld [vmem:[%s3] sm:$0xff]
        %v615 = vld [vmem:[%s3 + $0x8] sm:$0xff]
        %v616 = vld [vmem:[%s3 + $0x10] sm:$0xff]
        %v617 = vld [vmem:[%s3 + $0x18] sm:$0xff]
        %v618 = vld [vmem:[%s3 + $0x20] sm:$0xf]
        %v619 = vld [vmem:[%s4] sm:$0x1]
        %v620 = vlaneseq
        %v621 = vshrl.u32 %v620, 7
        %v622 = vadd.s32 %v621, 8
        %653 = vrot.lane.b32.xlu0 %v582, 120
        %v654 = vpop.permute.xlu0 %653
        %655 = vrot.lane.b32.xlu0 %v583, 120
        %v656 = vpop.permute.xlu0 %655
        %657 = vrot.lane.b32.xlu0 %v584, 120
        %v658 = vpop.permute.xlu0 %657
        %659 = vrot.lane.b32.xlu0 %v585, 120
        %v660 = vpop.permute.xlu0 %659
        %661 = vrot.lane.b32.xlu0 %v586, 120
        %v662 = vpop.permute.xlu0 %661
        %663 = vrot.lane.b32.xlu0 %v587, 120
        %v664 = vpop.permute.xlu0 %663
        %665 = vrot.lane.b32.xlu0 %v588, 120
        %v666 = vpop.permute.xlu0 %665
        %667 = vrot.lane.b32.xlu0 %v589, 120
        %v668 = vpop.permute.xlu0 %667
        %669 = vrot.lane.b32.xlu0 %v590, 120
        %v670 = vpop.permute.xlu0 %669
        %671 = vrot.lane.b32.xlu0 %v591, 120
        %v672 = vpop.permute.xlu0 %671
        %673 = vrot.lane.b32.xlu0 %v592, 120
        %v674 = vpop.permute.xlu0 %673
        %675 = vrot.lane.b32.xlu0 %v593, 120
        %v676 = vpop.permute.xlu0 %675
        %677 = vrot.lane.b32.xlu0 %v594, 120
        %v678 = vpop.permute.xlu0 %677
        %679 = vrot.lane.b32.xlu0 %v595, 120
        %v680 = vpop.permute.xlu0 %679
        %681 = vrot.lane.b32.xlu0 %v596, 120
        %v682 = vpop.permute.xlu0 %681
        %683 = vrot.lane.b32.xlu0 %v597, 120
        %v684 = vpop.permute.xlu0 %683
        %685 = vrot.lane.b32.xlu0 %v598, 120
        %v686 = vpop.permute.xlu0 %685
        %687 = vrot.lane.b32.xlu0 %v599, 120
        %v688 = vpop.permute.xlu0 %687
        %689 = vrot.lane.b32.xlu0 %v600, 120
        %v690 = vpop.permute.xlu0 %689
        %691 = vrot.lane.b32.xlu0 %v601, 120
        %v692 = vpop.permute.xlu0 %691
        %693 = vrot.lane.b32.xlu0 %v602, 120
        %v694 = vpop.permute.xlu0 %693
        %695 = vrot.lane.b32.xlu0 %v603, 120
        %v696 = vpop.permute.xlu0 %695
        %697 = vrot.lane.b32.xlu0 %v604, 120
        %v698 = vpop.permute.xlu0 %697
        %699 = vrot.lane.b32.xlu0 %v605, 120
        %v700 = vpop.permute.xlu0 %699
        %701 = vrot.lane.b32.xlu0 %v606, 120
        %v702 = vpop.permute.xlu0 %701
        %703 = vrot.lane.b32.xlu0 %v607, 120
        %v704 = vpop.permute.xlu0 %703
        %705 = vrot.lane.b32.xlu0 %v608, 120
        %v706 = vpop.permute.xlu0 %705
        %707 = vrot.lane.b32.xlu0 %v609, 120
        %v708 = vpop.permute.xlu0 %707
        %709 = vrot.lane.b32.xlu0 %v610, 120
        %v710 = vpop.permute.xlu0 %709
        %711 = vrot.lane.b32.xlu0 %v611, 120
        %v712 = vpop.permute.xlu0 %711
        %v743 = vrot.slane %v654, 7
        %v744 = vrot.slane %v658, 7
        %v745 = vrot.slane %v662, 7
        %v746 = vrot.slane %v666, 7
        %v747 = vrot.slane %v670, 7
        %v748 = vrot.slane %v674, 7
        %v749 = vrot.slane %v678, 7
        %v750 = vrot.slane %v682, 7
        %v751 = vrot.slane %v686, 7
        %v752 = vrot.slane %v690, 7
        %v753 = vrot.slane %v694, 7
        %v754 = vrot.slane %v698, 7
        %v755 = vrot.slane %v702, 7
        %v756 = vrot.slane %v706, 7
        %v757 = vrot.slane %v710, 7
        %v758 = vrot.slane %v656, 7
        %v759 = vrot.slane %v660, 7
        %v760 = vrot.slane %v664, 7
        %v761 = vrot.slane %v668, 7
        %v762 = vrot.slane %v672, 7
        %v763 = vrot.slane %v676, 7
        %v764 = vrot.slane %v680, 7
        %v765 = vrot.slane %v684, 7
        %v766 = vrot.slane %v688, 7
        %v767 = vrot.slane %v692, 7
        %v768 = vrot.slane %v696, 7
        %v769 = vrot.slane %v700, 7
        %v770 = vrot.slane %v704, 7
        %v771 = vrot.slane %v708, 7
        %v772 = vrot.slane %v712, 7
        %vm773 = vcmp.lt.s32.totalorder %v621, 1
        %v774 = vsel %vm773, %v743, %v758
        %v775 = vsel %vm773, %v744, %v759
        %v776 = vsel %vm773, %v745, %v760
        %v777 = vsel %vm773, %v746, %v761
        %v778 = vsel %vm773, %v747, %v762
        %v779 = vsel %vm773, %v748, %v763
        %v780 = vsel %vm773, %v749, %v764
        %v781 = vsel %vm773, %v750, %v765
        %v782 = vsel %vm773, %v751, %v766
        %v783 = vsel %vm773, %v752, %v767
        %v784 = vsel %vm773, %v753, %v768
        %v785 = vsel %vm773, %v754, %v769
        %v786 = vsel %vm773, %v755, %v770
        %v787 = vsel %vm773, %v756, %v771
        %v788 = vsel %vm773, %v757, %v772
        %v789 = vsel %vm773, %v758, %v743
        %v790 = vsel %vm773, %v759, %v744
        %v791 = vsel %vm773, %v760, %v745
        %v792 = vsel %vm773, %v761, %v746
        %v793 = vsel %vm773, %v762, %v747
        %v794 = vsel %vm773, %v763, %v748
        %v795 = vsel %vm773, %v764, %v749
        %v796 = vsel %vm773, %v765, %v750
        %v797 = vsel %vm773, %v766, %v751
        %v798 = vsel %vm773, %v767, %v752
        %v799 = vsel %vm773, %v768, %v753
        %v800 = vsel %vm773, %v769, %v754
        %v801 = vsel %vm773, %v770, %v755
        %v802 = vsel %vm773, %v771, %v756
        %v803 = vsel %vm773, %v772, %v757
        %vm804 = vcmp.ge.s32.totalorder %v621, 1
        %vm805 = vcmp.ge.s32.totalorder %v622, 1
        %vm806 = vcmp.lt.s32.totalorder %v621, 17
        %vm807 = vcmp.lt.s32.totalorder %v622, 17
        %vm808 = vmand %vm804, %vm806
        %vm809 = vmand %vm805, %vm807
        %v810 = vsel %vm808, 0.0, 0.0
        %v811 = vsel %vm809, 0.0, 0.0
        %v812 = vsel %vm808, %v789, 0.0
        %v813 = vsel %vm809, %v774, 0.0
        %v814 = vsel %vm808, %v790, 0.0
        %v815 = vsel %vm809, %v775, 0.0
        %v816 = vsel %vm808, %v791, 0.0
        %v817 = vsel %vm809, %v776, 0.0
        %v818 = vsel %vm808, %v792, 0.0
        %v819 = vsel %vm809, %v777, 0.0
        %v820 = vsel %vm808, %v793, 0.0
        %v821 = vsel %vm809, %v778, 0.0
        %v822 = vsel %vm808, %v794, 0.0
        %v823 = vsel %vm809, %v779, 0.0
        %v824 = vsel %vm808, %v795, 0.0
        %v825 = vsel %vm809, %v780, 0.0
        %v826 = vsel %vm808, %v796, 0.0
        %v827 = vsel %vm809, %v781, 0.0
        %v828 = vsel %vm808, %v797, 0.0
        %v829 = vsel %vm809, %v782, 0.0
        %v830 = vsel %vm808, %v798, 0.0
        %v831 = vsel %vm809, %v783, 0.0
        %v832 = vsel %vm808, %v799, 0.0
        %v833 = vsel %vm809, %v784, 0.0
        %v834 = vsel %vm808, %v800, 0.0
        %v835 = vsel %vm809, %v785, 0.0
        %v836 = vsel %vm808, %v801, 0.0
        %v837 = vsel %vm809, %v786, 0.0
        %v838 = vsel %vm808, %v802, 0.0
        %v839 = vsel %vm809, %v787, 0.0
        %v840 = vsel %vm808, %v803, 0.0
        %v841 = vsel %vm809, %v788, 0.0
        %v842 = vrot.slane %v654, 1
        %v843 = vrot.slane %v658, 1
        %v844 = vrot.slane %v662, 1
        %v845 = vrot.slane %v666, 1
        %v846 = vrot.slane %v670, 1
        %v847 = vrot.slane %v674, 1
        %v848 = vrot.slane %v678, 1
        %v849 = vrot.slane %v682, 1
        %v850 = vrot.slane %v686, 1
        %v851 = vrot.slane %v690, 1
        %v852 = vrot.slane %v694, 1
        %v853 = vrot.slane %v698, 1
        %v854 = vrot.slane %v702, 1
        %v855 = vrot.slane %v706, 1
        %v856 = vrot.slane %v710, 1
        %v857 = vrot.slane %v656, 1
        %v858 = vrot.slane %v660, 1
        %v859 = vrot.slane %v664, 1
        %v860 = vrot.slane %v668, 1
        %v861 = vrot.slane %v672, 1
        %v862 = vrot.slane %v676, 1
        %v863 = vrot.slane %v680, 1
        %v864 = vrot.slane %v684, 1
        %v865 = vrot.slane %v688, 1
        %v866 = vrot.slane %v692, 1
        %v867 = vrot.slane %v696, 1
        %v868 = vrot.slane %v700, 1
        %v869 = vrot.slane %v704, 1
        %v870 = vrot.slane %v708, 1
        %v871 = vrot.slane %v712, 1
        %vm872 = vcmp.lt.s32.totalorder %v621, 7
        %v873 = vsel %vm872, %v842, %v857
        %v874 = vsel %vm872, %v843, %v858
        %v875 = vsel %vm872, %v844, %v859
        %v876 = vsel %vm872, %v845, %v860
        %v877 = vsel %vm872, %v846, %v861
        %v878 = vsel %vm872, %v847, %v862
        %v879 = vsel %vm872, %v848, %v863
        %v880 = vsel %vm872, %v849, %v864
        %v881 = vsel %vm872, %v850, %v865
        %v882 = vsel %vm872, %v851, %v866
        %v883 = vsel %vm872, %v852, %v867
        %v884 = vsel %vm872, %v853, %v868
        %v885 = vsel %vm872, %v854, %v869
        %v886 = vsel %vm872, %v855, %v870
        %v887 = vsel %vm872, %v856, %v871
        %v888 = vsel %vm872, %v857, %v842
        %v889 = vsel %vm872, %v858, %v843
        %v890 = vsel %vm872, %v859, %v844
        %v891 = vsel %vm872, %v860, %v845
        %v892 = vsel %vm872, %v861, %v846
        %v893 = vsel %vm872, %v862, %v847
        %v894 = vsel %vm872, %v863, %v848
        %v895 = vsel %vm872, %v864, %v849
        %v896 = vsel %vm872, %v865, %v850
        %v897 = vsel %vm872, %v866, %v851
        %v898 = vsel %vm872, %v867, %v852
        %v899 = vsel %vm872, %v868, %v853
        %v900 = vsel %vm872, %v869, %v854
        %v901 = vsel %vm872, %v870, %v855
        %v902 = vsel %vm872, %v871, %v856
        %vm903 = vcmp.ge.s32.totalorder %v621, 4294967295
        %vm904 = vcmp.ge.s32.totalorder %v622, 4294967295
        %vm905 = vcmp.lt.s32.totalorder %v621, 15
        %vm906 = vcmp.lt.s32.totalorder %v622, 15
        %vm907 = vmand %vm903, %vm905
        %vm908 = vmand %vm904, %vm906
        %v909 = vsel %vm907, 0.0, 0.0
        %v910 = vsel %vm908, 0.0, 0.0
        %v911 = vsel %vm907, %v873, 0.0
        %v912 = vsel %vm908, %v888, 0.0
        %v913 = vsel %vm907, %v874, 0.0
        %v914 = vsel %vm908, %v889, 0.0
        %v915 = vsel %vm907, %v875, 0.0
        %v916 = vsel %vm908, %v890, 0.0
        %v917 = vsel %vm907, %v876, 0.0
        %v918 = vsel %vm908, %v891, 0.0
        %v919 = vsel %vm907, %v877, 0.0
        %v920 = vsel %vm908, %v892, 0.0
        %v921 = vsel %vm907, %v878, 0.0
        %v922 = vsel %vm908, %v893, 0.0
        %v923 = vsel %vm907, %v879, 0.0
        %v924 = vsel %vm908, %v894, 0.0
        %v925 = vsel %vm907, %v880, 0.0
        %v926 = vsel %vm908, %v895, 0.0
        %v927 = vsel %vm907, %v881, 0.0
        %v928 = vsel %vm908, %v896, 0.0
        %v929 = vsel %vm907, %v882, 0.0
        %v930 = vsel %vm908, %v897, 0.0
        %v931 = vsel %vm907, %v883, 0.0
        %v932 = vsel %vm908, %v898, 0.0
        %v933 = vsel %vm907, %v884, 0.0
        %v934 = vsel %vm908, %v899, 0.0
        %v935 = vsel %vm907, %v885, 0.0
        %v936 = vsel %vm908, %v900, 0.0
        %v937 = vsel %vm907, %v886, 0.0
        %v938 = vsel %vm908, %v901, 0.0
        %v939 = vsel %vm907, %v887, 0.0
        %v940 = vsel %vm908, %v902, 0.0
        %943 = vrot.lane.b32.xlu0 %v612, 120
        %v944 = vpop.permute.xlu0 %943
        %945 = vrot.lane.b32.xlu0 %v613, 120
        %v946 = vpop.permute.xlu0 %945
        %v949 = vrot.slane %v944, 7
        %v950 = vrot.slane %v946, 7
        %v951 = vsel %vm773, %v949, %v950
        %v952 = vsel %vm773, %v950, %v949
        %v953 = vsel %vm808, %v952, 0.0
        %v954 = vsel %vm809, %v951, 0.0
        %v955 = vrot.slane %v944, 1
        %v956 = vrot.slane %v946, 1
        %v957 = vsel %vm872, %v955, %v956
        %v958 = vsel %vm872, %v956, %v955
        %v959 = vsel %vm907, %v957, 0.0
        %v960 = vsel %vm908, %v958, 0.0
        %962 = vrot.lane.b32.xlu0 0.0, 120
        %v963 = vpop.permute.xlu0 %962
        %v965 = vrot.slane %v963, 7
        %v966 = vsel %vm808, %v965, 0.0
        %v967 = vsel %vm809, %v965, 0.0
        %v968 = vrot.slane %v963, 1
        %v969 = vsel %vm907, %v968, 0.0
        %v970 = vsel %vm908, %v968, 0.0
        %971 = vrot.lane.b32.xlu0 0.0, 4
        %v972 = vpop.permute.xlu0 %971
        %973 = vrot.lane.b32.xlu0 %v654, 4
        %v974 = vpop.permute.xlu0 %973
        %975 = vrot.lane.b32.xlu0 %v656, 4
        %v976 = vpop.permute.xlu0 %975
        %977 = vrot.lane.b32.xlu0 %v658, 4
        %v978 = vpop.permute.xlu0 %977
        %979 = vrot.lane.b32.xlu0 %v660, 4
        %v980 = vpop.permute.xlu0 %979
        %981 = vrot.lane.b32.xlu0 %v662, 4
        %v982 = vpop.permute.xlu0 %981
        %983 = vrot.lane.b32.xlu0 %v664, 4
        %v984 = vpop.permute.xlu0 %983
        %985 = vrot.lane.b32.xlu0 %v666, 4
        %v986 = vpop.permute.xlu0 %985
        %987 = vrot.lane.b32.xlu0 %v668, 4
        %v988 = vpop.permute.xlu0 %987
        %989 = vrot.lane.b32.xlu0 %v670, 4
        %v990 = vpop.permute.xlu0 %989
        %991 = vrot.lane.b32.xlu0 %v672, 4
        %v992 = vpop.permute.xlu0 %991
        %993 = vrot.lane.b32.xlu0 %v674, 4
        %v994 = vpop.permute.xlu0 %993
        %995 = vrot.lane.b32.xlu0 %v676, 4
        %v996 = vpop.permute.xlu0 %995
        %997 = vrot.lane.b32.xlu0 %v678, 4
        %v998 = vpop.permute.xlu0 %997
        %999 = vrot.lane.b32.xlu0 %v680, 4
        %v1000 = vpop.permute.xlu0 %999
        %1001 = vrot.lane.b32.xlu0 %v682, 4
        %v1002 = vpop.permute.xlu0 %1001
        %1003 = vrot.lane.b32.xlu0 %v684, 4
        %v1004 = vpop.permute.xlu0 %1003
        %1005 = vrot.lane.b32.xlu0 %v686, 4
        %v1006 = vpop.permute.xlu0 %1005
        %1007 = vrot.lane.b32.xlu0 %v688, 4
        %v1008 = vpop.permute.xlu0 %1007
        %1009 = vrot.lane.b32.xlu0 %v690, 4
        %v1010 = vpop.permute.xlu0 %1009
        %1011 = vrot.lane.b32.xlu0 %v692, 4
        %v1012 = vpop.permute.xlu0 %1011
        %1013 = vrot.lane.b32.xlu0 %v694, 4
        %v1014 = vpop.permute.xlu0 %1013
        %1015 = vrot.lane.b32.xlu0 %v696, 4
        %v1016 = vpop.permute.xlu0 %1015
        %1017 = vrot.lane.b32.xlu0 %v698, 4
        %v1018 = vpop.permute.xlu0 %1017
        %1019 = vrot.lane.b32.xlu0 %v700, 4
        %v1020 = vpop.permute.xlu0 %1019
        %1021 = vrot.lane.b32.xlu0 %v702, 4
        %v1022 = vpop.permute.xlu0 %1021
        %1023 = vrot.lane.b32.xlu0 %v704, 4
        %v1024 = vpop.permute.xlu0 %1023
        %1025 = vrot.lane.b32.xlu0 %v706, 4
        %v1026 = vpop.permute.xlu0 %1025
        %1027 = vrot.lane.b32.xlu0 %v708, 4
        %v1028 = vpop.permute.xlu0 %1027
        %1029 = vrot.lane.b32.xlu0 %v710, 4
        %v1030 = vpop.permute.xlu0 %1029
        %1031 = vrot.lane.b32.xlu0 %v712, 4
        %v1032 = vpop.permute.xlu0 %1031
        %1096 = vrot.lane.b32.xlu0 %v909, 8
        %v1097 = vpop.permute.xlu0 %1096
        %1098 = vrot.lane.b32.xlu0 %v910, 8
        %v1099 = vpop.permute.xlu0 %1098
        %1100 = vrot.lane.b32.xlu0 %v911, 8
        %v1101 = vpop.permute.xlu0 %1100
        %1102 = vrot.lane.b32.xlu0 %v912, 8
        %v1103 = vpop.permute.xlu0 %1102
        %1104 = vrot.lane.b32.xlu0 %v913, 8
        %v1105 = vpop.permute.xlu0 %1104
        %1106 = vrot.lane.b32.xlu0 %v914, 8
        %v1107 = vpop.permute.xlu0 %1106
        %1108 = vrot.lane.b32.xlu0 %v915, 8
        %v1109 = vpop.permute.xlu0 %1108
        %1110 = vrot.lane.b32.xlu0 %v916, 8
        %v1111 = vpop.permute.xlu0 %1110
        %1112 = vrot.lane.b32.xlu0 %v917, 8
        %v1113 = vpop.permute.xlu0 %1112
        %1114 = vrot.lane.b32.xlu0 %v918, 8
        %v1115 = vpop.permute.xlu0 %1114
        %1116 = vrot.lane.b32.xlu0 %v919, 8
        %v1117 = vpop.permute.xlu0 %1116
        %1118 = vrot.lane.b32.xlu0 %v920, 8
        %v1119 = vpop.permute.xlu0 %1118
        %1120 = vrot.lane.b32.xlu0 %v921, 8
        %v1121 = vpop.permute.xlu0 %1120
        %1122 = vrot.lane.b32.xlu0 %v922, 8
        %v1123 = vpop.permute.xlu0 %1122
        %1124 = vrot.lane.b32.xlu0 %v923, 8
        %v1125 = vpop.permute.xlu0 %1124
        %1126 = vrot.lane.b32.xlu0 %v924, 8
        %v1127 = vpop.permute.xlu0 %1126
        %1128 = vrot.lane.b32.xlu0 %v925, 8
        %v1129 = vpop.permute.xlu0 %1128
        %1130 = vrot.lane.b32.xlu0 %v926, 8
        %v1131 = vpop.permute.xlu0 %1130
        %1132 = vrot.lane.b32.xlu0 %v927, 8
        %v1133 = vpop.permute.xlu0 %1132
        %1134 = vrot.lane.b32.xlu0 %v928, 8
        %v1135 = vpop.permute.xlu0 %1134
        %1136 = vrot.lane.b32.xlu0 %v929, 8
        %v1137 = vpop.permute.xlu0 %1136
        %1138 = vrot.lane.b32.xlu0 %v930, 8
        %v1139 = vpop.permute.xlu0 %1138
        %1140 = vrot.lane.b32.xlu0 %v931, 8
        %v1141 = vpop.permute.xlu0 %1140
        %1142 = vrot.lane.b32.xlu0 %v932, 8
        %v1143 = vpop.permute.xlu0 %1142
        %1144 = vrot.lane.b32.xlu0 %v933, 8
        %v1145 = vpop.permute.xlu0 %1144
        %1146 = vrot.lane.b32.xlu0 %v934, 8
        %v1147 = vpop.permute.xlu0 %1146
        %1148 = vrot.lane.b32.xlu0 %v935, 8
        %v1149 = vpop.permute.xlu0 %1148
        %1150 = vrot.lane.b32.xlu0 %v936, 8
        %v1151 = vpop.permute.xlu0 %1150
        %1152 = vrot.lane.b32.xlu0 %v937, 8
        %v1153 = vpop.permute.xlu0 %1152
        %1154 = vrot.lane.b32.xlu0 %v938, 8
        %v1155 = vpop.permute.xlu0 %1154
        %1156 = vrot.lane.b32.xlu0 %v939, 8
        %v1157 = vpop.permute.xlu0 %1156
        %1158 = vrot.lane.b32.xlu0 %v940, 8
        %v1159 = vpop.permute.xlu0 %1158
        %1224 = vrot.lane.b32.xlu0 %v812, 12
        %v1225 = vpop.permute.xlu0 %1224
        %1226 = vrot.lane.b32.xlu0 %v813, 12
        %v1227 = vpop.permute.xlu0 %1226
        %1228 = vrot.lane.b32.xlu0 %v814, 12
        %v1229 = vpop.permute.xlu0 %1228
        %1230 = vrot.lane.b32.xlu0 %v815, 12
        %v1231 = vpop.permute.xlu0 %1230
        %1232 = vrot.lane.b32.xlu0 %v816, 12
        %v1233 = vpop.permute.xlu0 %1232
        %1234 = vrot.lane.b32.xlu0 %v817, 12
        %v1235 = vpop.permute.xlu0 %1234
        %1236 = vrot.lane.b32.xlu0 %v818, 12
        %v1237 = vpop.permute.xlu0 %1236
        %1238 = vrot.lane.b32.xlu0 %v819, 12
        %v1239 = vpop.permute.xlu0 %1238
        %1240 = vrot.lane.b32.xlu0 %v820, 12
        %v1241 = vpop.permute.xlu0 %1240
        %1242 = vrot.lane.b32.xlu0 %v821, 12
        %v1243 = vpop.permute.xlu0 %1242
        %1244 = vrot.lane.b32.xlu0 %v822, 12
        %v1245 = vpop.permute.xlu0 %1244
        %1246 = vrot.lane.b32.xlu0 %v823, 12
        %v1247 = vpop.permute.xlu0 %1246
        %1248 = vrot.lane.b32.xlu0 %v824, 12
        %v1249 = vpop.permute.xlu0 %1248
        %1250 = vrot.lane.b32.xlu0 %v825, 12
        %v1251 = vpop.permute.xlu0 %1250
        %1252 = vrot.lane.b32.xlu0 %v826, 12
        %v1253 = vpop.permute.xlu0 %1252
        %1254 = vrot.lane.b32.xlu0 %v827, 12
        %v1255 = vpop.permute.xlu0 %1254
        %1256 = vrot.lane.b32.xlu0 %v828, 12
        %v1257 = vpop.permute.xlu0 %1256
        %1258 = vrot.lane.b32.xlu0 %v829, 12
        %v1259 = vpop.permute.xlu0 %1258
        %1260 = vrot.lane.b32.xlu0 %v830, 12
        %v1261 = vpop.permute.xlu0 %1260
        %1262 = vrot.lane.b32.xlu0 %v831, 12
        %v1263 = vpop.permute.xlu0 %1262
        %1264 = vrot.lane.b32.xlu0 %v832, 12
        %v1265 = vpop.permute.xlu0 %1264
        %1266 = vrot.lane.b32.xlu0 %v833, 12
        %v1267 = vpop.permute.xlu0 %1266
        %1268 = vrot.lane.b32.xlu0 %v834, 12
        %v1269 = vpop.permute.xlu0 %1268
        %1270 = vrot.lane.b32.xlu0 %v835, 12
        %v1271 = vpop.permute.xlu0 %1270
        %1272 = vrot.lane.b32.xlu0 %v836, 12
        %v1273 = vpop.permute.xlu0 %1272
        %1274 = vrot.lane.b32.xlu0 %v837, 12
        %v1275 = vpop.permute.xlu0 %1274
        %1276 = vrot.lane.b32.xlu0 %v838, 12
        %v1277 = vpop.permute.xlu0 %1276
        %1278 = vrot.lane.b32.xlu0 %v839, 12
        %v1279 = vpop.permute.xlu0 %1278
        %1280 = vrot.lane.b32.xlu0 %v840, 12
        %v1281 = vpop.permute.xlu0 %1280
        %1282 = vrot.lane.b32.xlu0 %v841, 12
        %v1283 = vpop.permute.xlu0 %1282
        %1284 = vrot.lane.b32.xlu0 %v953, 12
        %v1285 = vpop.permute.xlu0 %1284
        %1286 = vrot.lane.b32.xlu0 %v954, 12
        %v1287 = vpop.permute.xlu0 %1286
        %1320 = vrot.lane.b32.xlu0 %v582, 8
        %v1321 = vpop.permute.xlu0 %1320
        %1322 = vrot.lane.b32.xlu0 %v583, 8
        %v1323 = vpop.permute.xlu0 %1322
        %1324 = vrot.lane.b32.xlu0 %v584, 8
        %v1325 = vpop.permute.xlu0 %1324
        %1326 = vrot.lane.b32.xlu0 %v585, 8
        %v1327 = vpop.permute.xlu0 %1326
        %1328 = vrot.lane.b32.xlu0 %v586, 8
        %v1329 = vpop.permute.xlu0 %1328
        %1330 = vrot.lane.b32.xlu0 %v587, 8
        %v1331 = vpop.permute.xlu0 %1330
        %1332 = vrot.lane.b32.xlu0 %v588, 8
        %v1333 = vpop.permute.xlu0 %1332
        %1334 = vrot.lane.b32.xlu0 %v589, 8
        %v1335 = vpop.permute.xlu0 %1334
        %1336 = vrot.lane.b32.xlu0 %v590, 8
        %v1337 = vpop.permute.xlu0 %1336
        %1338 = vrot.lane.b32.xlu0 %v591, 8
        %v1339 = vpop.permute.xlu0 %1338
        %1340 = vrot.lane.b32.xlu0 %v592, 8
        %v1341 = vpop.permute.xlu0 %1340
        %1342 = vrot.lane.b32.xlu0 %v593, 8
        %v1343 = vpop.permute.xlu0 %1342
        %1344 = vrot.lane.b32.xlu0 %v594, 8
        %v1345 = vpop.permute.xlu0 %1344
        %1346 = vrot.lane.b32.xlu0 %v595, 8
        %v1347 = vpop.permute.xlu0 %1346
        %1348 = vrot.lane.b32.xlu0 %v596, 8
        %v1349 = vpop.permute.xlu0 %1348
        %1350 = vrot.lane.b32.xlu0 %v597, 8
        %v1351 = vpop.permute.xlu0 %1350
        %1352 = vrot.lane.b32.xlu0 %v598, 8
        %v1353 = vpop.permute.xlu0 %1352
        %1354 = vrot.lane.b32.xlu0 %v599, 8
        %v1355 = vpop.permute.xlu0 %1354
        %1356 = vrot.lane.b32.xlu0 %v600, 8
        %v1357 = vpop.permute.xlu0 %1356
        %1358 = vrot.lane.b32.xlu0 %v601, 8
        %v1359 = vpop.permute.xlu0 %1358
        %1360 = vrot.lane.b32.xlu0 %v602, 8
        %v1361 = vpop.permute.xlu0 %1360
        %1362 = vrot.lane.b32.xlu0 %v603, 8
        %v1363 = vpop.permute.xlu0 %1362
        %1364 = vrot.lane.b32.xlu0 %v604, 8
        %v1365 = vpop.permute.xlu0 %1364
        %1366 = vrot.lane.b32.xlu0 %v605, 8
        %v1367 = vpop.permute.xlu0 %1366
        %1368 = vrot.lane.b32.xlu0 %v606, 8
        %v1369 = vpop.permute.xlu0 %1368
        %1370 = vrot.lane.b32.xlu0 %v607, 8
        %v1371 = vpop.permute.xlu0 %1370
        %1372 = vrot.lane.b32.xlu0 %v608, 8
        %v1373 = vpop.permute.xlu0 %1372
        %1374 = vrot.lane.b32.xlu0 %v609, 8
        %v1375 = vpop.permute.xlu0 %1374
        %1376 = vrot.lane.b32.xlu0 %v610, 8
        %v1377 = vpop.permute.xlu0 %1376
        %1378 = vrot.lane.b32.xlu0 %v611, 8
        %v1379 = vpop.permute.xlu0 %1378
        %1380 = vrot.lane.b32.xlu0 %v612, 8
        %v1381 = vpop.permute.xlu0 %1380
        %1382 = vrot.lane.b32.xlu0 %v613, 8
        %v1383 = vpop.permute.xlu0 %1382
        %1418 = vrot.lane.b32.xlu0 %v911, 20
        %v1419 = vpop.permute.xlu0 %1418
        %1420 = vrot.lane.b32.xlu0 %v912, 20
        %v1421 = vpop.permute.xlu0 %1420
        %1422 = vrot.lane.b32.xlu0 %v913, 20
        %v1423 = vpop.permute.xlu0 %1422
        %1424 = vrot.lane.b32.xlu0 %v914, 20
        %v1425 = vpop.permute.xlu0 %1424
        %1426 = vrot.lane.b32.xlu0 %v915, 20
        %v1427 = vpop.permute.xlu0 %1426
        %1428 = vrot.lane.b32.xlu0 %v916, 20
        %v1429 = vpop.permute.xlu0 %1428
        %1430 = vrot.lane.b32.xlu0 %v917, 20
        %v1431 = vpop.permute.xlu0 %1430
        %1432 = vrot.lane.b32.xlu0 %v918, 20
        %v1433 = vpop.permute.xlu0 %1432
        %1434 = vrot.lane.b32.xlu0 %v919, 20
        %v1435 = vpop.permute.xlu0 %1434
        %1436 = vrot.lane.b32.xlu0 %v920, 20
        %v1437 = vpop.permute.xlu0 %1436
        %1438 = vrot.lane.b32.xlu0 %v921, 20
        %v1439 = vpop.permute.xlu0 %1438
        %1440 = vrot.lane.b32.xlu0 %v922, 20
        %v1441 = vpop.permute.xlu0 %1440
        %1442 = vrot.lane.b32.xlu0 %v923, 20
        %v1443 = vpop.permute.xlu0 %1442
        %1444 = vrot.lane.b32.xlu0 %v924, 20
        %v1445 = vpop.permute.xlu0 %1444
        %1446 = vrot.lane.b32.xlu0 %v925, 20
        %v1447 = vpop.permute.xlu0 %1446
        %1448 = vrot.lane.b32.xlu0 %v926, 20
        %v1449 = vpop.permute.xlu0 %1448
        %1450 = vrot.lane.b32.xlu0 %v927, 20
        %v1451 = vpop.permute.xlu0 %1450
        %1452 = vrot.lane.b32.xlu0 %v928, 20
        %v1453 = vpop.permute.xlu0 %1452
        %1454 = vrot.lane.b32.xlu0 %v929, 20
        %v1455 = vpop.permute.xlu0 %1454
        %1456 = vrot.lane.b32.xlu0 %v930, 20
        %v1457 = vpop.permute.xlu0 %1456
        %1458 = vrot.lane.b32.xlu0 %v931, 20
        %v1459 = vpop.permute.xlu0 %1458
        %1460 = vrot.lane.b32.xlu0 %v932, 20
        %v1461 = vpop.permute.xlu0 %1460
        %1462 = vrot.lane.b32.xlu0 %v933, 20
        %v1463 = vpop.permute.xlu0 %1462
        %1464 = vrot.lane.b32.xlu0 %v934, 20
        %v1465 = vpop.permute.xlu0 %1464
        %1466 = vrot.lane.b32.xlu0 %v935, 20
        %v1467 = vpop.permute.xlu0 %1466
        %1468 = vrot.lane.b32.xlu0 %v936, 20
        %v1469 = vpop.permute.xlu0 %1468
        %1470 = vrot.lane.b32.xlu0 %v937, 20
        %v1471 = vpop.permute.xlu0 %1470
        %1472 = vrot.lane.b32.xlu0 %v938, 20
        %v1473 = vpop.permute.xlu0 %1472
        %1474 = vrot.lane.b32.xlu0 %v939, 20
        %v1475 = vpop.permute.xlu0 %1474
        %1476 = vrot.lane.b32.xlu0 %v940, 20
        %v1477 = vpop.permute.xlu0 %1476
        %1478 = vrot.lane.b32.xlu0 %v959, 20
        %v1479 = vpop.permute.xlu0 %1478
        %1480 = vrot.lane.b32.xlu0 %v960, 20
        %v1481 = vpop.permute.xlu0 %1480
        %1516 = vrot.lane.b32.xlu0 %v814, 24
        %v1517 = vpop.permute.xlu0 %1516
        %1518 = vrot.lane.b32.xlu0 %v815, 24
        %v1519 = vpop.permute.xlu0 %1518
        %1520 = vrot.lane.b32.xlu0 %v816, 24
        %v1521 = vpop.permute.xlu0 %1520
        %1522 = vrot.lane.b32.xlu0 %v817, 24
        %v1523 = vpop.permute.xlu0 %1522
        %1524 = vrot.lane.b32.xlu0 %v818, 24
        %v1525 = vpop.permute.xlu0 %1524
        %1526 = vrot.lane.b32.xlu0 %v819, 24
        %v1527 = vpop.permute.xlu0 %1526
        %1528 = vrot.lane.b32.xlu0 %v820, 24
        %v1529 = vpop.permute.xlu0 %1528
        %1530 = vrot.lane.b32.xlu0 %v821, 24
        %v1531 = vpop.permute.xlu0 %1530
        %1532 = vrot.lane.b32.xlu0 %v822, 24
        %v1533 = vpop.permute.xlu0 %1532
        %1534 = vrot.lane.b32.xlu0 %v823, 24
        %v1535 = vpop.permute.xlu0 %1534
        %1536 = vrot.lane.b32.xlu0 %v824, 24
        %v1537 = vpop.permute.xlu0 %1536
        %1538 = vrot.lane.b32.xlu0 %v825, 24
        %v1539 = vpop.permute.xlu0 %1538
        %1540 = vrot.lane.b32.xlu0 %v826, 24
        %v1541 = vpop.permute.xlu0 %1540
        %1542 = vrot.lane.b32.xlu0 %v827, 24
        %v1543 = vpop.permute.xlu0 %1542
        %1544 = vrot.lane.b32.xlu0 %v828, 24
        %v1545 = vpop.permute.xlu0 %1544
        %1546 = vrot.lane.b32.xlu0 %v829, 24
        %v1547 = vpop.permute.xlu0 %1546
        %1548 = vrot.lane.b32.xlu0 %v830, 24
        %v1549 = vpop.permute.xlu0 %1548
        %1550 = vrot.lane.b32.xlu0 %v831, 24
        %v1551 = vpop.permute.xlu0 %1550
        %1552 = vrot.lane.b32.xlu0 %v832, 24
        %v1553 = vpop.permute.xlu0 %1552
        %1554 = vrot.lane.b32.xlu0 %v833, 24
        %v1555 = vpop.permute.xlu0 %1554
        %1556 = vrot.lane.b32.xlu0 %v834, 24
        %v1557 = vpop.permute.xlu0 %1556
        %1558 = vrot.lane.b32.xlu0 %v835, 24
        %v1559 = vpop.permute.xlu0 %1558
        %1560 = vrot.lane.b32.xlu0 %v836, 24
        %v1561 = vpop.permute.xlu0 %1560
        %1562 = vrot.lane.b32.xlu0 %v837, 24
        %v1563 = vpop.permute.xlu0 %1562
        %1564 = vrot.lane.b32.xlu0 %v838, 24
        %v1565 = vpop.permute.xlu0 %1564
        %1566 = vrot.lane.b32.xlu0 %v839, 24
        %v1567 = vpop.permute.xlu0 %1566
        %1568 = vrot.lane.b32.xlu0 %v840, 24
        %v1569 = vpop.permute.xlu0 %1568
        %1570 = vrot.lane.b32.xlu0 %v841, 24
        %v1571 = vpop.permute.xlu0 %1570
        %1572 = vrot.lane.b32.xlu0 %v953, 24
        %v1573 = vpop.permute.xlu0 %1572
        %1574 = vrot.lane.b32.xlu0 %v954, 24
        %v1575 = vpop.permute.xlu0 %1574
        %1576 = vrot.lane.b32.xlu0 %v966, 24
        %v1577 = vpop.permute.xlu0 %1576
        %1578 = vrot.lane.b32.xlu0 %v967, 24
        %v1579 = vpop.permute.xlu0 %1578
        %1612 = vrot.lane.b32.xlu0 %v584, 20
        %v1613 = vpop.permute.xlu0 %1612
        %1614 = vrot.lane.b32.xlu0 %v585, 20
        %v1615 = vpop.permute.xlu0 %1614
        %1616 = vrot.lane.b32.xlu0 %v586, 20
        %v1617 = vpop.permute.xlu0 %1616
        %1618 = vrot.lane.b32.xlu0 %v587, 20
        %v1619 = vpop.permute.xlu0 %1618
        %1620 = vrot.lane.b32.xlu0 %v588, 20
        %v1621 = vpop.permute.xlu0 %1620
        %1622 = vrot.lane.b32.xlu0 %v589, 20
        %v1623 = vpop.permute.xlu0 %1622
        %1624 = vrot.lane.b32.xlu0 %v590, 20
        %v1625 = vpop.permute.xlu0 %1624
        %1626 = vrot.lane.b32.xlu0 %v591, 20
        %v1627 = vpop.permute.xlu0 %1626
        %1628 = vrot.lane.b32.xlu0 %v592, 20
        %v1629 = vpop.permute.xlu0 %1628
        %1630 = vrot.lane.b32.xlu0 %v593, 20
        %v1631 = vpop.permute.xlu0 %1630
        %1632 = vrot.lane.b32.xlu0 %v594, 20
        %v1633 = vpop.permute.xlu0 %1632
        %1634 = vrot.lane.b32.xlu0 %v595, 20
        %v1635 = vpop.permute.xlu0 %1634
        %1636 = vrot.lane.b32.xlu0 %v596, 20
        %v1637 = vpop.permute.xlu0 %1636
        %1638 = vrot.lane.b32.xlu0 %v597, 20
        %v1639 = vpop.permute.xlu0 %1638
        %1640 = vrot.lane.b32.xlu0 %v598, 20
        %v1641 = vpop.permute.xlu0 %1640
        %1642 = vrot.lane.b32.xlu0 %v599, 20
        %v1643 = vpop.permute.xlu0 %1642
        %1644 = vrot.lane.b32.xlu0 %v600, 20
        %v1645 = vpop.permute.xlu0 %1644
        %1646 = vrot.lane.b32.xlu0 %v601, 20
        %v1647 = vpop.permute.xlu0 %1646
        %1648 = vrot.lane.b32.xlu0 %v602, 20
        %v1649 = vpop.permute.xlu0 %1648
        %1650 = vrot.lane.b32.xlu0 %v603, 20
        %v1651 = vpop.permute.xlu0 %1650
        %1652 = vrot.lane.b32.xlu0 %v604, 20
        %v1653 = vpop.permute.xlu0 %1652
        %1654 = vrot.lane.b32.xlu0 %v605, 20
        %v1655 = vpop.permute.xlu0 %1654
        %1656 = vrot.lane.b32.xlu0 %v606, 20
        %v1657 = vpop.permute.xlu0 %1656
        %1658 = vrot.lane.b32.xlu0 %v607, 20
        %v1659 = vpop.permute.xlu0 %1658
        %1660 = vrot.lane.b32.xlu0 %v608, 20
        %v1661 = vpop.permute.xlu0 %1660
        %1662 = vrot.lane.b32.xlu0 %v609, 20
        %v1663 = vpop.permute.xlu0 %1662
        %1664 = vrot.lane.b32.xlu0 %v610, 20
        %v1665 = vpop.permute.xlu0 %1664
        %1666 = vrot.lane.b32.xlu0 %v611, 20
        %v1667 = vpop.permute.xlu0 %1666
        %1668 = vrot.lane.b32.xlu0 %v612, 20
        %v1669 = vpop.permute.xlu0 %1668
        %1670 = vrot.lane.b32.xlu0 %v613, 20
        %v1671 = vpop.permute.xlu0 %1670
        %1672 = vrot.lane.b32.xlu0 0.0, 20
        %v1673 = vpop.permute.xlu0 %1672
        %1707 = vrot.lane.b32.xlu0 %v913, 32
        %v1708 = vpop.permute.xlu0 %1707
        %1709 = vrot.lane.b32.xlu0 %v914, 32
        %v1710 = vpop.permute.xlu0 %1709
        %1711 = vrot.lane.b32.xlu0 %v915, 32
        %v1712 = vpop.permute.xlu0 %1711
        %1713 = vrot.lane.b32.xlu0 %v916, 32
        %v1714 = vpop.permute.xlu0 %1713
        %1715 = vrot.lane.b32.xlu0 %v917, 32
        %v1716 = vpop.permute.xlu0 %1715
        %1717 = vrot.lane.b32.xlu0 %v918, 32
        %v1718 = vpop.permute.xlu0 %1717
        %1719 = vrot.lane.b32.xlu0 %v919, 32
        %v1720 = vpop.permute.xlu0 %1719
        %1721 = vrot.lane.b32.xlu0 %v920, 32
        %v1722 = vpop.permute.xlu0 %1721
        %1723 = vrot.lane.b32.xlu0 %v921, 32
        %v1724 = vpop.permute.xlu0 %1723
        %1725 = vrot.lane.b32.xlu0 %v922, 32
        %v1726 = vpop.permute.xlu0 %1725
        %1727 = vrot.lane.b32.xlu0 %v923, 32
        %v1728 = vpop.permute.xlu0 %1727
        %1729 = vrot.lane.b32.xlu0 %v924, 32
        %v1730 = vpop.permute.xlu0 %1729
        %1731 = vrot.lane.b32.xlu0 %v925, 32
        %v1732 = vpop.permute.xlu0 %1731
        %1733 = vrot.lane.b32.xlu0 %v926, 32
        %v1734 = vpop.permute.xlu0 %1733
        %1735 = vrot.lane.b32.xlu0 %v927, 32
        %v1736 = vpop.permute.xlu0 %1735
        %1737 = vrot.lane.b32.xlu0 %v928, 32
        %v1738 = vpop.permute.xlu0 %1737
        %1739 = vrot.lane.b32.xlu0 %v929, 32
        %v1740 = vpop.permute.xlu0 %1739
        %1741 = vrot.lane.b32.xlu0 %v930, 32
        %v1742 = vpop.permute.xlu0 %1741
        %1743 = vrot.lane.b32.xlu0 %v931, 32
        %v1744 = vpop.permute.xlu0 %1743
        %1745 = vrot.lane.b32.xlu0 %v932, 32
        %v1746 = vpop.permute.xlu0 %1745
        %1747 = vrot.lane.b32.xlu0 %v933, 32
        %v1748 = vpop.permute.xlu0 %1747
        %1749 = vrot.lane.b32.xlu0 %v934, 32
        %v1750 = vpop.permute.xlu0 %1749
        %1751 = vrot.lane.b32.xlu0 %v935, 32
        %v1752 = vpop.permute.xlu0 %1751
        %1753 = vrot.lane.b32.xlu0 %v936, 32
        %v1754 = vpop.permute.xlu0 %1753
        %1755 = vrot.lane.b32.xlu0 %v937, 32
        %v1756 = vpop.permute.xlu0 %1755
        %1757 = vrot.lane.b32.xlu0 %v938, 32
        %v1758 = vpop.permute.xlu0 %1757
        %1759 = vrot.lane.b32.xlu0 %v939, 32
        %v1760 = vpop.permute.xlu0 %1759
        %1761 = vrot.lane.b32.xlu0 %v940, 32
        %v1762 = vpop.permute.xlu0 %1761
        %1763 = vrot.lane.b32.xlu0 %v959, 32
        %v1764 = vpop.permute.xlu0 %1763
        %1765 = vrot.lane.b32.xlu0 %v960, 32
        %v1766 = vpop.permute.xlu0 %1765
        %1767 = vrot.lane.b32.xlu0 %v969, 32
        %v1768 = vpop.permute.xlu0 %1767
        %1769 = vrot.lane.b32.xlu0 %v970, 32
        %v1770 = vpop.permute.xlu0 %1769
        %v1803 = vsel %vm368, %v810, %v972
        %v1804 = vsel %vm368, %v811, %v972
        %v1805 = vsel %vm368, %v812, %v974
        %v1806 = vsel %vm368, %v813, %v976
        %v1807 = vsel %vm368, %v814, %v978
        %v1808 = vsel %vm368, %v815, %v980
        %v1809 = vsel %vm368, %v816, %v982
        %v1810 = vsel %vm368, %v817, %v984
        %v1811 = vsel %vm368, %v818, %v986
        %v1812 = vsel %vm368, %v819, %v988
        %v1813 = vsel %vm368, %v820, %v990
        %v1814 = vsel %vm368, %v821, %v992
        %v1815 = vsel %vm368, %v822, %v994
        %v1816 = vsel %vm368, %v823, %v996
        %v1817 = vsel %vm368, %v824, %v998
        %v1818 = vsel %vm368, %v825, %v1000
        %v1819 = vsel %vm368, %v826, %v1002
        %v1820 = vsel %vm368, %v827, %v1004
        %v1821 = vsel %vm368, %v828, %v1006
        %v1822 = vsel %vm368, %v829, %v1008
        %v1823 = vsel %vm368, %v830, %v1010
        %v1824 = vsel %vm368, %v831, %v1012
        %v1825 = vsel %vm368, %v832, %v1014
        %v1826 = vsel %vm368, %v833, %v1016
        %v1827 = vsel %vm368, %v834, %v1018
        %v1828 = vsel %vm368, %v835, %v1020
        %v1829 = vsel %vm368, %v836, %v1022
        %v1830 = vsel %vm368, %v837, %v1024
        %v1831 = vsel %vm368, %v838, %v1026
        %v1832 = vsel %vm368, %v839, %v1028
        %v1833 = vsel %vm368, %v840, %v1030
        %v1834 = vsel %vm368, %v841, %v1032
        %vm1835 = vcmask 64512
        %v1836 = vsel %vm1835, %v1803, %v1097
        %v1837 = vsel %vm1835, %v1804, %v1099
        %v1838 = vsel %vm1835, %v1805, %v1101
        %v1839 = vsel %vm1835, %v1806, %v1103
        %v1840 = vsel %vm1835, %v1807, %v1105
        %v1841 = vsel %vm1835, %v1808, %v1107
        %v1842 = vsel %vm1835, %v1809, %v1109
        %v1843 = vsel %vm1835, %v1810, %v1111
        %v1844 = vsel %vm1835, %v1811, %v1113
        %v1845 = vsel %vm1835, %v1812, %v1115
        %v1846 = vsel %vm1835, %v1813, %v1117
        %v1847 = vsel %vm1835, %v1814, %v1119
        %v1848 = vsel %vm1835, %v1815, %v1121
        %v1849 = vsel %vm1835, %v1816, %v1123
        %v1850 = vsel %vm1835, %v1817, %v1125
        %v1851 = vsel %vm1835, %v1818, %v1127
        %v1852 = vsel %vm1835, %v1819, %v1129
        %v1853 = vsel %vm1835, %v1820, %v1131
        %v1854 = vsel %vm1835, %v1821, %v1133
        %v1855 = vsel %vm1835, %v1822, %v1135
        %v1856 = vsel %vm1835, %v1823, %v1137
        %v1857 = vsel %vm1835, %v1824, %v1139
        %v1858 = vsel %vm1835, %v1825, %v1141
        %v1859 = vsel %vm1835, %v1826, %v1143
        %v1860 = vsel %vm1835, %v1827, %v1145
        %v1861 = vsel %vm1835, %v1828, %v1147
        %v1862 = vsel %vm1835, %v1829, %v1149
        %v1863 = vsel %vm1835, %v1830, %v1151
        %v1864 = vsel %vm1835, %v1831, %v1153
        %v1865 = vsel %vm1835, %v1832, %v1155
        %v1866 = vsel %vm1835, %v1833, %v1157
        %v1867 = vsel %vm1835, %v1834, %v1159
        %vm1868 = vcmask 97280
        %v1869 = vsel %vm1868, %v1836, %v1225
        %v1870 = vsel %vm1868, %v1837, %v1227
        %v1871 = vsel %vm1868, %v1838, %v1229
        %v1872 = vsel %vm1868, %v1839, %v1231
        %v1873 = vsel %vm1868, %v1840, %v1233
        %v1874 = vsel %vm1868, %v1841, %v1235
        %v1875 = vsel %vm1868, %v1842, %v1237
        %v1876 = vsel %vm1868, %v1843, %v1239
        %v1877 = vsel %vm1868, %v1844, %v1241
        %v1878 = vsel %vm1868, %v1845, %v1243
        %v1879 = vsel %vm1868, %v1846, %v1245
        %v1880 = vsel %vm1868, %v1847, %v1247
        %v1881 = vsel %vm1868, %v1848, %v1249
        %v1882 = vsel %vm1868, %v1849, %v1251
        %v1883 = vsel %vm1868, %v1850, %v1253
        %v1884 = vsel %vm1868, %v1851, %v1255
        %v1885 = vsel %vm1868, %v1852, %v1257
        %v1886 = vsel %vm1868, %v1853, %v1259
        %v1887 = vsel %vm1868, %v1854, %v1261
        %v1888 = vsel %vm1868, %v1855, %v1263
        %v1889 = vsel %vm1868, %v1856, %v1265
        %v1890 = vsel %vm1868, %v1857, %v1267
        %v1891 = vsel %vm1868, %v1858, %v1269
        %v1892 = vsel %vm1868, %v1859, %v1271
        %v1893 = vsel %vm1868, %v1860, %v1273
        %v1894 = vsel %vm1868, %v1861, %v1275
        %v1895 = vsel %vm1868, %v1862, %v1277
        %v1896 = vsel %vm1868, %v1863, %v1279
        %v1897 = vsel %vm1868, %v1864, %v1281
        %v1898 = vsel %vm1868, %v1865, %v1283
        %v1899 = vsel %vm1868, %v1866, %v1285
        %v1900 = vsel %vm1868, %v1867, %v1287
        %vm1901 = vcmask 130048
        %v1902 = vsel %vm1901, %v1869, %v1321
        %v1903 = vsel %vm1901, %v1870, %v1323
        %v1904 = vsel %vm1901, %v1871, %v1325
        %v1905 = vsel %vm1901, %v1872, %v1327
        %v1906 = vsel %vm1901, %v1873, %v1329
        %v1907 = vsel %vm1901, %v1874, %v1331
        %v1908 = vsel %vm1901, %v1875, %v1333
        %v1909 = vsel %vm1901, %v1876, %v1335
        %v1910 = vsel %vm1901, %v1877, %v1337
        %v1911 = vsel %vm1901, %v1878, %v1339
        %v1912 = vsel %vm1901, %v1879, %v1341
        %v1913 = vsel %vm1901, %v1880, %v1343
        %v1914 = vsel %vm1901, %v1881, %v1345
        %v1915 = vsel %vm1901, %v1882, %v1347
        %v1916 = vsel %vm1901, %v1883, %v1349
        %v1917 = vsel %vm1901, %v1884, %v1351
        %v1918 = vsel %vm1901, %v1885, %v1353
        %v1919 = vsel %vm1901, %v1886, %v1355
        %v1920 = vsel %vm1901, %v1887, %v1357
        %v1921 = vsel %vm1901, %v1888, %v1359
        %v1922 = vsel %vm1901, %v1889, %v1361
        %v1923 = vsel %vm1901, %v1890, %v1363
        %v1924 = vsel %vm1901, %v1891, %v1365
        %v1925 = vsel %vm1901, %v1892, %v1367
        %v1926 = vsel %vm1901, %v1893, %v1369
        %v1927 = vsel %vm1901, %v1894, %v1371
        %v1928 = vsel %vm1901, %v1895, %v1373
        %v1929 = vsel %vm1901, %v1896, %v1375
        %v1930 = vsel %vm1901, %v1897, %v1377
        %v1931 = vsel %vm1901, %v1898, %v1379
        %v1932 = vsel %vm1901, %v1899, %v1381
        %v1933 = vsel %vm1901, %v1900, %v1383
        %vm1934 = vcmask 162816
        %v1935 = vsel %vm1934, %v1902, %v1419
        %v1936 = vsel %vm1934, %v1903, %v1421
        %v1937 = vsel %vm1934, %v1904, %v1423
        %v1938 = vsel %vm1934, %v1905, %v1425
        %v1939 = vsel %vm1934, %v1906, %v1427
        %v1940 = vsel %vm1934, %v1907, %v1429
        %v1941 = vsel %vm1934, %v1908, %v1431
        %v1942 = vsel %vm1934, %v1909, %v1433
        %v1943 = vsel %vm1934, %v1910, %v1435
        %v1944 = vsel %vm1934, %v1911, %v1437
        %v1945 = vsel %vm1934, %v1912, %v1439
        %v1946 = vsel %vm1934, %v1913, %v1441
        %v1947 = vsel %vm1934, %v1914, %v1443
        %v1948 = vsel %vm1934, %v1915, %v1445
        %v1949 = vsel %vm1934, %v1916, %v1447
        %v1950 = vsel %vm1934, %v1917, %v1449
        %v1951 = vsel %vm1934, %v1918, %v1451
        %v1952 = vsel %vm1934, %v1919, %v1453
        %v1953 = vsel %vm1934, %v1920, %v1455
        %v1954 = vsel %vm1934, %v1921, %v1457
        %v1955 = vsel %vm1934, %v1922, %v1459
        %v1956 = vsel %vm1934, %v1923, %v1461
        %v1957 = vsel %vm1934, %v1924, %v1463
        %v1958 = vsel %vm1934, %v1925, %v1465
        %v1959 = vsel %vm1934, %v1926, %v1467
        %v1960 = vsel %vm1934, %v1927, %v1469
        %v1961 = vsel %vm1934, %v1928, %v1471
        %v1962 = vsel %vm1934, %v1929, %v1473
        %v1963 = vsel %vm1934, %v1930, %v1475
        %v1964 = vsel %vm1934, %v1931, %v1477
        %v1965 = vsel %vm1934, %v1932, %v1479
        %v1966 = vsel %vm1934, %v1933, %v1481
        %vm1967 = vcmask 195584
        %v1968 = vsel %vm1967, %v1935, %v1517
        %v1969 = vsel %vm1967, %v1936, %v1519
        %v1970 = vsel %vm1967, %v1937, %v1521
        %v1971 = vsel %vm1967, %v1938, %v1523
        %v1972 = vsel %vm1967, %v1939, %v1525
        %v1973 = vsel %vm1967, %v1940, %v1527
        %v1974 = vsel %vm1967, %v1941, %v1529
        %v1975 = vsel %vm1967, %v1942, %v1531
        %v1976 = vsel %vm1967, %v1943, %v1533
        %v1977 = vsel %vm1967, %v1944, %v1535
        %v1978 = vsel %vm1967, %v1945, %v1537
        %v1979 = vsel %vm1967, %v1946, %v1539
        %v1980 = vsel %vm1967, %v1947, %v1541
        %v1981 = vsel %vm1967, %v1948, %v1543
        %v1982 = vsel %vm1967, %v1949, %v1545
        %v1983 = vsel %vm1967, %v1950, %v1547
        %v1984 = vsel %vm1967, %v1951, %v1549
        %v1985 = vsel %vm1967, %v1952, %v1551
        %v1986 = vsel %vm1967, %v1953, %v1553
        %v1987 = vsel %vm1967, %v1954, %v1555
        %v1988 = vsel %vm1967, %v1955, %v1557
        %v1989 = vsel %vm1967, %v1956, %v1559
        %v1990 = vsel %vm1967, %v1957, %v1561
        %v1991 = vsel %vm1967, %v1958, %v1563
        %v1992 = vsel %vm1967, %v1959, %v1565
        %v1993 = vsel %vm1967, %v1960, %v1567
        %v1994 = vsel %vm1967, %v1961, %v1569
        %v1995 = vsel %vm1967, %v1962, %v1571
        %v1996 = vsel %vm1967, %v1963, %v1573
        %v1997 = vsel %vm1967, %v1964, %v1575
        %v1998 = vsel %vm1967, %v1965, %v1577
        %v1999 = vsel %vm1967, %v1966, %v1579
        %vm2000 = vcmask 228352
        %v2001 = vsel %vm2000, %v1968, %v1613
        %v2002 = vsel %vm2000, %v1969, %v1615
        %v2003 = vsel %vm2000, %v1970, %v1617
        %v2004 = vsel %vm2000, %v1971, %v1619
        %v2005 = vsel %vm2000, %v1972, %v1621
        %v2006 = vsel %vm2000, %v1973, %v1623
        %v2007 = vsel %vm2000, %v1974, %v1625
        %v2008 = vsel %vm2000, %v1975, %v1627
        %v2009 = vsel %vm2000, %v1976, %v1629
        %v2010 = vsel %vm2000, %v1977, %v1631
        %v2011 = vsel %vm2000, %v1978, %v1633
        %v2012 = vsel %vm2000, %v1979, %v1635
        %v2013 = vsel %vm2000, %v1980, %v1637
        %v2014 = vsel %vm2000, %v1981, %v1639
        %v2015 = vsel %vm2000, %v1982, %v1641
        %v2016 = vsel %vm2000, %v1983, %v1643
        %v2017 = vsel %vm2000, %v1984, %v1645
        %v2018 = vsel %vm2000, %v1985, %v1647
        %v2019 = vsel %vm2000, %v1986, %v1649
        %v2020 = vsel %vm2000, %v1987, %v1651
        %v2021 = vsel %vm2000, %v1988, %v1653
        %v2022 = vsel %vm2000, %v1989, %v1655
        %v2023 = vsel %vm2000, %v1990, %v1657
        %v2024 = vsel %vm2000, %v1991, %v1659
        %v2025 = vsel %vm2000, %v1992, %v1661
        %v2026 = vsel %vm2000, %v1993, %v1663
        %v2027 = vsel %vm2000, %v1994, %v1665
        %v2028 = vsel %vm2000, %v1995, %v1667
        %v2029 = vsel %vm2000, %v1996, %v1669
        %v2030 = vsel %vm2000, %v1997, %v1671
        %v2031 = vsel %vm2000, %v1998, %v1673
        %v2032 = vsel %vm2000, %v1999, %v1673
        %vm2033 = vcmask 261120
        %v2034 = vsel %vm2033, %v2001, %v1708
        %v2035 = vsel %vm2033, %v2002, %v1710
        %v2036 = vsel %vm2033, %v2003, %v1712
        %v2037 = vsel %vm2033, %v2004, %v1714
        %v2038 = vsel %vm2033, %v2005, %v1716
        %v2039 = vsel %vm2033, %v2006, %v1718
        %v2040 = vsel %vm2033, %v2007, %v1720
        %v2041 = vsel %vm2033, %v2008, %v1722
        %v2042 = vsel %vm2033, %v2009, %v1724
        %v2043 = vsel %vm2033, %v2010, %v1726
        %v2044 = vsel %vm2033, %v2011, %v1728
        %v2045 = vsel %vm2033, %v2012, %v1730
        %v2046 = vsel %vm2033, %v2013, %v1732
        %v2047 = vsel %vm2033, %v2014, %v1734
        %v2048 = vsel %vm2033, %v2015, %v1736
        %v2049 = vsel %vm2033, %v2016, %v1738
        %v2050 = vsel %vm2033, %v2017, %v1740
        %v2051 = vsel %vm2033, %v2018, %v1742
        %v2052 = vsel %vm2033, %v2019, %v1744
        %v2053 = vsel %vm2033, %v2020, %v1746
        %v2054 = vsel %vm2033, %v2021, %v1748
        %v2055 = vsel %vm2033, %v2022, %v1750
        %v2056 = vsel %vm2033, %v2023, %v1752
        %v2057 = vsel %vm2033, %v2024, %v1754
        %v2058 = vsel %vm2033, %v2025, %v1756
        %v2059 = vsel %vm2033, %v2026, %v1758
        %v2060 = vsel %vm2033, %v2027, %v1760
        %v2061 = vsel %vm2033, %v2028, %v1762
        %v2062 = vsel %vm2033, %v2029, %v1764
        %v2063 = vsel %vm2033, %v2030, %v1766
        %v2064 = vsel %vm2033, %v2031, %v1768
        %v2065 = vsel %vm2033, %v2032, %v1770
        %v2067 = vperm.slane %v619, 0
        %vm2069 = vcmask 293888
        %v2071 = vsel %vm2069, %v2034, 0
        %v2074 = vsel %vm2069, %v2035, 0
        %v2077 = vsel %vm2069, %v2036, 0
        %v2080 = vsel %vm2069, %v2037, 0
        %v2083 = vsel %vm2069, %v2038, 0
        %v2086 = vsel %vm2069, %v2039, 0
        %v2089 = vsel %vm2069, %v2040, 0
        %v2092 = vsel %vm2069, %v2041, 0
        %v2095 = vsel %vm2069, %v2042, 0
        %v2098 = vsel %vm2069, %v2043, 0
        %v2101 = vsel %vm2069, %v2044, 0
        %v2104 = vsel %vm2069, %v2045, 0
        %v2107 = vsel %vm2069, %v2046, 0
        %v2110 = vsel %vm2069, %v2047, 0
        %v2113 = vsel %vm2069, %v2048, 0
        %v2116 = vsel %vm2069, %v2049, 0
        %v2119 = vsel %vm2069, %v2050, 0
        %v2122 = vsel %vm2069, %v2051, 0
        %v2125 = vsel %vm2069, %v2052, 0
        %v2128 = vsel %vm2069, %v2053, 0
        %v2131 = vsel %vm2069, %v2054, 0
        %v2134 = vsel %vm2069, %v2055, 0
        %v2137 = vsel %vm2069, %v2056, 0
        %v2140 = vsel %vm2069, %v2057, 0
        %v2143 = vsel %vm2069, %v2058, 0
        %v2146 = vsel %vm2069, %v2059, 0
        %v2149 = vsel %vm2069, %v2060, 0
        %v2152 = vsel %vm2069, %v2061, 0
        %v2155 = vsel %vm2069, %v2062, 0
        %v2158 = vsel %vm2069, %v2063, 0
        %v2161 = vsel %vm2069, %v2064, 0
        %v2164 = vsel %vm2069, %v2065, 0
        %v2167 = vsel %vm465, %v618, 0
        %2169 = vmatpush.msra.mxu0 0.0
        %2170 = vmatpush.msra.mxu0 0.0
        %2171 = vmatpush.msra.mxu0 0.0
        %2172 = vmatpush.msra.mxu0 0.0
        %2173 = vmatpush.msra.mxu0 0.0
        %2174 = vmatpush.msra.mxu0 0.0
        %2175 = vmatpush.msra.mxu0 0.0
        %2176 = vmatpush.msra.mxu0 0.0
        %2177 = vmatpush.msra.mxu0 0.0
        %2178 = vmatpush.msra.mxu0 0.0
        %2179 = vmatpush.msra.mxu0 0.0
        %2180 = vmatpush.msra.mxu0 %v2167
        %2181 = vmatpush.msra.mxu0 %v617
        %2182 = vmatpush.msra.mxu0 %v616
        %2183 = vmatpush.msra.mxu0 %v615
        %2184 = vmatpush.msra.mxu0 %v614
        %2185 = vmatmul.f32.gmra.mxu0 %v2071
        %v2186 = vpop.f32.mrf.mxu0
        %v2187 = vadd.f32 %v2067, %v2186
        %2188 = vmatmul.f32.gmra.mxu0 %v2074
        %v2189 = vpop.f32.mrf.mxu0
        %v2190 = vadd.f32 %v2067, %v2189
        %2191 = vmatmul.f32.gmra.mxu0 %v2077
        %v2192 = vpop.f32.mrf.mxu0
        %v2193 = vadd.f32 %v2067, %v2192
        %2194 = vmatmul.f32.gmra.mxu0 %v2080
        %v2195 = vpop.f32.mrf.mxu0
        %v2196 = vadd.f32 %v2067, %v2195
        %2197 = vmatmul.f32.gmra.mxu0 %v2083
        %v2198 = vpop.f32.mrf.mxu0
        %v2199 = vadd.f32 %v2067, %v2198
        %2200 = vmatmul.f32.gmra.mxu0 %v2086
        %v2201 = vpop.f32.mrf.mxu0
        %v2202 = vadd.f32 %v2067, %v2201
        %2203 = vmatmul.f32.gmra.mxu0 %v2089
        %v2204 = vpop.f32.mrf.mxu0
        %v2205 = vadd.f32 %v2067, %v2204
        %2206 = vmatmul.f32.gmra.mxu0 %v2092
        %v2207 = vpop.f32.mrf.mxu0
        %v2208 = vadd.f32 %v2067, %v2207
        %2209 = vmatmul.f32.gmra.mxu0 %v2095
        %v2210 = vpop.f32.mrf.mxu0
        %v2211 = vadd.f32 %v2067, %v2210
        %2212 = vmatmul.f32.gmra.mxu0 %v2098
        %v2213 = vpop.f32.mrf.mxu0
        %v2214 = vadd.f32 %v2067, %v2213
        %2215 = vmatmul.f32.gmra.mxu0 %v2101
        %v2216 = vpop.f32.mrf.mxu0
        %v2217 = vadd.f32 %v2067, %v2216
        %2218 = vmatmul.f32.gmra.mxu0 %v2104
        %v2219 = vpop.f32.mrf.mxu0
        %v2220 = vadd.f32 %v2067, %v2219
        %2221 = vmatmul.f32.gmra.mxu0 %v2107
        %v2222 = vpop.f32.mrf.mxu0
        %v2223 = vadd.f32 %v2067, %v2222
        %2224 = vmatmul.f32.gmra.mxu0 %v2110
        %v2225 = vpop.f32.mrf.mxu0
        %v2226 = vadd.f32 %v2067, %v2225
        %2227 = vmatmul.f32.gmra.mxu0 %v2113
        %v2228 = vpop.f32.mrf.mxu0
        %v2229 = vadd.f32 %v2067, %v2228
        %2230 = vmatmul.f32.gmra.mxu0 %v2116
        %v2231 = vpop.f32.mrf.mxu0
        %v2232 = vadd.f32 %v2067, %v2231
        %2233 = vmatmul.f32.gmra.mxu0 %v2119
        %v2234 = vpop.f32.mrf.mxu0
        %v2235 = vadd.f32 %v2067, %v2234
        %2236 = vmatmul.f32.gmra.mxu0 %v2122
        %v2237 = vpop.f32.mrf.mxu0
        %v2238 = vadd.f32 %v2067, %v2237
        %2239 = vmatmul.f32.gmra.mxu0 %v2125
        %v2240 = vpop.f32.mrf.mxu0
        %v2241 = vadd.f32 %v2067, %v2240
        %2242 = vmatmul.f32.gmra.mxu0 %v2128
        %v2243 = vpop.f32.mrf.mxu0
        %v2244 = vadd.f32 %v2067, %v2243
        %2245 = vmatmul.f32.gmra.mxu0 %v2131
        %v2246 = vpop.f32.mrf.mxu0
        %v2247 = vadd.f32 %v2067, %v2246
        %2248 = vmatmul.f32.gmra.mxu0 %v2134
        %v2249 = vpop.f32.mrf.mxu0
        %v2250 = vadd.f32 %v2067, %v2249
        %2251 = vmatmul.f32.gmra.mxu0 %v2137
        %v2252 = vpop.f32.mrf.mxu0
        %v2253 = vadd.f32 %v2067, %v2252
        %2254 = vmatmul.f32.gmra.mxu0 %v2140
        %v2255 = vpop.f32.mrf.mxu0
        %v2256 = vadd.f32 %v2067, %v2255
        %2257 = vmatmul.f32.gmra.mxu0 %v2143
        %v2258 = vpop.f32.mrf.mxu0
        %v2259 = vadd.f32 %v2067, %v2258
        %2260 = vmatmul.f32.gmra.mxu0 %v2146
        %v2261 = vpop.f32.mrf.mxu0
        %v2262 = vadd.f32 %v2067, %v2261
        %2263 = vmatmul.f32.gmra.mxu0 %v2149
        %v2264 = vpop.f32.mrf.mxu0
        %v2265 = vadd.f32 %v2067, %v2264
        %2266 = vmatmul.f32.gmra.mxu0 %v2152
        %v2267 = vpop.f32.mrf.mxu0
        %v2268 = vadd.f32 %v2067, %v2267
        %2269 = vmatmul.f32.gmra.mxu0 %v2155
        %v2270 = vpop.f32.mrf.mxu0
        %v2271 = vadd.f32 %v2067, %v2270
        %2272 = vmatmul.f32.gmra.mxu0 %v2158
        %v2273 = vpop.f32.mrf.mxu0
        %v2274 = vadd.f32 %v2067, %v2273
        %2275 = vmatmul.f32.gmra.mxu0 %v2161
        %v2276 = vpop.f32.mrf.mxu0
        %v2277 = vadd.f32 %v2067, %v2276
        %2278 = vmatmul.f32.gmra.mxu0 %v2164
        %v2279 = vpop.f32.mrf.mxu0
        %v2280 = vadd.f32 %v2067, %v2279
        %2281 = vdwg.mxu0
        %v2282 = vmax.f32 %v2187, 0.0
        %v2283 = vmax.f32 %v2190, 0.0
        %v2284 = vmax.f32 %v2193, 0.0
        %v2285 = vmax.f32 %v2196, 0.0
        %v2286 = vmax.f32 %v2199, 0.0
        %v2287 = vmax.f32 %v2202, 0.0
        %v2288 = vmax.f32 %v2205, 0.0
        %v2289 = vmax.f32 %v2208, 0.0
        %v2290 = vmax.f32 %v2211, 0.0
        %v2291 = vmax.f32 %v2214, 0.0
        %v2292 = vmax.f32 %v2217, 0.0
        %v2293 = vmax.f32 %v2220, 0.0
        %v2294 = vmax.f32 %v2223, 0.0
        %v2295 = vmax.f32 %v2226, 0.0
        %v2296 = vmax.f32 %v2229, 0.0
        %v2297 = vmax.f32 %v2232, 0.0
        %v2298 = vmax.f32 %v2235, 0.0
        %v2299 = vmax.f32 %v2238, 0.0
        %v2300 = vmax.f32 %v2241, 0.0
        %v2301 = vmax.f32 %v2244, 0.0
        %v2302 = vmax.f32 %v2247, 0.0
        %v2303 = vmax.f32 %v2250, 0.0
        %v2304 = vmax.f32 %v2253, 0.0
        %v2305 = vmax.f32 %v2256, 0.0
        %v2306 = vmax.f32 %v2259, 0.0
        %v2307 = vmax.f32 %v2262, 0.0
        %v2308 = vmax.f32 %v2265, 0.0
        %v2309 = vmax.f32 %v2268, 0.0
        %v2310 = vmax.f32 %v2271, 0.0
        %v2311 = vmax.f32 %v2274, 0.0
        %v2312 = vmax.f32 %v2277, 0.0
        %v2313 = vmax.f32 %v2280, 0.0
        %v2314 = vld [vmem:[%s5] sm:$0xff]
        %v2315 = vld [vmem:[%s5 + $0x8] sm:$0xff]
        %v2316 = vld [vmem:[%s5 + $0x10] sm:$0xff]
        %v2317 = vld [vmem:[%s5 + $0x18] sm:$0xff]
        %v2318 = vld [vmem:[%s5 + $0x20] sm:$0xff]
        %v2319 = vld [vmem:[%s5 + $0x28] sm:$0xff]
        %v2320 = vld [vmem:[%s5 + $0x30] sm:$0xff]
        %v2321 = vld [vmem:[%s5 + $0x38] sm:$0xff]
        %v2322 = vld [vmem:[%s5 + $0x40] sm:$0xff]
        %v2323 = vld [vmem:[%s5 + $0x48] sm:$0xff]
        %v2324 = vld [vmem:[%s5 + $0x50] sm:$0xff]
        %v2325 = vld [vmem:[%s5 + $0x58] sm:$0xff]
        %v2326 = vld [vmem:[%s5 + $0x60] sm:$0xf]
        %v2327 = vld [vmem:[%s6] sm:$0x1]
        %2328 = vrot.lane.b32.xlu0 %v582, 116
        %v2329 = vpop.permute.xlu0 %2328
        %2330 = vrot.lane.b32.xlu0 %v583, 116
        %v2331 = vpop.permute.xlu0 %2330
        %2332 = vrot.lane.b32.xlu0 %v584, 116
        %v2333 = vpop.permute.xlu0 %2332
        %2334 = vrot.lane.b32.xlu0 %v585, 116
        %v2335 = vpop.permute.xlu0 %2334
        %2336 = vrot.lane.b32.xlu0 %v586, 116
        %v2337 = vpop.permute.xlu0 %2336
        %2338 = vrot.lane.b32.xlu0 %v587, 116
        %v2339 = vpop.permute.xlu0 %2338
        %2340 = vrot.lane.b32.xlu0 %v588, 116
        %v2341 = vpop.permute.xlu0 %2340
        %2342 = vrot.lane.b32.xlu0 %v589, 116
        %v2343 = vpop.permute.xlu0 %2342
        %2344 = vrot.lane.b32.xlu0 %v590, 116
        %v2345 = vpop.permute.xlu0 %2344
        %2346 = vrot.lane.b32.xlu0 %v591, 116
        %v2347 = vpop.permute.xlu0 %2346
        %2348 = vrot.lane.b32.xlu0 %v592, 116
        %v2349 = vpop.permute.xlu0 %2348
        %2350 = vrot.lane.b32.xlu0 %v593, 116
        %v2351 = vpop.permute.xlu0 %2350
        %2352 = vrot.lane.b32.xlu0 %v594, 116
        %v2353 = vpop.permute.xlu0 %2352
        %2354 = vrot.lane.b32.xlu0 %v595, 116
        %v2355 = vpop.permute.xlu0 %2354
        %2356 = vrot.lane.b32.xlu0 %v596, 116
        %v2357 = vpop.permute.xlu0 %2356
        %2358 = vrot.lane.b32.xlu0 %v597, 116
        %v2359 = vpop.permute.xlu0 %2358
        %2360 = vrot.lane.b32.xlu0 %v598, 116
        %v2361 = vpop.permute.xlu0 %2360
        %2362 = vrot.lane.b32.xlu0 %v599, 116
        %v2363 = vpop.permute.xlu0 %2362
        %2364 = vrot.lane.b32.xlu0 %v600, 116
        %v2365 = vpop.permute.xlu0 %2364
        %2366 = vrot.lane.b32.xlu0 %v601, 116
        %v2367 = vpop.permute.xlu0 %2366
        %2368 = vrot.lane.b32.xlu0 %v602, 116
        %v2369 = vpop.permute.xlu0 %2368
        %2370 = vrot.lane.b32.xlu0 %v603, 116
        %v2371 = vpop.permute.xlu0 %2370
        %2372 = vrot.lane.b32.xlu0 %v604, 116
        %v2373 = vpop.permute.xlu0 %2372
        %2374 = vrot.lane.b32.xlu0 %v605, 116
        %v2375 = vpop.permute.xlu0 %2374
        %2376 = vrot.lane.b32.xlu0 %v606, 116
        %v2377 = vpop.permute.xlu0 %2376
        %2378 = vrot.lane.b32.xlu0 %v607, 116
        %v2379 = vpop.permute.xlu0 %2378
        %2380 = vrot.lane.b32.xlu0 %v608, 116
        %v2381 = vpop.permute.xlu0 %2380
        %2382 = vrot.lane.b32.xlu0 %v609, 116
        %v2383 = vpop.permute.xlu0 %2382
        %v2412 = vrot.slane %v2329, 6
        %v2413 = vrot.slane %v2333, 6
        %v2414 = vrot.slane %v2337, 6
        %v2415 = vrot.slane %v2341, 6
        %v2416 = vrot.slane %v2345, 6
        %v2417 = vrot.slane %v2349, 6
        %v2418 = vrot.slane %v2353, 6
        %v2419 = vrot.slane %v2357, 6
        %v2420 = vrot.slane %v2361, 6
        %v2421 = vrot.slane %v2365, 6
        %v2422 = vrot.slane %v2369, 6
        %v2423 = vrot.slane %v2373, 6
        %v2424 = vrot.slane %v2377, 6
        %v2425 = vrot.slane %v2381, 6
        %v2426 = vrot.slane %v2331, 6
        %v2427 = vrot.slane %v2335, 6
        %v2428 = vrot.slane %v2339, 6
        %v2429 = vrot.slane %v2343, 6
        %v2430 = vrot.slane %v2347, 6
        %v2431 = vrot.slane %v2351, 6
        %v2432 = vrot.slane %v2355, 6
        %v2433 = vrot.slane %v2359, 6
        %v2434 = vrot.slane %v2363, 6
        %v2435 = vrot.slane %v2367, 6
        %v2436 = vrot.slane %v2371, 6
        %v2437 = vrot.slane %v2375, 6
        %v2438 = vrot.slane %v2379, 6
        %v2439 = vrot.slane %v2383, 6
        %vm2440 = vcmp.lt.s32.totalorder %v621, 2
        %v2441 = vsel %vm2440, %v2412, %v2426
        %v2442 = vsel %vm2440, %v2413, %v2427
        %v2443 = vsel %vm2440, %v2414, %v2428
        %v2444 = vsel %vm2440, %v2415, %v2429
        %v2445 = vsel %vm2440, %v2416, %v2430
        %v2446 = vsel %vm2440, %v2417, %v2431
        %v2447 = vsel %vm2440, %v2418, %v2432
        %v2448 = vsel %vm2440, %v2419, %v2433
        %v2449 = vsel %vm2440, %v2420, %v2434
        %v2450 = vsel %vm2440, %v2421, %v2435
        %v2451 = vsel %vm2440, %v2422, %v2436
        %v2452 = vsel %vm2440, %v2423, %v2437
        %v2453 = vsel %vm2440, %v2424, %v2438
        %v2454 = vsel %vm2440, %v2425, %v2439
        %v2455 = vsel %vm2440, %v2426, %v2412
        %v2456 = vsel %vm2440, %v2427, %v2413
        %v2457 = vsel %vm2440, %v2428, %v2414
        %v2458 = vsel %vm2440, %v2429, %v2415
        %v2459 = vsel %vm2440, %v2430, %v2416
        %v2460 = vsel %vm2440, %v2431, %v2417
        %v2461 = vsel %vm2440, %v2432, %v2418
        %v2462 = vsel %vm2440, %v2433, %v2419
        %v2463 = vsel %vm2440, %v2434, %v2420
        %v2464 = vsel %vm2440, %v2435, %v2421
        %v2465 = vsel %vm2440, %v2436, %v2422
        %v2466 = vsel %vm2440, %v2437, %v2423
        %v2467 = vsel %vm2440, %v2438, %v2424
        %v2468 = vsel %vm2440, %v2439, %v2425
        %vm2469 = vcmp.ge.s32.totalorder %v621, 2
        %vm2470 = vcmp.ge.s32.totalorder %v622, 2
        %vm2471 = vcmp.lt.s32.totalorder %v621, 18
        %vm2472 = vcmp.lt.s32.totalorder %v622, 18
        %vm2473 = vmand %vm2469, %vm2471
        %vm2474 = vmand %vm2470, %vm2472
        %v2475 = vsel %vm2473, 0.0, 0.0
        %v2476 = vsel %vm2474, 0.0, 0.0
        %v2477 = vsel %vm2473, %v2455, 0.0
        %v2478 = vsel %vm2474, %v2441, 0.0
        %v2479 = vsel %vm2473, %v2456, 0.0
        %v2480 = vsel %vm2474, %v2442, 0.0
        %v2481 = vsel %vm2473, %v2457, 0.0
        %v2482 = vsel %vm2474, %v2443, 0.0
        %v2483 = vsel %vm2473, %v2458, 0.0
        %v2484 = vsel %vm2474, %v2444, 0.0
        %v2485 = vsel %vm2473, %v2459, 0.0
        %v2486 = vsel %vm2474, %v2445, 0.0
        %v2487 = vsel %vm2473, %v2460, 0.0
        %v2488 = vsel %vm2474, %v2446, 0.0
        %v2489 = vsel %vm2473, %v2461, 0.0
        %v2490 = vsel %vm2474, %v2447, 0.0
        %v2491 = vsel %vm2473, %v2462, 0.0
        %v2492 = vsel %vm2474, %v2448, 0.0
        %v2493 = vsel %vm2473, %v2463, 0.0
        %v2494 = vsel %vm2474, %v2449, 0.0
        %v2495 = vsel %vm2473, %v2464, 0.0
        %v2496 = vsel %vm2474, %v2450, 0.0
        %v2497 = vsel %vm2473, %v2465, 0.0
        %v2498 = vsel %vm2474, %v2451, 0.0
        %v2499 = vsel %vm2473, %v2466, 0.0
        %v2500 = vsel %vm2474, %v2452, 0.0
        %v2501 = vsel %vm2473, %v2467, 0.0
        %v2502 = vsel %vm2474, %v2453, 0.0
        %v2503 = vsel %vm2473, %v2468, 0.0
        %v2504 = vsel %vm2474, %v2454, 0.0
        %v2505 = vrot.slane %v2329, 7
        %v2506 = vrot.slane %v2333, 7
        %v2507 = vrot.slane %v2337, 7
        %v2508 = vrot.slane %v2341, 7
        %v2509 = vrot.slane %v2345, 7
        %v2510 = vrot.slane %v2349, 7
        %v2511 = vrot.slane %v2353, 7
        %v2512 = vrot.slane %v2357, 7
        %v2513 = vrot.slane %v2361, 7
        %v2514 = vrot.slane %v2365, 7
        %v2515 = vrot.slane %v2369, 7
        %v2516 = vrot.slane %v2373, 7
        %v2517 = vrot.slane %v2377, 7
        %v2518 = vrot.slane %v2381, 7
        %v2519 = vrot.slane %v2331, 7
        %v2520 = vrot.slane %v2335, 7
        %v2521 = vrot.slane %v2339, 7
        %v2522 = vrot.slane %v2343, 7
        %v2523 = vrot.slane %v2347, 7
        %v2524 = vrot.slane %v2351, 7
        %v2525 = vrot.slane %v2355, 7
        %v2526 = vrot.slane %v2359, 7
        %v2527 = vrot.slane %v2363, 7
        %v2528 = vrot.slane %v2367, 7
        %v2529 = vrot.slane %v2371, 7
        %v2530 = vrot.slane %v2375, 7
        %v2531 = vrot.slane %v2379, 7
        %v2532 = vrot.slane %v2383, 7
        %v2533 = vsel %vm773, %v2505, %v2519
        %v2534 = vsel %vm773, %v2506, %v2520
        %v2535 = vsel %vm773, %v2507, %v2521
        %v2536 = vsel %vm773, %v2508, %v2522
        %v2537 = vsel %vm773, %v2509, %v2523
        %v2538 = vsel %vm773, %v2510, %v2524
        %v2539 = vsel %vm773, %v2511, %v2525
        %v2540 = vsel %vm773, %v2512, %v2526
        %v2541 = vsel %vm773, %v2513, %v2527
        %v2542 = vsel %vm773, %v2514, %v2528
        %v2543 = vsel %vm773, %v2515, %v2529
        %v2544 = vsel %vm773, %v2516, %v2530
        %v2545 = vsel %vm773, %v2517, %v2531
        %v2546 = vsel %vm773, %v2518, %v2532
        %v2547 = vsel %vm773, %v2519, %v2505
        %v2548 = vsel %vm773, %v2520, %v2506
        %v2549 = vsel %vm773, %v2521, %v2507
        %v2550 = vsel %vm773, %v2522, %v2508
        %v2551 = vsel %vm773, %v2523, %v2509
        %v2552 = vsel %vm773, %v2524, %v2510
        %v2553 = vsel %vm773, %v2525, %v2511
        %v2554 = vsel %vm773, %v2526, %v2512
        %v2555 = vsel %vm773, %v2527, %v2513
        %v2556 = vsel %vm773, %v2528, %v2514
        %v2557 = vsel %vm773, %v2529, %v2515
        %v2558 = vsel %vm773, %v2530, %v2516
        %v2559 = vsel %vm773, %v2531, %v2517
        %v2560 = vsel %vm773, %v2532, %v2518
        %v2561 = vsel %vm808, %v2547, 0.0
        %v2562 = vsel %vm809, %v2533, 0.0
        %v2563 = vsel %vm808, %v2548, 0.0
        %v2564 = vsel %vm809, %v2534, 0.0
        %v2565 = vsel %vm808, %v2549, 0.0
        %v2566 = vsel %vm809, %v2535, 0.0
        %v2567 = vsel %vm808, %v2550, 0.0
        %v2568 = vsel %vm809, %v2536, 0.0
        %v2569 = vsel %vm808, %v2551, 0.0
        %v2570 = vsel %vm809, %v2537, 0.0
        %v2571 = vsel %vm808, %v2552, 0.0
        %v2572 = vsel %vm809, %v2538, 0.0
        %v2573 = vsel %vm808, %v2553, 0.0
        %v2574 = vsel %vm809, %v2539, 0.0
        %v2575 = vsel %vm808, %v2554, 0.0
        %v2576 = vsel %vm809, %v2540, 0.0
        %v2577 = vsel %vm808, %v2555, 0.0
        %v2578 = vsel %vm809, %v2541, 0.0
        %v2579 = vsel %vm808, %v2556, 0.0
        %v2580 = vsel %vm809, %v2542, 0.0
        %v2581 = vsel %vm808, %v2557, 0.0
        %v2582 = vsel %vm809, %v2543, 0.0
        %v2583 = vsel %vm808, %v2558, 0.0
        %v2584 = vsel %vm809, %v2544, 0.0
        %v2585 = vsel %vm808, %v2559, 0.0
        %v2586 = vsel %vm809, %v2545, 0.0
        %v2587 = vsel %vm808, %v2560, 0.0
        %v2588 = vsel %vm809, %v2546, 0.0
        %v2589 = vrot.slane %v2329, 1
        %v2590 = vrot.slane %v2333, 1
        %v2591 = vrot.slane %v2337, 1
        %v2592 = vrot.slane %v2341, 1
        %v2593 = vrot.slane %v2345, 1
        %v2594 = vrot.slane %v2349, 1
        %v2595 = vrot.slane %v2353, 1
        %v2596 = vrot.slane %v2357, 1
        %v2597 = vrot.slane %v2361, 1
        %v2598 = vrot.slane %v2365, 1
        %v2599 = vrot.slane %v2369, 1
        %v2600 = vrot.slane %v2373, 1
        %v2601 = vrot.slane %v2377, 1
        %v2602 = vrot.slane %v2381, 1
        %v2603 = vrot.slane %v2331, 1
        %v2604 = vrot.slane %v2335, 1
        %v2605 = vrot.slane %v2339, 1
        %v2606 = vrot.slane %v2343, 1
        %v2607 = vrot.slane %v2347, 1
        %v2608 = vrot.slane %v2351, 1
        %v2609 = vrot.slane %v2355, 1
        %v2610 = vrot.slane %v2359, 1
        %v2611 = vrot.slane %v2363, 1
        %v2612 = vrot.slane %v2367, 1
        %v2613 = vrot.slane %v2371, 1
        %v2614 = vrot.slane %v2375, 1
        %v2615 = vrot.slane %v2379, 1
        %v2616 = vrot.slane %v2383, 1
        %v2617 = vsel %vm872, %v2589, %v2603
        %v2618 = vsel %vm872, %v2590, %v2604
        %v2619 = vsel %vm872, %v2591, %v2605
        %v2620 = vsel %vm872, %v2592, %v2606
        %v2621 = vsel %vm872, %v2593, %v2607
        %v2622 = vsel %vm872, %v2594, %v2608
        %v2623 = vsel %vm872, %v2595, %v2609
        %v2624 = vsel %vm872, %v2596, %v2610
        %v2625 = vsel %vm872, %v2597, %v2611
        %v2626 = vsel %vm872, %v2598, %v2612
        %v2627 = vsel %vm872, %v2599, %v2613
        %v2628 = vsel %vm872, %v2600, %v2614
        %v2629 = vsel %vm872, %v2601, %v2615
        %v2630 = vsel %vm872, %v2602, %v2616
        %v2631 = vsel %vm872, %v2603, %v2589
        %v2632 = vsel %vm872, %v2604, %v2590
        %v2633 = vsel %vm872, %v2605, %v2591
        %v2634 = vsel %vm872, %v2606, %v2592
        %v2635 = vsel %vm872, %v2607, %v2593
        %v2636 = vsel %vm872, %v2608, %v2594
        %v2637 = vsel %vm872, %v2609, %v2595
        %v2638 = vsel %vm872, %v2610, %v2596
        %v2639 = vsel %vm872, %v2611, %v2597
        %v2640 = vsel %vm872, %v2612, %v2598
        %v2641 = vsel %vm872, %v2613, %v2599
        %v2642 = vsel %vm872, %v2614, %v2600
        %v2643 = vsel %vm872, %v2615, %v2601
        %v2644 = vsel %vm872, %v2616, %v2602
        %v2645 = vsel %vm907, %v2617, 0.0
        %v2646 = vsel %vm908, %v2631, 0.0
        %v2647 = vsel %vm907, %v2618, 0.0
        %v2648 = vsel %vm908, %v2632, 0.0
        %v2649 = vsel %vm907, %v2619, 0.0
        %v2650 = vsel %vm908, %v2633, 0.0
        %v2651 = vsel %vm907, %v2620, 0.0
        %v2652 = vsel %vm908, %v2634, 0.0
        %v2653 = vsel %vm907, %v2621, 0.0
        %v2654 = vsel %vm908, %v2635, 0.0
        %v2655 = vsel %vm907, %v2622, 0.0
        %v2656 = vsel %vm908, %v2636, 0.0
        %v2657 = vsel %vm907, %v2623, 0.0
        %v2658 = vsel %vm908, %v2637, 0.0
        %v2659 = vsel %vm907, %v2624, 0.0
        %v2660 = vsel %vm908, %v2638, 0.0
        %v2661 = vsel %vm907, %v2625, 0.0
        %v2662 = vsel %vm908, %v2639, 0.0
        %v2663 = vsel %vm907, %v2626, 0.0
        %v2664 = vsel %vm908, %v2640, 0.0
        %v2665 = vsel %vm907, %v2627, 0.0
        %v2666 = vsel %vm908, %v2641, 0.0
        %v2667 = vsel %vm907, %v2628, 0.0
        %v2668 = vsel %vm908, %v2642, 0.0
        %v2669 = vsel %vm907, %v2629, 0.0
        %v2670 = vsel %vm908, %v2643, 0.0
        %v2671 = vsel %vm907, %v2630, 0.0
        %v2672 = vsel %vm908, %v2644, 0.0
        %v2673 = vrot.slane %v2329, 2
        %v2674 = vrot.slane %v2333, 2
        %v2675 = vrot.slane %v2337, 2
        %v2676 = vrot.slane %v2341, 2
        %v2677 = vrot.slane %v2345, 2
        %v2678 = vrot.slane %v2349, 2
        %v2679 = vrot.slane %v2353, 2
        %v2680 = vrot.slane %v2357, 2
        %v2681 = vrot.slane %v2361, 2
        %v2682 = vrot.slane %v2365, 2
        %v2683 = vrot.slane %v2369, 2
        %v2684 = vrot.slane %v2373, 2
        %v2685 = vrot.slane %v2377, 2
        %v2686 = vrot.slane %v2381, 2
        %v2687 = vrot.slane %v2331, 2
        %v2688 = vrot.slane %v2335, 2
        %v2689 = vrot.slane %v2339, 2
        %v2690 = vrot.slane %v2343, 2
        %v2691 = vrot.slane %v2347, 2
        %v2692 = vrot.slane %v2351, 2
        %v2693 = vrot.slane %v2355, 2
        %v2694 = vrot.slane %v2359, 2
        %v2695 = vrot.slane %v2363, 2
        %v2696 = vrot.slane %v2367, 2
        %v2697 = vrot.slane %v2371, 2
        %v2698 = vrot.slane %v2375, 2
        %v2699 = vrot.slane %v2379, 2
        %v2700 = vrot.slane %v2383, 2
        %vm2701 = vcmp.lt.s32.totalorder %v621, 6
        %v2702 = vsel %vm2701, %v2673, %v2687
        %v2703 = vsel %vm2701, %v2674, %v2688
        %v2704 = vsel %vm2701, %v2675, %v2689
        %v2705 = vsel %vm2701, %v2676, %v2690
        %v2706 = vsel %vm2701, %v2677, %v2691
        %v2707 = vsel %vm2701, %v2678, %v2692
        %v2708 = vsel %vm2701, %v2679, %v2693
        %v2709 = vsel %vm2701, %v2680, %v2694
        %v2710 = vsel %vm2701, %v2681, %v2695
        %v2711 = vsel %vm2701, %v2682, %v2696
        %v2712 = vsel %vm2701, %v2683, %v2697
        %v2713 = vsel %vm2701, %v2684, %v2698
        %v2714 = vsel %vm2701, %v2685, %v2699
        %v2715 = vsel %vm2701, %v2686, %v2700
        %v2716 = vsel %vm2701, %v2687, %v2673
        %v2717 = vsel %vm2701, %v2688, %v2674
        %v2718 = vsel %vm2701, %v2689, %v2675
        %v2719 = vsel %vm2701, %v2690, %v2676
        %v2720 = vsel %vm2701, %v2691, %v2677
        %v2721 = vsel %vm2701, %v2692, %v2678
        %v2722 = vsel %vm2701, %v2693, %v2679
        %v2723 = vsel %vm2701, %v2694, %v2680
        %v2724 = vsel %vm2701, %v2695, %v2681
        %v2725 = vsel %vm2701, %v2696, %v2682
        %v2726 = vsel %vm2701, %v2697, %v2683
        %v2727 = vsel %vm2701, %v2698, %v2684
        %v2728 = vsel %vm2701, %v2699, %v2685
        %v2729 = vsel %vm2701, %v2700, %v2686
        %vm2730 = vcmp.ge.s32.totalorder %v621, 4294967294
        %vm2731 = vcmp.ge.s32.totalorder %v622, 4294967294
        %vm2732 = vcmp.lt.s32.totalorder %v621, 14
        %vm2733 = vcmp.lt.s32.totalorder %v622, 14
        %vm2734 = vmand %vm2730, %vm2732
        %vm2735 = vmand %vm2731, %vm2733
        %v2736 = vsel %vm2734, 0.0, 0.0
        %v2737 = vsel %vm2735, 0.0, 0.0
        %v2738 = vsel %vm2734, %v2702, 0.0
        %v2739 = vsel %vm2735, %v2716, 0.0
        %v2740 = vsel %vm2734, %v2703, 0.0
        %v2741 = vsel %vm2735, %v2717, 0.0
        %v2742 = vsel %vm2734, %v2704, 0.0
        %v2743 = vsel %vm2735, %v2718, 0.0
        %v2744 = vsel %vm2734, %v2705, 0.0
        %v2745 = vsel %vm2735, %v2719, 0.0
        %v2746 = vsel %vm2734, %v2706, 0.0
        %v2747 = vsel %vm2735, %v2720, 0.0
        %v2748 = vsel %vm2734, %v2707, 0.0
        %v2749 = vsel %vm2735, %v2721, 0.0
        %v2750 = vsel %vm2734, %v2708, 0.0
        %v2751 = vsel %vm2735, %v2722, 0.0
        %v2752 = vsel %vm2734, %v2709, 0.0
        %v2753 = vsel %vm2735, %v2723, 0.0
        %v2754 = vsel %vm2734, %v2710, 0.0
        %v2755 = vsel %vm2735, %v2724, 0.0
        %v2756 = vsel %vm2734, %v2711, 0.0
        %v2757 = vsel %vm2735, %v2725, 0.0
        %v2758 = vsel %vm2734, %v2712, 0.0
        %v2759 = vsel %vm2735, %v2726, 0.0
        %v2760 = vsel %vm2734, %v2713, 0.0
        %v2761 = vsel %vm2735, %v2727, 0.0
        %v2762 = vsel %vm2734, %v2714, 0.0
        %v2763 = vsel %vm2735, %v2728, 0.0
        %v2764 = vsel %vm2734, %v2715, 0.0
        %v2765 = vsel %vm2735, %v2729, 0.0
        %2766 = vrot.lane.b32.xlu0 %v610, 116
        %v2767 = vpop.permute.xlu0 %2766
        %2768 = vrot.lane.b32.xlu0 %v611, 116
        %v2769 = vpop.permute.xlu0 %2768
        %v2772 = vrot.slane %v2767, 6
        %v2773 = vrot.slane %v2769, 6
        %v2774 = vsel %vm2440, %v2772, %v2773
        %v2775 = vsel %vm2440, %v2773, %v2772
        %v2776 = vsel %vm2473, %v2775, 0.0
        %v2777 = vsel %vm2474, %v2774, 0.0
        %v2778 = vrot.slane %v2767, 7
        %v2779 = vrot.slane %v2769, 7
        %v2780 = vsel %vm773, %v2778, %v2779
        %v2781 = vsel %vm773, %v2779, %v2778
        %v2782 = vsel %vm808, %v2781, 0.0
        %v2783 = vsel %vm809, %v2780, 0.0
        %v2784 = vrot.slane %v2767, 1
        %v2785 = vrot.slane %v2769, 1
        %v2786 = vsel %vm872, %v2784, %v2785
        %v2787 = vsel %vm872, %v2785, %v2784
        %v2788 = vsel %vm907, %v2786, 0.0
        %v2789 = vsel %vm908, %v2787, 0.0
        %v2790 = vrot.slane %v2767, 2
        %v2791 = vrot.slane %v2769, 2
        %v2792 = vsel %vm2701, %v2790, %v2791
        %v2793 = vsel %vm2701, %v2791, %v2790
        %v2794 = vsel %vm2734, %v2792, 0.0
        %v2795 = vsel %vm2735, %v2793, 0.0
        %2796 = vrot.lane.b32.xlu0 %v612, 116
        %v2797 = vpop.permute.xlu0 %2796
        %2798 = vrot.lane.b32.xlu0 %v613, 116
        %v2799 = vpop.permute.xlu0 %2798
        %v2802 = vrot.slane %v2797, 6
        %v2803 = vrot.slane %v2799, 6
        %v2804 = vsel %vm2440, %v2802, %v2803
        %v2805 = vsel %vm2440, %v2803, %v2802
        %v2806 = vsel %vm2473, %v2805, 0.0
        %v2807 = vsel %vm2474, %v2804, 0.0
        %v2808 = vrot.slane %v2797, 7
        %v2809 = vrot.slane %v2799, 7
        %v2810 = vsel %vm773, %v2808, %v2809
        %v2811 = vsel %vm773, %v2809, %v2808
        %v2812 = vsel %vm808, %v2811, 0.0
        %v2813 = vsel %vm809, %v2810, 0.0
        %v2814 = vrot.slane %v2797, 1
        %v2815 = vrot.slane %v2799, 1
        %v2816 = vsel %vm872, %v2814, %v2815
        %v2817 = vsel %vm872, %v2815, %v2814
        %v2818 = vsel %vm907, %v2816, 0.0
        %v2819 = vsel %vm908, %v2817, 0.0
        %v2820 = vrot.slane %v2797, 2
        %v2821 = vrot.slane %v2799, 2
        %v2822 = vsel %vm2701, %v2820, %v2821
        %v2823 = vsel %vm2701, %v2821, %v2820
        %v2824 = vsel %vm2734, %v2822, 0.0
        %v2825 = vsel %vm2735, %v2823, 0.0
        %2826 = vrot.lane.b32.xlu0 0.0, 116
        %v2827 = vpop.permute.xlu0 %2826
        %v2829 = vrot.slane %v2827, 6
        %v2830 = vsel %vm2473, %v2829, 0.0
        %v2831 = vsel %vm2474, %v2829, 0.0
        %v2832 = vrot.slane %v2827, 7
        %v2833 = vsel %vm808, %v2832, 0.0
        %v2834 = vsel %vm809, %v2832, 0.0
        %v2835 = vrot.slane %v2827, 1
        %v2836 = vsel %vm907, %v2835, 0.0
        %v2837 = vsel %vm908, %v2835, 0.0
        %v2838 = vrot.slane %v2827, 2
        %v2839 = vsel %vm2734, %v2838, 0.0
        %v2840 = vsel %vm2735, %v2838, 0.0
        %2871 = vrot.lane.b32.xlu0 %v810, 4
        %v2872 = vpop.permute.xlu0 %2871
        %2873 = vrot.lane.b32.xlu0 %v811, 4
        %v2874 = vpop.permute.xlu0 %2873
        %2875 = vrot.lane.b32.xlu0 %v2561, 4
        %v2876 = vpop.permute.xlu0 %2875
        %2877 = vrot.lane.b32.xlu0 %v2562, 4
        %v2878 = vpop.permute.xlu0 %2877
        %2879 = vrot.lane.b32.xlu0 %v2563, 4
        %v2880 = vpop.permute.xlu0 %2879
        %2881 = vrot.lane.b32.xlu0 %v2564, 4
        %v2882 = vpop.permute.xlu0 %2881
        %2883 = vrot.lane.b32.xlu0 %v2565, 4
        %v2884 = vpop.permute.xlu0 %2883
        %2885 = vrot.lane.b32.xlu0 %v2566, 4
        %v2886 = vpop.permute.xlu0 %2885
        %2887 = vrot.lane.b32.xlu0 %v2567, 4
        %v2888 = vpop.permute.xlu0 %2887
        %2889 = vrot.lane.b32.xlu0 %v2568, 4
        %v2890 = vpop.permute.xlu0 %2889
        %2891 = vrot.lane.b32.xlu0 %v2569, 4
        %v2892 = vpop.permute.xlu0 %2891
        %2893 = vrot.lane.b32.xlu0 %v2570, 4
        %v2894 = vpop.permute.xlu0 %2893
        %2895 = vrot.lane.b32.xlu0 %v2571, 4
        %v2896 = vpop.permute.xlu0 %2895
        %2897 = vrot.lane.b32.xlu0 %v2572, 4
        %v2898 = vpop.permute.xlu0 %2897
        %2899 = vrot.lane.b32.xlu0 %v2573, 4
        %v2900 = vpop.permute.xlu0 %2899
        %2901 = vrot.lane.b32.xlu0 %v2574, 4
        %v2902 = vpop.permute.xlu0 %2901
        %2903 = vrot.lane.b32.xlu0 %v2575, 4
        %v2904 = vpop.permute.xlu0 %2903
        %2905 = vrot.lane.b32.xlu0 %v2576, 4
        %v2906 = vpop.permute.xlu0 %2905
        %2907 = vrot.lane.b32.xlu0 %v2577, 4
        %v2908 = vpop.permute.xlu0 %2907
        %2909 = vrot.lane.b32.xlu0 %v2578, 4
        %v2910 = vpop.permute.xlu0 %2909
        %2911 = vrot.lane.b32.xlu0 %v2579, 4
        %v2912 = vpop.permute.xlu0 %2911
        %2913 = vrot.lane.b32.xlu0 %v2580, 4
        %v2914 = vpop.permute.xlu0 %2913
        %2915 = vrot.lane.b32.xlu0 %v2581, 4
        %v2916 = vpop.permute.xlu0 %2915
        %2917 = vrot.lane.b32.xlu0 %v2582, 4
        %v2918 = vpop.permute.xlu0 %2917
        %2919 = vrot.lane.b32.xlu0 %v2583, 4
        %v2920 = vpop.permute.xlu0 %2919
        %2921 = vrot.lane.b32.xlu0 %v2584, 4
        %v2922 = vpop.permute.xlu0 %2921
        %2923 = vrot.lane.b32.xlu0 %v2585, 4
        %v2924 = vpop.permute.xlu0 %2923
        %2925 = vrot.lane.b32.xlu0 %v2586, 4
        %v2926 = vpop.permute.xlu0 %2925
        %2927 = vrot.lane.b32.xlu0 %v2587, 4
        %v2928 = vpop.permute.xlu0 %2927
        %2929 = vrot.lane.b32.xlu0 %v2588, 4
        %v2930 = vpop.permute.xlu0 %2929
        %2961 = vrot.lane.b32.xlu0 0.0, 8
        %v2962 = vpop.permute.xlu0 %2961
        %2963 = vrot.lane.b32.xlu0 %v2329, 8
        %v2964 = vpop.permute.xlu0 %2963
        %2965 = vrot.lane.b32.xlu0 %v2331, 8
        %v2966 = vpop.permute.xlu0 %2965
        %2967 = vrot.lane.b32.xlu0 %v2333, 8
        %v2968 = vpop.permute.xlu0 %2967
        %2969 = vrot.lane.b32.xlu0 %v2335, 8
        %v2970 = vpop.permute.xlu0 %2969
        %2971 = vrot.lane.b32.xlu0 %v2337, 8
        %v2972 = vpop.permute.xlu0 %2971
        %2973 = vrot.lane.b32.xlu0 %v2339, 8
        %v2974 = vpop.permute.xlu0 %2973
        %2975 = vrot.lane.b32.xlu0 %v2341, 8
        %v2976 = vpop.permute.xlu0 %2975
        %2977 = vrot.lane.b32.xlu0 %v2343, 8
        %v2978 = vpop.permute.xlu0 %2977
        %2979 = vrot.lane.b32.xlu0 %v2345, 8
        %v2980 = vpop.permute.xlu0 %2979
        %2981 = vrot.lane.b32.xlu0 %v2347, 8
        %v2982 = vpop.permute.xlu0 %2981
        %2983 = vrot.lane.b32.xlu0 %v2349, 8
        %v2984 = vpop.permute.xlu0 %2983
        %2985 = vrot.lane.b32.xlu0 %v2351, 8
        %v2986 = vpop.permute.xlu0 %2985
        %2987 = vrot.lane.b32.xlu0 %v2353, 8
        %v2988 = vpop.permute.xlu0 %2987
        %2989 = vrot.lane.b32.xlu0 %v2355, 8
        %v2990 = vpop.permute.xlu0 %2989
        %2991 = vrot.lane.b32.xlu0 %v2357, 8
        %v2992 = vpop.permute.xlu0 %2991
        %2993 = vrot.lane.b32.xlu0 %v2359, 8
        %v2994 = vpop.permute.xlu0 %2993
        %2995 = vrot.lane.b32.xlu0 %v2361, 8
        %v2996 = vpop.permute.xlu0 %2995
        %2997 = vrot.lane.b32.xlu0 %v2363, 8
        %v2998 = vpop.permute.xlu0 %2997
        %2999 = vrot.lane.b32.xlu0 %v2365, 8
        %v3000 = vpop.permute.xlu0 %2999
        %3001 = vrot.lane.b32.xlu0 %v2367, 8
        %v3002 = vpop.permute.xlu0 %3001
        %3003 = vrot.lane.b32.xlu0 %v2369, 8
        %v3004 = vpop.permute.xlu0 %3003
        %3005 = vrot.lane.b32.xlu0 %v2371, 8
        %v3006 = vpop.permute.xlu0 %3005
        %3007 = vrot.lane.b32.xlu0 %v2373, 8
        %v3008 = vpop.permute.xlu0 %3007
        %3009 = vrot.lane.b32.xlu0 %v2375, 8
        %v3010 = vpop.permute.xlu0 %3009
        %3011 = vrot.lane.b32.xlu0 %v2377, 8
        %v3012 = vpop.permute.xlu0 %3011
        %3013 = vrot.lane.b32.xlu0 %v2379, 8
        %v3014 = vpop.permute.xlu0 %3013
        %3015 = vrot.lane.b32.xlu0 %v2381, 8
        %v3016 = vpop.permute.xlu0 %3015
        %3017 = vrot.lane.b32.xlu0 %v2383, 8
        %v3018 = vpop.permute.xlu0 %3017
        %3076 = vrot.lane.b32.xlu0 %v909, 12
        %v3077 = vpop.permute.xlu0 %3076
        %3078 = vrot.lane.b32.xlu0 %v910, 12
        %v3079 = vpop.permute.xlu0 %3078
        %3080 = vrot.lane.b32.xlu0 %v2645, 12
        %v3081 = vpop.permute.xlu0 %3080
        %3082 = vrot.lane.b32.xlu0 %v2646, 12
        %v3083 = vpop.permute.xlu0 %3082
        %3084 = vrot.lane.b32.xlu0 %v2647, 12
        %v3085 = vpop.permute.xlu0 %3084
        %3086 = vrot.lane.b32.xlu0 %v2648, 12
        %v3087 = vpop.permute.xlu0 %3086
        %3088 = vrot.lane.b32.xlu0 %v2649, 12
        %v3089 = vpop.permute.xlu0 %3088
        %3090 = vrot.lane.b32.xlu0 %v2650, 12
        %v3091 = vpop.permute.xlu0 %3090
        %3092 = vrot.lane.b32.xlu0 %v2651, 12
        %v3093 = vpop.permute.xlu0 %3092
        %3094 = vrot.lane.b32.xlu0 %v2652, 12
        %v3095 = vpop.permute.xlu0 %3094
        %3096 = vrot.lane.b32.xlu0 %v2653, 12
        %v3097 = vpop.permute.xlu0 %3096
        %3098 = vrot.lane.b32.xlu0 %v2654, 12
        %v3099 = vpop.permute.xlu0 %3098
        %3100 = vrot.lane.b32.xlu0 %v2655, 12
        %v3101 = vpop.permute.xlu0 %3100
        %3102 = vrot.lane.b32.xlu0 %v2656, 12
        %v3103 = vpop.permute.xlu0 %3102
        %3104 = vrot.lane.b32.xlu0 %v2657, 12
        %v3105 = vpop.permute.xlu0 %3104
        %3106 = vrot.lane.b32.xlu0 %v2658, 12
        %v3107 = vpop.permute.xlu0 %3106
        %3108 = vrot.lane.b32.xlu0 %v2659, 12
        %v3109 = vpop.permute.xlu0 %3108
        %3110 = vrot.lane.b32.xlu0 %v2660, 12
        %v3111 = vpop.permute.xlu0 %3110
        %3112 = vrot.lane.b32.xlu0 %v2661, 12
        %v3113 = vpop.permute.xlu0 %3112
        %3114 = vrot.lane.b32.xlu0 %v2662, 12
        %v3115 = vpop.permute.xlu0 %3114
        %3116 = vrot.lane.b32.xlu0 %v2663, 12
        %v3117 = vpop.permute.xlu0 %3116
        %3118 = vrot.lane.b32.xlu0 %v2664, 12
        %v3119 = vpop.permute.xlu0 %3118
        %3120 = vrot.lane.b32.xlu0 %v2665, 12
        %v3121 = vpop.permute.xlu0 %3120
        %3122 = vrot.lane.b32.xlu0 %v2666, 12
        %v3123 = vpop.permute.xlu0 %3122
        %3124 = vrot.lane.b32.xlu0 %v2667, 12
        %v3125 = vpop.permute.xlu0 %3124
        %3126 = vrot.lane.b32.xlu0 %v2668, 12
        %v3127 = vpop.permute.xlu0 %3126
        %3128 = vrot.lane.b32.xlu0 %v2669, 12
        %v3129 = vpop.permute.xlu0 %3128
        %3130 = vrot.lane.b32.xlu0 %v2670, 12
        %v3131 = vpop.permute.xlu0 %3130
        %3132 = vrot.lane.b32.xlu0 %v2671, 12
        %v3133 = vpop.permute.xlu0 %3132
        %3134 = vrot.lane.b32.xlu0 %v2672, 12
        %v3135 = vpop.permute.xlu0 %3134
        %3196 = vrot.lane.b32.xlu0 %v2736, 16
        %v3197 = vpop.permute.xlu0 %3196
        %3198 = vrot.lane.b32.xlu0 %v2737, 16
        %v3199 = vpop.permute.xlu0 %3198
        %3200 = vrot.lane.b32.xlu0 %v2738, 16
        %v3201 = vpop.permute.xlu0 %3200
        %3202 = vrot.lane.b32.xlu0 %v2739, 16
        %v3203 = vpop.permute.xlu0 %3202
        %3204 = vrot.lane.b32.xlu0 %v2740, 16
        %v3205 = vpop.permute.xlu0 %3204
        %3206 = vrot.lane.b32.xlu0 %v2741, 16
        %v3207 = vpop.permute.xlu0 %3206
        %3208 = vrot.lane.b32.xlu0 %v2742, 16
        %v3209 = vpop.permute.xlu0 %3208
        %3210 = vrot.lane.b32.xlu0 %v2743, 16
        %v3211 = vpop.permute.xlu0 %3210
        %3212 = vrot.lane.b32.xlu0 %v2744, 16
        %v3213 = vpop.permute.xlu0 %3212
        %3214 = vrot.lane.b32.xlu0 %v2745, 16
        %v3215 = vpop.permute.xlu0 %3214
        %3216 = vrot.lane.b32.xlu0 %v2746, 16
        %v3217 = vpop.permute.xlu0 %3216
        %3218 = vrot.lane.b32.xlu0 %v2747, 16
        %v3219 = vpop.permute.xlu0 %3218
        %3220 = vrot.lane.b32.xlu0 %v2748, 16
        %v3221 = vpop.permute.xlu0 %3220
        %3222 = vrot.lane.b32.xlu0 %v2749, 16
        %v3223 = vpop.permute.xlu0 %3222
        %3224 = vrot.lane.b32.xlu0 %v2750, 16
        %v3225 = vpop.permute.xlu0 %3224
        %3226 = vrot.lane.b32.xlu0 %v2751, 16
        %v3227 = vpop.permute.xlu0 %3226
        %3228 = vrot.lane.b32.xlu0 %v2752, 16
        %v3229 = vpop.permute.xlu0 %3228
        %3230 = vrot.lane.b32.xlu0 %v2753, 16
        %v3231 = vpop.permute.xlu0 %3230
        %3232 = vrot.lane.b32.xlu0 %v2754, 16
        %v3233 = vpop.permute.xlu0 %3232
        %3234 = vrot.lane.b32.xlu0 %v2755, 16
        %v3235 = vpop.permute.xlu0 %3234
        %3236 = vrot.lane.b32.xlu0 %v2756, 16
        %v3237 = vpop.permute.xlu0 %3236
        %3238 = vrot.lane.b32.xlu0 %v2757, 16
        %v3239 = vpop.permute.xlu0 %3238
        %3240 = vrot.lane.b32.xlu0 %v2758, 16
        %v3241 = vpop.permute.xlu0 %3240
        %3242 = vrot.lane.b32.xlu0 %v2759, 16
        %v3243 = vpop.permute.xlu0 %3242
        %3244 = vrot.lane.b32.xlu0 %v2760, 16
        %v3245 = vpop.permute.xlu0 %3244
        %3246 = vrot.lane.b32.xlu0 %v2761, 16
        %v3247 = vpop.permute.xlu0 %3246
        %3248 = vrot.lane.b32.xlu0 %v2762, 16
        %v3249 = vpop.permute.xlu0 %3248
        %3250 = vrot.lane.b32.xlu0 %v2763, 16
        %v3251 = vpop.permute.xlu0 %3250
        %3252 = vrot.lane.b32.xlu0 %v2764, 16
        %v3253 = vpop.permute.xlu0 %3252
        %3254 = vrot.lane.b32.xlu0 %v2765, 16
        %v3255 = vpop.permute.xlu0 %3254
        %3318 = vrot.lane.b32.xlu0 %v2475, 20
        %v3319 = vpop.permute.xlu0 %3318
        %3320 = vrot.lane.b32.xlu0 %v2476, 20
        %v3321 = vpop.permute.xlu0 %3320
        %3322 = vrot.lane.b32.xlu0 %v2477, 20
        %v3323 = vpop.permute.xlu0 %3322
        %3324 = vrot.lane.b32.xlu0 %v2478, 20
        %v3325 = vpop.permute.xlu0 %3324
        %3326 = vrot.lane.b32.xlu0 %v2479, 20
        %v3327 = vpop.permute.xlu0 %3326
        %3328 = vrot.lane.b32.xlu0 %v2480, 20
        %v3329 = vpop.permute.xlu0 %3328
        %3330 = vrot.lane.b32.xlu0 %v2481, 20
        %v3331 = vpop.permute.xlu0 %3330
        %3332 = vrot.lane.b32.xlu0 %v2482, 20
        %v3333 = vpop.permute.xlu0 %3332
        %3334 = vrot.lane.b32.xlu0 %v2483, 20
        %v3335 = vpop.permute.xlu0 %3334
        %3336 = vrot.lane.b32.xlu0 %v2484, 20
        %v3337 = vpop.permute.xlu0 %3336
        %3338 = vrot.lane.b32.xlu0 %v2485, 20
        %v3339 = vpop.permute.xlu0 %3338
        %3340 = vrot.lane.b32.xlu0 %v2486, 20
        %v3341 = vpop.permute.xlu0 %3340
        %3342 = vrot.lane.b32.xlu0 %v2487, 20
        %v3343 = vpop.permute.xlu0 %3342
        %3344 = vrot.lane.b32.xlu0 %v2488, 20
        %v3345 = vpop.permute.xlu0 %3344
        %3346 = vrot.lane.b32.xlu0 %v2489, 20
        %v3347 = vpop.permute.xlu0 %3346
        %3348 = vrot.lane.b32.xlu0 %v2490, 20
        %v3349 = vpop.permute.xlu0 %3348
        %3350 = vrot.lane.b32.xlu0 %v2491, 20
        %v3351 = vpop.permute.xlu0 %3350
        %3352 = vrot.lane.b32.xlu0 %v2492, 20
        %v3353 = vpop.permute.xlu0 %3352
        %3354 = vrot.lane.b32.xlu0 %v2493, 20
        %v3355 = vpop.permute.xlu0 %3354
        %3356 = vrot.lane.b32.xlu0 %v2494, 20
        %v3357 = vpop.permute.xlu0 %3356
        %3358 = vrot.lane.b32.xlu0 %v2495, 20
        %v3359 = vpop.permute.xlu0 %3358
        %3360 = vrot.lane.b32.xlu0 %v2496, 20
        %v3361 = vpop.permute.xlu0 %3360
        %3362 = vrot.lane.b32.xlu0 %v2497, 20
        %v3363 = vpop.permute.xlu0 %3362
        %3364 = vrot.lane.b32.xlu0 %v2498, 20
        %v3365 = vpop.permute.xlu0 %3364
        %3366 = vrot.lane.b32.xlu0 %v2499, 20
        %v3367 = vpop.permute.xlu0 %3366
        %3368 = vrot.lane.b32.xlu0 %v2500, 20
        %v3369 = vpop.permute.xlu0 %3368
        %3370 = vrot.lane.b32.xlu0 %v2501, 20
        %v3371 = vpop.permute.xlu0 %3370
        %3372 = vrot.lane.b32.xlu0 %v2502, 20
        %v3373 = vpop.permute.xlu0 %3372
        %3374 = vrot.lane.b32.xlu0 %v2503, 20
        %v3375 = vpop.permute.xlu0 %3374
        %3376 = vrot.lane.b32.xlu0 %v2504, 20
        %v3377 = vpop.permute.xlu0 %3376
        %3378 = vrot.lane.b32.xlu0 %v2776, 20
        %v3379 = vpop.permute.xlu0 %3378
        %3380 = vrot.lane.b32.xlu0 %v2777, 20
        %v3381 = vpop.permute.xlu0 %3380
        %3416 = vrot.lane.b32.xlu0 %v810, 24
        %v3417 = vpop.permute.xlu0 %3416
        %3418 = vrot.lane.b32.xlu0 %v811, 24
        %v3419 = vpop.permute.xlu0 %3418
        %3420 = vrot.lane.b32.xlu0 %v2561, 24
        %v3421 = vpop.permute.xlu0 %3420
        %3422 = vrot.lane.b32.xlu0 %v2562, 24
        %v3423 = vpop.permute.xlu0 %3422
        %3424 = vrot.lane.b32.xlu0 %v2563, 24
        %v3425 = vpop.permute.xlu0 %3424
        %3426 = vrot.lane.b32.xlu0 %v2564, 24
        %v3427 = vpop.permute.xlu0 %3426
        %3428 = vrot.lane.b32.xlu0 %v2565, 24
        %v3429 = vpop.permute.xlu0 %3428
        %3430 = vrot.lane.b32.xlu0 %v2566, 24
        %v3431 = vpop.permute.xlu0 %3430
        %3432 = vrot.lane.b32.xlu0 %v2567, 24
        %v3433 = vpop.permute.xlu0 %3432
        %3434 = vrot.lane.b32.xlu0 %v2568, 24
        %v3435 = vpop.permute.xlu0 %3434
        %3436 = vrot.lane.b32.xlu0 %v2569, 24
        %v3437 = vpop.permute.xlu0 %3436
        %3438 = vrot.lane.b32.xlu0 %v2570, 24
        %v3439 = vpop.permute.xlu0 %3438
        %3440 = vrot.lane.b32.xlu0 %v2571, 24
        %v3441 = vpop.permute.xlu0 %3440
        %3442 = vrot.lane.b32.xlu0 %v2572, 24
        %v3443 = vpop.permute.xlu0 %3442
        %3444 = vrot.lane.b32.xlu0 %v2573, 24
        %v3445 = vpop.permute.xlu0 %3444
        %3446 = vrot.lane.b32.xlu0 %v2574, 24
        %v3447 = vpop.permute.xlu0 %3446
        %3448 = vrot.lane.b32.xlu0 %v2575, 24
        %v3449 = vpop.permute.xlu0 %3448
        %3450 = vrot.lane.b32.xlu0 %v2576, 24
        %v3451 = vpop.permute.xlu0 %3450
        %3452 = vrot.lane.b32.xlu0 %v2577, 24
        %v3453 = vpop.permute.xlu0 %3452
        %3454 = vrot.lane.b32.xlu0 %v2578, 24
        %v3455 = vpop.permute.xlu0 %3454
        %3456 = vrot.lane.b32.xlu0 %v2579, 24
        %v3457 = vpop.permute.xlu0 %3456
        %3458 = vrot.lane.b32.xlu0 %v2580, 24
        %v3459 = vpop.permute.xlu0 %3458
        %3460 = vrot.lane.b32.xlu0 %v2581, 24
        %v3461 = vpop.permute.xlu0 %3460
        %3462 = vrot.lane.b32.xlu0 %v2582, 24
        %v3463 = vpop.permute.xlu0 %3462
        %3464 = vrot.lane.b32.xlu0 %v2583, 24
        %v3465 = vpop.permute.xlu0 %3464
        %3466 = vrot.lane.b32.xlu0 %v2584, 24
        %v3467 = vpop.permute.xlu0 %3466
        %3468 = vrot.lane.b32.xlu0 %v2585, 24
        %v3469 = vpop.permute.xlu0 %3468
        %3470 = vrot.lane.b32.xlu0 %v2586, 24
        %v3471 = vpop.permute.xlu0 %3470
        %3472 = vrot.lane.b32.xlu0 %v2587, 24
        %v3473 = vpop.permute.xlu0 %3472
        %3474 = vrot.lane.b32.xlu0 %v2588, 24
        %v3475 = vpop.permute.xlu0 %3474
        %3476 = vrot.lane.b32.xlu0 %v2782, 24
        %v3477 = vpop.permute.xlu0 %3476
        %3478 = vrot.lane.b32.xlu0 %v2783, 24
        %v3479 = vpop.permute.xlu0 %3478
        %3512 = vrot.lane.b32.xlu0 0.0, 28
        %v3513 = vpop.permute.xlu0 %3512
        %3514 = vrot.lane.b32.xlu0 %v2329, 28
        %v3515 = vpop.permute.xlu0 %3514
        %3516 = vrot.lane.b32.xlu0 %v2331, 28
        %v3517 = vpop.permute.xlu0 %3516
        %3518 = vrot.lane.b32.xlu0 %v2333, 28
        %v3519 = vpop.permute.xlu0 %3518
        %3520 = vrot.lane.b32.xlu0 %v2335, 28
        %v3521 = vpop.permute.xlu0 %3520
        %3522 = vrot.lane.b32.xlu0 %v2337, 28
        %v3523 = vpop.permute.xlu0 %3522
        %3524 = vrot.lane.b32.xlu0 %v2339, 28
        %v3525 = vpop.permute.xlu0 %3524
        %3526 = vrot.lane.b32.xlu0 %v2341, 28
        %v3527 = vpop.permute.xlu0 %3526
        %3528 = vrot.lane.b32.xlu0 %v2343, 28
        %v3529 = vpop.permute.xlu0 %3528
        %3530 = vrot.lane.b32.xlu0 %v2345, 28
        %v3531 = vpop.permute.xlu0 %3530
        %3532 = vrot.lane.b32.xlu0 %v2347, 28
        %v3533 = vpop.permute.xlu0 %3532
        %3534 = vrot.lane.b32.xlu0 %v2349, 28
        %v3535 = vpop.permute.xlu0 %3534
        %3536 = vrot.lane.b32.xlu0 %v2351, 28
        %v3537 = vpop.permute.xlu0 %3536
        %3538 = vrot.lane.b32.xlu0 %v2353, 28
        %v3539 = vpop.permute.xlu0 %3538
        %3540 = vrot.lane.b32.xlu0 %v2355, 28
        %v3541 = vpop.permute.xlu0 %3540
        %3542 = vrot.lane.b32.xlu0 %v2357, 28
        %v3543 = vpop.permute.xlu0 %3542
        %3544 = vrot.lane.b32.xlu0 %v2359, 28
        %v3545 = vpop.permute.xlu0 %3544
        %3546 = vrot.lane.b32.xlu0 %v2361, 28
        %v3547 = vpop.permute.xlu0 %3546
        %3548 = vrot.lane.b32.xlu0 %v2363, 28
        %v3549 = vpop.permute.xlu0 %3548
        %3550 = vrot.lane.b32.xlu0 %v2365, 28
        %v3551 = vpop.permute.xlu0 %3550
        %3552 = vrot.lane.b32.xlu0 %v2367, 28
        %v3553 = vpop.permute.xlu0 %3552
        %3554 = vrot.lane.b32.xlu0 %v2369, 28
        %v3555 = vpop.permute.xlu0 %3554
        %3556 = vrot.lane.b32.xlu0 %v2371, 28
        %v3557 = vpop.permute.xlu0 %3556
        %3558 = vrot.lane.b32.xlu0 %v2373, 28
        %v3559 = vpop.permute.xlu0 %3558
        %3560 = vrot.lane.b32.xlu0 %v2375, 28
        %v3561 = vpop.permute.xlu0 %3560
        %3562 = vrot.lane.b32.xlu0 %v2377, 28
        %v3563 = vpop.permute.xlu0 %3562
        %3564 = vrot.lane.b32.xlu0 %v2379, 28
        %v3565 = vpop.permute.xlu0 %3564
        %3566 = vrot.lane.b32.xlu0 %v2381, 28
        %v3567 = vpop.permute.xlu0 %3566
        %3568 = vrot.lane.b32.xlu0 %v2383, 28
        %v3569 = vpop.permute.xlu0 %3568
        %3570 = vrot.lane.b32.xlu0 %v2767, 28
        %v3571 = vpop.permute.xlu0 %3570
        %3572 = vrot.lane.b32.xlu0 %v2769, 28
        %v3573 = vpop.permute.xlu0 %3572
        %3607 = vrot.lane.b32.xlu0 %v909, 32
        %v3608 = vpop.permute.xlu0 %3607
        %3609 = vrot.lane.b32.xlu0 %v910, 32
        %v3610 = vpop.permute.xlu0 %3609
        %3611 = vrot.lane.b32.xlu0 %v2645, 32
        %v3612 = vpop.permute.xlu0 %3611
        %3613 = vrot.lane.b32.xlu0 %v2646, 32
        %v3614 = vpop.permute.xlu0 %3613
        %3615 = vrot.lane.b32.xlu0 %v2647, 32
        %v3616 = vpop.permute.xlu0 %3615
        %3617 = vrot.lane.b32.xlu0 %v2648, 32
        %v3618 = vpop.permute.xlu0 %3617
        %3619 = vrot.lane.b32.xlu0 %v2649, 32
        %v3620 = vpop.permute.xlu0 %3619
        %3621 = vrot.lane.b32.xlu0 %v2650, 32
        %v3622 = vpop.permute.xlu0 %3621
        %3623 = vrot.lane.b32.xlu0 %v2651, 32
        %v3624 = vpop.permute.xlu0 %3623
        %3625 = vrot.lane.b32.xlu0 %v2652, 32
        %v3626 = vpop.permute.xlu0 %3625
        %3627 = vrot.lane.b32.xlu0 %v2653, 32
        %v3628 = vpop.permute.xlu0 %3627
        %3629 = vrot.lane.b32.xlu0 %v2654, 32
        %v3630 = vpop.permute.xlu0 %3629
        %3631 = vrot.lane.b32.xlu0 %v2655, 32
        %v3632 = vpop.permute.xlu0 %3631
        %3633 = vrot.lane.b32.xlu0 %v2656, 32
        %v3634 = vpop.permute.xlu0 %3633
        %3635 = vrot.lane.b32.xlu0 %v2657, 32
        %v3636 = vpop.permute.xlu0 %3635
        %3637 = vrot.lane.b32.xlu0 %v2658, 32
        %v3638 = vpop.permute.xlu0 %3637
        %3639 = vrot.lane.b32.xlu0 %v2659, 32
        %v3640 = vpop.permute.xlu0 %3639
        %3641 = vrot.lane.b32.xlu0 %v2660, 32
        %v3642 = vpop.permute.xlu0 %3641
        %3643 = vrot.lane.b32.xlu0 %v2661, 32
        %v3644 = vpop.permute.xlu0 %3643
        %3645 = vrot.lane.b32.xlu0 %v2662, 32
        %v3646 = vpop.permute.xlu0 %3645
        %3647 = vrot.lane.b32.xlu0 %v2663, 32
        %v3648 = vpop.permute.xlu0 %3647
        %3649 = vrot.lane.b32.xlu0 %v2664, 32
        %v3650 = vpop.permute.xlu0 %3649
        %3651 = vrot.lane.b32.xlu0 %v2665, 32
        %v3652 = vpop.permute.xlu0 %3651
        %3653 = vrot.lane.b32.xlu0 %v2666, 32
        %v3654 = vpop.permute.xlu0 %3653
        %3655 = vrot.lane.b32.xlu0 %v2667, 32
        %v3656 = vpop.permute.xlu0 %3655
        %3657 = vrot.lane.b32.xlu0 %v2668, 32
        %v3658 = vpop.permute.xlu0 %3657
        %3659 = vrot.lane.b32.xlu0 %v2669, 32
        %v3660 = vpop.permute.xlu0 %3659
        %3661 = vrot.lane.b32.xlu0 %v2670, 32
        %v3662 = vpop.permute.xlu0 %3661
        %3663 = vrot.lane.b32.xlu0 %v2671, 32
        %v3664 = vpop.permute.xlu0 %3663
        %3665 = vrot.lane.b32.xlu0 %v2672, 32
        %v3666 = vpop.permute.xlu0 %3665
        %3667 = vrot.lane.b32.xlu0 %v2788, 32
        %v3668 = vpop.permute.xlu0 %3667
        %3669 = vrot.lane.b32.xlu0 %v2789, 32
        %v3670 = vpop.permute.xlu0 %3669
        %3705 = vrot.lane.b32.xlu0 %v2736, 36
        %v3706 = vpop.permute.xlu0 %3705
        %3707 = vrot.lane.b32.xlu0 %v2737, 36
        %v3708 = vpop.permute.xlu0 %3707
        %3709 = vrot.lane.b32.xlu0 %v2738, 36
        %v3710 = vpop.permute.xlu0 %3709
        %3711 = vrot.lane.b32.xlu0 %v2739, 36
        %v3712 = vpop.permute.xlu0 %3711
        %3713 = vrot.lane.b32.xlu0 %v2740, 36
        %v3714 = vpop.permute.xlu0 %3713
        %3715 = vrot.lane.b32.xlu0 %v2741, 36
        %v3716 = vpop.permute.xlu0 %3715
        %3717 = vrot.lane.b32.xlu0 %v2742, 36
        %v3718 = vpop.permute.xlu0 %3717
        %3719 = vrot.lane.b32.xlu0 %v2743, 36
        %v3720 = vpop.permute.xlu0 %3719
        %3721 = vrot.lane.b32.xlu0 %v2744, 36
        %v3722 = vpop.permute.xlu0 %3721
        %3723 = vrot.lane.b32.xlu0 %v2745, 36
        %v3724 = vpop.permute.xlu0 %3723
        %3725 = vrot.lane.b32.xlu0 %v2746, 36
        %v3726 = vpop.permute.xlu0 %3725
        %3727 = vrot.lane.b32.xlu0 %v2747, 36
        %v3728 = vpop.permute.xlu0 %3727
        %3729 = vrot.lane.b32.xlu0 %v2748, 36
        %v3730 = vpop.permute.xlu0 %3729
        %3731 = vrot.lane.b32.xlu0 %v2749, 36
        %v3732 = vpop.permute.xlu0 %3731
        %3733 = vrot.lane.b32.xlu0 %v2750, 36
        %v3734 = vpop.permute.xlu0 %3733
        %3735 = vrot.lane.b32.xlu0 %v2751, 36
        %v3736 = vpop.permute.xlu0 %3735
        %3737 = vrot.lane.b32.xlu0 %v2752, 36
        %v3738 = vpop.permute.xlu0 %3737
        %3739 = vrot.lane.b32.xlu0 %v2753, 36
        %v3740 = vpop.permute.xlu0 %3739
        %3741 = vrot.lane.b32.xlu0 %v2754, 36
        %v3742 = vpop.permute.xlu0 %3741
        %3743 = vrot.lane.b32.xlu0 %v2755, 36
        %v3744 = vpop.permute.xlu0 %3743
        %3745 = vrot.lane.b32.xlu0 %v2756, 36
        %v3746 = vpop.permute.xlu0 %3745
        %3747 = vrot.lane.b32.xlu0 %v2757, 36
        %v3748 = vpop.permute.xlu0 %3747
        %3749 = vrot.lane.b32.xlu0 %v2758, 36
        %v3750 = vpop.permute.xlu0 %3749
        %3751 = vrot.lane.b32.xlu0 %v2759, 36
        %v3752 = vpop.permute.xlu0 %3751
        %3753 = vrot.lane.b32.xlu0 %v2760, 36
        %v3754 = vpop.permute.xlu0 %3753
        %3755 = vrot.lane.b32.xlu0 %v2761, 36
        %v3756 = vpop.permute.xlu0 %3755
        %3757 = vrot.lane.b32.xlu0 %v2762, 36
        %v3758 = vpop.permute.xlu0 %3757
        %3759 = vrot.lane.b32.xlu0 %v2763, 36
        %v3760 = vpop.permute.xlu0 %3759
        %3761 = vrot.lane.b32.xlu0 %v2764, 36
        %v3762 = vpop.permute.xlu0 %3761
        %3763 = vrot.lane.b32.xlu0 %v2765, 36
        %v3764 = vpop.permute.xlu0 %3763
        %3765 = vrot.lane.b32.xlu0 %v2794, 36
        %v3766 = vpop.permute.xlu0 %3765
        %3767 = vrot.lane.b32.xlu0 %v2795, 36
        %v3768 = vpop.permute.xlu0 %3767
        %3803 = vrot.lane.b32.xlu0 %v2477, 40
        %v3804 = vpop.permute.xlu0 %3803
        %3805 = vrot.lane.b32.xlu0 %v2478, 40
        %v3806 = vpop.permute.xlu0 %3805
        %3807 = vrot.lane.b32.xlu0 %v2479, 40
        %v3808 = vpop.permute.xlu0 %3807
        %3809 = vrot.lane.b32.xlu0 %v2480, 40
        %v3810 = vpop.permute.xlu0 %3809
        %3811 = vrot.lane.b32.xlu0 %v2481, 40
        %v3812 = vpop.permute.xlu0 %3811
        %3813 = vrot.lane.b32.xlu0 %v2482, 40
        %v3814 = vpop.permute.xlu0 %3813
        %3815 = vrot.lane.b32.xlu0 %v2483, 40
        %v3816 = vpop.permute.xlu0 %3815
        %3817 = vrot.lane.b32.xlu0 %v2484, 40
        %v3818 = vpop.permute.xlu0 %3817
        %3819 = vrot.lane.b32.xlu0 %v2485, 40
        %v3820 = vpop.permute.xlu0 %3819
        %3821 = vrot.lane.b32.xlu0 %v2486, 40
        %v3822 = vpop.permute.xlu0 %3821
        %3823 = vrot.lane.b32.xlu0 %v2487, 40
        %v3824 = vpop.permute.xlu0 %3823
        %3825 = vrot.lane.b32.xlu0 %v2488, 40
        %v3826 = vpop.permute.xlu0 %3825
        %3827 = vrot.lane.b32.xlu0 %v2489, 40
        %v3828 = vpop.permute.xlu0 %3827
        %3829 = vrot.lane.b32.xlu0 %v2490, 40
        %v3830 = vpop.permute.xlu0 %3829
        %3831 = vrot.lane.b32.xlu0 %v2491, 40
        %v3832 = vpop.permute.xlu0 %3831
        %3833 = vrot.lane.b32.xlu0 %v2492, 40
        %v3834 = vpop.permute.xlu0 %3833
        %3835 = vrot.lane.b32.xlu0 %v2493, 40
        %v3836 = vpop.permute.xlu0 %3835
        %3837 = vrot.lane.b32.xlu0 %v2494, 40
        %v3838 = vpop.permute.xlu0 %3837
        %3839 = vrot.lane.b32.xlu0 %v2495, 40
        %v3840 = vpop.permute.xlu0 %3839
        %3841 = vrot.lane.b32.xlu0 %v2496, 40
        %v3842 = vpop.permute.xlu0 %3841
        %3843 = vrot.lane.b32.xlu0 %v2497, 40
        %v3844 = vpop.permute.xlu0 %3843
        %3845 = vrot.lane.b32.xlu0 %v2498, 40
        %v3846 = vpop.permute.xlu0 %3845
        %3847 = vrot.lane.b32.xlu0 %v2499, 40
        %v3848 = vpop.permute.xlu0 %3847
        %3849 = vrot.lane.b32.xlu0 %v2500, 40
        %v3850 = vpop.permute.xlu0 %3849
        %3851 = vrot.lane.b32.xlu0 %v2501, 40
        %v3852 = vpop.permute.xlu0 %3851
        %3853 = vrot.lane.b32.xlu0 %v2502, 40
        %v3854 = vpop.permute.xlu0 %3853
        %3855 = vrot.lane.b32.xlu0 %v2503, 40
        %v3856 = vpop.permute.xlu0 %3855
        %3857 = vrot.lane.b32.xlu0 %v2504, 40
        %v3858 = vpop.permute.xlu0 %3857
        %3859 = vrot.lane.b32.xlu0 %v2776, 40
        %v3860 = vpop.permute.xlu0 %3859
        %3861 = vrot.lane.b32.xlu0 %v2777, 40
        %v3862 = vpop.permute.xlu0 %3861
        %3863 = vrot.lane.b32.xlu0 %v2806, 40
        %v3864 = vpop.permute.xlu0 %3863
        %3865 = vrot.lane.b32.xlu0 %v2807, 40
        %v3866 = vpop.permute.xlu0 %3865
        %3901 = vrot.lane.b32.xlu0 %v2561, 44
        %v3902 = vpop.permute.xlu0 %3901
        %3903 = vrot.lane.b32.xlu0 %v2562, 44
        %v3904 = vpop.permute.xlu0 %3903
        %3905 = vrot.lane.b32.xlu0 %v2563, 44
        %v3906 = vpop.permute.xlu0 %3905
        %3907 = vrot.lane.b32.xlu0 %v2564, 44
        %v3908 = vpop.permute.xlu0 %3907
        %3909 = vrot.lane.b32.xlu0 %v2565, 44
        %v3910 = vpop.permute.xlu0 %3909
        %3911 = vrot.lane.b32.xlu0 %v2566, 44
        %v3912 = vpop.permute.xlu0 %3911
        %3913 = vrot.lane.b32.xlu0 %v2567, 44
        %v3914 = vpop.permute.xlu0 %3913
        %3915 = vrot.lane.b32.xlu0 %v2568, 44
        %v3916 = vpop.permute.xlu0 %3915
        %3917 = vrot.lane.b32.xlu0 %v2569, 44
        %v3918 = vpop.permute.xlu0 %3917
        %3919 = vrot.lane.b32.xlu0 %v2570, 44
        %v3920 = vpop.permute.xlu0 %3919
        %3921 = vrot.lane.b32.xlu0 %v2571, 44
        %v3922 = vpop.permute.xlu0 %3921
        %3923 = vrot.lane.b32.xlu0 %v2572, 44
        %v3924 = vpop.permute.xlu0 %3923
        %3925 = vrot.lane.b32.xlu0 %v2573, 44
        %v3926 = vpop.permute.xlu0 %3925
        %3927 = vrot.lane.b32.xlu0 %v2574, 44
        %v3928 = vpop.permute.xlu0 %3927
        %3929 = vrot.lane.b32.xlu0 %v2575, 44
        %v3930 = vpop.permute.xlu0 %3929
        %3931 = vrot.lane.b32.xlu0 %v2576, 44
        %v3932 = vpop.permute.xlu0 %3931
        %3933 = vrot.lane.b32.xlu0 %v2577, 44
        %v3934 = vpop.permute.xlu0 %3933
        %3935 = vrot.lane.b32.xlu0 %v2578, 44
        %v3936 = vpop.permute.xlu0 %3935
        %3937 = vrot.lane.b32.xlu0 %v2579, 44
        %v3938 = vpop.permute.xlu0 %3937
        %3939 = vrot.lane.b32.xlu0 %v2580, 44
        %v3940 = vpop.permute.xlu0 %3939
        %3941 = vrot.lane.b32.xlu0 %v2581, 44
        %v3942 = vpop.permute.xlu0 %3941
        %3943 = vrot.lane.b32.xlu0 %v2582, 44
        %v3944 = vpop.permute.xlu0 %3943
        %3945 = vrot.lane.b32.xlu0 %v2583, 44
        %v3946 = vpop.permute.xlu0 %3945
        %3947 = vrot.lane.b32.xlu0 %v2584, 44
        %v3948 = vpop.permute.xlu0 %3947
        %3949 = vrot.lane.b32.xlu0 %v2585, 44
        %v3950 = vpop.permute.xlu0 %3949
        %3951 = vrot.lane.b32.xlu0 %v2586, 44
        %v3952 = vpop.permute.xlu0 %3951
        %3953 = vrot.lane.b32.xlu0 %v2587, 44
        %v3954 = vpop.permute.xlu0 %3953
        %3955 = vrot.lane.b32.xlu0 %v2588, 44
        %v3956 = vpop.permute.xlu0 %3955
        %3957 = vrot.lane.b32.xlu0 %v2782, 44
        %v3958 = vpop.permute.xlu0 %3957
        %3959 = vrot.lane.b32.xlu0 %v2783, 44
        %v3960 = vpop.permute.xlu0 %3959
        %3961 = vrot.lane.b32.xlu0 %v2812, 44
        %v3962 = vpop.permute.xlu0 %3961
        %3963 = vrot.lane.b32.xlu0 %v2813, 44
        %v3964 = vpop.permute.xlu0 %3963
        %3997 = vrot.lane.b32.xlu0 %v582, 36
        %v3998 = vpop.permute.xlu0 %3997
        %3999 = vrot.lane.b32.xlu0 %v583, 36
        %v4000 = vpop.permute.xlu0 %3999
        %4001 = vrot.lane.b32.xlu0 %v584, 36
        %v4002 = vpop.permute.xlu0 %4001
        %4003 = vrot.lane.b32.xlu0 %v585, 36
        %v4004 = vpop.permute.xlu0 %4003
        %4005 = vrot.lane.b32.xlu0 %v586, 36
        %v4006 = vpop.permute.xlu0 %4005
        %4007 = vrot.lane.b32.xlu0 %v587, 36
        %v4008 = vpop.permute.xlu0 %4007
        %4009 = vrot.lane.b32.xlu0 %v588, 36
        %v4010 = vpop.permute.xlu0 %4009
        %4011 = vrot.lane.b32.xlu0 %v589, 36
        %v4012 = vpop.permute.xlu0 %4011
        %4013 = vrot.lane.b32.xlu0 %v590, 36
        %v4014 = vpop.permute.xlu0 %4013
        %4015 = vrot.lane.b32.xlu0 %v591, 36
        %v4016 = vpop.permute.xlu0 %4015
        %4017 = vrot.lane.b32.xlu0 %v592, 36
        %v4018 = vpop.permute.xlu0 %4017
        %4019 = vrot.lane.b32.xlu0 %v593, 36
        %v4020 = vpop.permute.xlu0 %4019
        %4021 = vrot.lane.b32.xlu0 %v594, 36
        %v4022 = vpop.permute.xlu0 %4021
        %4023 = vrot.lane.b32.xlu0 %v595, 36
        %v4024 = vpop.permute.xlu0 %4023
        %4025 = vrot.lane.b32.xlu0 %v596, 36
        %v4026 = vpop.permute.xlu0 %4025
        %4027 = vrot.lane.b32.xlu0 %v597, 36
        %v4028 = vpop.permute.xlu0 %4027
        %4029 = vrot.lane.b32.xlu0 %v598, 36
        %v4030 = vpop.permute.xlu0 %4029
        %4031 = vrot.lane.b32.xlu0 %v599, 36
        %v4032 = vpop.permute.xlu0 %4031
        %4033 = vrot.lane.b32.xlu0 %v600, 36
        %v4034 = vpop.permute.xlu0 %4033
        %4035 = vrot.lane.b32.xlu0 %v601, 36
        %v4036 = vpop.permute.xlu0 %4035
        %4037 = vrot.lane.b32.xlu0 %v602, 36
        %v4038 = vpop.permute.xlu0 %4037
        %4039 = vrot.lane.b32.xlu0 %v603, 36
        %v4040 = vpop.permute.xlu0 %4039
        %4041 = vrot.lane.b32.xlu0 %v604, 36
        %v4042 = vpop.permute.xlu0 %4041
        %4043 = vrot.lane.b32.xlu0 %v605, 36
        %v4044 = vpop.permute.xlu0 %4043
        %4045 = vrot.lane.b32.xlu0 %v606, 36
        %v4046 = vpop.permute.xlu0 %4045
        %4047 = vrot.lane.b32.xlu0 %v607, 36
        %v4048 = vpop.permute.xlu0 %4047
        %4049 = vrot.lane.b32.xlu0 %v608, 36
        %v4050 = vpop.permute.xlu0 %4049
        %4051 = vrot.lane.b32.xlu0 %v609, 36
        %v4052 = vpop.permute.xlu0 %4051
        %4053 = vrot.lane.b32.xlu0 %v610, 36
        %v4054 = vpop.permute.xlu0 %4053
        %4055 = vrot.lane.b32.xlu0 %v611, 36
        %v4056 = vpop.permute.xlu0 %4055
        %4057 = vrot.lane.b32.xlu0 %v612, 36
        %v4058 = vpop.permute.xlu0 %4057
        %4059 = vrot.lane.b32.xlu0 %v613, 36
        %v4060 = vpop.permute.xlu0 %4059
        %4095 = vrot.lane.b32.xlu0 %v2645, 52
        %v4096 = vpop.permute.xlu0 %4095
        %4097 = vrot.lane.b32.xlu0 %v2646, 52
        %v4098 = vpop.permute.xlu0 %4097
        %4099 = vrot.lane.b32.xlu0 %v2647, 52
        %v4100 = vpop.permute.xlu0 %4099
        %4101 = vrot.lane.b32.xlu0 %v2648, 52
        %v4102 = vpop.permute.xlu0 %4101
        %4103 = vrot.lane.b32.xlu0 %v2649, 52
        %v4104 = vpop.permute.xlu0 %4103
        %4105 = vrot.lane.b32.xlu0 %v2650, 52
        %v4106 = vpop.permute.xlu0 %4105
        %4107 = vrot.lane.b32.xlu0 %v2651, 52
        %v4108 = vpop.permute.xlu0 %4107
        %4109 = vrot.lane.b32.xlu0 %v2652, 52
        %v4110 = vpop.permute.xlu0 %4109
        %4111 = vrot.lane.b32.xlu0 %v2653, 52
        %v4112 = vpop.permute.xlu0 %4111
        %4113 = vrot.lane.b32.xlu0 %v2654, 52
        %v4114 = vpop.permute.xlu0 %4113
        %4115 = vrot.lane.b32.xlu0 %v2655, 52
        %v4116 = vpop.permute.xlu0 %4115
        %4117 = vrot.lane.b32.xlu0 %v2656, 52
        %v4118 = vpop.permute.xlu0 %4117
        %4119 = vrot.lane.b32.xlu0 %v2657, 52
        %v4120 = vpop.permute.xlu0 %4119
        %4121 = vrot.lane.b32.xlu0 %v2658, 52
        %v4122 = vpop.permute.xlu0 %4121
        %4123 = vrot.lane.b32.xlu0 %v2659, 52
        %v4124 = vpop.permute.xlu0 %4123
        %4125 = vrot.lane.b32.xlu0 %v2660, 52
        %v4126 = vpop.permute.xlu0 %4125
        %4127 = vrot.lane.b32.xlu0 %v2661, 52
        %v4128 = vpop.permute.xlu0 %4127
        %4129 = vrot.lane.b32.xlu0 %v2662, 52
        %v4130 = vpop.permute.xlu0 %4129
        %4131 = vrot.lane.b32.xlu0 %v2663, 52
        %v4132 = vpop.permute.xlu0 %4131
        %4133 = vrot.lane.b32.xlu0 %v2664, 52
        %v4134 = vpop.permute.xlu0 %4133
        %4135 = vrot.lane.b32.xlu0 %v2665, 52
        %v4136 = vpop.permute.xlu0 %4135
        %4137 = vrot.lane.b32.xlu0 %v2666, 52
        %v4138 = vpop.permute.xlu0 %4137
        %4139 = vrot.lane.b32.xlu0 %v2667, 52
        %v4140 = vpop.permute.xlu0 %4139
        %4141 = vrot.lane.b32.xlu0 %v2668, 52
        %v4142 = vpop.permute.xlu0 %4141
        %4143 = vrot.lane.b32.xlu0 %v2669, 52
        %v4144 = vpop.permute.xlu0 %4143
        %4145 = vrot.lane.b32.xlu0 %v2670, 52
        %v4146 = vpop.permute.xlu0 %4145
        %4147 = vrot.lane.b32.xlu0 %v2671, 52
        %v4148 = vpop.permute.xlu0 %4147
        %4149 = vrot.lane.b32.xlu0 %v2672, 52
        %v4150 = vpop.permute.xlu0 %4149
        %4151 = vrot.lane.b32.xlu0 %v2788, 52
        %v4152 = vpop.permute.xlu0 %4151
        %4153 = vrot.lane.b32.xlu0 %v2789, 52
        %v4154 = vpop.permute.xlu0 %4153
        %4155 = vrot.lane.b32.xlu0 %v2818, 52
        %v4156 = vpop.permute.xlu0 %4155
        %4157 = vrot.lane.b32.xlu0 %v2819, 52
        %v4158 = vpop.permute.xlu0 %4157
        %4193 = vrot.lane.b32.xlu0 %v2738, 56
        %v4194 = vpop.permute.xlu0 %4193
        %4195 = vrot.lane.b32.xlu0 %v2739, 56
        %v4196 = vpop.permute.xlu0 %4195
        %4197 = vrot.lane.b32.xlu0 %v2740, 56
        %v4198 = vpop.permute.xlu0 %4197
        %4199 = vrot.lane.b32.xlu0 %v2741, 56
        %v4200 = vpop.permute.xlu0 %4199
        %4201 = vrot.lane.b32.xlu0 %v2742, 56
        %v4202 = vpop.permute.xlu0 %4201
        %4203 = vrot.lane.b32.xlu0 %v2743, 56
        %v4204 = vpop.permute.xlu0 %4203
        %4205 = vrot.lane.b32.xlu0 %v2744, 56
        %v4206 = vpop.permute.xlu0 %4205
        %4207 = vrot.lane.b32.xlu0 %v2745, 56
        %v4208 = vpop.permute.xlu0 %4207
        %4209 = vrot.lane.b32.xlu0 %v2746, 56
        %v4210 = vpop.permute.xlu0 %4209
        %4211 = vrot.lane.b32.xlu0 %v2747, 56
        %v4212 = vpop.permute.xlu0 %4211
        %4213 = vrot.lane.b32.xlu0 %v2748, 56
        %v4214 = vpop.permute.xlu0 %4213
        %4215 = vrot.lane.b32.xlu0 %v2749, 56
        %v4216 = vpop.permute.xlu0 %4215
        %4217 = vrot.lane.b32.xlu0 %v2750, 56
        %v4218 = vpop.permute.xlu0 %4217
        %4219 = vrot.lane.b32.xlu0 %v2751, 56
        %v4220 = vpop.permute.xlu0 %4219
        %4221 = vrot.lane.b32.xlu0 %v2752, 56
        %v4222 = vpop.permute.xlu0 %4221
        %4223 = vrot.lane.b32.xlu0 %v2753, 56
        %v4224 = vpop.permute.xlu0 %4223
        %4225 = vrot.lane.b32.xlu0 %v2754, 56
        %v4226 = vpop.permute.xlu0 %4225
        %4227 = vrot.lane.b32.xlu0 %v2755, 56
        %v4228 = vpop.permute.xlu0 %4227
        %4229 = vrot.lane.b32.xlu0 %v2756, 56
        %v4230 = vpop.permute.xlu0 %4229
        %4231 = vrot.lane.b32.xlu0 %v2757, 56
        %v4232 = vpop.permute.xlu0 %4231
        %4233 = vrot.lane.b32.xlu0 %v2758, 56
        %v4234 = vpop.permute.xlu0 %4233
        %4235 = vrot.lane.b32.xlu0 %v2759, 56
        %v4236 = vpop.permute.xlu0 %4235
        %4237 = vrot.lane.b32.xlu0 %v2760, 56
        %v4238 = vpop.permute.xlu0 %4237
        %4239 = vrot.lane.b32.xlu0 %v2761, 56
        %v4240 = vpop.permute.xlu0 %4239
        %4241 = vrot.lane.b32.xlu0 %v2762, 56
        %v4242 = vpop.permute.xlu0 %4241
        %4243 = vrot.lane.b32.xlu0 %v2763, 56
        %v4244 = vpop.permute.xlu0 %4243
        %4245 = vrot.lane.b32.xlu0 %v2764, 56
        %v4246 = vpop.permute.xlu0 %4245
        %4247 = vrot.lane.b32.xlu0 %v2765, 56
        %v4248 = vpop.permute.xlu0 %4247
        %4249 = vrot.lane.b32.xlu0 %v2794, 56
        %v4250 = vpop.permute.xlu0 %4249
        %4251 = vrot.lane.b32.xlu0 %v2795, 56
        %v4252 = vpop.permute.xlu0 %4251
        %4253 = vrot.lane.b32.xlu0 %v2824, 56
        %v4254 = vpop.permute.xlu0 %4253
        %4255 = vrot.lane.b32.xlu0 %v2825, 56
        %v4256 = vpop.permute.xlu0 %4255
        %4291 = vrot.lane.b32.xlu0 %v2479, 60
        %v4292 = vpop.permute.xlu0 %4291
        %4293 = vrot.lane.b32.xlu0 %v2480, 60
        %v4294 = vpop.permute.xlu0 %4293
        %4295 = vrot.lane.b32.xlu0 %v2481, 60
        %v4296 = vpop.permute.xlu0 %4295
        %4297 = vrot.lane.b32.xlu0 %v2482, 60
        %v4298 = vpop.permute.xlu0 %4297
        %4299 = vrot.lane.b32.xlu0 %v2483, 60
        %v4300 = vpop.permute.xlu0 %4299
        %4301 = vrot.lane.b32.xlu0 %v2484, 60
        %v4302 = vpop.permute.xlu0 %4301
        %4303 = vrot.lane.b32.xlu0 %v2485, 60
        %v4304 = vpop.permute.xlu0 %4303
        %4305 = vrot.lane.b32.xlu0 %v2486, 60
        %v4306 = vpop.permute.xlu0 %4305
        %4307 = vrot.lane.b32.xlu0 %v2487, 60
        %v4308 = vpop.permute.xlu0 %4307
        %4309 = vrot.lane.b32.xlu0 %v2488, 60
        %v4310 = vpop.permute.xlu0 %4309
        %4311 = vrot.lane.b32.xlu0 %v2489, 60
        %v4312 = vpop.permute.xlu0 %4311
        %4313 = vrot.lane.b32.xlu0 %v2490, 60
        %v4314 = vpop.permute.xlu0 %4313
        %4315 = vrot.lane.b32.xlu0 %v2491, 60
        %v4316 = vpop.permute.xlu0 %4315
        %4317 = vrot.lane.b32.xlu0 %v2492, 60
        %v4318 = vpop.permute.xlu0 %4317
        %4319 = vrot.lane.b32.xlu0 %v2493, 60
        %v4320 = vpop.permute.xlu0 %4319
        %4321 = vrot.lane.b32.xlu0 %v2494, 60
        %v4322 = vpop.permute.xlu0 %4321
        %4323 = vrot.lane.b32.xlu0 %v2495, 60
        %v4324 = vpop.permute.xlu0 %4323
        %4325 = vrot.lane.b32.xlu0 %v2496, 60
        %v4326 = vpop.permute.xlu0 %4325
        %4327 = vrot.lane.b32.xlu0 %v2497, 60
        %v4328 = vpop.permute.xlu0 %4327
        %4329 = vrot.lane.b32.xlu0 %v2498, 60
        %v4330 = vpop.permute.xlu0 %4329
        %4331 = vrot.lane.b32.xlu0 %v2499, 60
        %v4332 = vpop.permute.xlu0 %4331
        %4333 = vrot.lane.b32.xlu0 %v2500, 60
        %v4334 = vpop.permute.xlu0 %4333
        %4335 = vrot.lane.b32.xlu0 %v2501, 60
        %v4336 = vpop.permute.xlu0 %4335
        %4337 = vrot.lane.b32.xlu0 %v2502, 60
        %v4338 = vpop.permute.xlu0 %4337
        %4339 = vrot.lane.b32.xlu0 %v2503, 60
        %v4340 = vpop.permute.xlu0 %4339
        %4341 = vrot.lane.b32.xlu0 %v2504, 60
        %v4342 = vpop.permute.xlu0 %4341
        %4343 = vrot.lane.b32.xlu0 %v2776, 60
        %v4344 = vpop.permute.xlu0 %4343
        %4345 = vrot.lane.b32.xlu0 %v2777, 60
        %v4346 = vpop.permute.xlu0 %4345
        %4347 = vrot.lane.b32.xlu0 %v2806, 60
        %v4348 = vpop.permute.xlu0 %4347
        %4349 = vrot.lane.b32.xlu0 %v2807, 60
        %v4350 = vpop.permute.xlu0 %4349
        %4351 = vrot.lane.b32.xlu0 %v2830, 60
        %v4352 = vpop.permute.xlu0 %4351
        %4353 = vrot.lane.b32.xlu0 %v2831, 60
        %v4354 = vpop.permute.xlu0 %4353
        %v4387 = vsel %vm368, %v2475, %v2872
        %v4388 = vsel %vm368, %v2476, %v2874
        %v4389 = vsel %vm368, %v2477, %v2876
        %v4390 = vsel %vm368, %v2478, %v2878
        %v4391 = vsel %vm368, %v2479, %v2880
        %v4392 = vsel %vm368, %v2480, %v2882
        %v4393 = vsel %vm368, %v2481, %v2884
        %v4394 = vsel %vm368, %v2482, %v2886
        %v4395 = vsel %vm368, %v2483, %v2888
        %v4396 = vsel %vm368, %v2484, %v2890
        %v4397 = vsel %vm368, %v2485, %v2892
        %v4398 = vsel %vm368, %v2486, %v2894
        %v4399 = vsel %vm368, %v2487, %v2896
        %v4400 = vsel %vm368, %v2488, %v2898
        %v4401 = vsel %vm368, %v2489, %v2900
        %v4402 = vsel %vm368, %v2490, %v2902
        %v4403 = vsel %vm368, %v2491, %v2904
        %v4404 = vsel %vm368, %v2492, %v2906
        %v4405 = vsel %vm368, %v2493, %v2908
        %v4406 = vsel %vm368, %v2494, %v2910
        %v4407 = vsel %vm368, %v2495, %v2912
        %v4408 = vsel %vm368, %v2496, %v2914
        %v4409 = vsel %vm368, %v2497, %v2916
        %v4410 = vsel %vm368, %v2498, %v2918
        %v4411 = vsel %vm368, %v2499, %v2920
        %v4412 = vsel %vm368, %v2500, %v2922
        %v4413 = vsel %vm368, %v2501, %v2924
        %v4414 = vsel %vm368, %v2502, %v2926
        %v4415 = vsel %vm368, %v2503, %v2928
        %v4416 = vsel %vm368, %v2504, %v2930
        %v4417 = vsel %vm1835, %v4387, %v2962
        %v4418 = vsel %vm1835, %v4388, %v2962
        %v4419 = vsel %vm1835, %v4389, %v2964
        %v4420 = vsel %vm1835, %v4390, %v2966
        %v4421 = vsel %vm1835, %v4391, %v2968
        %v4422 = vsel %vm1835, %v4392, %v2970
        %v4423 = vsel %vm1835, %v4393, %v2972
        %v4424 = vsel %vm1835, %v4394, %v2974
        %v4425 = vsel %vm1835, %v4395, %v2976
        %v4426 = vsel %vm1835, %v4396, %v2978
        %v4427 = vsel %vm1835, %v4397, %v2980
        %v4428 = vsel %vm1835, %v4398, %v2982
        %v4429 = vsel %vm1835, %v4399, %v2984
        %v4430 = vsel %vm1835, %v4400, %v2986
        %v4431 = vsel %vm1835, %v4401, %v2988
        %v4432 = vsel %vm1835, %v4402, %v2990
        %v4433 = vsel %vm1835, %v4403, %v2992
        %v4434 = vsel %vm1835, %v4404, %v2994
        %v4435 = vsel %vm1835, %v4405, %v2996
        %v4436 = vsel %vm1835, %v4406, %v2998
        %v4437 = vsel %vm1835, %v4407, %v3000
        %v4438 = vsel %vm1835, %v4408, %v3002
        %v4439 = vsel %vm1835, %v4409, %v3004
        %v4440 = vsel %vm1835, %v4410, %v3006
        %v4441 = vsel %vm1835, %v4411, %v3008
        %v4442 = vsel %vm1835, %v4412, %v3010
        %v4443 = vsel %vm1835, %v4413, %v3012
        %v4444 = vsel %vm1835, %v4414, %v3014
        %v4445 = vsel %vm1835, %v4415, %v3016
        %v4446 = vsel %vm1835, %v4416, %v3018
        %v4447 = vsel %vm1868, %v4417, %v3077
        %v4448 = vsel %vm1868, %v4418, %v3079
        %v4449 = vsel %vm1868, %v4419, %v3081
        %v4450 = vsel %vm1868, %v4420, %v3083
        %v4451 = vsel %vm1868, %v4421, %v3085
        %v4452 = vsel %vm1868, %v4422, %v3087
        %v4453 = vsel %vm1868, %v4423, %v3089
        %v4454 = vsel %vm1868, %v4424, %v3091
        %v4455 = vsel %vm1868, %v4425, %v3093
        %v4456 = vsel %vm1868, %v4426, %v3095
        %v4457 = vsel %vm1868, %v4427, %v3097
        %v4458 = vsel %vm1868, %v4428, %v3099
        %v4459 = vsel %vm1868, %v4429, %v3101
        %v4460 = vsel %vm1868, %v4430, %v3103
        %v4461 = vsel %vm1868, %v4431, %v3105
        %v4462 = vsel %vm1868, %v4432, %v3107
        %v4463 = vsel %vm1868, %v4433, %v3109
        %v4464 = vsel %vm1868, %v4434, %v3111
        %v4465 = vsel %vm1868, %v4435, %v3113
        %v4466 = vsel %vm1868, %v4436, %v3115
        %v4467 = vsel %vm1868, %v4437, %v3117
        %v4468 = vsel %vm1868, %v4438, %v3119
        %v4469 = vsel %vm1868, %v4439, %v3121
        %v4470 = vsel %vm1868, %v4440, %v3123
        %v4471 = vsel %vm1868, %v4441, %v3125
        %v4472 = vsel %vm1868, %v4442, %v3127
        %v4473 = vsel %vm1868, %v4443, %v3129
        %v4474 = vsel %vm1868, %v4444, %v3131
        %v4475 = vsel %vm1868, %v4445, %v3133
        %v4476 = vsel %vm1868, %v4446, %v3135
        %v4477 = vsel %vm1901, %v4447, %v3197
        %v4478 = vsel %vm1901, %v4448, %v3199
        %v4479 = vsel %vm1901, %v4449, %v3201
        %v4480 = vsel %vm1901, %v4450, %v3203
        %v4481 = vsel %vm1901, %v4451, %v3205
        %v4482 = vsel %vm1901, %v4452, %v3207
        %v4483 = vsel %vm1901, %v4453, %v3209
        %v4484 = vsel %vm1901, %v4454, %v3211
        %v4485 = vsel %vm1901, %v4455, %v3213
        %v4486 = vsel %vm1901, %v4456, %v3215
        %v4487 = vsel %vm1901, %v4457, %v3217
        %v4488 = vsel %vm1901, %v4458, %v3219
        %v4489 = vsel %vm1901, %v4459, %v3221
        %v4490 = vsel %vm1901, %v4460, %v3223
        %v4491 = vsel %vm1901, %v4461, %v3225
        %v4492 = vsel %vm1901, %v4462, %v3227
        %v4493 = vsel %vm1901, %v4463, %v3229
        %v4494 = vsel %vm1901, %v4464, %v3231
        %v4495 = vsel %vm1901, %v4465, %v3233
        %v4496 = vsel %vm1901, %v4466, %v3235
        %v4497 = vsel %vm1901, %v4467, %v3237
        %v4498 = vsel %vm1901, %v4468, %v3239
        %v4499 = vsel %vm1901, %v4469, %v3241
        %v4500 = vsel %vm1901, %v4470, %v3243
        %v4501 = vsel %vm1901, %v4471, %v3245
        %v4502 = vsel %vm1901, %v4472, %v3247
        %v4503 = vsel %vm1901, %v4473, %v3249
        %v4504 = vsel %vm1901, %v4474, %v3251
        %v4505 = vsel %vm1901, %v4475, %v3253
        %v4506 = vsel %vm1901, %v4476, %v3255
        %v4507 = vsel %vm1934, %v4477, %v3319
        %v4508 = vsel %vm1934, %v4478, %v3321
        %v4509 = vsel %vm1934, %v4477, %v3323
        %v4510 = vsel %vm1934, %v4478, %v3325
        %v4511 = vsel %vm1934, %v4479, %v3327
        %v4512 = vsel %vm1934, %v4480, %v3329
        %v4513 = vsel %vm1934, %v4481, %v3331
        %v4514 = vsel %vm1934, %v4482, %v3333
        %v4515 = vsel %vm1934, %v4483, %v3335
        %v4516 = vsel %vm1934, %v4484, %v3337
        %v4517 = vsel %vm1934, %v4485, %v3339
        %v4518 = vsel %vm1934, %v4486, %v3341
        %v4519 = vsel %vm1934, %v4487, %v3343
        %v4520 = vsel %vm1934, %v4488, %v3345
        %v4521 = vsel %vm1934, %v4489, %v3347
        %v4522 = vsel %vm1934, %v4490, %v3349
        %v4523 = vsel %vm1934, %v4491, %v3351
        %v4524 = vsel %vm1934, %v4492, %v3353
        %v4525 = vsel %vm1934, %v4493, %v3355
        %v4526 = vsel %vm1934, %v4494, %v3357
        %v4527 = vsel %vm1934, %v4495, %v3359
        %v4528 = vsel %vm1934, %v4496, %v3361
        %v4529 = vsel %vm1934, %v4497, %v3363
        %v4530 = vsel %vm1934, %v4498, %v3365
        %v4531 = vsel %vm1934, %v4499, %v3367
        %v4532 = vsel %vm1934, %v4500, %v3369
        %v4533 = vsel %vm1934, %v4501, %v3371
        %v4534 = vsel %vm1934, %v4502, %v3373
        %v4535 = vsel %vm1934, %v4503, %v3375
        %v4536 = vsel %vm1934, %v4504, %v3377
        %v4537 = vsel %vm1934, %v4505, %v3379
        %v4538 = vsel %vm1934, %v4506, %v3381
        %v4539 = vsel %vm1967, %v4507, %v3417
        %v4540 = vsel %vm1967, %v4508, %v3419
        %v4541 = vsel %vm1967, %v4509, %v3421
        %v4542 = vsel %vm1967, %v4510, %v3423
        %v4543 = vsel %vm1967, %v4511, %v3425
        %v4544 = vsel %vm1967, %v4512, %v3427
        %v4545 = vsel %vm1967, %v4513, %v3429
        %v4546 = vsel %vm1967, %v4514, %v3431
        %v4547 = vsel %vm1967, %v4515, %v3433
        %v4548 = vsel %vm1967, %v4516, %v3435
        %v4549 = vsel %vm1967, %v4517, %v3437
        %v4550 = vsel %vm1967, %v4518, %v3439
        %v4551 = vsel %vm1967, %v4519, %v3441
        %v4552 = vsel %vm1967, %v4520, %v3443
        %v4553 = vsel %vm1967, %v4521, %v3445
        %v4554 = vsel %vm1967, %v4522, %v3447
        %v4555 = vsel %vm1967, %v4523, %v3449
        %v4556 = vsel %vm1967, %v4524, %v3451
        %v4557 = vsel %vm1967, %v4525, %v3453
        %v4558 = vsel %vm1967, %v4526, %v3455
        %v4559 = vsel %vm1967, %v4527, %v3457
        %v4560 = vsel %vm1967, %v4528, %v3459
        %v4561 = vsel %vm1967, %v4529, %v3461
        %v4562 = vsel %vm1967, %v4530, %v3463
        %v4563 = vsel %vm1967, %v4531, %v3465
        %v4564 = vsel %vm1967, %v4532, %v3467
        %v4565 = vsel %vm1967, %v4533, %v3469
        %v4566 = vsel %vm1967, %v4534, %v3471
        %v4567 = vsel %vm1967, %v4535, %v3473
        %v4568 = vsel %vm1967, %v4536, %v3475
        %v4569 = vsel %vm1967, %v4537, %v3477
        %v4570 = vsel %vm1967, %v4538, %v3479
        %v4571 = vsel %vm2000, %v4539, %v3513
        %v4572 = vsel %vm2000, %v4540, %v3513
        %v4573 = vsel %vm2000, %v4541, %v3515
        %v4574 = vsel %vm2000, %v4542, %v3517
        %v4575 = vsel %vm2000, %v4543, %v3519
        %v4576 = vsel %vm2000, %v4544, %v3521
        %v4577 = vsel %vm2000, %v4545, %v3523
        %v4578 = vsel %vm2000, %v4546, %v3525
        %v4579 = vsel %vm2000, %v4547, %v3527
        %v4580 = vsel %vm2000, %v4548, %v3529
        %v4581 = vsel %vm2000, %v4549, %v3531
        %v4582 = vsel %vm2000, %v4550, %v3533
        %v4583 = vsel %vm2000, %v4551, %v3535
        %v4584 = vsel %vm2000, %v4552, %v3537
        %v4585 = vsel %vm2000, %v4553, %v3539
        %v4586 = vsel %vm2000, %v4554, %v3541
        %v4587 = vsel %vm2000, %v4555, %v3543
        %v4588 = vsel %vm2000, %v4556, %v3545
        %v4589 = vsel %vm2000, %v4557, %v3547
        %v4590 = vsel %vm2000, %v4558, %v3549
        %v4591 = vsel %vm2000, %v4559, %v3551
        %v4592 = vsel %vm2000, %v4560, %v3553
        %v4593 = vsel %vm2000, %v4561, %v3555
        %v4594 = vsel %vm2000, %v4562, %v3557
        %v4595 = vsel %vm2000, %v4563, %v3559
        %v4596 = vsel %vm2000, %v4564, %v3561
        %v4597 = vsel %vm2000, %v4565, %v3563
        %v4598 = vsel %vm2000, %v4566, %v3565
        %v4599 = vsel %vm2000, %v4567, %v3567
        %v4600 = vsel %vm2000, %v4568, %v3569
        %v4601 = vsel %vm2000, %v4569, %v3571
        %v4602 = vsel %vm2000, %v4570, %v3573
        %v4603 = vsel %vm2033, %v4571, %v3608
        %v4604 = vsel %vm2033, %v4572, %v3610
        %v4605 = vsel %vm2033, %v4573, %v3612
        %v4606 = vsel %vm2033, %v4574, %v3614
        %v4607 = vsel %vm2033, %v4575, %v3616
        %v4608 = vsel %vm2033, %v4576, %v3618
        %v4609 = vsel %vm2033, %v4577, %v3620
        %v4610 = vsel %vm2033, %v4578, %v3622
        %v4611 = vsel %vm2033, %v4579, %v3624
        %v4612 = vsel %vm2033, %v4580, %v3626
        %v4613 = vsel %vm2033, %v4581, %v3628
        %v4614 = vsel %vm2033, %v4582, %v3630
        %v4615 = vsel %vm2033, %v4583, %v3632
        %v4616 = vsel %vm2033, %v4584, %v3634
        %v4617 = vsel %vm2033, %v4585, %v3636
        %v4618 = vsel %vm2033, %v4586, %v3638
        %v4619 = vsel %vm2033, %v4587, %v3640
        %v4620 = vsel %vm2033, %v4588, %v3642
        %v4621 = vsel %vm2033, %v4589, %v3644
        %v4622 = vsel %vm2033, %v4590, %v3646
        %v4623 = vsel %vm2033, %v4591, %v3648
        %v4624 = vsel %vm2033, %v4592, %v3650
        %v4625 = vsel %vm2033, %v4593, %v3652
        %v4626 = vsel %vm2033, %v4594, %v3654
        %v4627 = vsel %vm2033, %v4595, %v3656
        %v4628 = vsel %vm2033, %v4596, %v3658
        %v4629 = vsel %vm2033, %v4597, %v3660
        %v4630 = vsel %vm2033, %v4598, %v3662
        %v4631 = vsel %vm2033, %v4599, %v3664
        %v4632 = vsel %vm2033, %v4600, %v3666
        %v4633 = vsel %vm2033, %v4601, %v3668
        %v4634 = vsel %vm2033, %v4602, %v3670
        %v4635 = vsel %vm2069, %v4603, %v3706
        %v4636 = vsel %vm2069, %v4604, %v3708
        %v4637 = vsel %vm2069, %v4605, %v3710
        %v4638 = vsel %vm2069, %v4606, %v3712
        %v4639 = vsel %vm2069, %v4607, %v3714
        %v4640 = vsel %vm2069, %v4608, %v3716
        %v4641 = vsel %vm2069, %v4609, %v3718
        %v4642 = vsel %vm2069, %v4610, %v3720
        %v4643 = vsel %vm2069, %v4611, %v3722
        %v4644 = vsel %vm2069, %v4612, %v3724
        %v4645 = vsel %vm2069, %v4613, %v3726
        %v4646 = vsel %vm2069, %v4614, %v3728
        %v4647 = vsel %vm2069, %v4615, %v3730
        %v4648 = vsel %vm2069, %v4616, %v3732
        %v4649 = vsel %vm2069, %v4617, %v3734
        %v4650 = vsel %vm2069, %v4618, %v3736
        %v4651 = vsel %vm2069, %v4619, %v3738
        %v4652 = vsel %vm2069, %v4620, %v3740
        %v4653 = vsel %vm2069, %v4621, %v3742
        %v4654 = vsel %vm2069, %v4622, %v3744
        %v4655 = vsel %vm2069, %v4623, %v3746
        %v4656 = vsel %vm2069, %v4624, %v3748
        %v4657 = vsel %vm2069, %v4625, %v3750
        %v4658 = vsel %vm2069, %v4626, %v3752
        %v4659 = vsel %vm2069, %v4627, %v3754
        %v4660 = vsel %vm2069, %v4628, %v3756
        %v4661 = vsel %vm2069, %v4629, %v3758
        %v4662 = vsel %vm2069, %v4630, %v3760
        %v4663 = vsel %vm2069, %v4631, %v3762
        %v4664 = vsel %vm2069, %v4632, %v3764
        %v4665 = vsel %vm2069, %v4633, %v3766
        %v4666 = vsel %vm2069, %v4634, %v3768
        %vm4667 = vcmask 326656
        %v4668 = vsel %vm4667, %v4635, %v3804
        %v4669 = vsel %vm4667, %v4636, %v3806
        %v4670 = vsel %vm4667, %v4637, %v3808
        %v4671 = vsel %vm4667, %v4638, %v3810
        %v4672 = vsel %vm4667, %v4639, %v3812
        %v4673 = vsel %vm4667, %v4640, %v3814
        %v4674 = vsel %vm4667, %v4641, %v3816
        %v4675 = vsel %vm4667, %v4642, %v3818
        %v4676 = vsel %vm4667, %v4643, %v3820
        %v4677 = vsel %vm4667, %v4644, %v3822
        %v4678 = vsel %vm4667, %v4645, %v3824
        %v4679 = vsel %vm4667, %v4646, %v3826
        %v4680 = vsel %vm4667, %v4647, %v3828
        %v4681 = vsel %vm4667, %v4648, %v3830
        %v4682 = vsel %vm4667, %v4649, %v3832
        %v4683 = vsel %vm4667, %v4650, %v3834
        %v4684 = vsel %vm4667, %v4651, %v3836
        %v4685 = vsel %vm4667, %v4652, %v3838
        %v4686 = vsel %vm4667, %v4653, %v3840
        %v4687 = vsel %vm4667, %v4654, %v3842
        %v4688 = vsel %vm4667, %v4655, %v3844
        %v4689 = vsel %vm4667, %v4656, %v3846
        %v4690 = vsel %vm4667, %v4657, %v3848
        %v4691 = vsel %vm4667, %v4658, %v3850
        %v4692 = vsel %vm4667, %v4659, %v3852
        %v4693 = vsel %vm4667, %v4660, %v3854
        %v4694 = vsel %vm4667, %v4661, %v3856
        %v4695 = vsel %vm4667, %v4662, %v3858
        %v4696 = vsel %vm4667, %v4663, %v3860
        %v4697 = vsel %vm4667, %v4664, %v3862
        %v4698 = vsel %vm4667, %v4665, %v3864
        %v4699 = vsel %vm4667, %v4666, %v3866
        %vm4700 = vcmask 359424
        %v4701 = vsel %vm4700, %v4668, %v3902
        %v4702 = vsel %vm4700, %v4669, %v3904
        %v4703 = vsel %vm4700, %v4670, %v3906
        %v4704 = vsel %vm4700, %v4671, %v3908
        %v4705 = vsel %vm4700, %v4672, %v3910
        %v4706 = vsel %vm4700, %v4673, %v3912
        %v4707 = vsel %vm4700, %v4674, %v3914
        %v4708 = vsel %vm4700, %v4675, %v3916
        %v4709 = vsel %vm4700, %v4676, %v3918
        %v4710 = vsel %vm4700, %v4677, %v3920
        %v4711 = vsel %vm4700, %v4678, %v3922
        %v4712 = vsel %vm4700, %v4679, %v3924
        %v4713 = vsel %vm4700, %v4680, %v3926
        %v4714 = vsel %vm4700, %v4681, %v3928
        %v4715 = vsel %vm4700, %v4682, %v3930
        %v4716 = vsel %vm4700, %v4683, %v3932
        %v4717 = vsel %vm4700, %v4684, %v3934
        %v4718 = vsel %vm4700, %v4685, %v3936
        %v4719 = vsel %vm4700, %v4686, %v3938
        %v4720 = vsel %vm4700, %v4687, %v3940
        %v4721 = vsel %vm4700, %v4688, %v3942
        %v4722 = vsel %vm4700, %v4689, %v3944
        %v4723 = vsel %vm4700, %v4690, %v3946
        %v4724 = vsel %vm4700, %v4691, %v3948
        %v4725 = vsel %vm4700, %v4692, %v3950
        %v4726 = vsel %vm4700, %v4693, %v3952
        %v4727 = vsel %vm4700, %v4694, %v3954
        %v4728 = vsel %vm4700, %v4695, %v3956
        %v4729 = vsel %vm4700, %v4696, %v3958
        %v4730 = vsel %vm4700, %v4697, %v3960
        %v4731 = vsel %vm4700, %v4698, %v3962
        %v4732 = vsel %vm4700, %v4699, %v3964
        %vm4733 = vcmask 392192
        %v4734 = vsel %vm4733, %v4701, %v3998
        %v4735 = vsel %vm4733, %v4702, %v4000
        %v4736 = vsel %vm4733, %v4703, %v4002
        %v4737 = vsel %vm4733, %v4704, %v4004
        %v4738 = vsel %vm4733, %v4705, %v4006
        %v4739 = vsel %vm4733, %v4706, %v4008
        %v4740 = vsel %vm4733, %v4707, %v4010
        %v4741 = vsel %vm4733, %v4708, %v4012
        %v4742 = vsel %vm4733, %v4709, %v4014
        %v4743 = vsel %vm4733, %v4710, %v4016
        %v4744 = vsel %vm4733, %v4711, %v4018
        %v4745 = vsel %vm4733, %v4712, %v4020
        %v4746 = vsel %vm4733, %v4713, %v4022
        %v4747 = vsel %vm4733, %v4714, %v4024
        %v4748 = vsel %vm4733, %v4715, %v4026
        %v4749 = vsel %vm4733, %v4716, %v4028
        %v4750 = vsel %vm4733, %v4717, %v4030
        %v4751 = vsel %vm4733, %v4718, %v4032
        %v4752 = vsel %vm4733, %v4719, %v4034
        %v4753 = vsel %vm4733, %v4720, %v4036
        %v4754 = vsel %vm4733, %v4721, %v4038
        %v4755 = vsel %vm4733, %v4722, %v4040
        %v4756 = vsel %vm4733, %v4723, %v4042
        %v4757 = vsel %vm4733, %v4724, %v4044
        %v4758 = vsel %vm4733, %v4725, %v4046
        %v4759 = vsel %vm4733, %v4726, %v4048
        %v4760 = vsel %vm4733, %v4727, %v4050
        %v4761 = vsel %vm4733, %v4728, %v4052
        %v4762 = vsel %vm4733, %v4729, %v4054
        %v4763 = vsel %vm4733, %v4730, %v4056
        %v4764 = vsel %vm4733, %v4731, %v4058
        %v4765 = vsel %vm4733, %v4732, %v4060
        %vm4766 = vcmask 424960
        %v4767 = vsel %vm4766, %v4734, %v4096
        %v4768 = vsel %vm4766, %v4735, %v4098
        %v4769 = vsel %vm4766, %v4736, %v4100
        %v4770 = vsel %vm4766, %v4737, %v4102
        %v4771 = vsel %vm4766, %v4738, %v4104
        %v4772 = vsel %vm4766, %v4739, %v4106
        %v4773 = vsel %vm4766, %v4740, %v4108
        %v4774 = vsel %vm4766, %v4741, %v4110
        %v4775 = vsel %vm4766, %v4742, %v4112
        %v4776 = vsel %vm4766, %v4743, %v4114
        %v4777 = vsel %vm4766, %v4744, %v4116
        %v4778 = vsel %vm4766, %v4745, %v4118
        %v4779 = vsel %vm4766, %v4746, %v4120
        %v4780 = vsel %vm4766, %v4747, %v4122
        %v4781 = vsel %vm4766, %v4748, %v4124
        %v4782 = vsel %vm4766, %v4749, %v4126
        %v4783 = vsel %vm4766, %v4750, %v4128
        %v4784 = vsel %vm4766, %v4751, %v4130
        %v4785 = vsel %vm4766, %v4752, %v4132
        %v4786 = vsel %vm4766, %v4753, %v4134
        %v4787 = vsel %vm4766, %v4754, %v4136
        %v4788 = vsel %vm4766, %v4755, %v4138
        %v4789 = vsel %vm4766, %v4756, %v4140
        %v4790 = vsel %vm4766, %v4757, %v4142
        %v4791 = vsel %vm4766, %v4758, %v4144
        %v4792 = vsel %vm4766, %v4759, %v4146
        %v4793 = vsel %vm4766, %v4760, %v4148
        %v4794 = vsel %vm4766, %v4761, %v4150
        %v4795 = vsel %vm4766, %v4762, %v4152
        %v4796 = vsel %vm4766, %v4763, %v4154
        %v4797 = vsel %vm4766, %v4764, %v4156
        %v4798 = vsel %vm4766, %v4765, %v4158
        %vm4799 = vcmask 457728
        %v4800 = vsel %vm4799, %v4767, %v4194
        %v4801 = vsel %vm4799, %v4768, %v4196
        %v4802 = vsel %vm4799, %v4769, %v4198
        %v4803 = vsel %vm4799, %v4770, %v4200
        %v4804 = vsel %vm4799, %v4771, %v4202
        %v4805 = vsel %vm4799, %v4772, %v4204
        %v4806 = vsel %vm4799, %v4773, %v4206
        %v4807 = vsel %vm4799, %v4774, %v4208
        %v4808 = vsel %vm4799, %v4775, %v4210
        %v4809 = vsel %vm4799, %v4776, %v4212
        %v4810 = vsel %vm4799, %v4777, %v4214
        %v4811 = vsel %vm4799, %v4778, %v4216
        %v4812 = vsel %vm4799, %v4779, %v4218
        %v4813 = vsel %vm4799, %v4780, %v4220
        %v4814 = vsel %vm4799, %v4781, %v4222
        %v4815 = vsel %vm4799, %v4782, %v4224
        %v4816 = vsel %vm4799, %v4783, %v4226
        %v4817 = vsel %vm4799, %v4784, %v4228
        %v4818 = vsel %vm4799, %v4785, %v4230
        %v4819 = vsel %vm4799, %v4786, %v4232
        %v4820 = vsel %vm4799, %v4787, %v4234
        %v4821 = vsel %vm4799, %v4788, %v4236
        %v4822 = vsel %vm4799, %v4789, %v4238
        %v4823 = vsel %vm4799, %v4790, %v4240
        %v4824 = vsel %vm4799, %v4791, %v4242
        %v4825 = vsel %vm4799, %v4792, %v4244
        %v4826 = vsel %vm4799, %v4793, %v4246
        %v4827 = vsel %vm4799, %v4794, %v4248
        %v4828 = vsel %vm4799, %v4795, %v4250
        %v4829 = vsel %vm4799, %v4796, %v4252
        %v4830 = vsel %vm4799, %v4797, %v4254
        %v4831 = vsel %vm4799, %v4798, %v4256
        %vm4832 = vcmask 490496
        %v4833 = vsel %vm4832, %v4800, %v4292
        %v4834 = vsel %vm4832, %v4801, %v4294
        %v4835 = vsel %vm4832, %v4802, %v4296
        %v4836 = vsel %vm4832, %v4803, %v4298
        %v4837 = vsel %vm4832, %v4804, %v4300
        %v4838 = vsel %vm4832, %v4805, %v4302
        %v4839 = vsel %vm4832, %v4806, %v4304
        %v4840 = vsel %vm4832, %v4807, %v4306
        %v4841 = vsel %vm4832, %v4808, %v4308
        %v4842 = vsel %vm4832, %v4809, %v4310
        %v4843 = vsel %vm4832, %v4810, %v4312
        %v4844 = vsel %vm4832, %v4811, %v4314
        %v4845 = vsel %vm4832, %v4812, %v4316
        %v4846 = vsel %vm4832, %v4813, %v4318
        %v4847 = vsel %vm4832, %v4814, %v4320
        %v4848 = vsel %vm4832, %v4815, %v4322
        %v4849 = vsel %vm4832, %v4816, %v4324
        %v4850 = vsel %vm4832, %v4817, %v4326
        %v4851 = vsel %vm4832, %v4818, %v4328
        %v4852 = vsel %vm4832, %v4819, %v4330
        %v4853 = vsel %vm4832, %v4820, %v4332
        %v4854 = vsel %vm4832, %v4821, %v4334
        %v4855 = vsel %vm4832, %v4822, %v4336
        %v4856 = vsel %vm4832, %v4823, %v4338
        %v4857 = vsel %vm4832, %v4824, %v4340
        %v4858 = vsel %vm4832, %v4825, %v4342
        %v4859 = vsel %vm4832, %v4826, %v4344
        %v4860 = vsel %vm4832, %v4827, %v4346
        %v4861 = vsel %vm4832, %v4828, %v4348
        %v4862 = vsel %vm4832, %v4829, %v4350
        %v4863 = vsel %vm4832, %v4830, %v4352
        %v4864 = vsel %vm4832, %v4831, %v4354
        %4867 = vrot.lane.b32.xlu0 %v2647, 8
        %v4868 = vpop.permute.xlu0 %4867
        %4869 = vrot.lane.b32.xlu0 %v2648, 8
        %v4870 = vpop.permute.xlu0 %4869
        %4871 = vrot.lane.b32.xlu0 %v2649, 8
        %v4872 = vpop.permute.xlu0 %4871
        %4873 = vrot.lane.b32.xlu0 %v2650, 8
        %v4874 = vpop.permute.xlu0 %4873
        %4875 = vrot.lane.b32.xlu0 %v2651, 8
        %v4876 = vpop.permute.xlu0 %4875
        %4877 = vrot.lane.b32.xlu0 %v2652, 8
        %v4878 = vpop.permute.xlu0 %4877
        %4879 = vrot.lane.b32.xlu0 %v2653, 8
        %v4880 = vpop.permute.xlu0 %4879
        %4881 = vrot.lane.b32.xlu0 %v2654, 8
        %v4882 = vpop.permute.xlu0 %4881
        %4883 = vrot.lane.b32.xlu0 %v2655, 8
        %v4884 = vpop.permute.xlu0 %4883
        %4885 = vrot.lane.b32.xlu0 %v2656, 8
        %v4886 = vpop.permute.xlu0 %4885
        %4887 = vrot.lane.b32.xlu0 %v2657, 8
        %v4888 = vpop.permute.xlu0 %4887
        %4889 = vrot.lane.b32.xlu0 %v2658, 8
        %v4890 = vpop.permute.xlu0 %4889
        %4891 = vrot.lane.b32.xlu0 %v2659, 8
        %v4892 = vpop.permute.xlu0 %4891
        %4893 = vrot.lane.b32.xlu0 %v2660, 8
        %v4894 = vpop.permute.xlu0 %4893
        %4895 = vrot.lane.b32.xlu0 %v2661, 8
        %v4896 = vpop.permute.xlu0 %4895
        %4897 = vrot.lane.b32.xlu0 %v2662, 8
        %v4898 = vpop.permute.xlu0 %4897
        %4899 = vrot.lane.b32.xlu0 %v2663, 8
        %v4900 = vpop.permute.xlu0 %4899
        %4901 = vrot.lane.b32.xlu0 %v2664, 8
        %v4902 = vpop.permute.xlu0 %4901
        %4903 = vrot.lane.b32.xlu0 %v2665, 8
        %v4904 = vpop.permute.xlu0 %4903
        %4905 = vrot.lane.b32.xlu0 %v2666, 8
        %v4906 = vpop.permute.xlu0 %4905
        %4907 = vrot.lane.b32.xlu0 %v2667, 8
        %v4908 = vpop.permute.xlu0 %4907
        %4909 = vrot.lane.b32.xlu0 %v2668, 8
        %v4910 = vpop.permute.xlu0 %4909
        %4911 = vrot.lane.b32.xlu0 %v2669, 8
        %v4912 = vpop.permute.xlu0 %4911
        %4913 = vrot.lane.b32.xlu0 %v2670, 8
        %v4914 = vpop.permute.xlu0 %4913
        %4915 = vrot.lane.b32.xlu0 %v2671, 8
        %v4916 = vpop.permute.xlu0 %4915
        %4917 = vrot.lane.b32.xlu0 %v2672, 8
        %v4918 = vpop.permute.xlu0 %4917
        %4919 = vrot.lane.b32.xlu0 %v2788, 8
        %v4920 = vpop.permute.xlu0 %4919
        %4921 = vrot.lane.b32.xlu0 %v2789, 8
        %v4922 = vpop.permute.xlu0 %4921
        %4923 = vrot.lane.b32.xlu0 %v2818, 8
        %v4924 = vpop.permute.xlu0 %4923
        %4925 = vrot.lane.b32.xlu0 %v2819, 8
        %v4926 = vpop.permute.xlu0 %4925
        %4927 = vrot.lane.b32.xlu0 %v2836, 8
        %v4928 = vpop.permute.xlu0 %4927
        %4929 = vrot.lane.b32.xlu0 %v2837, 8
        %v4930 = vpop.permute.xlu0 %4929
        %4965 = vrot.lane.b32.xlu0 %v2740, 12
        %v4966 = vpop.permute.xlu0 %4965
        %4967 = vrot.lane.b32.xlu0 %v2741, 12
        %v4968 = vpop.permute.xlu0 %4967
        %4969 = vrot.lane.b32.xlu0 %v2742, 12
        %v4970 = vpop.permute.xlu0 %4969
        %4971 = vrot.lane.b32.xlu0 %v2743, 12
        %v4972 = vpop.permute.xlu0 %4971
        %4973 = vrot.lane.b32.xlu0 %v2744, 12
        %v4974 = vpop.permute.xlu0 %4973
        %4975 = vrot.lane.b32.xlu0 %v2745, 12
        %v4976 = vpop.permute.xlu0 %4975
        %4977 = vrot.lane.b32.xlu0 %v2746, 12
        %v4978 = vpop.permute.xlu0 %4977
        %4979 = vrot.lane.b32.xlu0 %v2747, 12
        %v4980 = vpop.permute.xlu0 %4979
        %4981 = vrot.lane.b32.xlu0 %v2748, 12
        %v4982 = vpop.permute.xlu0 %4981
        %4983 = vrot.lane.b32.xlu0 %v2749, 12
        %v4984 = vpop.permute.xlu0 %4983
        %4985 = vrot.lane.b32.xlu0 %v2750, 12
        %v4986 = vpop.permute.xlu0 %4985
        %4987 = vrot.lane.b32.xlu0 %v2751, 12
        %v4988 = vpop.permute.xlu0 %4987
        %4989 = vrot.lane.b32.xlu0 %v2752, 12
        %v4990 = vpop.permute.xlu0 %4989
        %4991 = vrot.lane.b32.xlu0 %v2753, 12
        %v4992 = vpop.permute.xlu0 %4991
        %4993 = vrot.lane.b32.xlu0 %v2754, 12
        %v4994 = vpop.permute.xlu0 %4993
        %4995 = vrot.lane.b32.xlu0 %v2755, 12
        %v4996 = vpop.permute.xlu0 %4995
        %4997 = vrot.lane.b32.xlu0 %v2756, 12
        %v4998 = vpop.permute.xlu0 %4997
        %4999 = vrot.lane.b32.xlu0 %v2757, 12
        %v5000 = vpop.permute.xlu0 %4999
        %5001 = vrot.lane.b32.xlu0 %v2758, 12
        %v5002 = vpop.permute.xlu0 %5001
        %5003 = vrot.lane.b32.xlu0 %v2759, 12
        %v5004 = vpop.permute.xlu0 %5003
        %5005 = vrot.lane.b32.xlu0 %v2760, 12
        %v5006 = vpop.permute.xlu0 %5005
        %5007 = vrot.lane.b32.xlu0 %v2761, 12
        %v5008 = vpop.permute.xlu0 %5007
        %5009 = vrot.lane.b32.xlu0 %v2762, 12
        %v5010 = vpop.permute.xlu0 %5009
        %5011 = vrot.lane.b32.xlu0 %v2763, 12
        %v5012 = vpop.permute.xlu0 %5011
        %5013 = vrot.lane.b32.xlu0 %v2764, 12
        %v5014 = vpop.permute.xlu0 %5013
        %5015 = vrot.lane.b32.xlu0 %v2765, 12
        %v5016 = vpop.permute.xlu0 %5015
        %5017 = vrot.lane.b32.xlu0 %v2794, 12
        %v5018 = vpop.permute.xlu0 %5017
        %5019 = vrot.lane.b32.xlu0 %v2795, 12
        %v5020 = vpop.permute.xlu0 %5019
        %5021 = vrot.lane.b32.xlu0 %v2824, 12
        %v5022 = vpop.permute.xlu0 %5021
        %5023 = vrot.lane.b32.xlu0 %v2825, 12
        %v5024 = vpop.permute.xlu0 %5023
        %5025 = vrot.lane.b32.xlu0 %v2839, 12
        %v5026 = vpop.permute.xlu0 %5025
        %5027 = vrot.lane.b32.xlu0 %v2840, 12
        %v5028 = vpop.permute.xlu0 %5027
        %5061 = vrot.lane.b32.xlu0 %v2481, 16
        %v5062 = vpop.permute.xlu0 %5061
        %5063 = vrot.lane.b32.xlu0 %v2482, 16
        %v5064 = vpop.permute.xlu0 %5063
        %5065 = vrot.lane.b32.xlu0 %v2483, 16
        %v5066 = vpop.permute.xlu0 %5065
        %5067 = vrot.lane.b32.xlu0 %v2484, 16
        %v5068 = vpop.permute.xlu0 %5067
        %5069 = vrot.lane.b32.xlu0 %v2485, 16
        %v5070 = vpop.permute.xlu0 %5069
        %5071 = vrot.lane.b32.xlu0 %v2486, 16
        %v5072 = vpop.permute.xlu0 %5071
        %5073 = vrot.lane.b32.xlu0 %v2487, 16
        %v5074 = vpop.permute.xlu0 %5073
        %5075 = vrot.lane.b32.xlu0 %v2488, 16
        %v5076 = vpop.permute.xlu0 %5075
        %5077 = vrot.lane.b32.xlu0 %v2489, 16
        %v5078 = vpop.permute.xlu0 %5077
        %5079 = vrot.lane.b32.xlu0 %v2490, 16
        %v5080 = vpop.permute.xlu0 %5079
        %5081 = vrot.lane.b32.xlu0 %v2491, 16
        %v5082 = vpop.permute.xlu0 %5081
        %5083 = vrot.lane.b32.xlu0 %v2492, 16
        %v5084 = vpop.permute.xlu0 %5083
        %5085 = vrot.lane.b32.xlu0 %v2493, 16
        %v5086 = vpop.permute.xlu0 %5085
        %5087 = vrot.lane.b32.xlu0 %v2494, 16
        %v5088 = vpop.permute.xlu0 %5087
        %5089 = vrot.lane.b32.xlu0 %v2495, 16
        %v5090 = vpop.permute.xlu0 %5089
        %5091 = vrot.lane.b32.xlu0 %v2496, 16
        %v5092 = vpop.permute.xlu0 %5091
        %5093 = vrot.lane.b32.xlu0 %v2497, 16
        %v5094 = vpop.permute.xlu0 %5093
        %5095 = vrot.lane.b32.xlu0 %v2498, 16
        %v5096 = vpop.permute.xlu0 %5095
        %5097 = vrot.lane.b32.xlu0 %v2499, 16
        %v5098 = vpop.permute.xlu0 %5097
        %5099 = vrot.lane.b32.xlu0 %v2500, 16
        %v5100 = vpop.permute.xlu0 %5099
        %5101 = vrot.lane.b32.xlu0 %v2501, 16
        %v5102 = vpop.permute.xlu0 %5101
        %5103 = vrot.lane.b32.xlu0 %v2502, 16
        %v5104 = vpop.permute.xlu0 %5103
        %5105 = vrot.lane.b32.xlu0 %v2503, 16
        %v5106 = vpop.permute.xlu0 %5105
        %5107 = vrot.lane.b32.xlu0 %v2504, 16
        %v5108 = vpop.permute.xlu0 %5107
        %5109 = vrot.lane.b32.xlu0 %v2776, 16
        %v5110 = vpop.permute.xlu0 %5109
        %5111 = vrot.lane.b32.xlu0 %v2777, 16
        %v5112 = vpop.permute.xlu0 %5111
        %5113 = vrot.lane.b32.xlu0 %v2806, 16
        %v5114 = vpop.permute.xlu0 %5113
        %5115 = vrot.lane.b32.xlu0 %v2807, 16
        %v5116 = vpop.permute.xlu0 %5115
        %5117 = vrot.lane.b32.xlu0 %v2830, 16
        %v5118 = vpop.permute.xlu0 %5117
        %5119 = vrot.lane.b32.xlu0 %v2831, 16
        %v5120 = vpop.permute.xlu0 %5119
        %5153 = vrot.lane.b32.xlu0 %v2565, 20
        %v5154 = vpop.permute.xlu0 %5153
        %5155 = vrot.lane.b32.xlu0 %v2566, 20
        %v5156 = vpop.permute.xlu0 %5155
        %5157 = vrot.lane.b32.xlu0 %v2567, 20
        %v5158 = vpop.permute.xlu0 %5157
        %5159 = vrot.lane.b32.xlu0 %v2568, 20
        %v5160 = vpop.permute.xlu0 %5159
        %5161 = vrot.lane.b32.xlu0 %v2569, 20
        %v5162 = vpop.permute.xlu0 %5161
        %5163 = vrot.lane.b32.xlu0 %v2570, 20
        %v5164 = vpop.permute.xlu0 %5163
        %5165 = vrot.lane.b32.xlu0 %v2571, 20
        %v5166 = vpop.permute.xlu0 %5165
        %5167 = vrot.lane.b32.xlu0 %v2572, 20
        %v5168 = vpop.permute.xlu0 %5167
        %5169 = vrot.lane.b32.xlu0 %v2573, 20
        %v5170 = vpop.permute.xlu0 %5169
        %5171 = vrot.lane.b32.xlu0 %v2574, 20
        %v5172 = vpop.permute.xlu0 %5171
        %5173 = vrot.lane.b32.xlu0 %v2575, 20
        %v5174 = vpop.permute.xlu0 %5173
        %5175 = vrot.lane.b32.xlu0 %v2576, 20
        %v5176 = vpop.permute.xlu0 %5175
        %5177 = vrot.lane.b32.xlu0 %v2577, 20
        %v5178 = vpop.permute.xlu0 %5177
        %5179 = vrot.lane.b32.xlu0 %v2578, 20
        %v5180 = vpop.permute.xlu0 %5179
        %5181 = vrot.lane.b32.xlu0 %v2579, 20
        %v5182 = vpop.permute.xlu0 %5181
        %5183 = vrot.lane.b32.xlu0 %v2580, 20
        %v5184 = vpop.permute.xlu0 %5183
        %5185 = vrot.lane.b32.xlu0 %v2581, 20
        %v5186 = vpop.permute.xlu0 %5185
        %5187 = vrot.lane.b32.xlu0 %v2582, 20
        %v5188 = vpop.permute.xlu0 %5187
        %5189 = vrot.lane.b32.xlu0 %v2583, 20
        %v5190 = vpop.permute.xlu0 %5189
        %5191 = vrot.lane.b32.xlu0 %v2584, 20
        %v5192 = vpop.permute.xlu0 %5191
        %5193 = vrot.lane.b32.xlu0 %v2585, 20
        %v5194 = vpop.permute.xlu0 %5193
        %5195 = vrot.lane.b32.xlu0 %v2586, 20
        %v5196 = vpop.permute.xlu0 %5195
        %5197 = vrot.lane.b32.xlu0 %v2587, 20
        %v5198 = vpop.permute.xlu0 %5197
        %5199 = vrot.lane.b32.xlu0 %v2588, 20
        %v5200 = vpop.permute.xlu0 %5199
        %5201 = vrot.lane.b32.xlu0 %v2782, 20
        %v5202 = vpop.permute.xlu0 %5201
        %5203 = vrot.lane.b32.xlu0 %v2783, 20
        %v5204 = vpop.permute.xlu0 %5203
        %5205 = vrot.lane.b32.xlu0 %v2812, 20
        %v5206 = vpop.permute.xlu0 %5205
        %5207 = vrot.lane.b32.xlu0 %v2813, 20
        %v5208 = vpop.permute.xlu0 %5207
        %5209 = vrot.lane.b32.xlu0 %v2833, 20
        %v5210 = vpop.permute.xlu0 %5209
        %5211 = vrot.lane.b32.xlu0 %v2834, 20
        %v5212 = vpop.permute.xlu0 %5211
        %5243 = vrot.lane.b32.xlu0 %v586, 12
        %v5244 = vpop.permute.xlu0 %5243
        %5245 = vrot.lane.b32.xlu0 %v587, 12
        %v5246 = vpop.permute.xlu0 %5245
        %5247 = vrot.lane.b32.xlu0 %v588, 12
        %v5248 = vpop.permute.xlu0 %5247
        %5249 = vrot.lane.b32.xlu0 %v589, 12
        %v5250 = vpop.permute.xlu0 %5249
        %5251 = vrot.lane.b32.xlu0 %v590, 12
        %v5252 = vpop.permute.xlu0 %5251
        %5253 = vrot.lane.b32.xlu0 %v591, 12
        %v5254 = vpop.permute.xlu0 %5253
        %5255 = vrot.lane.b32.xlu0 %v592, 12
        %v5256 = vpop.permute.xlu0 %5255
        %5257 = vrot.lane.b32.xlu0 %v593, 12
        %v5258 = vpop.permute.xlu0 %5257
        %5259 = vrot.lane.b32.xlu0 %v594, 12
        %v5260 = vpop.permute.xlu0 %5259
        %5261 = vrot.lane.b32.xlu0 %v595, 12
        %v5262 = vpop.permute.xlu0 %5261
        %5263 = vrot.lane.b32.xlu0 %v596, 12
        %v5264 = vpop.permute.xlu0 %5263
        %5265 = vrot.lane.b32.xlu0 %v597, 12
        %v5266 = vpop.permute.xlu0 %5265
        %5267 = vrot.lane.b32.xlu0 %v598, 12
        %v5268 = vpop.permute.xlu0 %5267
        %5269 = vrot.lane.b32.xlu0 %v599, 12
        %v5270 = vpop.permute.xlu0 %5269
        %5271 = vrot.lane.b32.xlu0 %v600, 12
        %v5272 = vpop.permute.xlu0 %5271
        %5273 = vrot.lane.b32.xlu0 %v601, 12
        %v5274 = vpop.permute.xlu0 %5273
        %5275 = vrot.lane.b32.xlu0 %v602, 12
        %v5276 = vpop.permute.xlu0 %5275
        %5277 = vrot.lane.b32.xlu0 %v603, 12
        %v5278 = vpop.permute.xlu0 %5277
        %5279 = vrot.lane.b32.xlu0 %v604, 12
        %v5280 = vpop.permute.xlu0 %5279
        %5281 = vrot.lane.b32.xlu0 %v605, 12
        %v5282 = vpop.permute.xlu0 %5281
        %5283 = vrot.lane.b32.xlu0 %v606, 12
        %v5284 = vpop.permute.xlu0 %5283
        %5285 = vrot.lane.b32.xlu0 %v607, 12
        %v5286 = vpop.permute.xlu0 %5285
        %5287 = vrot.lane.b32.xlu0 %v608, 12
        %v5288 = vpop.permute.xlu0 %5287
        %5289 = vrot.lane.b32.xlu0 %v609, 12
        %v5290 = vpop.permute.xlu0 %5289
        %5291 = vrot.lane.b32.xlu0 %v610, 12
        %v5292 = vpop.permute.xlu0 %5291
        %5293 = vrot.lane.b32.xlu0 %v611, 12
        %v5294 = vpop.permute.xlu0 %5293
        %5295 = vrot.lane.b32.xlu0 %v612, 12
        %v5296 = vpop.permute.xlu0 %5295
        %5297 = vrot.lane.b32.xlu0 %v613, 12
        %v5298 = vpop.permute.xlu0 %5297
        %5299 = vrot.lane.b32.xlu0 0.0, 12
        %v5300 = vpop.permute.xlu0 %5299
        %5330 = vrot.lane.b32.xlu0 %v2649, 28
        %v5331 = vpop.permute.xlu0 %5330
        %5332 = vrot.lane.b32.xlu0 %v2650, 28
        %v5333 = vpop.permute.xlu0 %5332
        %5334 = vrot.lane.b32.xlu0 %v2651, 28
        %v5335 = vpop.permute.xlu0 %5334
        %5336 = vrot.lane.b32.xlu0 %v2652, 28
        %v5337 = vpop.permute.xlu0 %5336
        %5338 = vrot.lane.b32.xlu0 %v2653, 28
        %v5339 = vpop.permute.xlu0 %5338
        %5340 = vrot.lane.b32.xlu0 %v2654, 28
        %v5341 = vpop.permute.xlu0 %5340
        %5342 = vrot.lane.b32.xlu0 %v2655, 28
        %v5343 = vpop.permute.xlu0 %5342
        %5344 = vrot.lane.b32.xlu0 %v2656, 28
        %v5345 = vpop.permute.xlu0 %5344
        %5346 = vrot.lane.b32.xlu0 %v2657, 28
        %v5347 = vpop.permute.xlu0 %5346
        %5348 = vrot.lane.b32.xlu0 %v2658, 28
        %v5349 = vpop.permute.xlu0 %5348
        %5350 = vrot.lane.b32.xlu0 %v2659, 28
        %v5351 = vpop.permute.xlu0 %5350
        %5352 = vrot.lane.b32.xlu0 %v2660, 28
        %v5353 = vpop.permute.xlu0 %5352
        %5354 = vrot.lane.b32.xlu0 %v2661, 28
        %v5355 = vpop.permute.xlu0 %5354
        %5356 = vrot.lane.b32.xlu0 %v2662, 28
        %v5357 = vpop.permute.xlu0 %5356
        %5358 = vrot.lane.b32.xlu0 %v2663, 28
        %v5359 = vpop.permute.xlu0 %5358
        %5360 = vrot.lane.b32.xlu0 %v2664, 28
        %v5361 = vpop.permute.xlu0 %5360
        %5362 = vrot.lane.b32.xlu0 %v2665, 28
        %v5363 = vpop.permute.xlu0 %5362
        %5364 = vrot.lane.b32.xlu0 %v2666, 28
        %v5365 = vpop.permute.xlu0 %5364
        %5366 = vrot.lane.b32.xlu0 %v2667, 28
        %v5367 = vpop.permute.xlu0 %5366
        %5368 = vrot.lane.b32.xlu0 %v2668, 28
        %v5369 = vpop.permute.xlu0 %5368
        %5370 = vrot.lane.b32.xlu0 %v2669, 28
        %v5371 = vpop.permute.xlu0 %5370
        %5372 = vrot.lane.b32.xlu0 %v2670, 28
        %v5373 = vpop.permute.xlu0 %5372
        %5374 = vrot.lane.b32.xlu0 %v2671, 28
        %v5375 = vpop.permute.xlu0 %5374
        %5376 = vrot.lane.b32.xlu0 %v2672, 28
        %v5377 = vpop.permute.xlu0 %5376
        %5378 = vrot.lane.b32.xlu0 %v2788, 28
        %v5379 = vpop.permute.xlu0 %5378
        %5380 = vrot.lane.b32.xlu0 %v2789, 28
        %v5381 = vpop.permute.xlu0 %5380
        %5382 = vrot.lane.b32.xlu0 %v2818, 28
        %v5383 = vpop.permute.xlu0 %5382
        %5384 = vrot.lane.b32.xlu0 %v2819, 28
        %v5385 = vpop.permute.xlu0 %5384
        %5386 = vrot.lane.b32.xlu0 %v2836, 28
        %v5387 = vpop.permute.xlu0 %5386
        %5388 = vrot.lane.b32.xlu0 %v2837, 28
        %v5389 = vpop.permute.xlu0 %5388
        %5420 = vrot.lane.b32.xlu0 %v2742, 32
        %v5421 = vpop.permute.xlu0 %5420
        %5422 = vrot.lane.b32.xlu0 %v2743, 32
        %v5423 = vpop.permute.xlu0 %5422
        %5424 = vrot.lane.b32.xlu0 %v2744, 32
        %v5425 = vpop.permute.xlu0 %5424
        %5426 = vrot.lane.b32.xlu0 %v2745, 32
        %v5427 = vpop.permute.xlu0 %5426
        %5428 = vrot.lane.b32.xlu0 %v2746, 32
        %v5429 = vpop.permute.xlu0 %5428
        %5430 = vrot.lane.b32.xlu0 %v2747, 32
        %v5431 = vpop.permute.xlu0 %5430
        %5432 = vrot.lane.b32.xlu0 %v2748, 32
        %v5433 = vpop.permute.xlu0 %5432
        %5434 = vrot.lane.b32.xlu0 %v2749, 32
        %v5435 = vpop.permute.xlu0 %5434
        %5436 = vrot.lane.b32.xlu0 %v2750, 32
        %v5437 = vpop.permute.xlu0 %5436
        %5438 = vrot.lane.b32.xlu0 %v2751, 32
        %v5439 = vpop.permute.xlu0 %5438
        %5440 = vrot.lane.b32.xlu0 %v2752, 32
        %v5441 = vpop.permute.xlu0 %5440
        %5442 = vrot.lane.b32.xlu0 %v2753, 32
        %v5443 = vpop.permute.xlu0 %5442
        %5444 = vrot.lane.b32.xlu0 %v2754, 32
        %v5445 = vpop.permute.xlu0 %5444
        %5446 = vrot.lane.b32.xlu0 %v2755, 32
        %v5447 = vpop.permute.xlu0 %5446
        %5448 = vrot.lane.b32.xlu0 %v2756, 32
        %v5449 = vpop.permute.xlu0 %5448
        %5450 = vrot.lane.b32.xlu0 %v2757, 32
        %v5451 = vpop.permute.xlu0 %5450
        %5452 = vrot.lane.b32.xlu0 %v2758, 32
        %v5453 = vpop.permute.xlu0 %5452
        %5454 = vrot.lane.b32.xlu0 %v2759, 32
        %v5455 = vpop.permute.xlu0 %5454
        %5456 = vrot.lane.b32.xlu0 %v2760, 32
        %v5457 = vpop.permute.xlu0 %5456
        %5458 = vrot.lane.b32.xlu0 %v2761, 32
        %v5459 = vpop.permute.xlu0 %5458
        %5460 = vrot.lane.b32.xlu0 %v2762, 32
        %v5461 = vpop.permute.xlu0 %5460
        %5462 = vrot.lane.b32.xlu0 %v2763, 32
        %v5463 = vpop.permute.xlu0 %5462
        %5464 = vrot.lane.b32.xlu0 %v2764, 32
        %v5465 = vpop.permute.xlu0 %5464
        %5466 = vrot.lane.b32.xlu0 %v2765, 32
        %v5467 = vpop.permute.xlu0 %5466
        %5468 = vrot.lane.b32.xlu0 %v2794, 32
        %v5469 = vpop.permute.xlu0 %5468
        %5470 = vrot.lane.b32.xlu0 %v2795, 32
        %v5471 = vpop.permute.xlu0 %5470
        %5472 = vrot.lane.b32.xlu0 %v2824, 32
        %v5473 = vpop.permute.xlu0 %5472
        %5474 = vrot.lane.b32.xlu0 %v2825, 32
        %v5475 = vpop.permute.xlu0 %5474
        %5476 = vrot.lane.b32.xlu0 %v2839, 32
        %v5477 = vpop.permute.xlu0 %5476
        %5478 = vrot.lane.b32.xlu0 %v2840, 32
        %v5479 = vpop.permute.xlu0 %5478
        %v5510 = vsel %vm368, %v2563, %v658
        %v5511 = vsel %vm368, %v2564, %v660
        %v5512 = vsel %vm368, %v2565, %v662
        %v5513 = vsel %vm368, %v2566, %v664
        %v5514 = vsel %vm368, %v2567, %v666
        %v5515 = vsel %vm368, %v2568, %v668
        %v5516 = vsel %vm368, %v2569, %v670
        %v5517 = vsel %vm368, %v2570, %v672
        %v5518 = vsel %vm368, %v2571, %v674
        %v5519 = vsel %vm368, %v2572, %v676
        %v5520 = vsel %vm368, %v2573, %v678
        %v5521 = vsel %vm368, %v2574, %v680
        %v5522 = vsel %vm368, %v2575, %v682
        %v5523 = vsel %vm368, %v2576, %v684
        %v5524 = vsel %vm368, %v2577, %v686
        %v5525 = vsel %vm368, %v2578, %v688
        %v5526 = vsel %vm368, %v2579, %v690
        %v5527 = vsel %vm368, %v2580, %v692
        %v5528 = vsel %vm368, %v2581, %v694
        %v5529 = vsel %vm368, %v2582, %v696
        %v5530 = vsel %vm368, %v2583, %v698
        %v5531 = vsel %vm368, %v2584, %v700
        %v5532 = vsel %vm368, %v2585, %v702
        %v5533 = vsel %vm368, %v2586, %v704
        %v5534 = vsel %vm368, %v2587, %v706
        %v5535 = vsel %vm368, %v2588, %v708
        %v5536 = vsel %vm368, %v2782, %v710
        %v5537 = vsel %vm368, %v2783, %v712
        %v5538 = vsel %vm368, %v2812, %v944
        %v5539 = vsel %vm368, %v2813, %v946
        %v5540 = vsel %vm368, %v2833, %v963
        %v5541 = vsel %vm368, %v2834, %v963
        %v5542 = vsel %vm1835, %v5510, %v4868
        %v5543 = vsel %vm1835, %v5511, %v4870
        %v5544 = vsel %vm1835, %v5512, %v4872
        %v5545 = vsel %vm1835, %v5513, %v4874
        %v5546 = vsel %vm1835, %v5514, %v4876
        %v5547 = vsel %vm1835, %v5515, %v4878
        %v5548 = vsel %vm1835, %v5516, %v4880
        %v5549 = vsel %vm1835, %v5517, %v4882
        %v5550 = vsel %vm1835, %v5518, %v4884
        %v5551 = vsel %vm1835, %v5519, %v4886
        %v5552 = vsel %vm1835, %v5520, %v4888
        %v5553 = vsel %vm1835, %v5521, %v4890
        %v5554 = vsel %vm1835, %v5522, %v4892
        %v5555 = vsel %vm1835, %v5523, %v4894
        %v5556 = vsel %vm1835, %v5524, %v4896
        %v5557 = vsel %vm1835, %v5525, %v4898
        %v5558 = vsel %vm1835, %v5526, %v4900
        %v5559 = vsel %vm1835, %v5527, %v4902
        %v5560 = vsel %vm1835, %v5528, %v4904
        %v5561 = vsel %vm1835, %v5529, %v4906
        %v5562 = vsel %vm1835, %v5530, %v4908
        %v5563 = vsel %vm1835, %v5531, %v4910
        %v5564 = vsel %vm1835, %v5532, %v4912
        %v5565 = vsel %vm1835, %v5533, %v4914
        %v5566 = vsel %vm1835, %v5534, %v4916
        %v5567 = vsel %vm1835, %v5535, %v4918
        %v5568 = vsel %vm1835, %v5536, %v4920
        %v5569 = vsel %vm1835, %v5537, %v4922
        %v5570 = vsel %vm1835, %v5538, %v4924
        %v5571 = vsel %vm1835, %v5539, %v4926
        %v5572 = vsel %vm1835, %v5540, %v4928
        %v5573 = vsel %vm1835, %v5541, %v4930
        %v5574 = vsel %vm1868, %v5542, %v4966
        %v5575 = vsel %vm1868, %v5543, %v4968
        %v5576 = vsel %vm1868, %v5544, %v4970
        %v5577 = vsel %vm1868, %v5545, %v4972
        %v5578 = vsel %vm1868, %v5546, %v4974
        %v5579 = vsel %vm1868, %v5547, %v4976
        %v5580 = vsel %vm1868, %v5548, %v4978
        %v5581 = vsel %vm1868, %v5549, %v4980
        %v5582 = vsel %vm1868, %v5550, %v4982
        %v5583 = vsel %vm1868, %v5551, %v4984
        %v5584 = vsel %vm1868, %v5552, %v4986
        %v5585 = vsel %vm1868, %v5553, %v4988
        %v5586 = vsel %vm1868, %v5554, %v4990
        %v5587 = vsel %vm1868, %v5555, %v4992
        %v5588 = vsel %vm1868, %v5556, %v4994
        %v5589 = vsel %vm1868, %v5557, %v4996
        %v5590 = vsel %vm1868, %v5558, %v4998
        %v5591 = vsel %vm1868, %v5559, %v5000
        %v5592 = vsel %vm1868, %v5560, %v5002
        %v5593 = vsel %vm1868, %v5561, %v5004
        %v5594 = vsel %vm1868, %v5562, %v5006
        %v5595 = vsel %vm1868, %v5563, %v5008
        %v5596 = vsel %vm1868, %v5564, %v5010
        %v5597 = vsel %vm1868, %v5565, %v5012
        %v5598 = vsel %vm1868, %v5566, %v5014
        %v5599 = vsel %vm1868, %v5567, %v5016
        %v5600 = vsel %vm1868, %v5568, %v5018
        %v5601 = vsel %vm1868, %v5569, %v5020
        %v5602 = vsel %vm1868, %v5570, %v5022
        %v5603 = vsel %vm1868, %v5571, %v5024
        %v5604 = vsel %vm1868, %v5572, %v5026
        %v5605 = vsel %vm1868, %v5573, %v5028
        %v5606 = vsel %vm1901, %v5574, %v5062
        %v5607 = vsel %vm1901, %v5575, %v5064
        %v5608 = vsel %vm1901, %v5576, %v5066
        %v5609 = vsel %vm1901, %v5577, %v5068
        %v5610 = vsel %vm1901, %v5578, %v5070
        %v5611 = vsel %vm1901, %v5579, %v5072
        %v5612 = vsel %vm1901, %v5580, %v5074
        %v5613 = vsel %vm1901, %v5581, %v5076
        %v5614 = vsel %vm1901, %v5582, %v5078
        %v5615 = vsel %vm1901, %v5583, %v5080
        %v5616 = vsel %vm1901, %v5584, %v5082
        %v5617 = vsel %vm1901, %v5585, %v5084
        %v5618 = vsel %vm1901, %v5586, %v5086
        %v5619 = vsel %vm1901, %v5587, %v5088
        %v5620 = vsel %vm1901, %v5588, %v5090
        %v5621 = vsel %vm1901, %v5589, %v5092
        %v5622 = vsel %vm1901, %v5590, %v5094
        %v5623 = vsel %vm1901, %v5591, %v5096
        %v5624 = vsel %vm1901, %v5592, %v5098
        %v5625 = vsel %vm1901, %v5593, %v5100
        %v5626 = vsel %vm1901, %v5594, %v5102
        %v5627 = vsel %vm1901, %v5595, %v5104
        %v5628 = vsel %vm1901, %v5596, %v5106
        %v5629 = vsel %vm1901, %v5597, %v5108
        %v5630 = vsel %vm1901, %v5598, %v5110
        %v5631 = vsel %vm1901, %v5599, %v5112
        %v5632 = vsel %vm1901, %v5600, %v5114
        %v5633 = vsel %vm1901, %v5601, %v5116
        %v5634 = vsel %vm1901, %v5602, %v5118
        %v5635 = vsel %vm1901, %v5603, %v5120
        %v5636 = vsel %vm1901, %v5604, %v5118
        %v5637 = vsel %vm1901, %v5605, %v5120
        %v5638 = vsel %vm1934, %v5606, %v5154
        %v5639 = vsel %vm1934, %v5607, %v5156
        %v5640 = vsel %vm1934, %v5608, %v5158
        %v5641 = vsel %vm1934, %v5609, %v5160
        %v5642 = vsel %vm1934, %v5610, %v5162
        %v5643 = vsel %vm1934, %v5611, %v5164
        %v5644 = vsel %vm1934, %v5612, %v5166
        %v5645 = vsel %vm1934, %v5613, %v5168
        %v5646 = vsel %vm1934, %v5614, %v5170
        %v5647 = vsel %vm1934, %v5615, %v5172
        %v5648 = vsel %vm1934, %v5616, %v5174
        %v5649 = vsel %vm1934, %v5617, %v5176
        %v5650 = vsel %vm1934, %v5618, %v5178
        %v5651 = vsel %vm1934, %v5619, %v5180
        %v5652 = vsel %vm1934, %v5620, %v5182
        %v5653 = vsel %vm1934, %v5621, %v5184
        %v5654 = vsel %vm1934, %v5622, %v5186
        %v5655 = vsel %vm1934, %v5623, %v5188
        %v5656 = vsel %vm1934, %v5624, %v5190
        %v5657 = vsel %vm1934, %v5625, %v5192
        %v5658 = vsel %vm1934, %v5626, %v5194
        %v5659 = vsel %vm1934, %v5627, %v5196
        %v5660 = vsel %vm1934, %v5628, %v5198
        %v5661 = vsel %vm1934, %v5629, %v5200
        %v5662 = vsel %vm1934, %v5630, %v5202
        %v5663 = vsel %vm1934, %v5631, %v5204
        %v5664 = vsel %vm1934, %v5632, %v5206
        %v5665 = vsel %vm1934, %v5633, %v5208
        %v5666 = vsel %vm1934, %v5634, %v5210
        %v5667 = vsel %vm1934, %v5635, %v5212
        %v5668 = vsel %vm1934, %v5636, %v5210
        %v5669 = vsel %vm1934, %v5637, %v5212
        %v5670 = vsel %vm1967, %v5638, %v5244
        %v5671 = vsel %vm1967, %v5639, %v5246
        %v5672 = vsel %vm1967, %v5640, %v5248
        %v5673 = vsel %vm1967, %v5641, %v5250
        %v5674 = vsel %vm1967, %v5642, %v5252
        %v5675 = vsel %vm1967, %v5643, %v5254
        %v5676 = vsel %vm1967, %v5644, %v5256
        %v5677 = vsel %vm1967, %v5645, %v5258
        %v5678 = vsel %vm1967, %v5646, %v5260
        %v5679 = vsel %vm1967, %v5647, %v5262
        %v5680 = vsel %vm1967, %v5648, %v5264
        %v5681 = vsel %vm1967, %v5649, %v5266
        %v5682 = vsel %vm1967, %v5650, %v5268
        %v5683 = vsel %vm1967, %v5651, %v5270
        %v5684 = vsel %vm1967, %v5652, %v5272
        %v5685 = vsel %vm1967, %v5653, %v5274
        %v5686 = vsel %vm1967, %v5654, %v5276
        %v5687 = vsel %vm1967, %v5655, %v5278
        %v5688 = vsel %vm1967, %v5656, %v5280
        %v5689 = vsel %vm1967, %v5657, %v5282
        %v5690 = vsel %vm1967, %v5658, %v5284
        %v5691 = vsel %vm1967, %v5659, %v5286
        %v5692 = vsel %vm1967, %v5660, %v5288
        %v5693 = vsel %vm1967, %v5661, %v5290
        %v5694 = vsel %vm1967, %v5662, %v5292
        %v5695 = vsel %vm1967, %v5663, %v5294
        %v5696 = vsel %vm1967, %v5664, %v5296
        %v5697 = vsel %vm1967, %v5665, %v5298
        %v5698 = vsel %vm1967, %v5666, %v5300
        %v5699 = vsel %vm1967, %v5667, %v5300
        %v5700 = vsel %vm1967, %v5668, %v5300
        %v5701 = vsel %vm1967, %v5669, %v5300
        %v5702 = vsel %vm2000, %v5670, %v5331
        %v5703 = vsel %vm2000, %v5671, %v5333
        %v5704 = vsel %vm2000, %v5672, %v5335
        %v5705 = vsel %vm2000, %v5673, %v5337
        %v5706 = vsel %vm2000, %v5674, %v5339
        %v5707 = vsel %vm2000, %v5675, %v5341
        %v5708 = vsel %vm2000, %v5676, %v5343
        %v5709 = vsel %vm2000, %v5677, %v5345
        %v5710 = vsel %vm2000, %v5678, %v5347
        %v5711 = vsel %vm2000, %v5679, %v5349
        %v5712 = vsel %vm2000, %v5680, %v5351
        %v5713 = vsel %vm2000, %v5681, %v5353
        %v5714 = vsel %vm2000, %v5682, %v5355
        %v5715 = vsel %vm2000, %v5683, %v5357
        %v5716 = vsel %vm2000, %v5684, %v5359
        %v5717 = vsel %vm2000, %v5685, %v5361
        %v5718 = vsel %vm2000, %v5686, %v5363
        %v5719 = vsel %vm2000, %v5687, %v5365
        %v5720 = vsel %vm2000, %v5688, %v5367
        %v5721 = vsel %vm2000, %v5689, %v5369
        %v5722 = vsel %vm2000, %v5690, %v5371
        %v5723 = vsel %vm2000, %v5691, %v5373
        %v5724 = vsel %vm2000, %v5692, %v5375
        %v5725 = vsel %vm2000, %v5693, %v5377
        %v5726 = vsel %vm2000, %v5694, %v5379
        %v5727 = vsel %vm2000, %v5695, %v5381
        %v5728 = vsel %vm2000, %v5696, %v5383
        %v5729 = vsel %vm2000, %v5697, %v5385
        %v5730 = vsel %vm2000, %v5698, %v5387
        %v5731 = vsel %vm2000, %v5699, %v5389
        %v5732 = vsel %vm2000, %v5700, %v5387
        %v5733 = vsel %vm2000, %v5701, %v5389
        %v5734 = vsel %vm2033, %v5702, %v5421
        %v5735 = vsel %vm2033, %v5703, %v5423
        %v5736 = vsel %vm2033, %v5704, %v5425
        %v5737 = vsel %vm2033, %v5705, %v5427
        %v5738 = vsel %vm2033, %v5706, %v5429
        %v5739 = vsel %vm2033, %v5707, %v5431
        %v5740 = vsel %vm2033, %v5708, %v5433
        %v5741 = vsel %vm2033, %v5709, %v5435
        %v5742 = vsel %vm2033, %v5710, %v5437
        %v5743 = vsel %vm2033, %v5711, %v5439
        %v5744 = vsel %vm2033, %v5712, %v5441
        %v5745 = vsel %vm2033, %v5713, %v5443
        %v5746 = vsel %vm2033, %v5714, %v5445
        %v5747 = vsel %vm2033, %v5715, %v5447
        %v5748 = vsel %vm2033, %v5716, %v5449
        %v5749 = vsel %vm2033, %v5717, %v5451
        %v5750 = vsel %vm2033, %v5718, %v5453
        %v5751 = vsel %vm2033, %v5719, %v5455
        %v5752 = vsel %vm2033, %v5720, %v5457
        %v5753 = vsel %vm2033, %v5721, %v5459
        %v5754 = vsel %vm2033, %v5722, %v5461
        %v5755 = vsel %vm2033, %v5723, %v5463
        %v5756 = vsel %vm2033, %v5724, %v5465
        %v5757 = vsel %vm2033, %v5725, %v5467
        %v5758 = vsel %vm2033, %v5726, %v5469
        %v5759 = vsel %vm2033, %v5727, %v5471
        %v5760 = vsel %vm2033, %v5728, %v5473
        %v5761 = vsel %vm2033, %v5729, %v5475
        %v5762 = vsel %vm2033, %v5730, %v5477
        %v5763 = vsel %vm2033, %v5731, %v5479
        %v5764 = vsel %vm2033, %v5732, %v5477
        %v5765 = vsel %vm2033, %v5733, %v5479
        %5798 = vrot.lane.b32.xlu0 %v5734, 64
        %v5799 = vpop.permute.xlu0 %5798
        %5800 = vrot.lane.b32.xlu0 %v5735, 64
        %v5801 = vpop.permute.xlu0 %5800
        %5802 = vrot.lane.b32.xlu0 %v5736, 64
        %v5803 = vpop.permute.xlu0 %5802
        %5804 = vrot.lane.b32.xlu0 %v5737, 64
        %v5805 = vpop.permute.xlu0 %5804
        %5806 = vrot.lane.b32.xlu0 %v5738, 64
        %v5807 = vpop.permute.xlu0 %5806
        %5808 = vrot.lane.b32.xlu0 %v5739, 64
        %v5809 = vpop.permute.xlu0 %5808
        %5810 = vrot.lane.b32.xlu0 %v5740, 64
        %v5811 = vpop.permute.xlu0 %5810
        %5812 = vrot.lane.b32.xlu0 %v5741, 64
        %v5813 = vpop.permute.xlu0 %5812
        %5814 = vrot.lane.b32.xlu0 %v5742, 64
        %v5815 = vpop.permute.xlu0 %5814
        %5816 = vrot.lane.b32.xlu0 %v5743, 64
        %v5817 = vpop.permute.xlu0 %5816
        %5818 = vrot.lane.b32.xlu0 %v5744, 64
        %v5819 = vpop.permute.xlu0 %5818
        %5820 = vrot.lane.b32.xlu0 %v5745, 64
        %v5821 = vpop.permute.xlu0 %5820
        %5822 = vrot.lane.b32.xlu0 %v5746, 64
        %v5823 = vpop.permute.xlu0 %5822
        %5824 = vrot.lane.b32.xlu0 %v5747, 64
        %v5825 = vpop.permute.xlu0 %5824
        %5826 = vrot.lane.b32.xlu0 %v5748, 64
        %v5827 = vpop.permute.xlu0 %5826
        %5828 = vrot.lane.b32.xlu0 %v5749, 64
        %v5829 = vpop.permute.xlu0 %5828
        %5830 = vrot.lane.b32.xlu0 %v5750, 64
        %v5831 = vpop.permute.xlu0 %5830
        %5832 = vrot.lane.b32.xlu0 %v5751, 64
        %v5833 = vpop.permute.xlu0 %5832
        %5834 = vrot.lane.b32.xlu0 %v5752, 64
        %v5835 = vpop.permute.xlu0 %5834
        %5836 = vrot.lane.b32.xlu0 %v5753, 64
        %v5837 = vpop.permute.xlu0 %5836
        %5838 = vrot.lane.b32.xlu0 %v5754, 64
        %v5839 = vpop.permute.xlu0 %5838
        %5840 = vrot.lane.b32.xlu0 %v5755, 64
        %v5841 = vpop.permute.xlu0 %5840
        %5842 = vrot.lane.b32.xlu0 %v5756, 64
        %v5843 = vpop.permute.xlu0 %5842
        %5844 = vrot.lane.b32.xlu0 %v5757, 64
        %v5845 = vpop.permute.xlu0 %5844
        %5846 = vrot.lane.b32.xlu0 %v5758, 64
        %v5847 = vpop.permute.xlu0 %5846
        %5848 = vrot.lane.b32.xlu0 %v5759, 64
        %v5849 = vpop.permute.xlu0 %5848
        %5850 = vrot.lane.b32.xlu0 %v5760, 64
        %v5851 = vpop.permute.xlu0 %5850
        %5852 = vrot.lane.b32.xlu0 %v5761, 64
        %v5853 = vpop.permute.xlu0 %5852
        %5854 = vrot.lane.b32.xlu0 %v5762, 64
        %v5855 = vpop.permute.xlu0 %5854
        %5856 = vrot.lane.b32.xlu0 %v5763, 64
        %v5857 = vpop.permute.xlu0 %5856
        %5858 = vrot.lane.b32.xlu0 %v5764, 64
        %v5859 = vpop.permute.xlu0 %5858
        %5860 = vrot.lane.b32.xlu0 %v5765, 64
        %v5861 = vpop.permute.xlu0 %5860
        %vm5894 = vcmask 523264
        %v5895 = vsel %vm5894, %v4833, %v5799
        %v5896 = vsel %vm5894, %v4834, %v5801
        %v5897 = vsel %vm5894, %v4835, %v5803
        %v5898 = vsel %vm5894, %v4836, %v5805
        %v5899 = vsel %vm5894, %v4837, %v5807
        %v5900 = vsel %vm5894, %v4838, %v5809
        %v5901 = vsel %vm5894, %v4839, %v5811
        %v5902 = vsel %vm5894, %v4840, %v5813
        %v5903 = vsel %vm5894, %v4841, %v5815
        %v5904 = vsel %vm5894, %v4842, %v5817
        %v5905 = vsel %vm5894, %v4843, %v5819
        %v5906 = vsel %vm5894, %v4844, %v5821
        %v5907 = vsel %vm5894, %v4845, %v5823
        %v5908 = vsel %vm5894, %v4846, %v5825
        %v5909 = vsel %vm5894, %v4847, %v5827
        %v5910 = vsel %vm5894, %v4848, %v5829
        %v5911 = vsel %vm5894, %v4849, %v5831
        %v5912 = vsel %vm5894, %v4850, %v5833
        %v5913 = vsel %vm5894, %v4851, %v5835
        %v5914 = vsel %vm5894, %v4852, %v5837
        %v5915 = vsel %vm5894, %v4853, %v5839
        %v5916 = vsel %vm5894, %v4854, %v5841
        %v5917 = vsel %vm5894, %v4855, %v5843
        %v5918 = vsel %vm5894, %v4856, %v5845
        %v5919 = vsel %vm5894, %v4857, %v5847
        %v5920 = vsel %vm5894, %v4858, %v5849
        %v5921 = vsel %vm5894, %v4859, %v5851
        %v5922 = vsel %vm5894, %v4860, %v5853
        %v5923 = vsel %vm5894, %v4861, %v5855
        %v5924 = vsel %vm5894, %v4862, %v5857
        %v5925 = vsel %vm5894, %v4863, %v5859
        %v5926 = vsel %vm5894, %v4864, %v5861
        %v5928 = vperm.slane %v2327, 0
        %vm5930 = vcmask 818176
        %v5932 = vsel %vm5930, %v5895, 0
        %v5935 = vsel %vm5930, %v5896, 0
        %v5938 = vsel %vm5930, %v5897, 0
        %v5941 = vsel %vm5930, %v5898, 0
        %v5944 = vsel %vm5930, %v5899, 0
        %v5947 = vsel %vm5930, %v5900, 0
        %v5950 = vsel %vm5930, %v5901, 0
        %v5953 = vsel %vm5930, %v5902, 0
        %v5956 = vsel %vm5930, %v5903, 0
        %v5959 = vsel %vm5930, %v5904, 0
        %v5962 = vsel %vm5930, %v5905, 0
        %v5965 = vsel %vm5930, %v5906, 0
        %v5968 = vsel %vm5930, %v5907, 0
        %v5971 = vsel %vm5930, %v5908, 0
        %v5974 = vsel %vm5930, %v5909, 0
        %v5977 = vsel %vm5930, %v5910, 0
        %v5980 = vsel %vm5930, %v5911, 0
        %v5983 = vsel %vm5930, %v5912, 0
        %v5986 = vsel %vm5930, %v5913, 0
        %v5989 = vsel %vm5930, %v5914, 0
        %v5992 = vsel %vm5930, %v5915, 0
        %v5995 = vsel %vm5930, %v5916, 0
        %v5998 = vsel %vm5930, %v5917, 0
        %v6001 = vsel %vm5930, %v5918, 0
        %v6004 = vsel %vm5930, %v5919, 0
        %v6007 = vsel %vm5930, %v5920, 0
        %v6010 = vsel %vm5930, %v5921, 0
        %v6013 = vsel %vm5930, %v5922, 0
        %v6016 = vsel %vm5930, %v5923, 0
        %v6019 = vsel %vm5930, %v5924, 0
        %v6022 = vsel %vm5930, %v5925, 0
        %v6025 = vsel %vm5930, %v5926, 0
        %v6028 = vsel %vm465, %v2326, 0
        %6030 = vmatpush.msra.mxu0 0.0
        %6031 = vmatpush.msra.mxu0 0.0
        %6032 = vmatpush.msra.mxu0 0.0
        %6033 = vmatpush.msra.mxu0 %v6028
        %6034 = vmatpush.msra.mxu0 %v2325
        %6035 = vmatpush.msra.mxu0 %v2324
        %6036 = vmatpush.msra.mxu0 %v2323
        %6037 = vmatpush.msra.mxu0 %v2322
        %6038 = vmatpush.msra.mxu0 %v2321
        %6039 = vmatpush.msra.mxu0 %v2320
        %6040 = vmatpush.msra.mxu0 %v2319
        %6041 = vmatpush.msra.mxu0 %v2318
        %6042 = vmatpush.msra.mxu0 %v2317
        %6043 = vmatpush.msra.mxu0 %v2316
        %6044 = vmatpush.msra.mxu0 %v2315
        %6045 = vmatpush.msra.mxu0 %v2314
        %6046 = vmatmul.f32.gmra.mxu0 %v5932
        %v6047 = vpop.f32.mrf.mxu0
        %v6048 = vadd.f32 %v5928, %v6047
        %6049 = vmatmul.f32.gmra.mxu0 %v5935
        %v6050 = vpop.f32.mrf.mxu0
        %v6051 = vadd.f32 %v5928, %v6050
        %6052 = vmatmul.f32.gmra.mxu0 %v5938
        %v6053 = vpop.f32.mrf.mxu0
        %v6054 = vadd.f32 %v5928, %v6053
        %6055 = vmatmul.f32.gmra.mxu0 %v5941
        %v6056 = vpop.f32.mrf.mxu0
        %v6057 = vadd.f32 %v5928, %v6056
        %6058 = vmatmul.f32.gmra.mxu0 %v5944
        %v6059 = vpop.f32.mrf.mxu0
        %v6060 = vadd.f32 %v5928, %v6059
        %6061 = vmatmul.f32.gmra.mxu0 %v5947
        %v6062 = vpop.f32.mrf.mxu0
        %v6063 = vadd.f32 %v5928, %v6062
        %6064 = vmatmul.f32.gmra.mxu0 %v5950
        %v6065 = vpop.f32.mrf.mxu0
        %v6066 = vadd.f32 %v5928, %v6065
        %6067 = vmatmul.f32.gmra.mxu0 %v5953
        %v6068 = vpop.f32.mrf.mxu0
        %v6069 = vadd.f32 %v5928, %v6068
        %6070 = vmatmul.f32.gmra.mxu0 %v5956
        %v6071 = vpop.f32.mrf.mxu0
        %v6072 = vadd.f32 %v5928, %v6071
        %6073 = vmatmul.f32.gmra.mxu0 %v5959
        %v6074 = vpop.f32.mrf.mxu0
        %v6075 = vadd.f32 %v5928, %v6074
        %6076 = vmatmul.f32.gmra.mxu0 %v5962
        %v6077 = vpop.f32.mrf.mxu0
        %v6078 = vadd.f32 %v5928, %v6077
        %6079 = vmatmul.f32.gmra.mxu0 %v5965
        %v6080 = vpop.f32.mrf.mxu0
        %v6081 = vadd.f32 %v5928, %v6080
        %6082 = vmatmul.f32.gmra.mxu0 %v5968
        %v6083 = vpop.f32.mrf.mxu0
        %v6084 = vadd.f32 %v5928, %v6083
        %6085 = vmatmul.f32.gmra.mxu0 %v5971
        %v6086 = vpop.f32.mrf.mxu0
        %v6087 = vadd.f32 %v5928, %v6086
        %6088 = vmatmul.f32.gmra.mxu0 %v5974
        %v6089 = vpop.f32.mrf.mxu0
        %v6090 = vadd.f32 %v5928, %v6089
        %6091 = vmatmul.f32.gmra.mxu0 %v5977
        %v6092 = vpop.f32.mrf.mxu0
        %v6093 = vadd.f32 %v5928, %v6092
        %6094 = vmatmul.f32.gmra.mxu0 %v5980
        %v6095 = vpop.f32.mrf.mxu0
        %v6096 = vadd.f32 %v5928, %v6095
        %6097 = vmatmul.f32.gmra.mxu0 %v5983
        %v6098 = vpop.f32.mrf.mxu0
        %v6099 = vadd.f32 %v5928, %v6098
        %6100 = vmatmul.f32.gmra.mxu0 %v5986
        %v6101 = vpop.f32.mrf.mxu0
        %v6102 = vadd.f32 %v5928, %v6101
        %6103 = vmatmul.f32.gmra.mxu0 %v5989
        %v6104 = vpop.f32.mrf.mxu0
        %v6105 = vadd.f32 %v5928, %v6104
        %6106 = vmatmul.f32.gmra.mxu0 %v5992
        %v6107 = vpop.f32.mrf.mxu0
        %v6108 = vadd.f32 %v5928, %v6107
        %6109 = vmatmul.f32.gmra.mxu0 %v5995
        %v6110 = vpop.f32.mrf.mxu0
        %v6111 = vadd.f32 %v5928, %v6110
        %6112 = vmatmul.f32.gmra.mxu0 %v5998
        %v6113 = vpop.f32.mrf.mxu0
        %v6114 = vadd.f32 %v5928, %v6113
        %6115 = vmatmul.f32.gmra.mxu0 %v6001
        %v6116 = vpop.f32.mrf.mxu0
        %v6117 = vadd.f32 %v5928, %v6116
        %6118 = vmatmul.f32.gmra.mxu0 %v6004
        %v6119 = vpop.f32.mrf.mxu0
        %v6120 = vadd.f32 %v5928, %v6119
        %6121 = vmatmul.f32.gmra.mxu0 %v6007
        %v6122 = vpop.f32.mrf.mxu0
        %v6123 = vadd.f32 %v5928, %v6122
        %6124 = vmatmul.f32.gmra.mxu0 %v6010
        %v6125 = vpop.f32.mrf.mxu0
        %v6126 = vadd.f32 %v5928, %v6125
        %6127 = vmatmul.f32.gmra.mxu0 %v6013
        %v6128 = vpop.f32.mrf.mxu0
        %v6129 = vadd.f32 %v5928, %v6128
        %6130 = vmatmul.f32.gmra.mxu0 %v6016
        %v6131 = vpop.f32.mrf.mxu0
        %v6132 = vadd.f32 %v5928, %v6131
        %6133 = vmatmul.f32.gmra.mxu0 %v6019
        %v6134 = vpop.f32.mrf.mxu0
        %v6135 = vadd.f32 %v5928, %v6134
        %6136 = vmatmul.f32.gmra.mxu0 %v6022
        %v6137 = vpop.f32.mrf.mxu0
        %v6138 = vadd.f32 %v5928, %v6137
        %6139 = vmatmul.f32.gmra.mxu0 %v6025
        %v6140 = vpop.f32.mrf.mxu0
        %v6141 = vadd.f32 %v5928, %v6140
        %6142 = vdwg.mxu0
        %v6143 = vmax.f32 %v6048, 0.0
        %v6144 = vmax.f32 %v6051, 0.0
        %v6145 = vmax.f32 %v6054, 0.0
        %v6146 = vmax.f32 %v6057, 0.0
        %v6147 = vmax.f32 %v6060, 0.0
        %v6148 = vmax.f32 %v6063, 0.0
        %v6149 = vmax.f32 %v6066, 0.0
        %v6150 = vmax.f32 %v6069, 0.0
        %v6151 = vmax.f32 %v6072, 0.0
        %v6152 = vmax.f32 %v6075, 0.0
        %v6153 = vmax.f32 %v6078, 0.0
        %v6154 = vmax.f32 %v6081, 0.0
        %v6155 = vmax.f32 %v6084, 0.0
        %v6156 = vmax.f32 %v6087, 0.0
        %v6157 = vmax.f32 %v6090, 0.0
        %v6158 = vmax.f32 %v6093, 0.0
        %v6159 = vmax.f32 %v6096, 0.0
        %v6160 = vmax.f32 %v6099, 0.0
        %v6161 = vmax.f32 %v6102, 0.0
        %v6162 = vmax.f32 %v6105, 0.0
        %v6163 = vmax.f32 %v6108, 0.0
        %v6164 = vmax.f32 %v6111, 0.0
        %v6165 = vmax.f32 %v6114, 0.0
        %v6166 = vmax.f32 %v6117, 0.0
        %v6167 = vmax.f32 %v6120, 0.0
        %v6168 = vmax.f32 %v6123, 0.0
        %v6169 = vmax.f32 %v6126, 0.0
        %v6170 = vmax.f32 %v6129, 0.0
        %v6171 = vmax.f32 %v6132, 0.0
        %v6172 = vmax.f32 %v6135, 0.0
        %v6173 = vmax.f32 %v6138, 0.0
        %v6174 = vmax.f32 %v6141, 0.0
        %v6175 = vrot.slane %v331, 7
        %v6176 = vrot.slane %v333, 7
        %v6177 = vrot.slane %v335, 7
        %v6178 = vrot.slane %v337, 7
        %v6179 = vrot.slane %v339, 7
        %v6180 = vrot.slane %v341, 7
        %v6181 = vrot.slane %v343, 7
        %v6182 = vrot.slane %v345, 7
        %v6183 = vrot.slane %v347, 7
        %v6184 = vrot.slane %v349, 7
        %v6185 = vrot.slane %v351, 7
        %v6186 = vrot.slane %v353, 7
        %v6187 = vrot.slane %v355, 7
        %v6188 = vrot.slane %v357, 7
        %v6189 = vrot.slane %v359, 7
        %v6190 = vrot.slane %v332, 7
        %v6191 = vrot.slane %v334, 7
        %v6192 = vrot.slane %v336, 7
        %v6193 = vrot.slane %v338, 7
        %v6194 = vrot.slane %v340, 7
        %v6195 = vrot.slane %v342, 7
        %v6196 = vrot.slane %v344, 7
        %v6197 = vrot.slane %v346, 7
        %v6198 = vrot.slane %v348, 7
        %v6199 = vrot.slane %v350, 7
        %v6200 = vrot.slane %v352, 7
        %v6201 = vrot.slane %v354, 7
        %v6202 = vrot.slane %v356, 7
        %v6203 = vrot.slane %v358, 7
        %v6204 = vrot.slane %v360, 7
        %v6205 = vsel %vm773, %v6175, %v6190
        %v6206 = vsel %vm773, %v6176, %v6191
        %v6207 = vsel %vm773, %v6177, %v6192
        %v6208 = vsel %vm773, %v6178, %v6193
        %v6209 = vsel %vm773, %v6179, %v6194
        %v6210 = vsel %vm773, %v6180, %v6195
        %v6211 = vsel %vm773, %v6181, %v6196
        %v6212 = vsel %vm773, %v6182, %v6197
        %v6213 = vsel %vm773, %v6183, %v6198
        %v6214 = vsel %vm773, %v6184, %v6199
        %v6215 = vsel %vm773, %v6185, %v6200
        %v6216 = vsel %vm773, %v6186, %v6201
        %v6217 = vsel %vm773, %v6187, %v6202
        %v6218 = vsel %vm773, %v6188, %v6203
        %v6219 = vsel %vm773, %v6189, %v6204
        %v6220 = vsel %vm773, %v6190, %v6175
        %v6221 = vsel %vm773, %v6191, %v6176
        %v6222 = vsel %vm773, %v6192, %v6177
        %v6223 = vsel %vm773, %v6193, %v6178
        %v6224 = vsel %vm773, %v6194, %v6179
        %v6225 = vsel %vm773, %v6195, %v6180
        %v6226 = vsel %vm773, %v6196, %v6181
        %v6227 = vsel %vm773, %v6197, %v6182
        %v6228 = vsel %vm773, %v6198, %v6183
        %v6229 = vsel %vm773, %v6199, %v6184
        %v6230 = vsel %vm773, %v6200, %v6185
        %v6231 = vsel %vm773, %v6201, %v6186
        %v6232 = vsel %vm773, %v6202, %v6187
        %v6233 = vsel %vm773, %v6203, %v6188
        %v6234 = vsel %vm773, %v6204, %v6189
        %v6235 = vsel %vm808, -inf, -inf
        %v6236 = vsel %vm809, -inf, -inf
        %v6237 = vsel %vm808, %v6220, -inf
        %v6238 = vsel %vm809, %v6205, -inf
        %v6239 = vsel %vm808, %v6221, -inf
        %v6240 = vsel %vm809, %v6206, -inf
        %v6241 = vsel %vm808, %v6222, -inf
        %v6242 = vsel %vm809, %v6207, -inf
        %v6243 = vsel %vm808, %v6223, -inf
        %v6244 = vsel %vm809, %v6208, -inf
        %v6245 = vsel %vm808, %v6224, -inf
        %v6246 = vsel %vm809, %v6209, -inf
        %v6247 = vsel %vm808, %v6225, -inf
        %v6248 = vsel %vm809, %v6210, -inf
        %v6249 = vsel %vm808, %v6226, -inf
        %v6250 = vsel %vm809, %v6211, -inf
        %v6251 = vsel %vm808, %v6227, -inf
        %v6252 = vsel %vm809, %v6212, -inf
        %v6253 = vsel %vm808, %v6228, -inf
        %v6254 = vsel %vm809, %v6213, -inf
        %v6255 = vsel %vm808, %v6229, -inf
        %v6256 = vsel %vm809, %v6214, -inf
        %v6257 = vsel %vm808, %v6230, -inf
        %v6258 = vsel %vm809, %v6215, -inf
        %v6259 = vsel %vm808, %v6231, -inf
        %v6260 = vsel %vm809, %v6216, -inf
        %v6261 = vsel %vm808, %v6232, -inf
        %v6262 = vsel %vm809, %v6217, -inf
        %v6263 = vsel %vm808, %v6233, -inf
        %v6264 = vsel %vm809, %v6218, -inf
        %v6265 = vsel %vm808, %v6234, -inf
        %v6266 = vsel %vm809, %v6219, -inf
        %v6267 = vmax.f32 %v331, %v6235
        %v6268 = vmax.f32 %v332, %v6236
        %v6269 = vmax.f32 %v333, %v6237
        %v6270 = vmax.f32 %v334, %v6238
        %v6271 = vmax.f32 %v335, %v6239
        %v6272 = vmax.f32 %v336, %v6240
        %v6273 = vmax.f32 %v337, %v6241
        %v6274 = vmax.f32 %v338, %v6242
        %v6275 = vmax.f32 %v339, %v6243
        %v6276 = vmax.f32 %v340, %v6244
        %v6277 = vmax.f32 %v341, %v6245
        %v6278 = vmax.f32 %v342, %v6246
        %v6279 = vmax.f32 %v343, %v6247
        %v6280 = vmax.f32 %v344, %v6248
        %v6281 = vmax.f32 %v345, %v6249
        %v6282 = vmax.f32 %v346, %v6250
        %v6283 = vmax.f32 %v347, %v6251
        %v6284 = vmax.f32 %v348, %v6252
        %v6285 = vmax.f32 %v349, %v6253
        %v6286 = vmax.f32 %v350, %v6254
        %v6287 = vmax.f32 %v351, %v6255
        %v6288 = vmax.f32 %v352, %v6256
        %v6289 = vmax.f32 %v353, %v6257
        %v6290 = vmax.f32 %v354, %v6258
        %v6291 = vmax.f32 %v355, %v6259
        %v6292 = vmax.f32 %v356, %v6260
        %v6293 = vmax.f32 %v357, %v6261
        %v6294 = vmax.f32 %v358, %v6262
        %v6295 = vmax.f32 %v359, %v6263
        %v6296 = vmax.f32 %v360, %v6264
        %v6297 = vmax.f32 %v361, %v6265
        %v6298 = vmax.f32 %v362, %v6266
        %v6299 = vmax.f32 %v6269, %v331
        %v6300 = vmax.f32 %v6270, %v332
        %v6301 = vmax.f32 %v6271, %v333
        %v6302 = vmax.f32 %v6272, %v334
        %v6303 = vmax.f32 %v6273, %v335
        %v6304 = vmax.f32 %v6274, %v336
        %v6305 = vmax.f32 %v6275, %v337
        %v6306 = vmax.f32 %v6276, %v338
        %v6307 = vmax.f32 %v6277, %v339
        %v6308 = vmax.f32 %v6278, %v340
        %v6309 = vmax.f32 %v6279, %v341
        %v6310 = vmax.f32 %v6280, %v342
        %v6311 = vmax.f32 %v6281, %v343
        %v6312 = vmax.f32 %v6282, %v344
        %v6313 = vmax.f32 %v6283, %v345
        %v6314 = vmax.f32 %v6284, %v346
        %v6315 = vmax.f32 %v6285, %v347
        %v6316 = vmax.f32 %v6286, %v348
        %v6317 = vmax.f32 %v6287, %v349
        %v6318 = vmax.f32 %v6288, %v350
        %v6319 = vmax.f32 %v6289, %v351
        %v6320 = vmax.f32 %v6290, %v352
        %v6321 = vmax.f32 %v6291, %v353
        %v6322 = vmax.f32 %v6292, %v354
        %v6323 = vmax.f32 %v6293, %v355
        %v6324 = vmax.f32 %v6294, %v356
        %v6325 = vmax.f32 %v6295, %v357
        %v6326 = vmax.f32 %v6296, %v358
        %v6327 = vmax.f32 %v6297, %v359
        %v6328 = vmax.f32 %v6298, %v360
        %v6329 = vrot.slane %v331, 1
        %v6330 = vrot.slane %v333, 1
        %v6331 = vrot.slane %v335, 1
        %v6332 = vrot.slane %v337, 1
        %v6333 = vrot.slane %v339, 1
        %v6334 = vrot.slane %v341, 1
        %v6335 = vrot.slane %v343, 1
        %v6336 = vrot.slane %v345, 1
        %v6337 = vrot.slane %v347, 1
        %v6338 = vrot.slane %v349, 1
        %v6339 = vrot.slane %v351, 1
        %v6340 = vrot.slane %v353, 1
        %v6341 = vrot.slane %v355, 1
        %v6342 = vrot.slane %v357, 1
        %v6343 = vrot.slane %v359, 1
        %v6344 = vrot.slane %v332, 1
        %v6345 = vrot.slane %v334, 1
        %v6346 = vrot.slane %v336, 1
        %v6347 = vrot.slane %v338, 1
        %v6348 = vrot.slane %v340, 1
        %v6349 = vrot.slane %v342, 1
        %v6350 = vrot.slane %v344, 1
        %v6351 = vrot.slane %v346, 1
        %v6352 = vrot.slane %v348, 1
        %v6353 = vrot.slane %v350, 1
        %v6354 = vrot.slane %v352, 1
        %v6355 = vrot.slane %v354, 1
        %v6356 = vrot.slane %v356, 1
        %v6357 = vrot.slane %v358, 1
        %v6358 = vrot.slane %v360, 1
        %v6359 = vsel %vm872, %v6329, %v6344
        %v6360 = vsel %vm872, %v6330, %v6345
        %v6361 = vsel %vm872, %v6331, %v6346
        %v6362 = vsel %vm872, %v6332, %v6347
        %v6363 = vsel %vm872, %v6333, %v6348
        %v6364 = vsel %vm872, %v6334, %v6349
        %v6365 = vsel %vm872, %v6335, %v6350
        %v6366 = vsel %vm872, %v6336, %v6351
        %v6367 = vsel %vm872, %v6337, %v6352
        %v6368 = vsel %vm872, %v6338, %v6353
        %v6369 = vsel %vm872, %v6339, %v6354
        %v6370 = vsel %vm872, %v6340, %v6355
        %v6371 = vsel %vm872, %v6341, %v6356
        %v6372 = vsel %vm872, %v6342, %v6357
        %v6373 = vsel %vm872, %v6343, %v6358
        %v6374 = vsel %vm872, %v6344, %v6329
        %v6375 = vsel %vm872, %v6345, %v6330
        %v6376 = vsel %vm872, %v6346, %v6331
        %v6377 = vsel %vm872, %v6347, %v6332
        %v6378 = vsel %vm872, %v6348, %v6333
        %v6379 = vsel %vm872, %v6349, %v6334
        %v6380 = vsel %vm872, %v6350, %v6335
        %v6381 = vsel %vm872, %v6351, %v6336
        %v6382 = vsel %vm872, %v6352, %v6337
        %v6383 = vsel %vm872, %v6353, %v6338
        %v6384 = vsel %vm872, %v6354, %v6339
        %v6385 = vsel %vm872, %v6355, %v6340
        %v6386 = vsel %vm872, %v6356, %v6341
        %v6387 = vsel %vm872, %v6357, %v6342
        %v6388 = vsel %vm872, %v6358, %v6343
        %v6389 = vsel %vm907, -inf, -inf
        %v6390 = vsel %vm908, -inf, -inf
        %v6391 = vsel %vm907, %v6359, -inf
        %v6392 = vsel %vm908, %v6374, -inf
        %v6393 = vsel %vm907, %v6360, -inf
        %v6394 = vsel %vm908, %v6375, -inf
        %v6395 = vsel %vm907, %v6361, -inf
        %v6396 = vsel %vm908, %v6376, -inf
        %v6397 = vsel %vm907, %v6362, -inf
        %v6398 = vsel %vm908, %v6377, -inf
        %v6399 = vsel %vm907, %v6363, -inf
        %v6400 = vsel %vm908, %v6378, -inf
        %v6401 = vsel %vm907, %v6364, -inf
        %v6402 = vsel %vm908, %v6379, -inf
        %v6403 = vsel %vm907, %v6365, -inf
        %v6404 = vsel %vm908, %v6380, -inf
        %v6405 = vsel %vm907, %v6366, -inf
        %v6406 = vsel %vm908, %v6381, -inf
        %v6407 = vsel %vm907, %v6367, -inf
        %v6408 = vsel %vm908, %v6382, -inf
        %v6409 = vsel %vm907, %v6368, -inf
        %v6410 = vsel %vm908, %v6383, -inf
        %v6411 = vsel %vm907, %v6369, -inf
        %v6412 = vsel %vm908, %v6384, -inf
        %v6413 = vsel %vm907, %v6370, -inf
        %v6414 = vsel %vm908, %v6385, -inf
        %v6415 = vsel %vm907, %v6371, -inf
        %v6416 = vsel %vm908, %v6386, -inf
        %v6417 = vsel %vm907, %v6372, -inf
        %v6418 = vsel %vm908, %v6387, -inf
        %v6419 = vsel %vm907, %v6373, -inf
        %v6420 = vsel %vm908, %v6388, -inf
        %v6421 = vmax.f32 %v6267, %v6389
        %v6422 = vmax.f32 %v6268, %v6390
        %v6423 = vmax.f32 %v6299, %v6391
        %v6424 = vmax.f32 %v6300, %v6392
        %v6425 = vmax.f32 %v6301, %v6393
        %v6426 = vmax.f32 %v6302, %v6394
        %v6427 = vmax.f32 %v6303, %v6395
        %v6428 = vmax.f32 %v6304, %v6396
        %v6429 = vmax.f32 %v6305, %v6397
        %v6430 = vmax.f32 %v6306, %v6398
        %v6431 = vmax.f32 %v6307, %v6399
        %v6432 = vmax.f32 %v6308, %v6400
        %v6433 = vmax.f32 %v6309, %v6401
        %v6434 = vmax.f32 %v6310, %v6402
        %v6435 = vmax.f32 %v6311, %v6403
        %v6436 = vmax.f32 %v6312, %v6404
        %v6437 = vmax.f32 %v6313, %v6405
        %v6438 = vmax.f32 %v6314, %v6406
        %v6439 = vmax.f32 %v6315, %v6407
        %v6440 = vmax.f32 %v6316, %v6408
        %v6441 = vmax.f32 %v6317, %v6409
        %v6442 = vmax.f32 %v6318, %v6410
        %v6443 = vmax.f32 %v6319, %v6411
        %v6444 = vmax.f32 %v6320, %v6412
        %v6445 = vmax.f32 %v6321, %v6413
        %v6446 = vmax.f32 %v6322, %v6414
        %v6447 = vmax.f32 %v6323, %v6415
        %v6448 = vmax.f32 %v6324, %v6416
        %v6449 = vmax.f32 %v6325, %v6417
        %v6450 = vmax.f32 %v6326, %v6418
        %v6451 = vmax.f32 %v6327, %v6419
        %v6452 = vmax.f32 %v6328, %v6420
        %v6453 = vrot.slane %v361, 7
        %v6454 = vrot.slane %v362, 7
        %v6455 = vsel %vm773, %v6453, %v6454
        %v6456 = vsel %vm773, %v6454, %v6453
        %v6457 = vsel %vm808, %v6456, -inf
        %v6458 = vsel %vm809, %v6455, -inf
        %v6459 = vmax.f32 %v6421, %v6237
        %v6460 = vmax.f32 %v6422, %v6238
        %v6461 = vmax.f32 %v6423, %v6239
        %v6462 = vmax.f32 %v6424, %v6240
        %v6463 = vmax.f32 %v6425, %v6241
        %v6464 = vmax.f32 %v6426, %v6242
        %v6465 = vmax.f32 %v6427, %v6243
        %v6466 = vmax.f32 %v6428, %v6244
        %v6467 = vmax.f32 %v6429, %v6245
        %v6468 = vmax.f32 %v6430, %v6246
        %v6469 = vmax.f32 %v6431, %v6247
        %v6470 = vmax.f32 %v6432, %v6248
        %v6471 = vmax.f32 %v6433, %v6249
        %v6472 = vmax.f32 %v6434, %v6250
        %v6473 = vmax.f32 %v6435, %v6251
        %v6474 = vmax.f32 %v6436, %v6252
        %v6475 = vmax.f32 %v6437, %v6253
        %v6476 = vmax.f32 %v6438, %v6254
        %v6477 = vmax.f32 %v6439, %v6255
        %v6478 = vmax.f32 %v6440, %v6256
        %v6479 = vmax.f32 %v6441, %v6257
        %v6480 = vmax.f32 %v6442, %v6258
        %v6481 = vmax.f32 %v6443, %v6259
        %v6482 = vmax.f32 %v6444, %v6260
        %v6483 = vmax.f32 %v6445, %v6261
        %v6484 = vmax.f32 %v6446, %v6262
        %v6485 = vmax.f32 %v6447, %v6263
        %v6486 = vmax.f32 %v6448, %v6264
        %v6487 = vmax.f32 %v6449, %v6265
        %v6488 = vmax.f32 %v6450, %v6266
        %v6489 = vmax.f32 %v6451, %v6457
        %v6490 = vmax.f32 %v6452, %v6458
        %v6491 = vrot.slane %v361, 1
        %v6492 = vrot.slane %v362, 1
        %v6493 = vsel %vm872, %v6491, %v6492
        %v6494 = vsel %vm872, %v6492, %v6491
        %v6495 = vsel %vm907, %v6493, -inf
        %v6496 = vsel %vm908, %v6494, -inf
        %v6497 = vmax.f32 %v6459, %v6391
        %v6498 = vmax.f32 %v6460, %v6392
        %v6499 = vmax.f32 %v6461, %v6393
        %v6500 = vmax.f32 %v6462, %v6394
        %v6501 = vmax.f32 %v6463, %v6395
        %v6502 = vmax.f32 %v6464, %v6396
        %v6503 = vmax.f32 %v6465, %v6397
        %v6504 = vmax.f32 %v6466, %v6398
        %v6505 = vmax.f32 %v6467, %v6399
        %v6506 = vmax.f32 %v6468, %v6400
        %v6507 = vmax.f32 %v6469, %v6401
        %v6508 = vmax.f32 %v6470, %v6402
        %v6509 = vmax.f32 %v6471, %v6403
        %v6510 = vmax.f32 %v6472, %v6404
        %v6511 = vmax.f32 %v6473, %v6405
        %v6512 = vmax.f32 %v6474, %v6406
        %v6513 = vmax.f32 %v6475, %v6407
        %v6514 = vmax.f32 %v6476, %v6408
        %v6515 = vmax.f32 %v6477, %v6409
        %v6516 = vmax.f32 %v6478, %v6410
        %v6517 = vmax.f32 %v6479, %v6411
        %v6518 = vmax.f32 %v6480, %v6412
        %v6519 = vmax.f32 %v6481, %v6413
        %v6520 = vmax.f32 %v6482, %v6414
        %v6521 = vmax.f32 %v6483, %v6415
        %v6522 = vmax.f32 %v6484, %v6416
        %v6523 = vmax.f32 %v6485, %v6417
        %v6524 = vmax.f32 %v6486, %v6418
        %v6525 = vmax.f32 %v6487, %v6419
        %v6526 = vmax.f32 %v6488, %v6420
        %v6527 = vmax.f32 %v6489, %v6495
        %v6528 = vmax.f32 %v6490, %v6496
        %v6529 = vmax.f32 %v6497, %v6239
        %v6530 = vmax.f32 %v6498, %v6240
        %v6531 = vmax.f32 %v6499, %v6241
        %v6532 = vmax.f32 %v6500, %v6242
        %v6533 = vmax.f32 %v6501, %v6243
        %v6534 = vmax.f32 %v6502, %v6244
        %v6535 = vmax.f32 %v6503, %v6245
        %v6536 = vmax.f32 %v6504, %v6246
        %v6537 = vmax.f32 %v6505, %v6247
        %v6538 = vmax.f32 %v6506, %v6248
        %v6539 = vmax.f32 %v6507, %v6249
        %v6540 = vmax.f32 %v6508, %v6250
        %v6541 = vmax.f32 %v6509, %v6251
        %v6542 = vmax.f32 %v6510, %v6252
        %v6543 = vmax.f32 %v6511, %v6253
        %v6544 = vmax.f32 %v6512, %v6254
        %v6545 = vmax.f32 %v6513, %v6255
        %v6546 = vmax.f32 %v6514, %v6256
        %v6547 = vmax.f32 %v6515, %v6257
        %v6548 = vmax.f32 %v6516, %v6258
        %v6549 = vmax.f32 %v6517, %v6259
        %v6550 = vmax.f32 %v6518, %v6260
        %v6551 = vmax.f32 %v6519, %v6261
        %v6552 = vmax.f32 %v6520, %v6262
        %v6553 = vmax.f32 %v6521, %v6263
        %v6554 = vmax.f32 %v6522, %v6264
        %v6555 = vmax.f32 %v6523, %v6265
        %v6556 = vmax.f32 %v6524, %v6266
        %v6557 = vmax.f32 %v6525, %v6457
        %v6558 = vmax.f32 %v6526, %v6458
        %v6559 = vmax.f32 %v6527, %v6235
        %v6560 = vmax.f32 %v6528, %v6236
        %v6561 = vmax.f32 %v6529, %v333
        %v6562 = vmax.f32 %v6530, %v334
        %v6563 = vmax.f32 %v6531, %v335
        %v6564 = vmax.f32 %v6532, %v336
        %v6565 = vmax.f32 %v6533, %v337
        %v6566 = vmax.f32 %v6534, %v338
        %v6567 = vmax.f32 %v6535, %v339
        %v6568 = vmax.f32 %v6536, %v340
        %v6569 = vmax.f32 %v6537, %v341
        %v6570 = vmax.f32 %v6538, %v342
        %v6571 = vmax.f32 %v6539, %v343
        %v6572 = vmax.f32 %v6540, %v344
        %v6573 = vmax.f32 %v6541, %v345
        %v6574 = vmax.f32 %v6542, %v346
        %v6575 = vmax.f32 %v6543, %v347
        %v6576 = vmax.f32 %v6544, %v348
        %v6577 = vmax.f32 %v6545, %v349
        %v6578 = vmax.f32 %v6546, %v350
        %v6579 = vmax.f32 %v6547, %v351
        %v6580 = vmax.f32 %v6548, %v352
        %v6581 = vmax.f32 %v6549, %v353
        %v6582 = vmax.f32 %v6550, %v354
        %v6583 = vmax.f32 %v6551, %v355
        %v6584 = vmax.f32 %v6552, %v356
        %v6585 = vmax.f32 %v6553, %v357
        %v6586 = vmax.f32 %v6554, %v358
        %v6587 = vmax.f32 %v6555, %v359
        %v6588 = vmax.f32 %v6556, %v360
        %v6589 = vmax.f32 %v6557, %v361
        %v6590 = vmax.f32 %v6558, %v362
        %v6591 = vmax.f32 %v6561, %v6393
        %v6592 = vmax.f32 %v6562, %v6394
        %v6593 = vmax.f32 %v6563, %v6395
        %v6594 = vmax.f32 %v6564, %v6396
        %v6595 = vmax.f32 %v6565, %v6397
        %v6596 = vmax.f32 %v6566, %v6398
        %v6597 = vmax.f32 %v6567, %v6399
        %v6598 = vmax.f32 %v6568, %v6400
        %v6599 = vmax.f32 %v6569, %v6401
        %v6600 = vmax.f32 %v6570, %v6402
        %v6601 = vmax.f32 %v6571, %v6403
        %v6602 = vmax.f32 %v6572, %v6404
        %v6603 = vmax.f32 %v6573, %v6405
        %v6604 = vmax.f32 %v6574, %v6406
        %v6605 = vmax.f32 %v6575, %v6407
        %v6606 = vmax.f32 %v6576, %v6408
        %v6607 = vmax.f32 %v6577, %v6409
        %v6608 = vmax.f32 %v6578, %v6410
        %v6609 = vmax.f32 %v6579, %v6411
        %v6610 = vmax.f32 %v6580, %v6412
        %v6611 = vmax.f32 %v6581, %v6413
        %v6612 = vmax.f32 %v6582, %v6414
        %v6613 = vmax.f32 %v6583, %v6415
        %v6614 = vmax.f32 %v6584, %v6416
        %v6615 = vmax.f32 %v6585, %v6417
        %v6616 = vmax.f32 %v6586, %v6418
        %v6617 = vmax.f32 %v6587, %v6419
        %v6618 = vmax.f32 %v6588, %v6420
        %v6619 = vmax.f32 %v6589, %v6495
        %v6620 = vmax.f32 %v6590, %v6496
        %v6621 = vmax.f32 %v6559, %v6389
        %v6622 = vmax.f32 %v6560, %v6390
        %v6623 = vld [vmem:[%s7] sm:$0xf]
        %v6624 = vld [vmem:[%s8] sm:$0x1]
        %v6626 = vperm.slane %v6624, 0
        %v6629 = vsel %vm368, %v6591, 0
        %v6632 = vsel %vm368, %v6592, 0
        %v6635 = vsel %vm368, %v6593, 0
        %v6638 = vsel %vm368, %v6594, 0
        %v6641 = vsel %vm368, %v6595, 0
        %v6644 = vsel %vm368, %v6596, 0
        %v6647 = vsel %vm368, %v6597, 0
        %v6650 = vsel %vm368, %v6598, 0
        %v6653 = vsel %vm368, %v6599, 0
        %v6656 = vsel %vm368, %v6600, 0
        %v6659 = vsel %vm368, %v6601, 0
        %v6662 = vsel %vm368, %v6602, 0
        %v6665 = vsel %vm368, %v6603, 0
        %v6668 = vsel %vm368, %v6604, 0
        %v6671 = vsel %vm368, %v6605, 0
        %v6674 = vsel %vm368, %v6606, 0
        %v6677 = vsel %vm368, %v6607, 0
        %v6680 = vsel %vm368, %v6608, 0
        %v6683 = vsel %vm368, %v6609, 0
        %v6686 = vsel %vm368, %v6610, 0
        %v6689 = vsel %vm368, %v6611, 0
        %v6692 = vsel %vm368, %v6612, 0
        %v6695 = vsel %vm368, %v6613, 0
        %v6698 = vsel %vm368, %v6614, 0
        %v6701 = vsel %vm368, %v6615, 0
        %v6704 = vsel %vm368, %v6616, 0
        %v6707 = vsel %vm368, %v6617, 0
        %v6710 = vsel %vm368, %v6618, 0
        %v6713 = vsel %vm368, %v6619, 0
        %v6716 = vsel %vm368, %v6620, 0
        %v6719 = vsel %vm368, %v6621, 0
        %v6722 = vsel %vm368, %v6622, 0
        %v6725 = vsel %vm465, %v6623, 0
        %6727 = vmatpush.msra.mxu0 0.0
        %6728 = vmatpush.msra.mxu0 0.0
        %6729 = vmatpush.msra.mxu0 0.0
        %6730 = vmatpush.msra.mxu0 0.0
        %6731 = vmatpush.msra.mxu0 0.0
        %6732 = vmatpush.msra.mxu0 0.0
        %6733 = vmatpush.msra.mxu0 0.0
        %6734 = vmatpush.msra.mxu0 0.0
        %6735 = vmatpush.msra.mxu0 0.0
        %6736 = vmatpush.msra.mxu0 0.0
        %6737 = vmatpush.msra.mxu0 0.0
        %6738 = vmatpush.msra.mxu0 0.0
        %6739 = vmatpush.msra.mxu0 0.0
        %6740 = vmatpush.msra.mxu0 0.0
        %6741 = vmatpush.msra.mxu0 0.0
        %6742 = vmatpush.msra.mxu0 %v6725
        %6743 = vmatmul.f32.gmra.mxu0 %v6629
        %v6744 = vpop.f32.mrf.mxu0
        %v6745 = vadd.f32 %v6626, %v6744
        %6746 = vmatmul.f32.gmra.mxu0 %v6632
        %v6747 = vpop.f32.mrf.mxu0
        %v6748 = vadd.f32 %v6626, %v6747
        %6749 = vmatmul.f32.gmra.mxu0 %v6635
        %v6750 = vpop.f32.mrf.mxu0
        %v6751 = vadd.f32 %v6626, %v6750
        %6752 = vmatmul.f32.gmra.mxu0 %v6638
        %v6753 = vpop.f32.mrf.mxu0
        %v6754 = vadd.f32 %v6626, %v6753
        %6755 = vmatmul.f32.gmra.mxu0 %v6641
        %v6756 = vpop.f32.mrf.mxu0
        %v6757 = vadd.f32 %v6626, %v6756
        %6758 = vmatmul.f32.gmra.mxu0 %v6644
        %v6759 = vpop.f32.mrf.mxu0
        %v6760 = vadd.f32 %v6626, %v6759
        %6761 = vmatmul.f32.gmra.mxu0 %v6647
        %v6762 = vpop.f32.mrf.mxu0
        %v6763 = vadd.f32 %v6626, %v6762
        %6764 = vmatmul.f32.gmra.mxu0 %v6650
        %v6765 = vpop.f32.mrf.mxu0
        %v6766 = vadd.f32 %v6626, %v6765
        %6767 = vmatmul.f32.gmra.mxu0 %v6653
        %v6768 = vpop.f32.mrf.mxu0
        %v6769 = vadd.f32 %v6626, %v6768
        %6770 = vmatmul.f32.gmra.mxu0 %v6656
        %v6771 = vpop.f32.mrf.mxu0
        %v6772 = vadd.f32 %v6626, %v6771
        %6773 = vmatmul.f32.gmra.mxu0 %v6659
        %v6774 = vpop.f32.mrf.mxu0
        %v6775 = vadd.f32 %v6626, %v6774
        %6776 = vmatmul.f32.gmra.mxu0 %v6662
        %v6777 = vpop.f32.mrf.mxu0
        %v6778 = vadd.f32 %v6626, %v6777
        %6779 = vmatmul.f32.gmra.mxu0 %v6665
        %v6780 = vpop.f32.mrf.mxu0
        %v6781 = vadd.f32 %v6626, %v6780
        %6782 = vmatmul.f32.gmra.mxu0 %v6668
        %v6783 = vpop.f32.mrf.mxu0
        %v6784 = vadd.f32 %v6626, %v6783
        %6785 = vmatmul.f32.gmra.mxu0 %v6671
        %v6786 = vpop.f32.mrf.mxu0
        %v6787 = vadd.f32 %v6626, %v6786
        %6788 = vmatmul.f32.gmra.mxu0 %v6674
        %v6789 = vpop.f32.mrf.mxu0
        %v6790 = vadd.f32 %v6626, %v6789
        %6791 = vmatmul.f32.gmra.mxu0 %v6677
        %v6792 = vpop.f32.mrf.mxu0
        %v6793 = vadd.f32 %v6626, %v6792
        %6794 = vmatmul.f32.gmra.mxu0 %v6680
        %v6795 = vpop.f32.mrf.mxu0
        %v6796 = vadd.f32 %v6626, %v6795
        %6797 = vmatmul.f32.gmra.mxu0 %v6683
        %v6798 = vpop.f32.mrf.mxu0
        %v6799 = vadd.f32 %v6626, %v6798
        %6800 = vmatmul.f32.gmra.mxu0 %v6686
        %v6801 = vpop.f32.mrf.mxu0
        %v6802 = vadd.f32 %v6626, %v6801
        %6803 = vmatmul.f32.gmra.mxu0 %v6689
        %v6804 = vpop.f32.mrf.mxu0
        %v6805 = vadd.f32 %v6626, %v6804
        %6806 = vmatmul.f32.gmra.mxu0 %v6692
        %v6807 = vpop.f32.mrf.mxu0
        %v6808 = vadd.f32 %v6626, %v6807
        %6809 = vmatmul.f32.gmra.mxu0 %v6695
        %v6810 = vpop.f32.mrf.mxu0
        %v6811 = vadd.f32 %v6626, %v6810
        %6812 = vmatmul.f32.gmra.mxu0 %v6698
        %v6813 = vpop.f32.mrf.mxu0
        %v6814 = vadd.f32 %v6626, %v6813
        %6815 = vmatmul.f32.gmra.mxu0 %v6701
        %v6816 = vpop.f32.mrf.mxu0
        %v6817 = vadd.f32 %v6626, %v6816
        %6818 = vmatmul.f32.gmra.mxu0 %v6704
        %v6819 = vpop.f32.mrf.mxu0
        %v6820 = vadd.f32 %v6626, %v6819
        %6821 = vmatmul.f32.gmra.mxu0 %v6707
        %v6822 = vpop.f32.mrf.mxu0
        %v6823 = vadd.f32 %v6626, %v6822
        %6824 = vmatmul.f32.gmra.mxu0 %v6710
        %v6825 = vpop.f32.mrf.mxu0
        %v6826 = vadd.f32 %v6626, %v6825
        %6827 = vmatmul.f32.gmra.mxu0 %v6713
        %v6828 = vpop.f32.mrf.mxu0
        %v6829 = vadd.f32 %v6626, %v6828
        %6830 = vmatmul.f32.gmra.mxu0 %v6716
        %v6831 = vpop.f32.mrf.mxu0
        %v6832 = vadd.f32 %v6626, %v6831
        %6833 = vmatmul.f32.gmra.mxu0 %v6719
        %v6834 = vpop.f32.mrf.mxu0
        %v6835 = vadd.f32 %v6626, %v6834
        %6836 = vmatmul.f32.gmra.mxu0 %v6722
        %v6837 = vpop.f32.mrf.mxu0
        %v6838 = vadd.f32 %v6626, %v6837
        %6839 = vdwg.mxu0
        %v6840 = vmax.f32 %v6745, 0.0
        %v6841 = vmax.f32 %v6748, 0.0
        %v6842 = vmax.f32 %v6751, 0.0
        %v6843 = vmax.f32 %v6754, 0.0
        %v6844 = vmax.f32 %v6757, 0.0
        %v6845 = vmax.f32 %v6760, 0.0
        %v6846 = vmax.f32 %v6763, 0.0
        %v6847 = vmax.f32 %v6766, 0.0
        %v6848 = vmax.f32 %v6769, 0.0
        %v6849 = vmax.f32 %v6772, 0.0
        %v6850 = vmax.f32 %v6775, 0.0
        %v6851 = vmax.f32 %v6778, 0.0
        %v6852 = vmax.f32 %v6781, 0.0
        %v6853 = vmax.f32 %v6784, 0.0
        %v6854 = vmax.f32 %v6787, 0.0
        %v6855 = vmax.f32 %v6790, 0.0
        %v6856 = vmax.f32 %v6793, 0.0
        %v6857 = vmax.f32 %v6796, 0.0
        %v6858 = vmax.f32 %v6799, 0.0
        %v6859 = vmax.f32 %v6802, 0.0
        %v6860 = vmax.f32 %v6805, 0.0
        %v6861 = vmax.f32 %v6808, 0.0
        %v6862 = vmax.f32 %v6811, 0.0
        %v6863 = vmax.f32 %v6814, 0.0
        %v6864 = vmax.f32 %v6817, 0.0
        %v6865 = vmax.f32 %v6820, 0.0
        %v6866 = vmax.f32 %v6823, 0.0
        %v6867 = vmax.f32 %v6826, 0.0
        %v6868 = vmax.f32 %v6829, 0.0
        %v6869 = vmax.f32 %v6832, 0.0
        %v6870 = vmax.f32 %v6835, 0.0
        %v6871 = vmax.f32 %v6838, 0.0
        %6904 = vrot.lane.b32.xlu0 %v2282, 8
        %v6905 = vpop.permute.xlu0 %6904
        %6906 = vrot.lane.b32.xlu0 %v2283, 8
        %v6907 = vpop.permute.xlu0 %6906
        %6908 = vrot.lane.b32.xlu0 %v2284, 8
        %v6909 = vpop.permute.xlu0 %6908
        %6910 = vrot.lane.b32.xlu0 %v2285, 8
        %v6911 = vpop.permute.xlu0 %6910
        %6912 = vrot.lane.b32.xlu0 %v2286, 8
        %v6913 = vpop.permute.xlu0 %6912
        %6914 = vrot.lane.b32.xlu0 %v2287, 8
        %v6915 = vpop.permute.xlu0 %6914
        %6916 = vrot.lane.b32.xlu0 %v2288, 8
        %v6917 = vpop.permute.xlu0 %6916
        %6918 = vrot.lane.b32.xlu0 %v2289, 8
        %v6919 = vpop.permute.xlu0 %6918
        %6920 = vrot.lane.b32.xlu0 %v2290, 8
        %v6921 = vpop.permute.xlu0 %6920
        %6922 = vrot.lane.b32.xlu0 %v2291, 8
        %v6923 = vpop.permute.xlu0 %6922
        %6924 = vrot.lane.b32.xlu0 %v2292, 8
        %v6925 = vpop.permute.xlu0 %6924
        %6926 = vrot.lane.b32.xlu0 %v2293, 8
        %v6927 = vpop.permute.xlu0 %6926
        %6928 = vrot.lane.b32.xlu0 %v2294, 8
        %v6929 = vpop.permute.xlu0 %6928
        %6930 = vrot.lane.b32.xlu0 %v2295, 8
        %v6931 = vpop.permute.xlu0 %6930
        %6932 = vrot.lane.b32.xlu0 %v2296, 8
        %v6933 = vpop.permute.xlu0 %6932
        %6934 = vrot.lane.b32.xlu0 %v2297, 8
        %v6935 = vpop.permute.xlu0 %6934
        %6936 = vrot.lane.b32.xlu0 %v2298, 8
        %v6937 = vpop.permute.xlu0 %6936
        %6938 = vrot.lane.b32.xlu0 %v2299, 8
        %v6939 = vpop.permute.xlu0 %6938
        %6940 = vrot.lane.b32.xlu0 %v2300, 8
        %v6941 = vpop.permute.xlu0 %6940
        %6942 = vrot.lane.b32.xlu0 %v2301, 8
        %v6943 = vpop.permute.xlu0 %6942
        %6944 = vrot.lane.b32.xlu0 %v2302, 8
        %v6945 = vpop.permute.xlu0 %6944
        %6946 = vrot.lane.b32.xlu0 %v2303, 8
        %v6947 = vpop.permute.xlu0 %6946
        %6948 = vrot.lane.b32.xlu0 %v2304, 8
        %v6949 = vpop.permute.xlu0 %6948
        %6950 = vrot.lane.b32.xlu0 %v2305, 8
        %v6951 = vpop.permute.xlu0 %6950
        %6952 = vrot.lane.b32.xlu0 %v2306, 8
        %v6953 = vpop.permute.xlu0 %6952
        %6954 = vrot.lane.b32.xlu0 %v2307, 8
        %v6955 = vpop.permute.xlu0 %6954
        %6956 = vrot.lane.b32.xlu0 %v2308, 8
        %v6957 = vpop.permute.xlu0 %6956
        %6958 = vrot.lane.b32.xlu0 %v2309, 8
        %v6959 = vpop.permute.xlu0 %6958
        %6960 = vrot.lane.b32.xlu0 %v2310, 8
        %v6961 = vpop.permute.xlu0 %6960
        %6962 = vrot.lane.b32.xlu0 %v2311, 8
        %v6963 = vpop.permute.xlu0 %6962
        %6964 = vrot.lane.b32.xlu0 %v2312, 8
        %v6965 = vpop.permute.xlu0 %6964
        %6966 = vrot.lane.b32.xlu0 %v2313, 8
        %v6967 = vpop.permute.xlu0 %6966
        %7032 = vrot.lane.b32.xlu0 %v6143, 16
        %v7033 = vpop.permute.xlu0 %7032
        %7034 = vrot.lane.b32.xlu0 %v6144, 16
        %v7035 = vpop.permute.xlu0 %7034
        %7036 = vrot.lane.b32.xlu0 %v6145, 16
        %v7037 = vpop.permute.xlu0 %7036
        %7038 = vrot.lane.b32.xlu0 %v6146, 16
        %v7039 = vpop.permute.xlu0 %7038
        %7040 = vrot.lane.b32.xlu0 %v6147, 16
        %v7041 = vpop.permute.xlu0 %7040
        %7042 = vrot.lane.b32.xlu0 %v6148, 16
        %v7043 = vpop.permute.xlu0 %7042
        %7044 = vrot.lane.b32.xlu0 %v6149, 16
        %v7045 = vpop.permute.xlu0 %7044
        %7046 = vrot.lane.b32.xlu0 %v6150, 16
        %v7047 = vpop.permute.xlu0 %7046
        %7048 = vrot.lane.b32.xlu0 %v6151, 16
        %v7049 = vpop.permute.xlu0 %7048
        %7050 = vrot.lane.b32.xlu0 %v6152, 16
        %v7051 = vpop.permute.xlu0 %7050
        %7052 = vrot.lane.b32.xlu0 %v6153, 16
        %v7053 = vpop.permute.xlu0 %7052
        %7054 = vrot.lane.b32.xlu0 %v6154, 16
        %v7055 = vpop.permute.xlu0 %7054
        %7056 = vrot.lane.b32.xlu0 %v6155, 16
        %v7057 = vpop.permute.xlu0 %7056
        %7058 = vrot.lane.b32.xlu0 %v6156, 16
        %v7059 = vpop.permute.xlu0 %7058
        %7060 = vrot.lane.b32.xlu0 %v6157, 16
        %v7061 = vpop.permute.xlu0 %7060
        %7062 = vrot.lane.b32.xlu0 %v6158, 16
        %v7063 = vpop.permute.xlu0 %7062
        %7064 = vrot.lane.b32.xlu0 %v6159, 16
        %v7065 = vpop.permute.xlu0 %7064
        %7066 = vrot.lane.b32.xlu0 %v6160, 16
        %v7067 = vpop.permute.xlu0 %7066
        %7068 = vrot.lane.b32.xlu0 %v6161, 16
        %v7069 = vpop.permute.xlu0 %7068
        %7070 = vrot.lane.b32.xlu0 %v6162, 16
        %v7071 = vpop.permute.xlu0 %7070
        %7072 = vrot.lane.b32.xlu0 %v6163, 16
        %v7073 = vpop.permute.xlu0 %7072
        %7074 = vrot.lane.b32.xlu0 %v6164, 16
        %v7075 = vpop.permute.xlu0 %7074
        %7076 = vrot.lane.b32.xlu0 %v6165, 16
        %v7077 = vpop.permute.xlu0 %7076
        %7078 = vrot.lane.b32.xlu0 %v6166, 16
        %v7079 = vpop.permute.xlu0 %7078
        %7080 = vrot.lane.b32.xlu0 %v6167, 16
        %v7081 = vpop.permute.xlu0 %7080
        %7082 = vrot.lane.b32.xlu0 %v6168, 16
        %v7083 = vpop.permute.xlu0 %7082
        %7084 = vrot.lane.b32.xlu0 %v6169, 16
        %v7085 = vpop.permute.xlu0 %7084
        %7086 = vrot.lane.b32.xlu0 %v6170, 16
        %v7087 = vpop.permute.xlu0 %7086
        %7088 = vrot.lane.b32.xlu0 %v6171, 16
        %v7089 = vpop.permute.xlu0 %7088
        %7090 = vrot.lane.b32.xlu0 %v6172, 16
        %v7091 = vpop.permute.xlu0 %7090
        %7092 = vrot.lane.b32.xlu0 %v6173, 16
        %v7093 = vpop.permute.xlu0 %7092
        %7094 = vrot.lane.b32.xlu0 %v6174, 16
        %v7095 = vpop.permute.xlu0 %7094
        %7160 = vrot.lane.b32.xlu0 %v6840, 24
        %v7161 = vpop.permute.xlu0 %7160
        %7162 = vrot.lane.b32.xlu0 %v6841, 24
        %v7163 = vpop.permute.xlu0 %7162
        %7164 = vrot.lane.b32.xlu0 %v6842, 24
        %v7165 = vpop.permute.xlu0 %7164
        %7166 = vrot.lane.b32.xlu0 %v6843, 24
        %v7167 = vpop.permute.xlu0 %7166
        %7168 = vrot.lane.b32.xlu0 %v6844, 24
        %v7169 = vpop.permute.xlu0 %7168
        %7170 = vrot.lane.b32.xlu0 %v6845, 24
        %v7171 = vpop.permute.xlu0 %7170
        %7172 = vrot.lane.b32.xlu0 %v6846, 24
        %v7173 = vpop.permute.xlu0 %7172
        %7174 = vrot.lane.b32.xlu0 %v6847, 24
        %v7175 = vpop.permute.xlu0 %7174
        %7176 = vrot.lane.b32.xlu0 %v6848, 24
        %v7177 = vpop.permute.xlu0 %7176
        %7178 = vrot.lane.b32.xlu0 %v6849, 24
        %v7179 = vpop.permute.xlu0 %7178
        %7180 = vrot.lane.b32.xlu0 %v6850, 24
        %v7181 = vpop.permute.xlu0 %7180
        %7182 = vrot.lane.b32.xlu0 %v6851, 24
        %v7183 = vpop.permute.xlu0 %7182
        %7184 = vrot.lane.b32.xlu0 %v6852, 24
        %v7185 = vpop.permute.xlu0 %7184
        %7186 = vrot.lane.b32.xlu0 %v6853, 24
        %v7187 = vpop.permute.xlu0 %7186
        %7188 = vrot.lane.b32.xlu0 %v6854, 24
        %v7189 = vpop.permute.xlu0 %7188
        %7190 = vrot.lane.b32.xlu0 %v6855, 24
        %v7191 = vpop.permute.xlu0 %7190
        %7192 = vrot.lane.b32.xlu0 %v6856, 24
        %v7193 = vpop.permute.xlu0 %7192
        %7194 = vrot.lane.b32.xlu0 %v6857, 24
        %v7195 = vpop.permute.xlu0 %7194
        %7196 = vrot.lane.b32.xlu0 %v6858, 24
        %v7197 = vpop.permute.xlu0 %7196
        %7198 = vrot.lane.b32.xlu0 %v6859, 24
        %v7199 = vpop.permute.xlu0 %7198
        %7200 = vrot.lane.b32.xlu0 %v6860, 24
        %v7201 = vpop.permute.xlu0 %7200
        %7202 = vrot.lane.b32.xlu0 %v6861, 24
        %v7203 = vpop.permute.xlu0 %7202
        %7204 = vrot.lane.b32.xlu0 %v6862, 24
        %v7205 = vpop.permute.xlu0 %7204
        %7206 = vrot.lane.b32.xlu0 %v6863, 24
        %v7207 = vpop.permute.xlu0 %7206
        %7208 = vrot.lane.b32.xlu0 %v6864, 24
        %v7209 = vpop.permute.xlu0 %7208
        %7210 = vrot.lane.b32.xlu0 %v6865, 24
        %v7211 = vpop.permute.xlu0 %7210
        %7212 = vrot.lane.b32.xlu0 %v6866, 24
        %v7213 = vpop.permute.xlu0 %7212
        %7214 = vrot.lane.b32.xlu0 %v6867, 24
        %v7215 = vpop.permute.xlu0 %7214
        %7216 = vrot.lane.b32.xlu0 %v6868, 24
        %v7217 = vpop.permute.xlu0 %7216
        %7218 = vrot.lane.b32.xlu0 %v6869, 24
        %v7219 = vpop.permute.xlu0 %7218
        %7220 = vrot.lane.b32.xlu0 %v6870, 24
        %v7221 = vpop.permute.xlu0 %7220
        %7222 = vrot.lane.b32.xlu0 %v6871, 24
        %v7223 = vpop.permute.xlu0 %7222
        %v7256 = vsel %vm1835, %v582, %v6905
        %v7257 = vsel %vm1835, %v583, %v6907
        %v7258 = vsel %vm1835, %v584, %v6909
        %v7259 = vsel %vm1835, %v585, %v6911
        %v7260 = vsel %vm1835, %v586, %v6913
        %v7261 = vsel %vm1835, %v587, %v6915
        %v7262 = vsel %vm1835, %v588, %v6917
        %v7263 = vsel %vm1835, %v589, %v6919
        %v7264 = vsel %vm1835, %v590, %v6921
        %v7265 = vsel %vm1835, %v591, %v6923
        %v7266 = vsel %vm1835, %v592, %v6925
        %v7267 = vsel %vm1835, %v593, %v6927
        %v7268 = vsel %vm1835, %v594, %v6929
        %v7269 = vsel %vm1835, %v595, %v6931
        %v7270 = vsel %vm1835, %v596, %v6933
        %v7271 = vsel %vm1835, %v597, %v6935
        %v7272 = vsel %vm1835, %v598, %v6937
        %v7273 = vsel %vm1835, %v599, %v6939
        %v7274 = vsel %vm1835, %v600, %v6941
        %v7275 = vsel %vm1835, %v601, %v6943
        %v7276 = vsel %vm1835, %v602, %v6945
        %v7277 = vsel %vm1835, %v603, %v6947
        %v7278 = vsel %vm1835, %v604, %v6949
        %v7279 = vsel %vm1835, %v605, %v6951
        %v7280 = vsel %vm1835, %v606, %v6953
        %v7281 = vsel %vm1835, %v607, %v6955
        %v7282 = vsel %vm1835, %v608, %v6957
        %v7283 = vsel %vm1835, %v609, %v6959
        %v7284 = vsel %vm1835, %v610, %v6961
        %v7285 = vsel %vm1835, %v611, %v6963
        %v7286 = vsel %vm1835, %v612, %v6965
        %v7287 = vsel %vm1835, %v613, %v6967
        %v7288 = vsel %vm1901, %v7256, %v7033
        %v7289 = vsel %vm1901, %v7257, %v7035
        %v7290 = vsel %vm1901, %v7258, %v7037
        %v7291 = vsel %vm1901, %v7259, %v7039
        %v7292 = vsel %vm1901, %v7260, %v7041
        %v7293 = vsel %vm1901, %v7261, %v7043
        %v7294 = vsel %vm1901, %v7262, %v7045
        %v7295 = vsel %vm1901, %v7263, %v7047
        %v7296 = vsel %vm1901, %v7264, %v7049
        %v7297 = vsel %vm1901, %v7265, %v7051
        %v7298 = vsel %vm1901, %v7266, %v7053
        %v7299 = vsel %vm1901, %v7267, %v7055
        %v7300 = vsel %vm1901, %v7268, %v7057
        %v7301 = vsel %vm1901, %v7269, %v7059
        %v7302 = vsel %vm1901, %v7270, %v7061
        %v7303 = vsel %vm1901, %v7271, %v7063
        %v7304 = vsel %vm1901, %v7272, %v7065
        %v7305 = vsel %vm1901, %v7273, %v7067
        %v7306 = vsel %vm1901, %v7274, %v7069
        %v7307 = vsel %vm1901, %v7275, %v7071
        %v7308 = vsel %vm1901, %v7276, %v7073
        %v7309 = vsel %vm1901, %v7277, %v7075
        %v7310 = vsel %vm1901, %v7278, %v7077
        %v7311 = vsel %vm1901, %v7279, %v7079
        %v7312 = vsel %vm1901, %v7280, %v7081
        %v7313 = vsel %vm1901, %v7281, %v7083
        %v7314 = vsel %vm1901, %v7282, %v7085
        %v7315 = vsel %vm1901, %v7283, %v7087
        %v7316 = vsel %vm1901, %v7284, %v7089
        %v7317 = vsel %vm1901, %v7285, %v7091
        %v7318 = vsel %vm1901, %v7286, %v7093
        %v7319 = vsel %vm1901, %v7287, %v7095
        %v7320 = vsel %vm1967, %v7288, %v7161
        %v7321 = vsel %vm1967, %v7289, %v7163
        %v7322 = vsel %vm1967, %v7290, %v7165
        %v7323 = vsel %vm1967, %v7291, %v7167
        %v7324 = vsel %vm1967, %v7292, %v7169
        %v7325 = vsel %vm1967, %v7293, %v7171
        %v7326 = vsel %vm1967, %v7294, %v7173
        %v7327 = vsel %vm1967, %v7295, %v7175
        %v7328 = vsel %vm1967, %v7296, %v7177
        %v7329 = vsel %vm1967, %v7297, %v7179
        %v7330 = vsel %vm1967, %v7298, %v7181
        %v7331 = vsel %vm1967, %v7299, %v7183
        %v7332 = vsel %vm1967, %v7300, %v7185
        %v7333 = vsel %vm1967, %v7301, %v7187
        %v7334 = vsel %vm1967, %v7302, %v7189
        %v7335 = vsel %vm1967, %v7303, %v7191
        %v7336 = vsel %vm1967, %v7304, %v7193
        %v7337 = vsel %vm1967, %v7305, %v7195
        %v7338 = vsel %vm1967, %v7306, %v7197
        %v7339 = vsel %vm1967, %v7307, %v7199
        %v7340 = vsel %vm1967, %v7308, %v7201
        %v7341 = vsel %vm1967, %v7309, %v7203
        %v7342 = vsel %vm1967, %v7310, %v7205
        %v7343 = vsel %vm1967, %v7311, %v7207
        %v7344 = vsel %vm1967, %v7312, %v7209
        %v7345 = vsel %vm1967, %v7313, %v7211
        %v7346 = vsel %vm1967, %v7314, %v7213
        %v7347 = vsel %vm1967, %v7315, %v7215
        %v7348 = vsel %vm1967, %v7316, %v7217
        %v7349 = vsel %vm1967, %v7317, %v7219
        %v7350 = vsel %vm1967, %v7318, %v7221
        %v7351 = vsel %vm1967, %v7319, %v7223
        %7352 = vst.msk [vmem:[%s325] sm:$0xff] %vm2033, %v7320
        %7353 = vst.msk [vmem:[%s325 + $0x8] sm:$0xff] %vm2033, %v7321
        %7354 = vst.msk [vmem:[%s325 + $0x10] sm:$0xff] %vm2033, %v7322
        %7355 = vst.msk [vmem:[%s325 + $0x18] sm:$0xff] %vm2033, %v7323
        %7356 = vst.msk [vmem:[%s325 + $0x20] sm:$0xff] %vm2033, %v7324
        %7357 = vst.msk [vmem:[%s325 + $0x28] sm:$0xff] %vm2033, %v7325
        %7358 = vst.msk [vmem:[%s325 + $0x30] sm:$0xff] %vm2033, %v7326
        %7359 = vst.msk [vmem:[%s325 + $0x38] sm:$0xff] %vm2033, %v7327
        %7360 = vst.msk [vmem:[%s325 + $0x40] sm:$0xff] %vm2033, %v7328
        %7361 = vst.msk [vmem:[%s325 + $0x48] sm:$0xff] %vm2033, %v7329
        %7362 = vst.msk [vmem:[%s325 + $0x50] sm:$0xff] %vm2033, %v7330
        %7363 = vst.msk [vmem:[%s325 + $0x58] sm:$0xff] %vm2033, %v7331
        %7364 = vst.msk [vmem:[%s325 + $0x60] sm:$0xff] %vm2033, %v7332
        %7365 = vst.msk [vmem:[%s325 + $0x68] sm:$0xff] %vm2033, %v7333
        %7366 = vst.msk [vmem:[%s325 + $0x70] sm:$0xff] %vm2033, %v7334
        %7367 = vst.msk [vmem:[%s325 + $0x78] sm:$0xff] %vm2033, %v7335
        %7368 = vst.msk [vmem:[%s325 + $0x80] sm:$0xff] %vm2033, %v7336
        %7369 = vst.msk [vmem:[%s325 + $0x88] sm:$0xff] %vm2033, %v7337
        %7370 = vst.msk [vmem:[%s325 + $0x90] sm:$0xff] %vm2033, %v7338
        %7371 = vst.msk [vmem:[%s325 + $0x98] sm:$0xff] %vm2033, %v7339
        %7372 = vst.msk [vmem:[%s325 + $0xa0] sm:$0xff] %vm2033, %v7340
        %7373 = vst.msk [vmem:[%s325 + $0xa8] sm:$0xff] %vm2033, %v7341
        %7374 = vst.msk [vmem:[%s325 + $0xb0] sm:$0xff] %vm2033, %v7342
        %7375 = vst.msk [vmem:[%s325 + $0xb8] sm:$0xff] %vm2033, %v7343
        %7376 = vst.msk [vmem:[%s325 + $0xc0] sm:$0xff] %vm2033, %v7344
        %7377 = vst.msk [vmem:[%s325 + $0xc8] sm:$0xff] %vm2033, %v7345
        %7378 = vst.msk [vmem:[%s325 + $0xd0] sm:$0xff] %vm2033, %v7346
        %7379 = vst.msk [vmem:[%s325 + $0xd8] sm:$0xff] %vm2033, %v7347
        %7380 = vst.msk [vmem:[%s325 + $0xe0] sm:$0xff] %vm2033, %v7348
        %7381 = vst.msk [vmem:[%s325 + $0xe8] sm:$0xff] %vm2033, %v7349
        %7382 = vst.msk [vmem:[%s325 + $0xf0] sm:$0xff] %vm2033, %v7350
        %7383 = vst.msk [vmem:[%s325 + $0xf8] sm:$0xff] %vm2033, %v7351
        %s7384 = sand.u32 %s225, 1
        %s7385 = scalar_lea.sflag [#allocation3], %s7384
        %s7386 = sand.u32 %s225, 1
        %s7387 = smul.addr %s7386, 256
        %s7388 = scalar_lea.vmem [#allocation2], %s7387
        // Predicated region
        $region57: #{inception_forward.1} parent=55 // pred_check
          %p7389 = pneg %p235
        $region58: #{inception_forward.1} parent=55 // pred_check_branch
          %7391 = sbr.rel (%p7389) target = $region60
        $region59: #{inception_forward.1} parent=55 // pred_region
          %7393 = vsyncadd %s7385, 0
          %s7394 = smul.addr %s23, 32
          %s7395 = smul.addr %s7394, 8
          %s7396 = scalar_lea.hbm %s9, %s7395
          %s7397 = sshll.u32 %s7388, 4
          %s7398 = int_to_ptr.vmem [resolvable:$true] %s7397
          %s7399 = sshll.u32 %s7396, 4
          %s7400 = int_to_ptr.hbm [resolvable:$true] %s7399
          %7405 = dma.vmem_to_hbm [thread:$0]  %s7398, 4096, %s7400, %s7385, 128, 128, 8
        $region60: #{inception_forward.1} parent=55 // pred_fallthru
          _
      $region56: #{inception_forward.1} parent=5 // pred_fallthru
        _
      %p7406 = scmp.le.s32.totalorder 2, %s18
      // Predicated region
      $region61: #{inception_forward.1} parent=5 // pred_check
        %p7407 = pneg %p7406
      $region62: #{inception_forward.1} parent=5 // pred_check_branch
        %7409 = sbr.rel (%p7407) target = $region64
      $region63: #{inception_forward.1} parent=5 // pred_region
        %s7410 = ssub.s32 %s18, 2
        // Predicated region
        $region65: #{inception_forward.1} parent=63 // pred_check
          %p7411 = pneg %p241
        $region66: #{inception_forward.1} parent=63 // pred_check_branch
          %7413 = sbr.rel (%p7411) target = $region68
        $region67: #{inception_forward.1} parent=63 // pred_region
          %s7414 = sand.u32 %s226, 1
          %s7415 = scalar_lea.sflag [#allocation3], %s7414
          %s7416 = sand.u32 %s226, 1
          %s7417 = smul.addr %s7416, 256
          %s7418 = scalar_lea.vmem [#allocation2], %s7417
          %7420 = dma.done %s7415, 4096
        $region68: #{inception_forward.1} parent=63 // pred_fallthru
          _
      $region64: #{inception_forward.1} parent=5 // pred_fallthru
        _
    $region6: #{inception_forward.1} parent=1 // loop_footer
      %s22 = sadd.s32 1, %s18
    $region7: #{inception_forward.1} parent=1 // loop_footer_branch
      %17 = sbr.rel target = $region3
    $region8: #{inception_forward.1} parent=1 // loop_exit
      _
    %7421 = vsyncpa [#allocation3], 1
    %s7422 = scalar_lea.sflag [#allocation3], 1
    %7423 = vsyncpa %s7422, 1

</llo_original>
